<compile_context>
chip_gen: v6e
topology: v6e:2x2x1
jax: 0.10.0
libtpu: 0.0.40
codegen_flags: <defaults>
</compile_context>

<pallas_src>
import math

import jax
import jax.numpy as jnp
from jax.experimental import pallas as pl
from jax.experimental.pallas import tpu as pltpu

NZ = 100
EPS = 1e-5


def _vmem_limit_bytes():
    try:
        cap = pltpu.get_tpu_info().vmem_capacity_bytes
    except Exception:
        cap = 128 * 1024 * 1024
    return int(min(64 * 1024 * 1024, (cap * 6) // 10))


VMEM_LIMIT = _vmem_limit_bytes()


# ---------------------------------------------------------------------------
# Pallas kernels (the compute hot path)
# ---------------------------------------------------------------------------
def _mm_stats_kernel(a_ref, w_ref, y_ref, s1_ref, s2_ref):
    """One (phase, row-tile) step: bf16 matmul with f32 accumulation, writes
    the pre-BN tile plus per-tile column sum / sum-of-squares (f32)."""
    acc = jnp.dot(a_ref[0], w_ref[0], preferred_element_type=jnp.float32)
    y_ref[...] = acc[None]
    ssum = jnp.sum(acc, axis=0, keepdims=True)          # (1, C)
    ssq = jnp.sum(acc * acc, axis=0, keepdims=True)     # (1, C)
    s1_ref[...] = ssum[None, None]
    s2_ref[...] = ssq[None, None]


def _bn_relu_kernel(y_ref, scale_ref, shift_ref, o_ref):
    """Tiled normalize + ReLU epilogue; writes bf16 activations."""
    y = y_ref[...]                                       # (1, TR, C) f32
    out = jnp.maximum(y * scale_ref[...] + shift_ref[...], 0.0)
    o_ref[...] = out.astype(o_ref.dtype)


def _mm_tanh_kernel(a_ref, w_ref, o_ref):
    """Final layer: bf16 matmul (Cout padded to 128 lanes) + tanh."""
    acc = jnp.dot(a_ref[0], w_ref[0], preferred_element_type=jnp.float32)
    o_ref[...] = jnp.tanh(acc)[None]


# ---------------------------------------------------------------------------
# pallas_call wrappers
# ---------------------------------------------------------------------------
def _row_tile(r):
    if r <= 512:
        return r
    g = math.gcd(r, 512)
    return g if g >= 16 else r


def _phase_matmul_bn_relu(a, wm, gamma, beta):
    """a: (P, R, K) bf16, wm: (P, K, C) bf16.  Fused phase-batched matmul with
    BatchNorm (train-mode stats over all P*R rows) + ReLU.  Returns (P, R, C) bf16."""
    p, r, k = a.shape
    c = wm.shape[2]
    tr = _row_tile(r)
    nt = r // tr

    y, ssum, ssq = pl.pallas_call(
        _mm_stats_kernel,
        out_shape=(
            jax.ShapeDtypeStruct((p, r, c), jnp.float32),
            jax.ShapeDtypeStruct((p, nt, 1, c), jnp.float32),
            jax.ShapeDtypeStruct((p, nt, 1, c), jnp.float32),
        ),
        grid=(p, nt),
        in_specs=[
            pl.BlockSpec((1, tr, k), lambda i, j: (i, j, 0)),
            pl.BlockSpec((1, k, c), lambda i, j: (i, 0, 0)),
        ],
        out_specs=(
            pl.BlockSpec((1, tr, c), lambda i, j: (i, j, 0)),
            pl.BlockSpec((1, 1, 1, c), lambda i, j: (i, j, 0, 0)),
            pl.BlockSpec((1, 1, 1, c), lambda i, j: (i, j, 0, 0)),
        ),
        compiler_params=pltpu.CompilerParams(
            dimension_semantics=("parallel", "parallel"),
            vmem_limit_bytes=VMEM_LIMIT,
        ),
    )(a, wm)

    # Tiny reduction over per-tile partial stats (f32), then fold BN affine.
    cnt = float(p * r)
    mean = jnp.sum(ssum, axis=(0, 1, 2)) / cnt
    var = jnp.maximum(jnp.sum(ssq, axis=(0, 1, 2)) / cnt - mean * mean, 0.0)
    inv = jax.lax.rsqrt(var + EPS)
    scale = (gamma * inv).reshape(1, 1, c).astype(jnp.float32)
    shift = (beta - mean * gamma * inv).reshape(1, 1, c).astype(jnp.float32)

    return pl.pallas_call(
        _bn_relu_kernel,
        out_shape=jax.ShapeDtypeStruct((p, r, c), jnp.bfloat16),
        grid=(p, nt),
        in_specs=[
            pl.BlockSpec((1, tr, c), lambda i, j: (i, j, 0)),
            pl.BlockSpec((1, 1, c), lambda i, j: (0, 0, 0)),
            pl.BlockSpec((1, 1, c), lambda i, j: (0, 0, 0)),
        ],
        out_specs=pl.BlockSpec((1, tr, c), lambda i, j: (i, j, 0)),
        compiler_params=pltpu.CompilerParams(
            dimension_semantics=("parallel", "parallel"),
            vmem_limit_bytes=VMEM_LIMIT,
        ),
    )(y, scale, shift)


def _phase_matmul_tanh(a, wm):
    """a: (P, R, K) bf16, wm: (P, K, C) bf16 (C lane-padded).  Returns (P, R, C) f32."""
    p, r, k = a.shape
    c = wm.shape[2]
    tr = _row_tile(r)
    nt = r // tr
    return pl.pallas_call(
        _mm_tanh_kernel,
        out_shape=jax.ShapeDtypeStruct((p, r, c), jnp.float32),
        grid=(p, nt),
        in_specs=[
            pl.BlockSpec((1, tr, k), lambda i, j: (i, j, 0)),
            pl.BlockSpec((1, k, c), lambda i, j: (i, 0, 0)),
        ],
        out_specs=pl.BlockSpec((1, tr, c), lambda i, j: (i, j, 0)),
        compiler_params=pltpu.CompilerParams(
            dimension_semantics=("parallel", "parallel"),
            vmem_limit_bytes=VMEM_LIMIT,
        ),
    )(a, wm)


# ---------------------------------------------------------------------------
# Glue: sub-pixel decomposition of ConvTranspose2d(k=4, stride=2, pad=1)
# ---------------------------------------------------------------------------
# out[n, 2i+r, 2j+c, :] = sum_{dh,dw in {0,1}} x_pad[n, i+r+dh, j+c+dw, :]
#                         @ W[:, :, kh=(3-r)-2*dh, kw=(3-c)-2*dw]
def _subpixel_im2col(x):
    """x: (N, H, W, Cin) NHWC -> A: (4, N*H*W, 4*Cin); phase p = 2*r + c,
    column index = (dh, dw, cin)."""
    n, h, w, cin = x.shape
    xp = jnp.pad(x, ((0, 0), (1, 1), (1, 1), (0, 0)))
    phases = []
    for r in range(2):
        for c in range(2):
            taps = []
            for dh in range(2):
                for dw in range(2):
                    taps.append(xp[:, r + dh:r + dh + h, c + dw:c + dw + w, :])
            a = jnp.stack(taps, axis=3)                  # (N, H, W, 4, Cin)
            phases.append(a.reshape(n * h * w, 4 * cin))
    return jnp.stack(phases, axis=0).astype(jnp.bfloat16)


def _subpixel_weight(w):
    """PyTorch ConvTranspose2d weight (Cin, Cout, 4, 4) -> (4, 4*Cin, Cout),
    phase p = 2*r + c, row index = (dh, dw, cin)."""
    cin, cout = w.shape[0], w.shape[1]
    mats = []
    for r in range(2):
        for c in range(2):
            sub = w[:, :, 3 - r::-2, 3 - c::-2]          # (Cin, Cout, dh, dw)
            mats.append(sub.transpose(2, 3, 0, 1).reshape(4 * cin, cout))
    return jnp.stack(mats, axis=0).astype(jnp.bfloat16)


def _interleave_phases(yp, n, h, w, c):
    """yp: (4, N*H*W, C) with phase p = 2*r + col -> (N, 2H, 2W, C)."""
    y = yp.reshape(2, 2, n, h, w, c)
    y = y.transpose(2, 3, 0, 4, 1, 5)                    # (N, H, 2, W, 2, C)
    return y.reshape(n, 2 * h, 2 * w, c)


def _deconv_bn_relu_block(x_nhwc, w_pt, gamma, beta):
    n, h, w, _ = x_nhwc.shape
    cout = w_pt.shape[1]
    a = _subpixel_im2col(x_nhwc)                         # (4, N*H*W, 4*Cin) bf16
    wm = _subpixel_weight(w_pt)                          # (4, 4*Cin, Cout)  bf16
    y = _phase_matmul_bn_relu(a, wm, gamma, beta)        # (4, N*H*W, Cout)  bf16
    return _interleave_phases(y, n, h, w, cout)          # (N, 2H, 2W, Cout) bf16


# ---------------------------------------------------------------------------
# Generator = the nn.Sequential of 4 transposed-conv blocks
# ---------------------------------------------------------------------------
def init_generator_params(key, nz=NZ):
    ks = jax.random.split(key, 4)
    std = 0.02  # DCGAN-style init
    return {
        "w1": jax.random.normal(ks[0], (nz, 512, 4, 4), jnp.float32) * std,
        "g1": jnp.ones((512,), jnp.float32), "b1": jnp.zeros((512,), jnp.float32),
        "w2": jax.random.normal(ks[1], (512, 256, 4, 4), jnp.float32) * std,
        "g2": jnp.ones((256,), jnp.float32), "b2": jnp.zeros((256,), jnp.float32),
        "w3": jax.random.normal(ks[2], (256, 128, 4, 4), jnp.float32) * std,
        "g3": jnp.ones((128,), jnp.float32), "b3": jnp.zeros((128,), jnp.float32),
        "w4": jax.random.normal(ks[3], (128, 3, 4, 4), jnp.float32) * std,
    }


def generator_forward(params, x):
    """x: (N, nz, 1, 1) NCHW  ->  (N, 3, 32, 32) NCHW."""
    n = x.shape[0]

    # ---- Layer 1: ConvTranspose2d(nz, 512, 4, 1, 0) on a 1x1 input ----------
    # out[n, oh, ow, co] = sum_ci x[n, ci] * w1[ci, co, oh, ow]
    # => 16 per-output-pixel matmuls, phase-stacked like the stride-2 layers.
    x2 = x.reshape(n, NZ).astype(jnp.bfloat16)
    a1 = jnp.broadcast_to(x2[None], (16, n, NZ))
    w1 = params["w1"].transpose(2, 3, 0, 1).reshape(16, NZ, 512).astype(jnp.bfloat16)
    y1 = _phase_matmul_bn_relu(a1, w1, params["g1"], params["b1"])  # (16, N, 512)
    h = y1.reshape(4, 4, n, 512).transpose(2, 0, 1, 3)              # (N, 4, 4, 512)

    # ---- Layers 2-3: stride-2 deconv + BN + ReLU (sub-pixel matmuls) --------
    h = _deconv_bn_relu_block(h, params["w2"], params["g2"], params["b2"])  # (N, 8, 8, 256)
    h = _deconv_bn_relu_block(h, params["w3"], params["g3"], params["b3"])  # (N,16,16,128)

    # ---- Layer 4: stride-2 deconv to 3 channels (lane-padded to 128) + tanh -
    a4 = _subpixel_im2col(h)                                         # (4, N*256, 512)
    w4 = _subpixel_weight(params["w4"]).astype(jnp.float32)          # (4, 512, 3)
    w4 = jnp.pad(w4, ((0, 0), (0, 0), (0, 125))).astype(jnp.bfloat16)  # (4, 512, 128)
    y4 = _phase_matmul_tanh(a4, w4)                                  # (4, N*256, 128) f32
    out_nhwc = _interleave_phases(y4[..., :3], n, 16, 16, 3)         # (N, 32, 32, 3)
    return out_nhwc.transpose(0, 3, 1, 2)                            # (N, 3, 32, 32)


if __name__ == "__main__":
    key = jax.random.PRNGKey(0)
    pkey, xkey = jax.random.split(key)
    params = init_generator_params(pkey)
    x = jax.random.normal(xkey, (2, NZ, 1, 1), jnp.float32)

    out = jax.jit(generator_forward)(params, x)
    out = jax.block_until_ready(out)

    assert out.shape == (2, 3, 32, 32), out.shape
    assert bool(jnp.all(jnp.isfinite(out)))
    assert bool(jnp.all(jnp.abs(out) <= 1.0))  # tanh output range
    print("KERNEL_OK")
</pallas_src>

<mosaic_0001>
module attributes {stable_mosaic.version = 11 : i64} {
  func.func @_mm_stats_kernel(%arg0: i32, %arg1: i32, %arg2: memref<1x2x100xbf16, #tpu.memory_space<vmem>>, %arg3: memref<1x100x512xbf16, #tpu.memory_space<vmem>>, %arg4: memref<1x2x512xf32, #tpu.memory_space<vmem>>, %arg5: memref<1x1x1x512xf32, #tpu.memory_space<vmem>>, %arg6: memref<1x1x1x512xf32, #tpu.memory_space<vmem>>) attributes {dimension_semantics = [#tpu.dimension_semantics<parallel>, #tpu.dimension_semantics<parallel>], iteration_bounds = array<i64: 16, 1>, scalar_prefetch = 0 : i64, scratch_operands = 0 : i64, tpu.core_type = #tpu.core_type<tc>, window_params = [{transform_indices = @transform_0, window_bounds = array<i64: 1, 2, 100>}, {transform_indices = @transform_1, window_bounds = array<i64: 1, 100, 512>}, {transform_indices = @transform_2, window_bounds = array<i64: 1, 2, 512>}, {transform_indices = @transform_3, window_bounds = array<i64: 1, 1, 1, 512>}, {transform_indices = @transform_4, window_bounds = array<i64: 1, 1, 1, 512>}]} {
    %c0 = arith.constant 0 : index
    %c0_0 = arith.constant 0 : index
    %c0_1 = arith.constant 0 : index
    %0 = vector.load %arg2[%c0, %c0_0, %c0_1] : memref<1x2x100xbf16, #tpu.memory_space<vmem>>, vector<1x2x100xbf16>
    %1 = vector.shape_cast %0 : vector<1x2x100xbf16> to vector<2x100xbf16>
    %c0_2 = arith.constant 0 : index
    %c0_3 = arith.constant 0 : index
    %c0_4 = arith.constant 0 : index
    %2 = vector.load %arg3[%c0_2, %c0_3, %c0_4] : memref<1x100x512xbf16, #tpu.memory_space<vmem>>, vector<1x100x512xbf16>
    %3 = vector.shape_cast %2 : vector<1x100x512xbf16> to vector<100x512xbf16>
    %cst = arith.constant dense<0.000000e+00> : vector<2x512xf32>
    %4 = tpu.matmul %1, %3, %cst {dimension_numbers = #tpu.dot_dimension_numbers<[1], [0], [0], [1], [0, 0, 1, 1], [], []>} : vector<2x100xbf16>, vector<100x512xbf16>, vector<2x512xf32> -> vector<2x512xf32>
    %5 = vector.shape_cast %4 : vector<2x512xf32> to vector<1x2x512xf32>
    %c0_5 = arith.constant 0 : index
    %c0_6 = arith.constant 0 : index
    %c0_7 = arith.constant 0 : index
    %6 = vector.load %arg4[%c0_5, %c0_6, %c0_7] : memref<1x2x512xf32, #tpu.memory_space<vmem>>, vector<1x2x512xf32>
    tpu.vector_store %arg4[%c0_5, %c0_6, %c0_7], %5 {strides = array<i32>} : memref<1x2x512xf32, #tpu.memory_space<vmem>>, vector<1x2x512xf32>,
    %cst_8 = arith.constant dense<0.000000e+00> : vector<512xf32>
    %7 = vector.multi_reduction <add>, %4, %cst_8 [0] : vector<2x512xf32> to vector<512xf32>
    %8 = vector.shape_cast %7 : vector<512xf32> to vector<1x512xf32>
    %9 = arith.mulf %4, %4 : vector<2x512xf32>
    %cst_9 = arith.constant dense<0.000000e+00> : vector<512xf32>
    %10 = vector.multi_reduction <add>, %9, %cst_9 [0] : vector<2x512xf32> to vector<512xf32>
    %11 = vector.shape_cast %10 : vector<512xf32> to vector<1x512xf32>
    %12 = vector.shape_cast %8 : vector<1x512xf32> to vector<1x1x1x512xf32>
    %c0_10 = arith.constant 0 : index
    %c0_11 = arith.constant 0 : index
    %c0_12 = arith.constant 0 : index
    %c0_13 = arith.constant 0 : index
    %13 = vector.load %arg5[%c0_10, %c0_11, %c0_12, %c0_13] : memref<1x1x1x512xf32, #tpu.memory_space<vmem>>, vector<1x1x1x512xf32>
    tpu.vector_store %arg5[%c0_10, %c0_11, %c0_12, %c0_13], %12 {strides = array<i32>} : memref<1x1x1x512xf32, #tpu.memory_space<vmem>>, vector<1x1x1x512xf32>,
    %14 = vector.shape_cast %11 : vector<1x512xf32> to vector<1x1x1x512xf32>
    %c0_14 = arith.constant 0 : index
    %c0_15 = arith.constant 0 : index
    %c0_16 = arith.constant 0 : index
    %c0_17 = arith.constant 0 : index
    %15 = vector.load %arg6[%c0_14, %c0_15, %c0_16, %c0_17] : memref<1x1x1x512xf32, #tpu.memory_space<vmem>>, vector<1x1x1x512xf32>
    tpu.vector_store %arg6[%c0_14, %c0_15, %c0_16, %c0_17], %14 {strides = array<i32>} : memref<1x1x1x512xf32, #tpu.memory_space<vmem>>, vector<1x1x1x512xf32>,
    return
  }
  func.func @transform_0(%arg0: i32, %arg1: i32) -> (i32, i32, i32) {
    %c0_i32 = arith.constant 0 : i32
    %c0_i32_0 = arith.constant 0 : i32
    return %arg0, %arg1, %c0_i32 : i32, i32, i32
  }
  func.func @transform_1(%arg0: i32, %arg1: i32) -> (i32, i32, i32) {
    %c0_i32 = arith.constant 0 : i32
    %c0_i32_0 = arith.constant 0 : i32
    %c0_i32_1 = arith.constant 0 : i32
    return %arg0, %c0_i32, %c0_i32_0 : i32, i32, i32
  }
  func.func @transform_2(%arg0: i32, %arg1: i32) -> (i32, i32, i32) {
    %c0_i32 = arith.constant 0 : i32
    %c0_i32_0 = arith.constant 0 : i32
    return %arg0, %arg1, %c0_i32 : i32, i32, i32
  }
  func.func @transform_3(%arg0: i32, %arg1: i32) -> (i32, i32, i32, i32) {
    %c0_i32 = arith.constant 0 : i32
    %c0_i32_0 = arith.constant 0 : i32
    %c0_i32_1 = arith.constant 0 : i32
    return %arg0, %arg1, %c0_i32, %c0_i32_0 : i32, i32, i32, i32
  }
  func.func @transform_4(%arg0: i32, %arg1: i32) -> (i32, i32, i32, i32) {
    %c0_i32 = arith.constant 0 : i32
    %c0_i32_0 = arith.constant 0 : i32
    %c0_i32_1 = arith.constant 0 : i32
    return %arg0, %arg1, %c0_i32, %c0_i32_0 : i32, i32, i32, i32
  }
}

module attributes {stable_mosaic.version = 11 : i64} {
  func.func @_bn_relu_kernel(%arg0: i32, %arg1: i32, %arg2: memref<1x2x512xf32, #tpu.memory_space<vmem>>, %arg3: memref<1x1x512xf32, #tpu.memory_space<vmem>>, %arg4: memref<1x1x512xf32, #tpu.memory_space<vmem>>, %arg5: memref<1x2x512xbf16, #tpu.memory_space<vmem>>) attributes {dimension_semantics = [#tpu.dimension_semantics<parallel>, #tpu.dimension_semantics<parallel>], iteration_bounds = array<i64: 16, 1>, scalar_prefetch = 0 : i64, scratch_operands = 0 : i64, tpu.core_type = #tpu.core_type<tc>, window_params = [{transform_indices = @transform_0, window_bounds = array<i64: 1, 2, 512>}, {pipeline_mode = #tpu.pipeline_mode<synchronous>, transform_indices = @transform_1, window_bounds = array<i64: 1, 1, 512>}, {pipeline_mode = #tpu.pipeline_mode<synchronous>, transform_indices = @transform_2, window_bounds = array<i64: 1, 1, 512>}, {transform_indices = @transform_3, window_bounds = array<i64: 1, 2, 512>}]} {
    %c0 = arith.constant 0 : index
    %c0_0 = arith.constant 0 : index
    %c0_1 = arith.constant 0 : index
    %0 = vector.load %arg2[%c0, %c0_0, %c0_1] : memref<1x2x512xf32, #tpu.memory_space<vmem>>, vector<1x2x512xf32>
    %c0_2 = arith.constant 0 : index
    %c0_3 = arith.constant 0 : index
    %c0_4 = arith.constant 0 : index
    %1 = vector.load %arg3[%c0_2, %c0_3, %c0_4] : memref<1x1x512xf32, #tpu.memory_space<vmem>>, vector<1x1x512xf32>
    %2 = vector.broadcast %1 : vector<1x1x512xf32> to vector<1x2x512xf32>
    %3 = arith.mulf %0, %2 : vector<1x2x512xf32>
    %c0_5 = arith.constant 0 : index
    %c0_6 = arith.constant 0 : index
    %c0_7 = arith.constant 0 : index
    %4 = vector.load %arg4[%c0_5, %c0_6, %c0_7] : memref<1x1x512xf32, #tpu.memory_space<vmem>>, vector<1x1x512xf32>
    %5 = vector.broadcast %4 : vector<1x1x512xf32> to vector<1x2x512xf32>
    %6 = arith.addf %3, %5 : vector<1x2x512xf32>
    %cst = arith.constant 0.000000e+00 : f32
    %7 = vector.broadcast %cst : f32 to vector<1x2x512xf32>
    %8 = arith.maximumf %6, %7 : vector<1x2x512xf32>
    %9 = arith.truncf %8 : vector<1x2x512xf32> to vector<1x2x512xbf16>
    %c0_8 = arith.constant 0 : index
    %c0_9 = arith.constant 0 : index
    %c0_10 = arith.constant 0 : index
    %10 = vector.load %arg5[%c0_8, %c0_9, %c0_10] : memref<1x2x512xbf16, #tpu.memory_space<vmem>>, vector<1x2x512xbf16>
    tpu.vector_store %arg5[%c0_8, %c0_9, %c0_10], %9 {strides = array<i32>} : memref<1x2x512xbf16, #tpu.memory_space<vmem>>, vector<1x2x512xbf16>,
    return
  }
  func.func @transform_0(%arg0: i32, %arg1: i32) -> (i32, i32, i32) {
    %c0_i32 = arith.constant 0 : i32
    %c0_i32_0 = arith.constant 0 : i32
    return %arg0, %arg1, %c0_i32 : i32, i32, i32
  }
  func.func @transform_1(%arg0: i32, %arg1: i32) -> (i32, i32, i32) {
    %c0_i32 = arith.constant 0 : i32
    %c0_i32_0 = arith.constant 0 : i32
    %c0_i32_1 = arith.constant 0 : i32
    %c0_i32_2 = arith.constant 0 : i32
    return %c0_i32, %c0_i32_0, %c0_i32_1 : i32, i32, i32
  }
  func.func @transform_2(%arg0: i32, %arg1: i32) -> (i32, i32, i32) {
    %c0_i32 = arith.constant 0 : i32
    %c0_i32_0 = arith.constant 0 : i32
    %c0_i32_1 = arith.constant 0 : i32
    %c0_i32_2 = arith.constant 0 : i32
    return %c0_i32, %c0_i32_0, %c0_i32_1 : i32, i32, i32
  }
  func.func @transform_3(%arg0: i32, %arg1: i32) -> (i32, i32, i32) {
    %c0_i32 = arith.constant 0 : i32
    %c0_i32_0 = arith.constant 0 : i32
    return %arg0, %arg1, %c0_i32 : i32, i32, i32
  }
}

module attributes {stable_mosaic.version = 11 : i64} {
  func.func @_mm_stats_kernel(%arg0: i32, %arg1: i32, %arg2: memref<1x32x2048xbf16, #tpu.memory_space<vmem>>, %arg3: memref<1x2048x256xbf16, #tpu.memory_space<vmem>>, %arg4: memref<1x32x256xf32, #tpu.memory_space<vmem>>, %arg5: memref<1x1x1x256xf32, #tpu.memory_space<vmem>>, %arg6: memref<1x1x1x256xf32, #tpu.memory_space<vmem>>) attributes {dimension_semantics = [#tpu.dimension_semantics<parallel>, #tpu.dimension_semantics<parallel>], iteration_bounds = array<i64: 4, 1>, scalar_prefetch = 0 : i64, scratch_operands = 0 : i64, tpu.core_type = #tpu.core_type<tc>, window_params = [{transform_indices = @transform_0, window_bounds = array<i64: 1, 32, 2048>}, {transform_indices = @transform_1, window_bounds = array<i64: 1, 2048, 256>}, {transform_indices = @transform_2, window_bounds = array<i64: 1, 32, 256>}, {transform_indices = @transform_3, window_bounds = array<i64: 1, 1, 1, 256>}, {transform_indices = @transform_4, window_bounds = array<i64: 1, 1, 1, 256>}]} {
    %c0 = arith.constant 0 : index
    %c0_0 = arith.constant 0 : index
    %c0_1 = arith.constant 0 : index
    %0 = vector.load %arg2[%c0, %c0_0, %c0_1] : memref<1x32x2048xbf16, #tpu.memory_space<vmem>>, vector<1x32x2048xbf16>
    %1 = vector.shape_cast %0 : vector<1x32x2048xbf16> to vector<32x2048xbf16>
    %c0_2 = arith.constant 0 : index
    %c0_3 = arith.constant 0 : index
    %c0_4 = arith.constant 0 : index
    %2 = vector.load %arg3[%c0_2, %c0_3, %c0_4] : memref<1x2048x256xbf16, #tpu.memory_space<vmem>>, vector<1x2048x256xbf16>
    %3 = vector.shape_cast %2 : vector<1x2048x256xbf16> to vector<2048x256xbf16>
    %cst = arith.constant dense<0.000000e+00> : vector<32x256xf32>
    %4 = tpu.matmul %1, %3, %cst {dimension_numbers = #tpu.dot_dimension_numbers<[1], [0], [0], [1], [0, 0, 1, 1], [], []>} : vector<32x2048xbf16>, vector<2048x256xbf16>, vector<32x256xf32> -> vector<32x256xf32>
    %5 = vector.shape_cast %4 : vector<32x256xf32> to vector<1x32x256xf32>
    %c0_5 = arith.constant 0 : index
    %c0_6 = arith.constant 0 : index
    %c0_7 = arith.constant 0 : index
    %6 = vector.load %arg4[%c0_5, %c0_6, %c0_7] : memref<1x32x256xf32, #tpu.memory_space<vmem>>, vector<1x32x256xf32>
    tpu.vector_store %arg4[%c0_5, %c0_6, %c0_7], %5 {strides = array<i32>} : memref<1x32x256xf32, #tpu.memory_space<vmem>>, vector<1x32x256xf32>,
    %cst_8 = arith.constant dense<0.000000e+00> : vector<256xf32>
    %7 = vector.multi_reduction <add>, %4, %cst_8 [0] : vector<32x256xf32> to vector<256xf32>
    %8 = vector.shape_cast %7 : vector<256xf32> to vector<1x256xf32>
    %9 = arith.mulf %4, %4 : vector<32x256xf32>
    %cst_9 = arith.constant dense<0.000000e+00> : vector<256xf32>
    %10 = vector.multi_reduction <add>, %9, %cst_9 [0] : vector<32x256xf32> to vector<256xf32>
    %11 = vector.shape_cast %10 : vector<256xf32> to vector<1x256xf32>
    %12 = vector.shape_cast %8 : vector<1x256xf32> to vector<1x1x1x256xf32>
    %c0_10 = arith.constant 0 : index
    %c0_11 = arith.constant 0 : index
    %c0_12 = arith.constant 0 : index
    %c0_13 = arith.constant 0 : index
    %13 = vector.load %arg5[%c0_10, %c0_11, %c0_12, %c0_13] : memref<1x1x1x256xf32, #tpu.memory_space<vmem>>, vector<1x1x1x256xf32>
    tpu.vector_store %arg5[%c0_10, %c0_11, %c0_12, %c0_13], %12 {strides = array<i32>} : memref<1x1x1x256xf32, #tpu.memory_space<vmem>>, vector<1x1x1x256xf32>,
    %14 = vector.shape_cast %11 : vector<1x256xf32> to vector<1x1x1x256xf32>
    %c0_14 = arith.constant 0 : index
    %c0_15 = arith.constant 0 : index
    %c0_16 = arith.constant 0 : index
    %c0_17 = arith.constant 0 : index
    %15 = vector.load %arg6[%c0_14, %c0_15, %c0_16, %c0_17] : memref<1x1x1x256xf32, #tpu.memory_space<vmem>>, vector<1x1x1x256xf32>
    tpu.vector_store %arg6[%c0_14, %c0_15, %c0_16, %c0_17], %14 {strides = array<i32>} : memref<1x1x1x256xf32, #tpu.memory_space<vmem>>, vector<1x1x1x256xf32>,
    return
  }
  func.func @transform_0(%arg0: i32, %arg1: i32) -> (i32, i32, i32) {
    %c0_i32 = arith.constant 0 : i32
    %c0_i32_0 = arith.constant 0 : i32
    return %arg0, %arg1, %c0_i32 : i32, i32, i32
  }
  func.func @transform_1(%arg0: i32, %arg1: i32) -> (i32, i32, i32) {
    %c0_i32 = arith.constant 0 : i32
    %c0_i32_0 = arith.constant 0 : i32
    %c0_i32_1 = arith.constant 0 : i32
    return %arg0, %c0_i32, %c0_i32_0 : i32, i32, i32
  }
  func.func @transform_2(%arg0: i32, %arg1: i32) -> (i32, i32, i32) {
    %c0_i32 = arith.constant 0 : i32
    %c0_i32_0 = arith.constant 0 : i32
    return %arg0, %arg1, %c0_i32 : i32, i32, i32
  }
  func.func @transform_3(%arg0: i32, %arg1: i32) -> (i32, i32, i32, i32) {
    %c0_i32 = arith.constant 0 : i32
    %c0_i32_0 = arith.constant 0 : i32
    %c0_i32_1 = arith.constant 0 : i32
    return %arg0, %arg1, %c0_i32, %c0_i32_0 : i32, i32, i32, i32
  }
  func.func @transform_4(%arg0: i32, %arg1: i32) -> (i32, i32, i32, i32) {
    %c0_i32 = arith.constant 0 : i32
    %c0_i32_0 = arith.constant 0 : i32
    %c0_i32_1 = arith.constant 0 : i32
    return %arg0, %arg1, %c0_i32, %c0_i32_0 : i32, i32, i32, i32
  }
}

module attributes {stable_mosaic.version = 11 : i64} {
  func.func @_bn_relu_kernel(%arg0: i32, %arg1: i32, %arg2: memref<1x32x256xf32, #tpu.memory_space<vmem>>, %arg3: memref<1x1x256xf32, #tpu.memory_space<vmem>>, %arg4: memref<1x1x256xf32, #tpu.memory_space<vmem>>, %arg5: memref<1x32x256xbf16, #tpu.memory_space<vmem>>) attributes {dimension_semantics = [#tpu.dimension_semantics<parallel>, #tpu.dimension_semantics<parallel>], iteration_bounds = array<i64: 4, 1>, scalar_prefetch = 0 : i64, scratch_operands = 0 : i64, tpu.core_type = #tpu.core_type<tc>, window_params = [{transform_indices = @transform_0, window_bounds = array<i64: 1, 32, 256>}, {pipeline_mode = #tpu.pipeline_mode<synchronous>, transform_indices = @transform_1, window_bounds = array<i64: 1, 1, 256>}, {pipeline_mode = #tpu.pipeline_mode<synchronous>, transform_indices = @transform_2, window_bounds = array<i64: 1, 1, 256>}, {transform_indices = @transform_3, window_bounds = array<i64: 1, 32, 256>}]} {
    %c0 = arith.constant 0 : index
    %c0_0 = arith.constant 0 : index
    %c0_1 = arith.constant 0 : index
    %0 = vector.load %arg2[%c0, %c0_0, %c0_1] : memref<1x32x256xf32, #tpu.memory_space<vmem>>, vector<1x32x256xf32>
    %c0_2 = arith.constant 0 : index
    %c0_3 = arith.constant 0 : index
    %c0_4 = arith.constant 0 : index
    %1 = vector.load %arg3[%c0_2, %c0_3, %c0_4] : memref<1x1x256xf32, #tpu.memory_space<vmem>>, vector<1x1x256xf32>
    %2 = vector.broadcast %1 : vector<1x1x256xf32> to vector<1x32x256xf32>
    %3 = arith.mulf %0, %2 : vector<1x32x256xf32>
    %c0_5 = arith.constant 0 : index
    %c0_6 = arith.constant 0 : index
    %c0_7 = arith.constant 0 : index
    %4 = vector.load %arg4[%c0_5, %c0_6, %c0_7] : memref<1x1x256xf32, #tpu.memory_space<vmem>>, vector<1x1x256xf32>
    %5 = vector.broadcast %4 : vector<1x1x256xf32> to vector<1x32x256xf32>
    %6 = arith.addf %3, %5 : vector<1x32x256xf32>
    %cst = arith.constant 0.000000e+00 : f32
    %7 = vector.broadcast %cst : f32 to vector<1x32x256xf32>
    %8 = arith.maximumf %6, %7 : vector<1x32x256xf32>
    %9 = arith.truncf %8 : vector<1x32x256xf32> to vector<1x32x256xbf16>
    %c0_8 = arith.constant 0 : index
    %c0_9 = arith.constant 0 : index
    %c0_10 = arith.constant 0 : index
    %10 = vector.load %arg5[%c0_8, %c0_9, %c0_10] : memref<1x32x256xbf16, #tpu.memory_space<vmem>>, vector<1x32x256xbf16>
    tpu.vector_store %arg5[%c0_8, %c0_9, %c0_10], %9 {strides = array<i32>} : memref<1x32x256xbf16, #tpu.memory_space<vmem>>, vector<1x32x256xbf16>,
    return
  }
  func.func @transform_0(%arg0: i32, %arg1: i32) -> (i32, i32, i32) {
    %c0_i32 = arith.constant 0 : i32
    %c0_i32_0 = arith.constant 0 : i32
    return %arg0, %arg1, %c0_i32 : i32, i32, i32
  }
  func.func @transform_1(%arg0: i32, %arg1: i32) -> (i32, i32, i32) {
    %c0_i32 = arith.constant 0 : i32
    %c0_i32_0 = arith.constant 0 : i32
    %c0_i32_1 = arith.constant 0 : i32
    %c0_i32_2 = arith.constant 0 : i32
    return %c0_i32, %c0_i32_0, %c0_i32_1 : i32, i32, i32
  }
  func.func @transform_2(%arg0: i32, %arg1: i32) -> (i32, i32, i32) {
    %c0_i32 = arith.constant 0 : i32
    %c0_i32_0 = arith.constant 0 : i32
    %c0_i32_1 = arith.constant 0 : i32
    %c0_i32_2 = arith.constant 0 : i32
    return %c0_i32, %c0_i32_0, %c0_i32_1 : i32, i32, i32
  }
  func.func @transform_3(%arg0: i32, %arg1: i32) -> (i32, i32, i32) {
    %c0_i32 = arith.constant 0 : i32
    %c0_i32_0 = arith.constant 0 : i32
    return %arg0, %arg1, %c0_i32 : i32, i32, i32
  }
}

module attributes {stable_mosaic.version = 11 : i64} {
  func.func @_mm_stats_kernel(%arg0: i32, %arg1: i32, %arg2: memref<1x128x1024xbf16, #tpu.memory_space<vmem>>, %arg3: memref<1x1024x128xbf16, #tpu.memory_space<vmem>>, %arg4: memref<1x128x128xf32, #tpu.memory_space<vmem>>, %arg5: memref<1x1x1x128xf32, #tpu.memory_space<vmem>>, %arg6: memref<1x1x1x128xf32, #tpu.memory_space<vmem>>) attributes {dimension_semantics = [#tpu.dimension_semantics<parallel>, #tpu.dimension_semantics<parallel>], iteration_bounds = array<i64: 4, 1>, scalar_prefetch = 0 : i64, scratch_operands = 0 : i64, tpu.core_type = #tpu.core_type<tc>, window_params = [{transform_indices = @transform_0, window_bounds = array<i64: 1, 128, 1024>}, {transform_indices = @transform_1, window_bounds = array<i64: 1, 1024, 128>}, {transform_indices = @transform_2, window_bounds = array<i64: 1, 128, 128>}, {transform_indices = @transform_3, window_bounds = array<i64: 1, 1, 1, 128>}, {transform_indices = @transform_4, window_bounds = array<i64: 1, 1, 1, 128>}]} {
    %c0 = arith.constant 0 : index
    %c0_0 = arith.constant 0 : index
    %c0_1 = arith.constant 0 : index
    %0 = vector.load %arg2[%c0, %c0_0, %c0_1] : memref<1x128x1024xbf16, #tpu.memory_space<vmem>>, vector<1x128x1024xbf16>
    %1 = vector.shape_cast %0 : vector<1x128x1024xbf16> to vector<128x1024xbf16>
    %c0_2 = arith.constant 0 : index
    %c0_3 = arith.constant 0 : index
    %c0_4 = arith.constant 0 : index
    %2 = vector.load %arg3[%c0_2, %c0_3, %c0_4] : memref<1x1024x128xbf16, #tpu.memory_space<vmem>>, vector<1x1024x128xbf16>
    %3 = vector.shape_cast %2 : vector<1x1024x128xbf16> to vector<1024x128xbf16>
    %cst = arith.constant dense<0.000000e+00> : vector<128x128xf32>
    %4 = tpu.matmul %1, %3, %cst {dimension_numbers = #tpu.dot_dimension_numbers<[1], [0], [0], [1], [0, 0, 1, 1], [], []>} : vector<128x1024xbf16>, vector<1024x128xbf16>, vector<128x128xf32> -> vector<128x128xf32>
    %5 = vector.shape_cast %4 : vector<128x128xf32> to vector<1x128x128xf32>
    %c0_5 = arith.constant 0 : index
    %c0_6 = arith.constant 0 : index
    %c0_7 = arith.constant 0 : index
    %6 = vector.load %arg4[%c0_5, %c0_6, %c0_7] : memref<1x128x128xf32, #tpu.memory_space<vmem>>, vector<1x128x128xf32>
    tpu.vector_store %arg4[%c0_5, %c0_6, %c0_7], %5 {strides = array<i32>} : memref<1x128x128xf32, #tpu.memory_space<vmem>>, vector<1x128x128xf32>,
    %cst_8 = arith.constant dense<0.000000e+00> : vector<128xf32>
    %7 = vector.multi_reduction <add>, %4, %cst_8 [0] : vector<128x128xf32> to vector<128xf32>
    %8 = vector.shape_cast %7 : vector<128xf32> to vector<1x128xf32>
    %9 = arith.mulf %4, %4 : vector<128x128xf32>
    %cst_9 = arith.constant dense<0.000000e+00> : vector<128xf32>
    %10 = vector.multi_reduction <add>, %9, %cst_9 [0] : vector<128x128xf32> to vector<128xf32>
    %11 = vector.shape_cast %10 : vector<128xf32> to vector<1x128xf32>
    %12 = vector.shape_cast %8 : vector<1x128xf32> to vector<1x1x1x128xf32>
    %c0_10 = arith.constant 0 : index
    %c0_11 = arith.constant 0 : index
    %c0_12 = arith.constant 0 : index
    %c0_13 = arith.constant 0 : index
    %13 = vector.load %arg5[%c0_10, %c0_11, %c0_12, %c0_13] : memref<1x1x1x128xf32, #tpu.memory_space<vmem>>, vector<1x1x1x128xf32>
    tpu.vector_store %arg5[%c0_10, %c0_11, %c0_12, %c0_13], %12 {strides = array<i32>} : memref<1x1x1x128xf32, #tpu.memory_space<vmem>>, vector<1x1x1x128xf32>,
    %14 = vector.shape_cast %11 : vector<1x128xf32> to vector<1x1x1x128xf32>
    %c0_14 = arith.constant 0 : index
    %c0_15 = arith.constant 0 : index
    %c0_16 = arith.constant 0 : index
    %c0_17 = arith.constant 0 : index
    %15 = vector.load %arg6[%c0_14, %c0_15, %c0_16, %c0_17] : memref<1x1x1x128xf32, #tpu.memory_space<vmem>>, vector<1x1x1x128xf32>
    tpu.vector_store %arg6[%c0_14, %c0_15, %c0_16, %c0_17], %14 {strides = array<i32>} : memref<1x1x1x128xf32, #tpu.memory_space<vmem>>, vector<1x1x1x128xf32>,
    return
  }
  func.func @transform_0(%arg0: i32, %arg1: i32) -> (i32, i32, i32) {
    %c0_i32 = arith.constant 0 : i32
    %c0_i32_0 = arith.constant 0 : i32
    return %arg0, %arg1, %c0_i32 : i32, i32, i32
  }
  func.func @transform_1(%arg0: i32, %arg1: i32) -> (i32, i32, i32) {
    %c0_i32 = arith.constant 0 : i32
    %c0_i32_0 = arith.constant 0 : i32
    %c0_i32_1 = arith.constant 0 : i32
    return %arg0, %c0_i32, %c0_i32_0 : i32, i32, i32
  }
  func.func @transform_2(%arg0: i32, %arg1: i32) -> (i32, i32, i32) {
    %c0_i32 = arith.constant 0 : i32
    %c0_i32_0 = arith.constant 0 : i32
    return %arg0, %arg1, %c0_i32 : i32, i32, i32
  }
  func.func @transform_3(%arg0: i32, %arg1: i32) -> (i32, i32, i32, i32) {
    %c0_i32 = arith.constant 0 : i32
    %c0_i32_0 = arith.constant 0 : i32
    %c0_i32_1 = arith.constant 0 : i32
    return %arg0, %arg1, %c0_i32, %c0_i32_0 : i32, i32, i32, i32
  }
  func.func @transform_4(%arg0: i32, %arg1: i32) -> (i32, i32, i32, i32) {
    %c0_i32 = arith.constant 0 : i32
    %c0_i32_0 = arith.constant 0 : i32
    %c0_i32_1 = arith.constant 0 : i32
    return %arg0, %arg1, %c0_i32, %c0_i32_0 : i32, i32, i32, i32
  }
}

module attributes {stable_mosaic.version = 11 : i64} {
  func.func @_bn_relu_kernel(%arg0: i32, %arg1: i32, %arg2: memref<1x128x128xf32, #tpu.memory_space<vmem>>, %arg3: memref<1x1x128xf32, #tpu.memory_space<vmem>>, %arg4: memref<1x1x128xf32, #tpu.memory_space<vmem>>, %arg5: memref<1x128x128xbf16, #tpu.memory_space<vmem>>) attributes {dimension_semantics = [#tpu.dimension_semantics<parallel>, #tpu.dimension_semantics<parallel>], iteration_bounds = array<i64: 4, 1>, scalar_prefetch = 0 : i64, scratch_operands = 0 : i64, tpu.core_type = #tpu.core_type<tc>, window_params = [{transform_indices = @transform_0, window_bounds = array<i64: 1, 128, 128>}, {pipeline_mode = #tpu.pipeline_mode<synchronous>, transform_indices = @transform_1, window_bounds = array<i64: 1, 1, 128>}, {pipeline_mode = #tpu.pipeline_mode<synchronous>, transform_indices = @transform_2, window_bounds = array<i64: 1, 1, 128>}, {transform_indices = @transform_3, window_bounds = array<i64: 1, 128, 128>}]} {
    %c0 = arith.constant 0 : index
    %c0_0 = arith.constant 0 : index
    %c0_1 = arith.constant 0 : index
    %0 = vector.load %arg2[%c0, %c0_0, %c0_1] : memref<1x128x128xf32, #tpu.memory_space<vmem>>, vector<1x128x128xf32>
    %c0_2 = arith.constant 0 : index
    %c0_3 = arith.constant 0 : index
    %c0_4 = arith.constant 0 : index
    %1 = vector.load %arg3[%c0_2, %c0_3, %c0_4] : memref<1x1x128xf32, #tpu.memory_space<vmem>>, vector<1x1x128xf32>
    %2 = vector.broadcast %1 : vector<1x1x128xf32> to vector<1x128x128xf32>
    %3 = arith.mulf %0, %2 : vector<1x128x128xf32>
    %c0_5 = arith.constant 0 : index
    %c0_6 = arith.constant 0 : index
    %c0_7 = arith.constant 0 : index
    %4 = vector.load %arg4[%c0_5, %c0_6, %c0_7] : memref<1x1x128xf32, #tpu.memory_space<vmem>>, vector<1x1x128xf32>
    %5 = vector.broadcast %4 : vector<1x1x128xf32> to vector<1x128x128xf32>
    %6 = arith.addf %3, %5 : vector<1x128x128xf32>
    %cst = arith.constant 0.000000e+00 : f32
    %7 = vector.broadcast %cst : f32 to vector<1x128x128xf32>
    %8 = arith.maximumf %6, %7 : vector<1x128x128xf32>
    %9 = arith.truncf %8 : vector<1x128x128xf32> to vector<1x128x128xbf16>
    %c0_8 = arith.constant 0 : index
    %c0_9 = arith.constant 0 : index
    %c0_10 = arith.constant 0 : index
    %10 = vector.load %arg5[%c0_8, %c0_9, %c0_10] : memref<1x128x128xbf16, #tpu.memory_space<vmem>>, vector<1x128x128xbf16>
    tpu.vector_store %arg5[%c0_8, %c0_9, %c0_10], %9 {strides = array<i32>} : memref<1x128x128xbf16, #tpu.memory_space<vmem>>, vector<1x128x128xbf16>,
    return
  }
  func.func @transform_0(%arg0: i32, %arg1: i32) -> (i32, i32, i32) {
    %c0_i32 = arith.constant 0 : i32
    %c0_i32_0 = arith.constant 0 : i32
    return %arg0, %arg1, %c0_i32 : i32, i32, i32
  }
  func.func @transform_1(%arg0: i32, %arg1: i32) -> (i32, i32, i32) {
    %c0_i32 = arith.constant 0 : i32
    %c0_i32_0 = arith.constant 0 : i32
    %c0_i32_1 = arith.constant 0 : i32
    %c0_i32_2 = arith.constant 0 : i32
    return %c0_i32, %c0_i32_0, %c0_i32_1 : i32, i32, i32
  }
  func.func @transform_2(%arg0: i32, %arg1: i32) -> (i32, i32, i32) {
    %c0_i32 = arith.constant 0 : i32
    %c0_i32_0 = arith.constant 0 : i32
    %c0_i32_1 = arith.constant 0 : i32
    %c0_i32_2 = arith.constant 0 : i32
    return %c0_i32, %c0_i32_0, %c0_i32_1 : i32, i32, i32
  }
  func.func @transform_3(%arg0: i32, %arg1: i32) -> (i32, i32, i32) {
    %c0_i32 = arith.constant 0 : i32
    %c0_i32_0 = arith.constant 0 : i32
    return %arg0, %arg1, %c0_i32 : i32, i32, i32
  }
}

module attributes {stable_mosaic.version = 11 : i64} {
  func.func @_mm_tanh_kernel(%arg0: i32, %arg1: i32, %arg2: memref<1x512x512xbf16, #tpu.memory_space<vmem>>, %arg3: memref<1x512x128xbf16, #tpu.memory_space<vmem>>, %arg4: memref<1x512x128xf32, #tpu.memory_space<vmem>>) attributes {dimension_semantics = [#tpu.dimension_semantics<parallel>, #tpu.dimension_semantics<parallel>], iteration_bounds = array<i64: 4, 1>, scalar_prefetch = 0 : i64, scratch_operands = 0 : i64, tpu.core_type = #tpu.core_type<tc>, window_params = [{transform_indices = @transform_0, window_bounds = array<i64: 1, 512, 512>}, {transform_indices = @transform_1, window_bounds = array<i64: 1, 512, 128>}, {transform_indices = @transform_2, window_bounds = array<i64: 1, 512, 128>}]} {
    %c0 = arith.constant 0 : index
    %c0_0 = arith.constant 0 : index
    %c0_1 = arith.constant 0 : index
    %0 = vector.load %arg2[%c0, %c0_0, %c0_1] : memref<1x512x512xbf16, #tpu.memory_space<vmem>>, vector<1x512x512xbf16>
    %1 = vector.shape_cast %0 : vector<1x512x512xbf16> to vector<512x512xbf16>
    %c0_2 = arith.constant 0 : index
    %c0_3 = arith.constant 0 : index
    %c0_4 = arith.constant 0 : index
    %2 = vector.load %arg3[%c0_2, %c0_3, %c0_4] : memref<1x512x128xbf16, #tpu.memory_space<vmem>>, vector<1x512x128xbf16>
    %3 = vector.shape_cast %2 : vector<1x512x128xbf16> to vector<512x128xbf16>
    %cst = arith.constant dense<0.000000e+00> : vector<512x128xf32>
    %4 = tpu.matmul %1, %3, %cst {dimension_numbers = #tpu.dot_dimension_numbers<[1], [0], [0], [1], [0, 0, 1, 1], [], []>} : vector<512x512xbf16>, vector<512x128xbf16>, vector<512x128xf32> -> vector<512x128xf32>
    %5 = math.tanh %4 : vector<512x128xf32>
    %6 = vector.shape_cast %5 : vector<512x128xf32> to vector<1x512x128xf32>
    %c0_5 = arith.constant 0 : index
    %c0_6 = arith.constant 0 : index
    %c0_7 = arith.constant 0 : index
    %7 = vector.load %arg4[%c0_5, %c0_6, %c0_7] : memref<1x512x128xf32, #tpu.memory_space<vmem>>, vector<1x512x128xf32>
    tpu.vector_store %arg4[%c0_5, %c0_6, %c0_7], %6 {strides = array<i32>} : memref<1x512x128xf32, #tpu.memory_space<vmem>>, vector<1x512x128xf32>,
    return
  }
  func.func @transform_0(%arg0: i32, %arg1: i32) -> (i32, i32, i32) {
    %c0_i32 = arith.constant 0 : i32
    %c0_i32_0 = arith.constant 0 : i32
    return %arg0, %arg1, %c0_i32 : i32, i32, i32
  }
  func.func @transform_1(%arg0: i32, %arg1: i32) -> (i32, i32, i32) {
    %c0_i32 = arith.constant 0 : i32
    %c0_i32_0 = arith.constant 0 : i32
    %c0_i32_1 = arith.constant 0 : i32
    return %arg0, %c0_i32, %c0_i32_0 : i32, i32, i32
  }
  func.func @transform_2(%arg0: i32, %arg1: i32) -> (i32, i32, i32) {
    %c0_i32 = arith.constant 0 : i32
    %c0_i32_0 = arith.constant 0 : i32
    return %arg0, %arg1, %c0_i32 : i32, i32, i32
  }
}

</mosaic_0001>

<llo_original>
// kernel: generator_forward.7
$region0: #{generator_forward.7}
  #allocation0 [shape = 'u32[]', space=smem, size = 0x4, offset = 0x4, fixed_abs, tag = 'smem constant byte address 0x4 - core index']
  #allocation1 [shape = 'u32[144,128]{1,0:T(1,128)}', space=vmem, size = 0x12000, scoped, tag = 'internal scratch']
  %s0 = inlined_call_operand.vmem [shape: bf16[16,2,100], index: 0, kind: input, shape index: {}]
  %s1 = inlined_call_operand.vmem [shape: bf16[16,100,512], index: 1, kind: input, shape index: {}]
  %s2 = inlined_call_operand.vmem [shape: f32[16,2,512], index: 2, kind: output, shape index: {0}]
  %s3 = inlined_call_operand.vmem [shape: f32[16,1,1,512], index: 3, kind: output, shape index: {1}]
  %s4 = inlined_call_operand.vmem [shape: f32[16,1,1,512], index: 4, kind: output, shape index: {2}]
  %5 = xla_tuple %s2, %s3, %s4
  %s6 = sld [smem:[#allocation0]]
  $region57: #{generator_forward.7} parent=0
    _
  %s8 = ssub.s32 1, %s6
  %s9 = scalar_select 0, %s8, %s6
  loop: start=0, step=1, limit=18
  $region2: #{generator_forward.7} parent=0 // loop_pre_header
    _
  $region3: #{generator_forward.7} parent=0 // loop_header
    %s11 = sphi 0, %s15
    %p12 = scmp.ge.s32.totalorder %s11, 18
    %s18 = sphi 0, %s30
    %s19 = sphi 0, %s26
    %s20 = sphi 0, %s18
    %s21 = sphi 0, %s19
    %s22 = sphi 0, %s20
    %s23 = sphi 0, %s21
    %s35 = sphi 0, %s37
    %s38 = sphi 0, %s35
    %s39 = sphi 0, %s38
    %s55 = sphi 0, %s39
    %s61 = sphi 0, %s63
    %s64 = sphi 0, %s61
    %s65 = sphi 0, %s64
    %s81 = sphi 0, %s65
    %s89 = sphi 0, %s91
    %s92 = sphi 0, %s89
    %s93 = sphi 0, %s92
    %s109 = sphi 0, %s93
    %s117 = sphi 0, %s119
    %s120 = sphi 0, %s117
    %s121 = sphi 0, %s120
    %s137 = sphi 0, %s121
    %s145 = sphi 0, %s147
    %s148 = sphi 0, %s145
    %s149 = sphi 0, %s148
    %s165 = sphi 0, %s149
  $region4: #{generator_forward.7} parent=0 // loop_header_branch
    %14 = sbr.rel (%p12) target = $region8
  $region5: #{generator_forward.7} parent=0 // loop_body
    %s16 = ssub.s32 %s11, 1
    %s17 = ssub.s32 %s11, 2
    %s24 = sadd.s32 1, %s19
    %p25 = scmp.ge.s32.totalorder %s24, 1
    %s26 = scalar_select %p25, 0, %s24
    %s27 = sadd.s32 1, %s18
    %s28 = scalar_select %p25, %s27, %s18
    %p29 = scmp.ge.s32.totalorder %s28, 16
    %s30 = scalar_select %p29, 0, %s28
    %s31 = ssub.s32 %s18, %s30
    %s32 = ssub.s32 %s19, %s26
    %s33 = sor.u32 %s31, %s32
    %p34 = scmp.eq.s32.totalorder %s33, 0
    %s36 = sadd.s32 %s35, 1
    %s37 = scalar_select %p34, %s35, %s36
    %p40 = pneg %p34
    %p41 = scmp.eq.s32.totalorder %s11, 15
    %p42 = por %p40, %p41
    %p43 = scmp.ne.s32.totalorder %s35, %s38
    %p44 = scmp.eq.s32.totalorder %s11, 0
    %p45 = por %p43, %p44
    %p46 = scmp.ne.s32.totalorder %s35, %s38
    %p47 = scmp.eq.s32.totalorder %s16, 15
    %p48 = por %p46, %p47
    %p49 = scmp.ne.s32.totalorder %s38, %s39
    %p50 = scmp.eq.s32.totalorder %s16, 0
    %p51 = por %p49, %p50
    %p52 = scmp.ne.s32.totalorder %s38, %s39
    %p53 = scmp.eq.s32.totalorder %s17, 15
    %p54 = por %p52, %p53
    %p56 = scmp.ne.s32.totalorder %s39, %s55
    %p57 = scmp.eq.s32.totalorder %s17, 0
    %p58 = por %p56, %p57
    %s59 = ssub.s32 %s18, %s30
    %p60 = scmp.eq.s32.totalorder %s59, 0
    %s62 = sadd.s32 %s61, 1
    %s63 = scalar_select %p60, %s61, %s62
    %p66 = pneg %p60
    %p67 = scmp.eq.s32.totalorder %s11, 15
    %p68 = por %p66, %p67
    %p69 = scmp.ne.s32.totalorder %s61, %s64
    %p70 = scmp.eq.s32.totalorder %s11, 0
    %p71 = por %p69, %p70
    %p72 = scmp.ne.s32.totalorder %s61, %s64
    %p73 = scmp.eq.s32.totalorder %s16, 15
    %p74 = por %p72, %p73
    %p75 = scmp.ne.s32.totalorder %s64, %s65
    %p76 = scmp.eq.s32.totalorder %s16, 0
    %p77 = por %p75, %p76
    %p78 = scmp.ne.s32.totalorder %s64, %s65
    %p79 = scmp.eq.s32.totalorder %s17, 15
    %p80 = por %p78, %p79
    %p82 = scmp.ne.s32.totalorder %s65, %s81
    %p83 = scmp.eq.s32.totalorder %s17, 0
    %p84 = por %p82, %p83
    %s85 = ssub.s32 %s18, %s30
    %s86 = ssub.s32 %s19, %s26
    %s87 = sor.u32 %s85, %s86
    %p88 = scmp.eq.s32.totalorder %s87, 0
    %s90 = sadd.s32 %s89, 1
    %s91 = scalar_select %p88, %s89, %s90
    %p94 = pneg %p88
    %p95 = scmp.eq.s32.totalorder %s11, 15
    %p96 = por %p94, %p95
    %p97 = scmp.ne.s32.totalorder %s89, %s92
    %p98 = scmp.eq.s32.totalorder %s11, 0
    %p99 = por %p97, %p98
    %p100 = scmp.ne.s32.totalorder %s89, %s92
    %p101 = scmp.eq.s32.totalorder %s16, 15
    %p102 = por %p100, %p101
    %p103 = scmp.ne.s32.totalorder %s92, %s93
    %p104 = scmp.eq.s32.totalorder %s16, 0
    %p105 = por %p103, %p104
    %p106 = scmp.ne.s32.totalorder %s92, %s93
    %p107 = scmp.eq.s32.totalorder %s17, 15
    %p108 = por %p106, %p107
    %p110 = scmp.ne.s32.totalorder %s93, %s109
    %p111 = scmp.eq.s32.totalorder %s17, 0
    %p112 = por %p110, %p111
    %s113 = ssub.s32 %s18, %s30
    %s114 = ssub.s32 %s19, %s26
    %s115 = sor.u32 %s113, %s114
    %p116 = scmp.eq.s32.totalorder %s115, 0
    %s118 = sadd.s32 %s117, 1
    %s119 = scalar_select %p116, %s117, %s118
    %p122 = pneg %p116
    %p123 = scmp.eq.s32.totalorder %s11, 15
    %p124 = por %p122, %p123
    %p125 = scmp.ne.s32.totalorder %s117, %s120
    %p126 = scmp.eq.s32.totalorder %s11, 0
    %p127 = por %p125, %p126
    %p128 = scmp.ne.s32.totalorder %s117, %s120
    %p129 = scmp.eq.s32.totalorder %s16, 15
    %p130 = por %p128, %p129
    %p131 = scmp.ne.s32.totalorder %s120, %s121
    %p132 = scmp.eq.s32.totalorder %s16, 0
    %p133 = por %p131, %p132
    %p134 = scmp.ne.s32.totalorder %s120, %s121
    %p135 = scmp.eq.s32.totalorder %s17, 15
    %p136 = por %p134, %p135
    %p138 = scmp.ne.s32.totalorder %s121, %s137
    %p139 = scmp.eq.s32.totalorder %s17, 0
    %p140 = por %p138, %p139
    %s141 = ssub.s32 %s18, %s30
    %s142 = ssub.s32 %s19, %s26
    %s143 = sor.u32 %s141, %s142
    %p144 = scmp.eq.s32.totalorder %s143, 0
    %s146 = sadd.s32 %s145, 1
    %s147 = scalar_select %p144, %s145, %s146
    %p150 = pneg %p144
    %p151 = scmp.eq.s32.totalorder %s11, 15
    %p152 = por %p150, %p151
    %p153 = scmp.ne.s32.totalorder %s145, %s148
    %p154 = scmp.eq.s32.totalorder %s11, 0
    %p155 = por %p153, %p154
    %p156 = scmp.ne.s32.totalorder %s145, %s148
    %p157 = scmp.eq.s32.totalorder %s16, 15
    %p158 = por %p156, %p157
    %p159 = scmp.ne.s32.totalorder %s148, %s149
    %p160 = scmp.eq.s32.totalorder %s16, 0
    %p161 = por %p159, %p160
    %p162 = scmp.ne.s32.totalorder %s148, %s149
    %p163 = scmp.eq.s32.totalorder %s17, 15
    %p164 = por %p162, %p163
    %p166 = scmp.ne.s32.totalorder %s149, %s165
    %p167 = scmp.eq.s32.totalorder %s17, 0
    %p168 = por %p166, %p167
    %p169 = scmp.le.s32.totalorder 1, %s11
    %p170 = scmp.lt.s32.totalorder %s11, 17
    %p171 = pnand %p169, %p170
    %p172 = pneg %p171
    // Predicated region
    $region9: #{generator_forward.7} parent=5 // pred_check
      _
    $region10: #{generator_forward.7} parent=5 // pred_check_branch
      %174 = sbr.rel (%p171) target = $region12
    $region11: #{generator_forward.7} parent=5 // pred_region
      %s175 = ssub.s32 %s11, 1
    $region12: #{generator_forward.7} parent=5 // pred_fallthru
      _
    %p176 = scmp.lt.s32.totalorder %s11, 16
    // Predicated region
    $region13: #{generator_forward.7} parent=5 // pred_check
      %p177 = pneg %p176
    $region14: #{generator_forward.7} parent=5 // pred_check_branch
      %179 = sbr.rel (%p177) target = $region16
    $region15: #{generator_forward.7} parent=5 // pred_region
      // Predicated region
      $region17: #{generator_forward.7} parent=15 // pred_check
        %p180 = pneg %p45
      $region18: #{generator_forward.7} parent=15 // pred_check_branch
        %182 = sbr.rel (%p180) target = $region20
      $region19: #{generator_forward.7} parent=15 // pred_region
        %p183 = scmp.lt.s32.totalorder %s18, 15
        %s184 = scalar_select %p183, %s18, 15
        %p185 = scmp.lt.s32.totalorder %s19, 0
        %s186 = scalar_select %p185, %s19, 0
        %s187 = sadd.s32 %s186, %s184
        %s188 = scalar_lea.vmem %s0, %s187
      $region20: #{generator_forward.7} parent=15 // pred_fallthru
        _
      // Predicated region
      $region21: #{generator_forward.7} parent=15 // pred_check
        %p189 = pneg %p71
      $region22: #{generator_forward.7} parent=15 // pred_check_branch
        %191 = sbr.rel (%p189) target = $region24
      $region23: #{generator_forward.7} parent=15 // pred_region
        %p192 = scmp.lt.s32.totalorder %s18, 15
        %s193 = scalar_select %p192, %s18, 15
        %s194 = smul.addr %s193, 52
        %s195 = smul.addr %s194, 4
        %s196 = scalar_lea.vmem %s1, %s195
      $region24: #{generator_forward.7} parent=15 // pred_fallthru
        _
    $region16: #{generator_forward.7} parent=5 // pred_fallthru
      _
    %p197 = scmp.le.s32.totalorder 1, %s11
    %p198 = scmp.lt.s32.totalorder %s11, 17
    %p199 = pnand %p197, %p198
    %p200 = pneg %p199
    // Predicated region
    $region25: #{generator_forward.7} parent=5 // pred_check
      _
    $region26: #{generator_forward.7} parent=5 // pred_check_branch
      %202 = sbr.rel (%p199) target = $region28
    $region27: #{generator_forward.7} parent=5 // pred_region
      %s203 = ssub.s32 %s11, 1
      %p204 = scmp.lt.s32.totalorder %s20, 15
      %s205 = scalar_select %p204, %s20, 15
      %p206 = scmp.lt.s32.totalorder %s21, 0
      %s207 = scalar_select %p206, %s21, 0
      %s208 = sadd.s32 %s207, %s205
      %s209 = scalar_lea.vmem %s0, %s208
      %p210 = pneg %p51
      %p211 = pneg %p48
      %p212 = scmp.lt.s32.totalorder %s20, 15
      %s213 = scalar_select %p212, %s20, 15
      %s214 = smul.addr %s213, 52
      %s215 = smul.addr %s214, 4
      %s216 = scalar_lea.vmem %s1, %s215
      %p217 = pneg %p77
      %p218 = pneg %p74
      %p219 = pneg %p105
      %p220 = pneg %p102
      %p221 = scmp.lt.s32.totalorder %s20, 15
      %s222 = scalar_select %p221, %s20, 15
      %p223 = scmp.lt.s32.totalorder %s21, 0
      %s224 = scalar_select %p223, %s21, 0
      %s225 = smul.addr %s224, 4
      %s226 = smul.addr %s222, 4
      %s227 = sadd.s32 %s225, %s226
      %s228 = smul.addr %s227, 2
      %s229 = scalar_lea.vmem %s2, %s228
      %p230 = pneg %p133
      %p231 = pneg %p130
      %p232 = scmp.lt.s32.totalorder %s20, 15
      %s233 = scalar_select %p232, %s20, 15
      %p234 = scmp.lt.s32.totalorder %s21, 0
      %s235 = scalar_select %p234, %s21, 0
      %s236 = smul.addr %s235, 4
      %s237 = smul.addr %s233, 4
      %s238 = sadd.s32 %s236, %s237
      %s239 = scalar_lea.vmem %s3, %s238
      %p240 = pneg %p161
      %p241 = pneg %p158
      %p242 = scmp.lt.s32.totalorder %s20, 15
      %s243 = scalar_select %p242, %s20, 15
      %p244 = scmp.lt.s32.totalorder %s21, 0
      %s245 = scalar_select %p244, %s21, 0
      %s246 = smul.addr %s245, 4
      %s247 = smul.addr %s243, 4
      %s248 = sadd.s32 %s246, %s247
      %s249 = scalar_lea.vmem %s4, %s248
      %p250 = scmp.lt.s32.totalorder %s20, 15
      %s251 = scalar_select %p250, %s20, 15
      %p252 = scmp.lt.s32.totalorder %s21, 0
      %s253 = scalar_select %p252, %s21, 0
      %s254 = sadd.s32 %s253, %s251
      %s255 = scalar_lea.vmem %s0, %s254
      %p256 = scmp.lt.s32.totalorder %s20, 15
      %s257 = scalar_select %p256, %s20, 15
      %s258 = smul.addr %s257, 52
      %s259 = smul.addr %s258, 4
      %s260 = scalar_lea.vmem %s1, %s259
      %p261 = scmp.lt.s32.totalorder %s20, 15
      %s262 = scalar_select %p261, %s20, 15
      %p263 = scmp.lt.s32.totalorder %s21, 0
      %s264 = scalar_select %p263, %s21, 0
      %s265 = smul.addr %s264, 4
      %s266 = smul.addr %s262, 4
      %s267 = sadd.s32 %s265, %s266
      %s268 = smul.addr %s267, 2
      %s269 = scalar_lea.vmem %s2, %s268
      %p270 = scmp.lt.s32.totalorder %s20, 15
      %s271 = scalar_select %p270, %s20, 15
      %p272 = scmp.lt.s32.totalorder %s21, 0
      %s273 = scalar_select %p272, %s21, 0
      %s274 = smul.addr %s273, 4
      %s275 = smul.addr %s271, 4
      %s276 = sadd.s32 %s274, %s275
      %s277 = scalar_lea.vmem %s3, %s276
      %p278 = scmp.lt.s32.totalorder %s20, 15
      %s279 = scalar_select %p278, %s20, 15
      %p280 = scmp.lt.s32.totalorder %s21, 0
      %s281 = scalar_select %p280, %s21, 0
      %s282 = smul.addr %s281, 4
      %s283 = smul.addr %s279, 4
      %s284 = sadd.s32 %s282, %s283
      %s285 = scalar_lea.vmem %s4, %s284
      %v287 = vld [vmem:[%s255] sm:$0x1]
      %v288 = vld [vmem:[%s260] sm:$0xff]
      %v289 = vld [vmem:[%s260 + $0x8] sm:$0xff]
      %v290 = vld [vmem:[%s260 + $0x10] sm:$0xff]
      %v291 = vld [vmem:[%s260 + $0x18] sm:$0xff]
      %v292 = vld [vmem:[%s260 + $0x20] sm:$0xff]
      %v293 = vld [vmem:[%s260 + $0x28] sm:$0xff]
      %v294 = vld [vmem:[%s260 + $0x30] sm:$0xff]
      %v295 = vld [vmem:[%s260 + $0x38] sm:$0xff]
      %v296 = vld [vmem:[%s260 + $0x40] sm:$0xff]
      %v297 = vld [vmem:[%s260 + $0x48] sm:$0xff]
      %v298 = vld [vmem:[%s260 + $0x50] sm:$0xff]
      %v299 = vld [vmem:[%s260 + $0x58] sm:$0xff]
      %v300 = vld [vmem:[%s260 + $0x60] sm:$0xff]
      %v301 = vld [vmem:[%s260 + $0x68] sm:$0xff]
      %v302 = vld [vmem:[%s260 + $0x70] sm:$0xff]
      %v303 = vld [vmem:[%s260 + $0x78] sm:$0xff]
      %v304 = vld [vmem:[%s260 + $0x80] sm:$0xff]
      %v305 = vld [vmem:[%s260 + $0x88] sm:$0xff]
      %v306 = vld [vmem:[%s260 + $0x90] sm:$0xff]
      %v307 = vld [vmem:[%s260 + $0x98] sm:$0xff]
      %v308 = vld [vmem:[%s260 + $0xa0] sm:$0xff]
      %v309 = vld [vmem:[%s260 + $0xa8] sm:$0xff]
      %v310 = vld [vmem:[%s260 + $0xb0] sm:$0xff]
      %v311 = vld [vmem:[%s260 + $0xb8] sm:$0xff]
      %v312 = vld [vmem:[%s260 + $0xc0] sm:$0x33]
      %v313 = vld [vmem:[%s260 + $0xc8] sm:$0x33]
      %v340 = vunpack.c.l.b16 %v288
      %v341 = vunpack.c.h.b16 %v288
      %v342 = vunpack.c.l.b16 %v289
      %v343 = vunpack.c.h.b16 %v289
      %v344 = vunpack.c.l.b16 %v290
      %v345 = vunpack.c.h.b16 %v290
      %v346 = vunpack.c.l.b16 %v291
      %v347 = vunpack.c.h.b16 %v291
      %v348 = vunpack.c.l.b16 %v292
      %v349 = vunpack.c.h.b16 %v292
      %v350 = vunpack.c.l.b16 %v293
      %v351 = vunpack.c.h.b16 %v293
      %v352 = vunpack.c.l.b16 %v294
      %v353 = vunpack.c.h.b16 %v294
      %v354 = vunpack.c.l.b16 %v295
      %v355 = vunpack.c.h.b16 %v295
      %v356 = vunpack.c.l.b16 %v296
      %v357 = vunpack.c.h.b16 %v296
      %v358 = vunpack.c.l.b16 %v297
      %v359 = vunpack.c.h.b16 %v297
      %v360 = vunpack.c.l.b16 %v298
      %v361 = vunpack.c.h.b16 %v298
      %v362 = vunpack.c.l.b16 %v299
      %v363 = vunpack.c.h.b16 %v299
      %v364 = vunpack.c.l.b16 %v300
      %v365 = vunpack.c.h.b16 %v300
      %v366 = vunpack.c.l.b16 %v301
      %v367 = vunpack.c.h.b16 %v301
      %v368 = vunpack.c.l.b16 %v302
      %v369 = vunpack.c.h.b16 %v302
      %v370 = vunpack.c.l.b16 %v303
      %v371 = vunpack.c.h.b16 %v303
      %v372 = vunpack.c.l.b16 %v304
      %v373 = vunpack.c.h.b16 %v304
      %v374 = vunpack.c.l.b16 %v305
      %v375 = vunpack.c.h.b16 %v305
      %v376 = vunpack.c.l.b16 %v306
      %v377 = vunpack.c.h.b16 %v306
      %v378 = vunpack.c.l.b16 %v307
      %v379 = vunpack.c.h.b16 %v307
      %v380 = vunpack.c.l.b16 %v308
      %v381 = vunpack.c.h.b16 %v308
      %v382 = vunpack.c.l.b16 %v309
      %v383 = vunpack.c.h.b16 %v309
      %v384 = vunpack.c.l.b16 %v310
      %v385 = vunpack.c.h.b16 %v310
      %v386 = vunpack.c.l.b16 %v311
      %v387 = vunpack.c.h.b16 %v311
      %v388 = vunpack.c.l.b16 %v312
      %v389 = vunpack.c.h.b16 %v312
      %v390 = vunpack.c.l.b16 %v313
      %v391 = vunpack.c.h.b16 %v313
      %v392 = vpack.c.b16 %v344, %v340
      %v393 = vpack.c.b16 %v345, %v341
      %v394 = vpack.c.b16 %v346, %v342
      %v395 = vpack.c.b16 %v347, %v343
      %v396 = vpack.c.b16 %v352, %v348
      %v397 = vpack.c.b16 %v353, %v349
      %v398 = vpack.c.b16 %v354, %v350
      %v399 = vpack.c.b16 %v355, %v351
      %v400 = vpack.c.b16 %v360, %v356
      %v401 = vpack.c.b16 %v361, %v357
      %v402 = vpack.c.b16 %v362, %v358
      %v403 = vpack.c.b16 %v363, %v359
      %v404 = vpack.c.b16 %v368, %v364
      %v405 = vpack.c.b16 %v369, %v365
      %v406 = vpack.c.b16 %v370, %v366
      %v407 = vpack.c.b16 %v371, %v367
      %v408 = vpack.c.b16 %v376, %v372
      %v409 = vpack.c.b16 %v377, %v373
      %v410 = vpack.c.b16 %v378, %v374
      %v411 = vpack.c.b16 %v379, %v375
      %v412 = vpack.c.b16 %v384, %v380
      %v413 = vpack.c.b16 %v385, %v381
      %v414 = vpack.c.b16 %v386, %v382
      %v415 = vpack.c.b16 %v387, %v383
      %v416 = vpack.c.b16 %v388, %v388
      %v417 = vpack.c.b16 %v389, %v389
      %v418 = vpack.c.b16 %v390, %v390
      %v419 = vpack.c.b16 %v391, %v391
      %vm444 = vcmask 818176
      %v446 = vsel %vm444, %v287, 0
      %vm448 = vcmask 1041408
      %v450 = vsel %vm448, %v416, 0
      %v453 = vsel %vm448, %v417, 0
      %v456 = vsel %vm448, %v418, 0
      %v459 = vsel %vm448, %v419, 0
      %461 = vmatprep.subr.bf16.mxu0 0
      %462 = vmatpush1.bf16.msra.mxu0 0
      %463 = vmatprep.subr.bf16.mxu0 %v453
      %464 = vmatpush1.bf16.msra.mxu0 %v450
      %465 = vmatprep.subr.bf16.mxu0 %v413
      %466 = vmatpush1.bf16.msra.mxu0 %v412
      %467 = vmatprep.subr.bf16.mxu0 %v409
      %468 = vmatpush1.bf16.msra.mxu0 %v408
      %469 = vmatprep.subr.bf16.mxu0 %v405
      %470 = vmatpush1.bf16.msra.mxu0 %v404
      %471 = vmatprep.subr.bf16.mxu0 %v401
      %472 = vmatpush1.bf16.msra.mxu0 %v400
      %473 = vmatprep.subr.bf16.mxu0 %v397
      %474 = vmatpush1.bf16.msra.mxu0 %v396
      %475 = vmatprep.subr.bf16.mxu0 %v393
      %476 = vmatpush1.bf16.msra.mxu0 %v392
      %477 = vmatprep.subr.bf16.mxu0 0
      %478 = vmatpush2.bf16.msra.mxu0 0
      %479 = vmatprep.subr.bf16.mxu0 0
      %480 = vmatpush2.bf16.msra.mxu0 0
      %481 = vmatprep.subr.bf16.mxu0 0
      %482 = vmatpush2.bf16.msra.mxu0 0
      %483 = vmatprep.subr.bf16.mxu0 0
      %484 = vmatpush2.bf16.msra.mxu0 0
      %485 = vmatprep.subr.bf16.mxu0 0
      %486 = vmatpush2.bf16.msra.mxu0 0
      %487 = vmatprep.subr.bf16.mxu0 0
      %488 = vmatpush2.bf16.msra.mxu0 0
      %489 = vmatprep.subr.bf16.mxu0 0
      %490 = vmatpush2.bf16.msra.mxu0 0
      %491 = vmatprep.subr.bf16.mxu0 0
      %492 = vmatpush2.bf16.msra.mxu0 0
      %493 = vmatprep.mubr.bf16.mxu0 0
      %494 = vmatmul.mubr.bf16.gmra.mxu0 %v446
      %v495 = vpop.f32.mrf.mxu0
      %v496 = vadd.f32 0.0, %v495
      %v497 = vpop.f32.mrf.mxu0
      %v498 = vadd.f32 0.0, %v497
      %v499 = vpop.f32.mrf.mxu0
      %v500 = vpop.f32.mrf.mxu0
      %501 = vdwg.mxu0
      %502 = vmatprep.subr.bf16.mxu0 0
      %503 = vmatpush1.bf16.msra.mxu0 0
      %504 = vmatprep.subr.bf16.mxu0 %v459
      %505 = vmatpush1.bf16.msra.mxu0 %v456
      %506 = vmatprep.subr.bf16.mxu0 %v415
      %507 = vmatpush1.bf16.msra.mxu0 %v414
      %508 = vmatprep.subr.bf16.mxu0 %v411
      %509 = vmatpush1.bf16.msra.mxu0 %v410
      %510 = vmatprep.subr.bf16.mxu0 %v407
      %511 = vmatpush1.bf16.msra.mxu0 %v406
      %512 = vmatprep.subr.bf16.mxu0 %v403
      %513 = vmatpush1.bf16.msra.mxu0 %v402
      %514 = vmatprep.subr.bf16.mxu0 %v399
      %515 = vmatpush1.bf16.msra.mxu0 %v398
      %516 = vmatprep.subr.bf16.mxu0 %v395
      %517 = vmatpush1.bf16.msra.mxu0 %v394
      %518 = vmatprep.subr.bf16.mxu0 0
      %519 = vmatpush2.bf16.msra.mxu0 0
      %520 = vmatprep.subr.bf16.mxu0 0
      %521 = vmatpush2.bf16.msra.mxu0 0
      %522 = vmatprep.subr.bf16.mxu0 0
      %523 = vmatpush2.bf16.msra.mxu0 0
      %524 = vmatprep.subr.bf16.mxu0 0
      %525 = vmatpush2.bf16.msra.mxu0 0
      %526 = vmatprep.subr.bf16.mxu0 0
      %527 = vmatpush2.bf16.msra.mxu0 0
      %528 = vmatprep.subr.bf16.mxu0 0
      %529 = vmatpush2.bf16.msra.mxu0 0
      %530 = vmatprep.subr.bf16.mxu0 0
      %531 = vmatpush2.bf16.msra.mxu0 0
      %532 = vmatprep.subr.bf16.mxu0 0
      %533 = vmatpush2.bf16.msra.mxu0 0
      %534 = vmatprep.mubr.bf16.mxu0 0
      %535 = vmatmul.mubr.bf16.gmra.mxu0 %v446
      %v536 = vpop.f32.mrf.mxu0
      %v537 = vadd.f32 0.0, %v536
      %v538 = vpop.f32.mrf.mxu0
      %v539 = vadd.f32 0.0, %v538
      %v540 = vpop.f32.mrf.mxu0
      %v541 = vpop.f32.mrf.mxu0
      %542 = vdwg.mxu0
      %v547 = vcombine.low %v496, %v498
      %v548 = vcombine.low %v537, %v539
      %v550 = vunpack.c.l.s4 1983009808
      %v551 = vunpack.c.0.s8 %v550
      %v552 = vlaneseq
      %v553 = vshrl.u32 %v552, 7
      %v554 = vsub.s32 %v551, %v553
      %v555 = vrot.slane %v547, %v554
      %v557 = vunpack.c.l.s4 1983009808
      %v558 = vunpack.c.0.s8 %v557
      %v559 = vlaneseq
      %v560 = vshrl.u32 %v559, 7
      %v561 = vsub.s32 %v558, %v560
      %v562 = vrot.slane %v548, %v561
      %v563 = vcombine.low %v555, %v562
      %565 = vst [vmem:[%s269] sm:$0xff] %v563
      %v566 = vsel %vm448, %v496, 0.0
      %v567 = vrot.slane %v566, 4
      %v568 = vadd.f32 %v566, %v567
      %v569 = vrot.slane %v568, 2
      %v570 = vadd.f32 %v568, %v569
      %v571 = vrot.slane %v570, 1
      %v572 = vadd.f32 %v570, %v571
      %v573 = vsel %vm448, %v498, 0.0
      %v574 = vrot.slane %v573, 4
      %v575 = vadd.f32 %v573, %v574
      %v576 = vrot.slane %v575, 2
      %v577 = vadd.f32 %v575, %v576
      %v578 = vrot.slane %v577, 1
      %v579 = vadd.f32 %v577, %v578
      %v580 = vsel %vm448, %v537, 0.0
      %v581 = vrot.slane %v580, 4
      %v582 = vadd.f32 %v580, %v581
      %v583 = vrot.slane %v582, 2
      %v584 = vadd.f32 %v582, %v583
      %v585 = vrot.slane %v584, 1
      %v586 = vadd.f32 %v584, %v585
      %v587 = vsel %vm448, %v539, 0.0
      %v588 = vrot.slane %v587, 4
      %v589 = vadd.f32 %v587, %v588
      %v590 = vrot.slane %v589, 2
      %v591 = vadd.f32 %v589, %v590
      %v592 = vrot.slane %v591, 1
      %v593 = vadd.f32 %v591, %v592
      %v594 = vmul.f32 %v496, %v496
      %v595 = vmul.f32 %v498, %v498
      %v596 = vmul.f32 %v537, %v537
      %v597 = vmul.f32 %v539, %v539
      %v598 = vsel %vm448, %v594, 0.0
      %v599 = vrot.slane %v598, 4
      %v600 = vadd.f32 %v598, %v599
      %v601 = vrot.slane %v600, 2
      %v602 = vadd.f32 %v600, %v601
      %v603 = vrot.slane %v602, 1
      %v604 = vadd.f32 %v602, %v603
      %v605 = vsel %vm448, %v595, 0.0
      %v606 = vrot.slane %v605, 4
      %v607 = vadd.f32 %v605, %v606
      %v608 = vrot.slane %v607, 2
      %v609 = vadd.f32 %v607, %v608
      %v610 = vrot.slane %v609, 1
      %v611 = vadd.f32 %v609, %v610
      %v612 = vsel %vm448, %v596, 0.0
      %v613 = vrot.slane %v612, 4
      %v614 = vadd.f32 %v612, %v613
      %v615 = vrot.slane %v614, 2
      %v616 = vadd.f32 %v614, %v615
      %v617 = vrot.slane %v616, 1
      %v618 = vadd.f32 %v616, %v617
      %v619 = vsel %vm448, %v597, 0.0
      %v620 = vrot.slane %v619, 4
      %v621 = vadd.f32 %v619, %v620
      %v622 = vrot.slane %v621, 2
      %v623 = vadd.f32 %v621, %v622
      %v624 = vrot.slane %v623, 1
      %v625 = vadd.f32 %v623, %v624
      %v630 = vcombine.low %v572, %v579
      %v631 = vcombine.low %v586, %v593
      %v633 = vunpack.c.l.s4 1966171168
      %v634 = vunpack.c.0.s8 %v633
      %v635 = vlaneseq
      %v636 = vshrl.u32 %v635, 7
      %v637 = vsub.s32 %v634, %v636
      %v638 = vrot.slane %v630, %v637
      %v640 = vunpack.c.l.s4 1966171168
      %v641 = vunpack.c.0.s8 %v640
      %v642 = vlaneseq
      %v643 = vshrl.u32 %v642, 7
      %v644 = vsub.s32 %v641, %v643
      %v645 = vrot.slane %v631, %v644
      %v646 = vcombine.low %v638, %v645
      %v648 = vunpack.c.l.s4 1966171168
      %v649 = vunpack.c.0.s8 %v648
      %v650 = vlaneseq
      %v651 = vshrl.u32 %v650, 7
      %v652 = vsub.s32 %v649, %v651
      %v653 = vrot.slane %v646, %v652
      %v655 = vlaneseq
      %vm656 = vcmp.ge.s32.totalorder %v655, 0
      %vm657 = vcmp.lt.s32.totalorder %v655, 512
      %vm658 = vmand %vm656, %vm657
      %659 = vst.msk [vmem:[%s277] sm:$0xf] %vm658, %v653
      %v664 = vcombine.low %v604, %v611
      %v665 = vcombine.low %v618, %v625
      %v667 = vunpack.c.l.s4 1966171168
      %v668 = vunpack.c.0.s8 %v667
      %v669 = vlaneseq
      %v670 = vshrl.u32 %v669, 7
      %v671 = vsub.s32 %v668, %v670
      %v672 = vrot.slane %v664, %v671
      %v674 = vunpack.c.l.s4 1966171168
      %v675 = vunpack.c.0.s8 %v674
      %v676 = vlaneseq
      %v677 = vshrl.u32 %v676, 7
      %v678 = vsub.s32 %v675, %v677
      %v679 = vrot.slane %v665, %v678
      %v680 = vcombine.low %v672, %v679
      %v682 = vunpack.c.l.s4 1966171168
      %v683 = vunpack.c.0.s8 %v682
      %v684 = vlaneseq
      %v685 = vshrl.u32 %v684, 7
      %v686 = vsub.s32 %v683, %v685
      %v687 = vrot.slane %v680, %v686
      %689 = vst.msk [vmem:[%s285] sm:$0xf] %vm658, %v687
      %p690 = scmp.lt.s32.totalorder %s20, 15
      %s691 = scalar_select %p690, %s20, 15
      %p692 = scmp.lt.s32.totalorder %s21, 0
      %s693 = scalar_select %p692, %s21, 0
      %s694 = smul.addr %s693, 4
      %s695 = smul.addr %s691, 4
      %s696 = sadd.s32 %s694, %s695
      %s697 = smul.addr %s696, 2
      %s698 = scalar_lea.vmem %s2, %s697
      %p699 = scmp.lt.s32.totalorder %s20, 15
      %s700 = scalar_select %p699, %s20, 15
      %p701 = scmp.lt.s32.totalorder %s21, 0
      %s702 = scalar_select %p701, %s21, 0
      %s703 = smul.addr %s702, 4
      %s704 = smul.addr %s700, 4
      %s705 = sadd.s32 %s703, %s704
      %s706 = scalar_lea.vmem %s3, %s705
      %p707 = scmp.lt.s32.totalorder %s20, 15
      %s708 = scalar_select %p707, %s20, 15
      %p709 = scmp.lt.s32.totalorder %s21, 0
      %s710 = scalar_select %p709, %s21, 0
      %s711 = smul.addr %s710, 4
      %s712 = smul.addr %s708, 4
      %s713 = sadd.s32 %s711, %s712
      %s714 = scalar_lea.vmem %s4, %s713
      // Predicated region
      $region29: #{generator_forward.7} parent=27 // pred_check
        %p715 = pneg %p102
      $region30: #{generator_forward.7} parent=27 // pred_check_branch
        %717 = sbr.rel (%p715) target = $region32
      $region31: #{generator_forward.7} parent=27 // pred_region
        _
      $region32: #{generator_forward.7} parent=27 // pred_fallthru
        _
      // Predicated region
      $region33: #{generator_forward.7} parent=27 // pred_check
        %p718 = pneg %p130
      $region34: #{generator_forward.7} parent=27 // pred_check_branch
        %720 = sbr.rel (%p718) target = $region36
      $region35: #{generator_forward.7} parent=27 // pred_region
        _
      $region36: #{generator_forward.7} parent=27 // pred_fallthru
        _
      // Predicated region
      $region37: #{generator_forward.7} parent=27 // pred_check
        %p721 = pneg %p158
      $region38: #{generator_forward.7} parent=27 // pred_check_branch
        %723 = sbr.rel (%p721) target = $region40
      $region39: #{generator_forward.7} parent=27 // pred_region
        _
      $region40: #{generator_forward.7} parent=27 // pred_fallthru
        _
    $region28: #{generator_forward.7} parent=5 // pred_fallthru
      _
    %p724 = scmp.le.s32.totalorder 2, %s11
    // Predicated region
    $region41: #{generator_forward.7} parent=5 // pred_check
      %p725 = pneg %p724
    $region42: #{generator_forward.7} parent=5 // pred_check_branch
      %727 = sbr.rel (%p725) target = $region44
    $region43: #{generator_forward.7} parent=5 // pred_region
      %s728 = ssub.s32 %s11, 2
      // Predicated region
      $region45: #{generator_forward.7} parent=43 // pred_check
        %p729 = pneg %p108
      $region46: #{generator_forward.7} parent=43 // pred_check_branch
        %731 = sbr.rel (%p729) target = $region48
      $region47: #{generator_forward.7} parent=43 // pred_region
        %p732 = scmp.lt.s32.totalorder %s22, 15
        %s733 = scalar_select %p732, %s22, 15
        %p734 = scmp.lt.s32.totalorder %s23, 0
        %s735 = scalar_select %p734, %s23, 0
        %s736 = smul.addr %s735, 4
        %s737 = smul.addr %s733, 4
        %s738 = sadd.s32 %s736, %s737
        %s739 = smul.addr %s738, 2
        %s740 = scalar_lea.vmem %s2, %s739
      $region48: #{generator_forward.7} parent=43 // pred_fallthru
        _
      // Predicated region
      $region49: #{generator_forward.7} parent=43 // pred_check
        %p741 = pneg %p136
      $region50: #{generator_forward.7} parent=43 // pred_check_branch
        %743 = sbr.rel (%p741) target = $region52
      $region51: #{generator_forward.7} parent=43 // pred_region
        %p744 = scmp.lt.s32.totalorder %s22, 15
        %s745 = scalar_select %p744, %s22, 15
        %p746 = scmp.lt.s32.totalorder %s23, 0
        %s747 = scalar_select %p746, %s23, 0
        %s748 = smul.addr %s747, 4
        %s749 = smul.addr %s745, 4
        %s750 = sadd.s32 %s748, %s749
        %s751 = scalar_lea.vmem %s3, %s750
      $region52: #{generator_forward.7} parent=43 // pred_fallthru
        _
      // Predicated region
      $region53: #{generator_forward.7} parent=43 // pred_check
        %p752 = pneg %p164
      $region54: #{generator_forward.7} parent=43 // pred_check_branch
        %754 = sbr.rel (%p752) target = $region56
      $region55: #{generator_forward.7} parent=43 // pred_region
        %p755 = scmp.lt.s32.totalorder %s22, 15
        %s756 = scalar_select %p755, %s22, 15
        %p757 = scmp.lt.s32.totalorder %s23, 0
        %s758 = scalar_select %p757, %s23, 0
        %s759 = smul.addr %s758, 4
        %s760 = smul.addr %s756, 4
        %s761 = sadd.s32 %s759, %s760
        %s762 = scalar_lea.vmem %s4, %s761
      $region56: #{generator_forward.7} parent=43 // pred_fallthru
        _
    $region44: #{generator_forward.7} parent=5 // pred_fallthru
      _
  $region6: #{generator_forward.7} parent=0 // loop_footer
    %s15 = sadd.s32 1, %s11
  $region7: #{generator_forward.7} parent=0 // loop_footer_branch
    %10 = sbr.rel target = $region3
  $region8: #{generator_forward.7} parent=0 // loop_exit
    _

// kernel: generator_forward.8
$region0: #{generator_forward.8}
  #allocation0 [shape = 'u32[]', space=smem, size = 0x4, offset = 0x4, fixed_abs, tag = 'smem constant byte address 0x4 - core index']
  #allocation1 [shape = 'u32[144,128]{1,0:T(1,128)}', space=vmem, size = 0x12000, scoped, tag = 'internal scratch']
  %s0 = inlined_call_operand.vmem [shape: f32[16,2,512], index: 0, kind: input, shape index: {}]
  %s1 = inlined_call_operand.vmem [shape: f32[1,1,512], index: 1, kind: input, shape index: {}]
  %s2 = inlined_call_operand.vmem [shape: f32[1,1,512], index: 2, kind: input, shape index: {}]
  %s3 = inlined_call_operand.vmem [shape: bf16[16,2,512], index: 3, kind: output, shape index: {}]
  %s4 = sld [smem:[#allocation0]]
  $region45: #{generator_forward.8} parent=0
    _
  %s6 = ssub.s32 1, %s4
  %s7 = scalar_select 0, %s6, %s4
  loop: start=0, step=1, limit=18
  $region2: #{generator_forward.8} parent=0 // loop_pre_header
    _
  $region3: #{generator_forward.8} parent=0 // loop_header
    %s9 = sphi 0, %s13
    %p10 = scmp.ge.s32.totalorder %s9, 18
    %s16 = sphi 0, %s28
    %s17 = sphi 0, %s24
    %s18 = sphi 0, %s16
    %s19 = sphi 0, %s17
    %s20 = sphi 0, %s18
    %s21 = sphi 0, %s19
    %s33 = sphi 0, %s35
    %s36 = sphi 0, %s33
    %s37 = sphi 0, %s36
    %s53 = sphi 0, %s37
    %s57 = sphi 0, %s57
    %s59 = sphi 0, %s57
    %s60 = sphi 0, %s59
    %s74 = sphi 0, %s60
    %s78 = sphi 0, %s78
    %s80 = sphi 0, %s78
    %s81 = sphi 0, %s80
    %s95 = sphi 0, %s81
    %s103 = sphi 0, %s105
    %s106 = sphi 0, %s103
    %s107 = sphi 0, %s106
    %s123 = sphi 0, %s107
  $region4: #{generator_forward.8} parent=0 // loop_header_branch
    %12 = sbr.rel (%p10) target = $region8
  $region5: #{generator_forward.8} parent=0 // loop_body
    %s14 = ssub.s32 %s9, 1
    %s15 = ssub.s32 %s9, 2
    %s22 = sadd.s32 1, %s17
    %p23 = scmp.ge.s32.totalorder %s22, 1
    %s24 = scalar_select %p23, 0, %s22
    %s25 = sadd.s32 1, %s16
    %s26 = scalar_select %p23, %s25, %s16
    %p27 = scmp.ge.s32.totalorder %s26, 16
    %s28 = scalar_select %p27, 0, %s26
    %s29 = ssub.s32 %s16, %s28
    %s30 = ssub.s32 %s17, %s24
    %s31 = sor.u32 %s29, %s30
    %p32 = scmp.eq.s32.totalorder %s31, 0
    %s34 = sadd.s32 %s33, 1
    %s35 = scalar_select %p32, %s33, %s34
    %p38 = pneg %p32
    %p39 = scmp.eq.s32.totalorder %s9, 15
    %p40 = por %p38, %p39
    %p41 = scmp.ne.s32.totalorder %s33, %s36
    %p42 = scmp.eq.s32.totalorder %s9, 0
    %p43 = por %p41, %p42
    %p44 = scmp.ne.s32.totalorder %s33, %s36
    %p45 = scmp.eq.s32.totalorder %s14, 15
    %p46 = por %p44, %p45
    %p47 = scmp.ne.s32.totalorder %s36, %s37
    %p48 = scmp.eq.s32.totalorder %s14, 0
    %p49 = por %p47, %p48
    %p50 = scmp.ne.s32.totalorder %s36, %s37
    %p51 = scmp.eq.s32.totalorder %s15, 15
    %p52 = por %p50, %p51
    %p54 = scmp.ne.s32.totalorder %s37, %s53
    %p55 = scmp.eq.s32.totalorder %s15, 0
    %p56 = por %p54, %p55
    %s58 = sadd.s32 %s57, 1
    %p61 = scmp.eq.s32.totalorder %s9, 15
    %p62 = scmp.ne.s32.totalorder %s57, %s59
    %p63 = scmp.eq.s32.totalorder %s9, 0
    %p64 = por %p62, %p63
    %p65 = scmp.ne.s32.totalorder %s57, %s59
    %p66 = scmp.eq.s32.totalorder %s14, 15
    %p67 = por %p65, %p66
    %p68 = scmp.ne.s32.totalorder %s59, %s60
    %p69 = scmp.eq.s32.totalorder %s14, 0
    %p70 = por %p68, %p69
    %p71 = scmp.ne.s32.totalorder %s59, %s60
    %p72 = scmp.eq.s32.totalorder %s15, 15
    %p73 = por %p71, %p72
    %p75 = scmp.ne.s32.totalorder %s60, %s74
    %p76 = scmp.eq.s32.totalorder %s15, 0
    %p77 = por %p75, %p76
    %s79 = sadd.s32 %s78, 1
    %p82 = scmp.eq.s32.totalorder %s9, 15
    %p83 = scmp.ne.s32.totalorder %s78, %s80
    %p84 = scmp.eq.s32.totalorder %s9, 0
    %p85 = por %p83, %p84
    %p86 = scmp.ne.s32.totalorder %s78, %s80
    %p87 = scmp.eq.s32.totalorder %s14, 15
    %p88 = por %p86, %p87
    %p89 = scmp.ne.s32.totalorder %s80, %s81
    %p90 = scmp.eq.s32.totalorder %s14, 0
    %p91 = por %p89, %p90
    %p92 = scmp.ne.s32.totalorder %s80, %s81
    %p93 = scmp.eq.s32.totalorder %s15, 15
    %p94 = por %p92, %p93
    %p96 = scmp.ne.s32.totalorder %s81, %s95
    %p97 = scmp.eq.s32.totalorder %s15, 0
    %p98 = por %p96, %p97
    %s99 = ssub.s32 %s16, %s28
    %s100 = ssub.s32 %s17, %s24
    %s101 = sor.u32 %s99, %s100
    %p102 = scmp.eq.s32.totalorder %s101, 0
    %s104 = sadd.s32 %s103, 1
    %s105 = scalar_select %p102, %s103, %s104
    %p108 = pneg %p102
    %p109 = scmp.eq.s32.totalorder %s9, 15
    %p110 = por %p108, %p109
    %p111 = scmp.ne.s32.totalorder %s103, %s106
    %p112 = scmp.eq.s32.totalorder %s9, 0
    %p113 = por %p111, %p112
    %p114 = scmp.ne.s32.totalorder %s103, %s106
    %p115 = scmp.eq.s32.totalorder %s14, 15
    %p116 = por %p114, %p115
    %p117 = scmp.ne.s32.totalorder %s106, %s107
    %p118 = scmp.eq.s32.totalorder %s14, 0
    %p119 = por %p117, %p118
    %p120 = scmp.ne.s32.totalorder %s106, %s107
    %p121 = scmp.eq.s32.totalorder %s15, 15
    %p122 = por %p120, %p121
    %p124 = scmp.ne.s32.totalorder %s107, %s123
    %p125 = scmp.eq.s32.totalorder %s15, 0
    %p126 = por %p124, %p125
    %p127 = scmp.le.s32.totalorder 1, %s9
    %p128 = scmp.lt.s32.totalorder %s9, 17
    %p129 = pnand %p127, %p128
    %p130 = pneg %p129
    // Predicated region
    $region9: #{generator_forward.8} parent=5 // pred_check
      _
    $region10: #{generator_forward.8} parent=5 // pred_check_branch
      %132 = sbr.rel (%p129) target = $region12
    $region11: #{generator_forward.8} parent=5 // pred_region
      %s133 = ssub.s32 %s9, 1
      // Predicated region
      $region13: #{generator_forward.8} parent=11 // pred_check
        %p134 = pneg %p70
      $region14: #{generator_forward.8} parent=11 // pred_check_branch
        %136 = sbr.rel (%p134) target = $region16
      $region15: #{generator_forward.8} parent=11 // pred_region
        _
      $region16: #{generator_forward.8} parent=11 // pred_fallthru
        _
      // Predicated region
      $region17: #{generator_forward.8} parent=11 // pred_check
        %p137 = pneg %p91
      $region18: #{generator_forward.8} parent=11 // pred_check_branch
        %139 = sbr.rel (%p137) target = $region20
      $region19: #{generator_forward.8} parent=11 // pred_region
        _
      $region20: #{generator_forward.8} parent=11 // pred_fallthru
        _
    $region12: #{generator_forward.8} parent=5 // pred_fallthru
      _
    %p140 = scmp.lt.s32.totalorder %s9, 16
    // Predicated region
    $region21: #{generator_forward.8} parent=5 // pred_check
      %p141 = pneg %p140
    $region22: #{generator_forward.8} parent=5 // pred_check_branch
      %143 = sbr.rel (%p141) target = $region24
    $region23: #{generator_forward.8} parent=5 // pred_region
      // Predicated region
      $region25: #{generator_forward.8} parent=23 // pred_check
        %p144 = pneg %p43
      $region26: #{generator_forward.8} parent=23 // pred_check_branch
        %146 = sbr.rel (%p144) target = $region28
      $region27: #{generator_forward.8} parent=23 // pred_region
        %p147 = scmp.lt.s32.totalorder %s16, 15
        %s148 = scalar_select %p147, %s16, 15
        %p149 = scmp.lt.s32.totalorder %s17, 0
        %s150 = scalar_select %p149, %s17, 0
        %s151 = smul.addr %s150, 4
        %s152 = smul.addr %s148, 4
        %s153 = sadd.s32 %s151, %s152
        %s154 = smul.addr %s153, 2
        %s155 = scalar_lea.vmem %s0, %s154
      $region28: #{generator_forward.8} parent=23 // pred_fallthru
        _
    $region24: #{generator_forward.8} parent=5 // pred_fallthru
      _
    %p156 = scmp.le.s32.totalorder 1, %s9
    %p157 = scmp.lt.s32.totalorder %s9, 17
    %p158 = pnand %p156, %p157
    %p159 = pneg %p158
    // Predicated region
    $region29: #{generator_forward.8} parent=5 // pred_check
      _
    $region30: #{generator_forward.8} parent=5 // pred_check_branch
      %161 = sbr.rel (%p158) target = $region32
    $region31: #{generator_forward.8} parent=5 // pred_region
      %s162 = ssub.s32 %s9, 1
      %p163 = scmp.lt.s32.totalorder %s18, 15
      %s164 = scalar_select %p163, %s18, 15
      %p165 = scmp.lt.s32.totalorder %s19, 0
      %s166 = scalar_select %p165, %s19, 0
      %s167 = smul.addr %s166, 4
      %s168 = smul.addr %s164, 4
      %s169 = sadd.s32 %s167, %s168
      %s170 = smul.addr %s169, 2
      %s171 = scalar_lea.vmem %s0, %s170
      %p172 = pneg %p49
      %p173 = pneg %p46
      %p174 = pneg %p70
      %p175 = pneg %p67
      %p176 = pneg %p91
      %p177 = pneg %p88
      %p178 = pneg %p119
      %p179 = pneg %p116
      %p180 = scmp.lt.s32.totalorder %s18, 15
      %s181 = scalar_select %p180, %s18, 15
      %p182 = scmp.lt.s32.totalorder %s19, 0
      %s183 = scalar_select %p182, %s19, 0
      %s184 = smul.addr %s183, 4
      %s185 = smul.addr %s181, 4
      %s186 = sadd.s32 %s184, %s185
      %s187 = scalar_lea.vmem %s3, %s186
      %p188 = scmp.lt.s32.totalorder %s18, 15
      %s189 = scalar_select %p188, %s18, 15
      %p190 = scmp.lt.s32.totalorder %s19, 0
      %s191 = scalar_select %p190, %s19, 0
      %s192 = smul.addr %s191, 4
      %s193 = smul.addr %s189, 4
      %s194 = sadd.s32 %s192, %s193
      %s195 = smul.addr %s194, 2
      %s196 = scalar_lea.vmem %s0, %s195
      %p197 = scmp.lt.s32.totalorder %s18, 15
      %s198 = scalar_select %p197, %s18, 15
      %p199 = scmp.lt.s32.totalorder %s19, 0
      %s200 = scalar_select %p199, %s19, 0
      %s201 = smul.addr %s200, 4
      %s202 = smul.addr %s198, 4
      %s203 = sadd.s32 %s201, %s202
      %s204 = scalar_lea.vmem %s3, %s203
      %v205 = vld [vmem:[%s196] sm:$0xff]
      %v206 = vld [vmem:[%s1] sm:$0xf]
      %v208 = vlaneseq
      %v209 = vshrl.u32 %v208, 7
      %v210 = vsub.s32 0, %v209
      %v211 = vrot.slane %v206, %v210
      %v212 = vlaneseq
      %v213 = vshrl.u32 %v212, 7
      %v214 = vsub.s32 1, %v213
      %v215 = vrot.slane %v206, %v214
      %v216 = vlaneseq
      %v217 = vshrl.u32 %v216, 7
      %v218 = vsub.s32 2, %v217
      %v219 = vrot.slane %v206, %v218
      %v220 = vlaneseq
      %v221 = vshrl.u32 %v220, 7
      %v222 = vsub.s32 3, %v221
      %v223 = vrot.slane %v206, %v222
      %v224 = vcombine.low %v211, %v215
      %v225 = vcombine.low %v219, %v223
      %v227 = vunpack.c.l.s4 1983009808
      %v228 = vunpack.c.0.s8 %v227
      %v229 = vlaneseq
      %v230 = vshrl.u32 %v229, 7
      %v231 = vsub.s32 %v228, %v230
      %v232 = vrot.slane %v224, %v231
      %v234 = vunpack.c.l.s4 1983009808
      %v235 = vunpack.c.0.s8 %v234
      %v236 = vlaneseq
      %v237 = vshrl.u32 %v236, 7
      %v238 = vsub.s32 %v235, %v237
      %v239 = vrot.slane %v225, %v238
      %v240 = vcombine.low %v232, %v239
      %v242 = vmul.f32 %v205, %v240
      %v243 = vld [vmem:[%s2] sm:$0xf]
      %v245 = vlaneseq
      %v246 = vshrl.u32 %v245, 7
      %v247 = vsub.s32 0, %v246
      %v248 = vrot.slane %v243, %v247
      %v249 = vlaneseq
      %v250 = vshrl.u32 %v249, 7
      %v251 = vsub.s32 1, %v250
      %v252 = vrot.slane %v243, %v251
      %v253 = vlaneseq
      %v254 = vshrl.u32 %v253, 7
      %v255 = vsub.s32 2, %v254
      %v256 = vrot.slane %v243, %v255
      %v257 = vlaneseq
      %v258 = vshrl.u32 %v257, 7
      %v259 = vsub.s32 3, %v258
      %v260 = vrot.slane %v243, %v259
      %v261 = vcombine.low %v248, %v252
      %v262 = vcombine.low %v256, %v260
      %v264 = vunpack.c.l.s4 1983009808
      %v265 = vunpack.c.0.s8 %v264
      %v266 = vlaneseq
      %v267 = vshrl.u32 %v266, 7
      %v268 = vsub.s32 %v265, %v267
      %v269 = vrot.slane %v261, %v268
      %v271 = vunpack.c.l.s4 1983009808
      %v272 = vunpack.c.0.s8 %v271
      %v273 = vlaneseq
      %v274 = vshrl.u32 %v273, 7
      %v275 = vsub.s32 %v272, %v274
      %v276 = vrot.slane %v262, %v275
      %v277 = vcombine.low %v269, %v276
      %v279 = vadd.f32 %v242, %v277
      %v280 = vmax.f32 %v279, 0.0
      %v282 = vcombine.high %v280, %v280
      %v284 = vunpack.c.l.s4 1983009808
      %v285 = vunpack.c.0.s8 %v284
      %v286 = vlaneseq
      %v287 = vshrl.u32 %v286, 7
      %v288 = vsub.s32 %v285, %v287
      %v289 = vrot.slane %v280, %v288
      %v291 = vunpack.c.l.s4 1983009808
      %v292 = vunpack.c.0.s8 %v291
      %v293 = vlaneseq
      %v294 = vshrl.u32 %v293, 7
      %v295 = vsub.s32 %v292, %v294
      %v296 = vrot.slane %v282, %v295
      %v297 = vcombine.high %v289, %v289
      %v298 = vcombine.high %v296, %v296
      %v303 = vpack.c.bf16 %v289, %v289
      %v304 = vpack.c.bf16 %v297, %v297
      %v305 = vpack.c.bf16 %v296, %v296
      %v306 = vpack.c.bf16 %v298, %v298
      %v311 = vcombine.low %v303, %v304
      %v312 = vcombine.low %v305, %v306
      %v314 = vunpack.c.l.s4 1966171168
      %v315 = vunpack.c.0.s8 %v314
      %v316 = vlaneseq
      %v317 = vshrl.u32 %v316, 7
      %v318 = vsub.s32 %v315, %v317
      %v319 = vrot.slane %v311, %v318
      %v321 = vunpack.c.l.s4 1966171168
      %v322 = vunpack.c.0.s8 %v321
      %v323 = vlaneseq
      %v324 = vshrl.u32 %v323, 7
      %v325 = vsub.s32 %v322, %v324
      %v326 = vrot.slane %v312, %v325
      %v327 = vcombine.low %v319, %v326
      %v329 = vunpack.c.l.s4 1966171168
      %v330 = vunpack.c.0.s8 %v329
      %v331 = vlaneseq
      %v332 = vshrl.u32 %v331, 7
      %v333 = vsub.s32 %v330, %v332
      %v334 = vrot.slane %v327, %v333
      %336 = vst [vmem:[%s204] sm:$0xf] %v334
      %p337 = scmp.lt.s32.totalorder %s18, 15
      %s338 = scalar_select %p337, %s18, 15
      %p339 = scmp.lt.s32.totalorder %s19, 0
      %s340 = scalar_select %p339, %s19, 0
      %s341 = smul.addr %s340, 4
      %s342 = smul.addr %s338, 4
      %s343 = sadd.s32 %s341, %s342
      %s344 = scalar_lea.vmem %s3, %s343
      // Predicated region
      $region33: #{generator_forward.8} parent=31 // pred_check
        %p345 = pneg %p116
      $region34: #{generator_forward.8} parent=31 // pred_check_branch
        %347 = sbr.rel (%p345) target = $region36
      $region35: #{generator_forward.8} parent=31 // pred_region
        _
      $region36: #{generator_forward.8} parent=31 // pred_fallthru
        _
    $region32: #{generator_forward.8} parent=5 // pred_fallthru
      _
    %p348 = scmp.le.s32.totalorder 2, %s9
    // Predicated region
    $region37: #{generator_forward.8} parent=5 // pred_check
      %p349 = pneg %p348
    $region38: #{generator_forward.8} parent=5 // pred_check_branch
      %351 = sbr.rel (%p349) target = $region40
    $region39: #{generator_forward.8} parent=5 // pred_region
      %s352 = ssub.s32 %s9, 2
      // Predicated region
      $region41: #{generator_forward.8} parent=39 // pred_check
        %p353 = pneg %p122
      $region42: #{generator_forward.8} parent=39 // pred_check_branch
        %355 = sbr.rel (%p353) target = $region44
      $region43: #{generator_forward.8} parent=39 // pred_region
        %p356 = scmp.lt.s32.totalorder %s20, 15
        %s357 = scalar_select %p356, %s20, 15
        %p358 = scmp.lt.s32.totalorder %s21, 0
        %s359 = scalar_select %p358, %s21, 0
        %s360 = smul.addr %s359, 4
        %s361 = smul.addr %s357, 4
        %s362 = sadd.s32 %s360, %s361
        %s363 = scalar_lea.vmem %s3, %s362
      $region44: #{generator_forward.8} parent=39 // pred_fallthru
        _
    $region40: #{generator_forward.8} parent=5 // pred_fallthru
      _
  $region6: #{generator_forward.8} parent=0 // loop_footer
    %s13 = sadd.s32 1, %s9
  $region7: #{generator_forward.8} parent=0 // loop_footer_branch
    %8 = sbr.rel target = $region3
  $region8: #{generator_forward.8} parent=0 // loop_exit
    _

// kernel: generator_forward.9
$region0: #{generator_forward.9}
  #allocation0 [shape = 'u32[]', space=smem, size = 0x4, offset = 0x4, fixed_abs, tag = 'smem constant byte address 0x4 - core index']
  #allocation1 [shape = 'u32[144,128]{1,0:T(1,128)}', space=vmem, size = 0x12000, scoped, tag = 'internal scratch']
  %s0 = inlined_call_operand.vmem [shape: bf16[4,32,2048], index: 0, kind: input, shape index: {}]
  %s1 = inlined_call_operand.vmem [shape: bf16[4,2048,256], index: 1, kind: input, shape index: {}]
  %s2 = inlined_call_operand.vmem [shape: f32[4,32,256], index: 2, kind: output, shape index: {0}]
  %s3 = inlined_call_operand.vmem [shape: f32[4,1,1,256], index: 3, kind: output, shape index: {1}]
  %s4 = inlined_call_operand.vmem [shape: f32[4,1,1,256], index: 4, kind: output, shape index: {2}]
  %5 = xla_tuple %s2, %s3, %s4
  %s6 = sld [smem:[#allocation0]]
  $region57: #{generator_forward.9} parent=0
    _
  %s8 = ssub.s32 1, %s6
  %s9 = scalar_select 0, %s8, %s6
  loop: start=0, step=1, limit=6
  $region2: #{generator_forward.9} parent=0 // loop_pre_header
    _
  $region3: #{generator_forward.9} parent=0 // loop_header
    %s11 = sphi 0, %s15
    %p12 = scmp.ge.s32.totalorder %s11, 6
    %s18 = sphi 0, %s30
    %s19 = sphi 0, %s26
    %s20 = sphi 0, %s18
    %s21 = sphi 0, %s19
    %s22 = sphi 0, %s20
    %s23 = sphi 0, %s21
    %s35 = sphi 0, %s37
    %s38 = sphi 0, %s35
    %s39 = sphi 0, %s38
    %s55 = sphi 0, %s39
    %s61 = sphi 0, %s63
    %s64 = sphi 0, %s61
    %s65 = sphi 0, %s64
    %s81 = sphi 0, %s65
    %s89 = sphi 0, %s91
    %s92 = sphi 0, %s89
    %s93 = sphi 0, %s92
    %s109 = sphi 0, %s93
    %s117 = sphi 0, %s119
    %s120 = sphi 0, %s117
    %s121 = sphi 0, %s120
    %s137 = sphi 0, %s121
    %s145 = sphi 0, %s147
    %s148 = sphi 0, %s145
    %s149 = sphi 0, %s148
    %s165 = sphi 0, %s149
  $region4: #{generator_forward.9} parent=0 // loop_header_branch
    %14 = sbr.rel (%p12) target = $region8
  $region5: #{generator_forward.9} parent=0 // loop_body
    %s16 = ssub.s32 %s11, 1
    %s17 = ssub.s32 %s11, 2
    %s24 = sadd.s32 1, %s19
    %p25 = scmp.ge.s32.totalorder %s24, 1
    %s26 = scalar_select %p25, 0, %s24
    %s27 = sadd.s32 1, %s18
    %s28 = scalar_select %p25, %s27, %s18
    %p29 = scmp.ge.s32.totalorder %s28, 4
    %s30 = scalar_select %p29, 0, %s28
    %s31 = ssub.s32 %s18, %s30
    %s32 = ssub.s32 %s19, %s26
    %s33 = sor.u32 %s31, %s32
    %p34 = scmp.eq.s32.totalorder %s33, 0
    %s36 = sadd.s32 %s35, 1
    %s37 = scalar_select %p34, %s35, %s36
    %p40 = pneg %p34
    %p41 = scmp.eq.s32.totalorder %s11, 3
    %p42 = por %p40, %p41
    %p43 = scmp.ne.s32.totalorder %s35, %s38
    %p44 = scmp.eq.s32.totalorder %s11, 0
    %p45 = por %p43, %p44
    %p46 = scmp.ne.s32.totalorder %s35, %s38
    %p47 = scmp.eq.s32.totalorder %s16, 3
    %p48 = por %p46, %p47
    %p49 = scmp.ne.s32.totalorder %s38, %s39
    %p50 = scmp.eq.s32.totalorder %s16, 0
    %p51 = por %p49, %p50
    %p52 = scmp.ne.s32.totalorder %s38, %s39
    %p53 = scmp.eq.s32.totalorder %s17, 3
    %p54 = por %p52, %p53
    %p56 = scmp.ne.s32.totalorder %s39, %s55
    %p57 = scmp.eq.s32.totalorder %s17, 0
    %p58 = por %p56, %p57
    %s59 = ssub.s32 %s18, %s30
    %p60 = scmp.eq.s32.totalorder %s59, 0
    %s62 = sadd.s32 %s61, 1
    %s63 = scalar_select %p60, %s61, %s62
    %p66 = pneg %p60
    %p67 = scmp.eq.s32.totalorder %s11, 3
    %p68 = por %p66, %p67
    %p69 = scmp.ne.s32.totalorder %s61, %s64
    %p70 = scmp.eq.s32.totalorder %s11, 0
    %p71 = por %p69, %p70
    %p72 = scmp.ne.s32.totalorder %s61, %s64
    %p73 = scmp.eq.s32.totalorder %s16, 3
    %p74 = por %p72, %p73
    %p75 = scmp.ne.s32.totalorder %s64, %s65
    %p76 = scmp.eq.s32.totalorder %s16, 0
    %p77 = por %p75, %p76
    %p78 = scmp.ne.s32.totalorder %s64, %s65
    %p79 = scmp.eq.s32.totalorder %s17, 3
    %p80 = por %p78, %p79
    %p82 = scmp.ne.s32.totalorder %s65, %s81
    %p83 = scmp.eq.s32.totalorder %s17, 0
    %p84 = por %p82, %p83
    %s85 = ssub.s32 %s18, %s30
    %s86 = ssub.s32 %s19, %s26
    %s87 = sor.u32 %s85, %s86
    %p88 = scmp.eq.s32.totalorder %s87, 0
    %s90 = sadd.s32 %s89, 1
    %s91 = scalar_select %p88, %s89, %s90
    %p94 = pneg %p88
    %p95 = scmp.eq.s32.totalorder %s11, 3
    %p96 = por %p94, %p95
    %p97 = scmp.ne.s32.totalorder %s89, %s92
    %p98 = scmp.eq.s32.totalorder %s11, 0
    %p99 = por %p97, %p98
    %p100 = scmp.ne.s32.totalorder %s89, %s92
    %p101 = scmp.eq.s32.totalorder %s16, 3
    %p102 = por %p100, %p101
    %p103 = scmp.ne.s32.totalorder %s92, %s93
    %p104 = scmp.eq.s32.totalorder %s16, 0
    %p105 = por %p103, %p104
    %p106 = scmp.ne.s32.totalorder %s92, %s93
    %p107 = scmp.eq.s32.totalorder %s17, 3
    %p108 = por %p106, %p107
    %p110 = scmp.ne.s32.totalorder %s93, %s109
    %p111 = scmp.eq.s32.totalorder %s17, 0
    %p112 = por %p110, %p111
    %s113 = ssub.s32 %s18, %s30
    %s114 = ssub.s32 %s19, %s26
    %s115 = sor.u32 %s113, %s114
    %p116 = scmp.eq.s32.totalorder %s115, 0
    %s118 = sadd.s32 %s117, 1
    %s119 = scalar_select %p116, %s117, %s118
    %p122 = pneg %p116
    %p123 = scmp.eq.s32.totalorder %s11, 3
    %p124 = por %p122, %p123
    %p125 = scmp.ne.s32.totalorder %s117, %s120
    %p126 = scmp.eq.s32.totalorder %s11, 0
    %p127 = por %p125, %p126
    %p128 = scmp.ne.s32.totalorder %s117, %s120
    %p129 = scmp.eq.s32.totalorder %s16, 3
    %p130 = por %p128, %p129
    %p131 = scmp.ne.s32.totalorder %s120, %s121
    %p132 = scmp.eq.s32.totalorder %s16, 0
    %p133 = por %p131, %p132
    %p134 = scmp.ne.s32.totalorder %s120, %s121
    %p135 = scmp.eq.s32.totalorder %s17, 3
    %p136 = por %p134, %p135
    %p138 = scmp.ne.s32.totalorder %s121, %s137
    %p139 = scmp.eq.s32.totalorder %s17, 0
    %p140 = por %p138, %p139
    %s141 = ssub.s32 %s18, %s30
    %s142 = ssub.s32 %s19, %s26
    %s143 = sor.u32 %s141, %s142
    %p144 = scmp.eq.s32.totalorder %s143, 0
    %s146 = sadd.s32 %s145, 1
    %s147 = scalar_select %p144, %s145, %s146
    %p150 = pneg %p144
    %p151 = scmp.eq.s32.totalorder %s11, 3
    %p152 = por %p150, %p151
    %p153 = scmp.ne.s32.totalorder %s145, %s148
    %p154 = scmp.eq.s32.totalorder %s11, 0
    %p155 = por %p153, %p154
    %p156 = scmp.ne.s32.totalorder %s145, %s148
    %p157 = scmp.eq.s32.totalorder %s16, 3
    %p158 = por %p156, %p157
    %p159 = scmp.ne.s32.totalorder %s148, %s149
    %p160 = scmp.eq.s32.totalorder %s16, 0
    %p161 = por %p159, %p160
    %p162 = scmp.ne.s32.totalorder %s148, %s149
    %p163 = scmp.eq.s32.totalorder %s17, 3
    %p164 = por %p162, %p163
    %p166 = scmp.ne.s32.totalorder %s149, %s165
    %p167 = scmp.eq.s32.totalorder %s17, 0
    %p168 = por %p166, %p167
    %p169 = scmp.le.s32.totalorder 1, %s11
    %p170 = scmp.lt.s32.totalorder %s11, 5
    %p171 = pnand %p169, %p170
    %p172 = pneg %p171
    // Predicated region
    $region9: #{generator_forward.9} parent=5 // pred_check
      _
    $region10: #{generator_forward.9} parent=5 // pred_check_branch
      %174 = sbr.rel (%p171) target = $region12
    $region11: #{generator_forward.9} parent=5 // pred_region
      %s175 = ssub.s32 %s11, 1
    $region12: #{generator_forward.9} parent=5 // pred_fallthru
      _
    %p176 = scmp.lt.s32.totalorder %s11, 4
    // Predicated region
    $region13: #{generator_forward.9} parent=5 // pred_check
      %p177 = pneg %p176
    $region14: #{generator_forward.9} parent=5 // pred_check_branch
      %179 = sbr.rel (%p177) target = $region16
    $region15: #{generator_forward.9} parent=5 // pred_region
      // Predicated region
      $region17: #{generator_forward.9} parent=15 // pred_check
        %p180 = pneg %p45
      $region18: #{generator_forward.9} parent=15 // pred_check_branch
        %182 = sbr.rel (%p180) target = $region20
      $region19: #{generator_forward.9} parent=15 // pred_region
        %s183 = smul.u32 4, %s19
        %p184 = scmp.lt.s32.totalorder %s18, 3
        %s185 = scalar_select %p184, %s18, 3
        %p186 = scmp.lt.s32.totalorder %s183, 3
        %s187 = scalar_select %p186, %s183, 3
        %s188 = smul.addr %s187, 16
        %s189 = smul.addr %s185, 64
        %s190 = sadd.s32 %s188, %s189
        %s191 = smul.addr %s190, 4
        %s192 = scalar_lea.vmem %s0, %s191
        %s193 = smul.u32 4, %s19
      $region20: #{generator_forward.9} parent=15 // pred_fallthru
        _
      // Predicated region
      $region21: #{generator_forward.9} parent=15 // pred_check
        %p194 = pneg %p71
      $region22: #{generator_forward.9} parent=15 // pred_check_branch
        %196 = sbr.rel (%p194) target = $region24
      $region23: #{generator_forward.9} parent=15 // pred_region
        %p197 = scmp.lt.s32.totalorder %s18, 3
        %s198 = scalar_select %p197, %s18, 3
        %s199 = smul.addr %s198, 512
        %s200 = smul.addr %s199, 4
        %s201 = scalar_lea.vmem %s1, %s200
      $region24: #{generator_forward.9} parent=15 // pred_fallthru
        _
    $region16: #{generator_forward.9} parent=5 // pred_fallthru
      _
    %p202 = scmp.le.s32.totalorder 1, %s11
    %p203 = scmp.lt.s32.totalorder %s11, 5
    %p204 = pnand %p202, %p203
    %p205 = pneg %p204
    // Predicated region
    $region25: #{generator_forward.9} parent=5 // pred_check
      _
    $region26: #{generator_forward.9} parent=5 // pred_check_branch
      %207 = sbr.rel (%p204) target = $region28
    $region27: #{generator_forward.9} parent=5 // pred_region
      %s208 = ssub.s32 %s11, 1
      %s209 = smul.u32 4, %s21
      %p210 = scmp.lt.s32.totalorder %s20, 3
      %s211 = scalar_select %p210, %s20, 3
      %p212 = scmp.lt.s32.totalorder %s209, 3
      %s213 = scalar_select %p212, %s209, 3
      %s214 = smul.addr %s213, 16
      %s215 = smul.addr %s211, 64
      %s216 = sadd.s32 %s214, %s215
      %s217 = smul.addr %s216, 4
      %s218 = scalar_lea.vmem %s0, %s217
      %p219 = pneg %p51
      %p220 = pneg %p48
      %p221 = scmp.lt.s32.totalorder %s20, 3
      %s222 = scalar_select %p221, %s20, 3
      %s223 = smul.addr %s222, 512
      %s224 = smul.addr %s223, 4
      %s225 = scalar_lea.vmem %s1, %s224
      %p226 = pneg %p77
      %p227 = pneg %p74
      %p228 = pneg %p105
      %p229 = pneg %p102
      %s230 = smul.u32 4, %s21
      %p231 = scmp.lt.s32.totalorder %s20, 3
      %s232 = scalar_select %p231, %s20, 3
      %p233 = scmp.lt.s32.totalorder %s230, 3
      %s234 = scalar_select %p233, %s230, 3
      %s235 = smul.addr %s234, 2
      %s236 = smul.addr %s232, 8
      %s237 = sadd.s32 %s235, %s236
      %s238 = smul.addr %s237, 8
      %s239 = scalar_lea.vmem %s2, %s238
      %p240 = pneg %p133
      %p241 = pneg %p130
      %p242 = scmp.lt.s32.totalorder %s20, 3
      %s243 = scalar_select %p242, %s20, 3
      %p244 = scmp.lt.s32.totalorder %s21, 0
      %s245 = scalar_select %p244, %s21, 0
      %s246 = smul.addr %s245, 2
      %s247 = smul.addr %s243, 2
      %s248 = sadd.s32 %s246, %s247
      %s249 = scalar_lea.vmem %s3, %s248
      %p250 = pneg %p161
      %p251 = pneg %p158
      %p252 = scmp.lt.s32.totalorder %s20, 3
      %s253 = scalar_select %p252, %s20, 3
      %p254 = scmp.lt.s32.totalorder %s21, 0
      %s255 = scalar_select %p254, %s21, 0
      %s256 = smul.addr %s255, 2
      %s257 = smul.addr %s253, 2
      %s258 = sadd.s32 %s256, %s257
      %s259 = scalar_lea.vmem %s4, %s258
      %s260 = smul.u32 4, %s21
      %p261 = scmp.lt.s32.totalorder %s20, 3
      %s262 = scalar_select %p261, %s20, 3
      %p263 = scmp.lt.s32.totalorder %s260, 3
      %s264 = scalar_select %p263, %s260, 3
      %s265 = smul.addr %s264, 16
      %s266 = smul.addr %s262, 64
      %s267 = sadd.s32 %s265, %s266
      %s268 = smul.addr %s267, 4
      %s269 = scalar_lea.vmem %s0, %s268
      %s270 = smul.u32 4, %s21
      %p271 = scmp.lt.s32.totalorder %s20, 3
      %s272 = scalar_select %p271, %s20, 3
      %s273 = smul.addr %s272, 512
      %s274 = smul.addr %s273, 4
      %s275 = scalar_lea.vmem %s1, %s274
      %s276 = smul.u32 4, %s21
      %p277 = scmp.lt.s32.totalorder %s20, 3
      %s278 = scalar_select %p277, %s20, 3
      %p279 = scmp.lt.s32.totalorder %s276, 3
      %s280 = scalar_select %p279, %s276, 3
      %s281 = smul.addr %s280, 2
      %s282 = smul.addr %s278, 8
      %s283 = sadd.s32 %s281, %s282
      %s284 = smul.addr %s283, 8
      %s285 = scalar_lea.vmem %s2, %s284
      %s286 = smul.u32 4, %s21
      %p287 = scmp.lt.s32.totalorder %s20, 3
      %s288 = scalar_select %p287, %s20, 3
      %p289 = scmp.lt.s32.totalorder %s21, 0
      %s290 = scalar_select %p289, %s21, 0
      %s291 = smul.addr %s290, 2
      %s292 = smul.addr %s288, 2
      %s293 = sadd.s32 %s291, %s292
      %s294 = scalar_lea.vmem %s3, %s293
      %p295 = scmp.lt.s32.totalorder %s20, 3
      %s296 = scalar_select %p295, %s20, 3
      %p297 = scmp.lt.s32.totalorder %s21, 0
      %s298 = scalar_select %p297, %s21, 0
      %s299 = smul.addr %s298, 2
      %s300 = smul.addr %s296, 2
      %s301 = sadd.s32 %s299, %s300
      %s302 = scalar_lea.vmem %s4, %s301
      %v303 = vld [vmem:[%s269] sm:$0xff]
      %v304 = vld [vmem:[%s269 + $0x8] sm:$0xff]
      %v305 = vld [vmem:[%s269 + $0x10] sm:$0xff]
      %v306 = vld [vmem:[%s269 + $0x18] sm:$0xff]
      %v307 = vld [vmem:[%s269 + $0x20] sm:$0xff]
      %v308 = vld [vmem:[%s269 + $0x28] sm:$0xff]
      %v309 = vld [vmem:[%s269 + $0x30] sm:$0xff]
      %v310 = vld [vmem:[%s269 + $0x38] sm:$0xff]
      %v311 = vld [vmem:[%s269 + $0x40] sm:$0xff]
      %v312 = vld [vmem:[%s269 + $0x48] sm:$0xff]
      %v313 = vld [vmem:[%s269 + $0x50] sm:$0xff]
      %v314 = vld [vmem:[%s269 + $0x58] sm:$0xff]
      %v315 = vld [vmem:[%s269 + $0x60] sm:$0xff]
      %v316 = vld [vmem:[%s269 + $0x68] sm:$0xff]
      %v317 = vld [vmem:[%s269 + $0x70] sm:$0xff]
      %v318 = vld [vmem:[%s269 + $0x78] sm:$0xff]
      %v319 = vld [vmem:[%s269 + $0x80] sm:$0xff]
      %v320 = vld [vmem:[%s269 + $0x88] sm:$0xff]
      %v321 = vld [vmem:[%s269 + $0x90] sm:$0xff]
      %v322 = vld [vmem:[%s269 + $0x98] sm:$0xff]
      %v323 = vld [vmem:[%s269 + $0xa0] sm:$0xff]
      %v324 = vld [vmem:[%s269 + $0xa8] sm:$0xff]
      %v325 = vld [vmem:[%s269 + $0xb0] sm:$0xff]
      %v326 = vld [vmem:[%s269 + $0xb8] sm:$0xff]
      %v327 = vld [vmem:[%s269 + $0xc0] sm:$0xff]
      %v328 = vld [vmem:[%s269 + $0xc8] sm:$0xff]
      %v329 = vld [vmem:[%s269 + $0xd0] sm:$0xff]
      %v330 = vld [vmem:[%s269 + $0xd8] sm:$0xff]
      %v331 = vld [vmem:[%s269 + $0xe0] sm:$0xff]
      %v332 = vld [vmem:[%s269 + $0xe8] sm:$0xff]
      %v333 = vld [vmem:[%s269 + $0xf0] sm:$0xff]
      %v334 = vld [vmem:[%s269 + $0xf8] sm:$0xff]
      %v335 = vld [vmem:[%s275] sm:$0xff]
      %v336 = vld [vmem:[%s275 + $0x8] sm:$0xff]
      %v337 = vld [vmem:[%s275 + $0x10] sm:$0xff]
      %v338 = vld [vmem:[%s275 + $0x18] sm:$0xff]
      %v339 = vld [vmem:[%s275 + $0x20] sm:$0xff]
      %v340 = vld [vmem:[%s275 + $0x28] sm:$0xff]
      %v341 = vld [vmem:[%s275 + $0x30] sm:$0xff]
      %v342 = vld [vmem:[%s275 + $0x38] sm:$0xff]
      %v343 = vld [vmem:[%s275 + $0x40] sm:$0xff]
      %v344 = vld [vmem:[%s275 + $0x48] sm:$0xff]
      %v345 = vld [vmem:[%s275 + $0x50] sm:$0xff]
      %v346 = vld [vmem:[%s275 + $0x58] sm:$0xff]
      %v347 = vld [vmem:[%s275 + $0x60] sm:$0xff]
      %v348 = vld [vmem:[%s275 + $0x68] sm:$0xff]
      %v349 = vld [vmem:[%s275 + $0x70] sm:$0xff]
      %v350 = vld [vmem:[%s275 + $0x78] sm:$0xff]
      %v351 = vld [vmem:[%s275 + $0x80] sm:$0xff]
      %v352 = vld [vmem:[%s275 + $0x88] sm:$0xff]
      %v353 = vld [vmem:[%s275 + $0x90] sm:$0xff]
      %v354 = vld [vmem:[%s275 + $0x98] sm:$0xff]
      %v355 = vld [vmem:[%s275 + $0xa0] sm:$0xff]
      %v356 = vld [vmem:[%s275 + $0xa8] sm:$0xff]
      %v357 = vld [vmem:[%s275 + $0xb0] sm:$0xff]
      %v358 = vld [vmem:[%s275 + $0xb8] sm:$0xff]
      %v359 = vld [vmem:[%s275 + $0xc0] sm:$0xff]
      %v360 = vld [vmem:[%s275 + $0xc8] sm:$0xff]
      %v361 = vld [vmem:[%s275 + $0xd0] sm:$0xff]
      %v362 = vld [vmem:[%s275 + $0xd8] sm:$0xff]
      %v363 = vld [vmem:[%s275 + $0xe0] sm:$0xff]
      %v364 = vld [vmem:[%s275 + $0xe8] sm:$0xff]
      %v365 = vld [vmem:[%s275 + $0xf0] sm:$0xff]
      %v366 = vld [vmem:[%s275 + $0xf8] sm:$0xff]
      %v367 = vld [vmem:[%s275 + $0x100] sm:$0xff]
      %v368 = vld [vmem:[%s275 + $0x108] sm:$0xff]
      %v369 = vld [vmem:[%s275 + $0x110] sm:$0xff]
      %v370 = vld [vmem:[%s275 + $0x118] sm:$0xff]
      %v371 = vld [vmem:[%s275 + $0x120] sm:$0xff]
      %v372 = vld [vmem:[%s275 + $0x128] sm:$0xff]
      %v373 = vld [vmem:[%s275 + $0x130] sm:$0xff]
      %v374 = vld [vmem:[%s275 + $0x138] sm:$0xff]
      %v375 = vld [vmem:[%s275 + $0x140] sm:$0xff]
      %v376 = vld [vmem:[%s275 + $0x148] sm:$0xff]
      %v377 = vld [vmem:[%s275 + $0x150] sm:$0xff]
      %v378 = vld [vmem:[%s275 + $0x158] sm:$0xff]
      %v379 = vld [vmem:[%s275 + $0x160] sm:$0xff]
      %v380 = vld [vmem:[%s275 + $0x168] sm:$0xff]
      %v381 = vld [vmem:[%s275 + $0x170] sm:$0xff]
      %v382 = vld [vmem:[%s275 + $0x178] sm:$0xff]
      %v383 = vld [vmem:[%s275 + $0x180] sm:$0xff]
      %v384 = vld [vmem:[%s275 + $0x188] sm:$0xff]
      %v385 = vld [vmem:[%s275 + $0x190] sm:$0xff]
      %v386 = vld [vmem:[%s275 + $0x198] sm:$0xff]
      %v387 = vld [vmem:[%s275 + $0x1a0] sm:$0xff]
      %v388 = vld [vmem:[%s275 + $0x1a8] sm:$0xff]
      %v389 = vld [vmem:[%s275 + $0x1b0] sm:$0xff]
      %v390 = vld [vmem:[%s275 + $0x1b8] sm:$0xff]
      %v391 = vld [vmem:[%s275 + $0x1c0] sm:$0xff]
      %v392 = vld [vmem:[%s275 + $0x1c8] sm:$0xff]
      %v393 = vld [vmem:[%s275 + $0x1d0] sm:$0xff]
      %v394 = vld [vmem:[%s275 + $0x1d8] sm:$0xff]
      %v395 = vld [vmem:[%s275 + $0x1e0] sm:$0xff]
      %v396 = vld [vmem:[%s275 + $0x1e8] sm:$0xff]
      %v397 = vld [vmem:[%s275 + $0x1f0] sm:$0xff]
      %v398 = vld [vmem:[%s275 + $0x1f8] sm:$0xff]
      %v399 = vld [vmem:[%s275 + $0x200] sm:$0xff]
      %v400 = vld [vmem:[%s275 + $0x208] sm:$0xff]
      %v401 = vld [vmem:[%s275 + $0x210] sm:$0xff]
      %v402 = vld [vmem:[%s275 + $0x218] sm:$0xff]
      %v403 = vld [vmem:[%s275 + $0x220] sm:$0xff]
      %v404 = vld [vmem:[%s275 + $0x228] sm:$0xff]
      %v405 = vld [vmem:[%s275 + $0x230] sm:$0xff]
      %v406 = vld [vmem:[%s275 + $0x238] sm:$0xff]
      %v407 = vld [vmem:[%s275 + $0x240] sm:$0xff]
      %v408 = vld [vmem:[%s275 + $0x248] sm:$0xff]
      %v409 = vld [vmem:[%s275 + $0x250] sm:$0xff]
      %v410 = vld [vmem:[%s275 + $0x258] sm:$0xff]
      %v411 = vld [vmem:[%s275 + $0x260] sm:$0xff]
      %v412 = vld [vmem:[%s275 + $0x268] sm:$0xff]
      %v413 = vld [vmem:[%s275 + $0x270] sm:$0xff]
      %v414 = vld [vmem:[%s275 + $0x278] sm:$0xff]
      %v415 = vld [vmem:[%s275 + $0x280] sm:$0xff]
      %v416 = vld [vmem:[%s275 + $0x288] sm:$0xff]
      %v417 = vld [vmem:[%s275 + $0x290] sm:$0xff]
      %v418 = vld [vmem:[%s275 + $0x298] sm:$0xff]
      %v419 = vld [vmem:[%s275 + $0x2a0] sm:$0xff]
      %v420 = vld [vmem:[%s275 + $0x2a8] sm:$0xff]
      %v421 = vld [vmem:[%s275 + $0x2b0] sm:$0xff]
      %v422 = vld [vmem:[%s275 + $0x2b8] sm:$0xff]
      %v423 = vld [vmem:[%s275 + $0x2c0] sm:$0xff]
      %v424 = vld [vmem:[%s275 + $0x2c8] sm:$0xff]
      %v425 = vld [vmem:[%s275 + $0x2d0] sm:$0xff]
      %v426 = vld [vmem:[%s275 + $0x2d8] sm:$0xff]
      %v427 = vld [vmem:[%s275 + $0x2e0] sm:$0xff]
      %v428 = vld [vmem:[%s275 + $0x2e8] sm:$0xff]
      %v429 = vld [vmem:[%s275 + $0x2f0] sm:$0xff]
      %v430 = vld [vmem:[%s275 + $0x2f8] sm:$0xff]
      %v431 = vld [vmem:[%s275 + $0x300] sm:$0xff]
      %v432 = vld [vmem:[%s275 + $0x308] sm:$0xff]
      %v433 = vld [vmem:[%s275 + $0x310] sm:$0xff]
      %v434 = vld [vmem:[%s275 + $0x318] sm:$0xff]
      %v435 = vld [vmem:[%s275 + $0x320] sm:$0xff]
      %v436 = vld [vmem:[%s275 + $0x328] sm:$0xff]
      %v437 = vld [vmem:[%s275 + $0x330] sm:$0xff]
      %v438 = vld [vmem:[%s275 + $0x338] sm:$0xff]
      %v439 = vld [vmem:[%s275 + $0x340] sm:$0xff]
      %v440 = vld [vmem:[%s275 + $0x348] sm:$0xff]
      %v441 = vld [vmem:[%s275 + $0x350] sm:$0xff]
      %v442 = vld [vmem:[%s275 + $0x358] sm:$0xff]
      %v443 = vld [vmem:[%s275 + $0x360] sm:$0xff]
      %v444 = vld [vmem:[%s275 + $0x368] sm:$0xff]
      %v445 = vld [vmem:[%s275 + $0x370] sm:$0xff]
      %v446 = vld [vmem:[%s275 + $0x378] sm:$0xff]
      %v447 = vld [vmem:[%s275 + $0x380] sm:$0xff]
      %v448 = vld [vmem:[%s275 + $0x388] sm:$0xff]
      %v449 = vld [vmem:[%s275 + $0x390] sm:$0xff]
      %v450 = vld [vmem:[%s275 + $0x398] sm:$0xff]
      %v451 = vld [vmem:[%s275 + $0x3a0] sm:$0xff]
      %v452 = vld [vmem:[%s275 + $0x3a8] sm:$0xff]
      %v453 = vld [vmem:[%s275 + $0x3b0] sm:$0xff]
      %v454 = vld [vmem:[%s275 + $0x3b8] sm:$0xff]
      %v455 = vld [vmem:[%s275 + $0x3c0] sm:$0xff]
      %v456 = vld [vmem:[%s275 + $0x3c8] sm:$0xff]
      %v457 = vld [vmem:[%s275 + $0x3d0] sm:$0xff]
      %v458 = vld [vmem:[%s275 + $0x3d8] sm:$0xff]
      %v459 = vld [vmem:[%s275 + $0x3e0] sm:$0xff]
      %v460 = vld [vmem:[%s275 + $0x3e8] sm:$0xff]
      %v461 = vld [vmem:[%s275 + $0x3f0] sm:$0xff]
      %v462 = vld [vmem:[%s275 + $0x3f8] sm:$0xff]
      %v463 = vld [vmem:[%s275 + $0x400] sm:$0xff]
      %v464 = vld [vmem:[%s275 + $0x408] sm:$0xff]
      %v465 = vld [vmem:[%s275 + $0x410] sm:$0xff]
      %v466 = vld [vmem:[%s275 + $0x418] sm:$0xff]
      %v467 = vld [vmem:[%s275 + $0x420] sm:$0xff]
      %v468 = vld [vmem:[%s275 + $0x428] sm:$0xff]
      %v469 = vld [vmem:[%s275 + $0x430] sm:$0xff]
      %v470 = vld [vmem:[%s275 + $0x438] sm:$0xff]
      %v471 = vld [vmem:[%s275 + $0x440] sm:$0xff]
      %v472 = vld [vmem:[%s275 + $0x448] sm:$0xff]
      %v473 = vld [vmem:[%s275 + $0x450] sm:$0xff]
      %v474 = vld [vmem:[%s275 + $0x458] sm:$0xff]
      %v475 = vld [vmem:[%s275 + $0x460] sm:$0xff]
      %v476 = vld [vmem:[%s275 + $0x468] sm:$0xff]
      %v477 = vld [vmem:[%s275 + $0x470] sm:$0xff]
      %v478 = vld [vmem:[%s275 + $0x478] sm:$0xff]
      %v479 = vld [vmem:[%s275 + $0x480] sm:$0xff]
      %v480 = vld [vmem:[%s275 + $0x488] sm:$0xff]
      %v481 = vld [vmem:[%s275 + $0x490] sm:$0xff]
      %v482 = vld [vmem:[%s275 + $0x498] sm:$0xff]
      %v483 = vld [vmem:[%s275 + $0x4a0] sm:$0xff]
      %v484 = vld [vmem:[%s275 + $0x4a8] sm:$0xff]
      %v485 = vld [vmem:[%s275 + $0x4b0] sm:$0xff]
      %v486 = vld [vmem:[%s275 + $0x4b8] sm:$0xff]
      %v487 = vld [vmem:[%s275 + $0x4c0] sm:$0xff]
      %v488 = vld [vmem:[%s275 + $0x4c8] sm:$0xff]
      %v489 = vld [vmem:[%s275 + $0x4d0] sm:$0xff]
      %v490 = vld [vmem:[%s275 + $0x4d8] sm:$0xff]
      %v491 = vld [vmem:[%s275 + $0x4e0] sm:$0xff]
      %v492 = vld [vmem:[%s275 + $0x4e8] sm:$0xff]
      %v493 = vld [vmem:[%s275 + $0x4f0] sm:$0xff]
      %v494 = vld [vmem:[%s275 + $0x4f8] sm:$0xff]
      %v495 = vld [vmem:[%s275 + $0x500] sm:$0xff]
      %v496 = vld [vmem:[%s275 + $0x508] sm:$0xff]
      %v497 = vld [vmem:[%s275 + $0x510] sm:$0xff]
      %v498 = vld [vmem:[%s275 + $0x518] sm:$0xff]
      %v499 = vld [vmem:[%s275 + $0x520] sm:$0xff]
      %v500 = vld [vmem:[%s275 + $0x528] sm:$0xff]
      %v501 = vld [vmem:[%s275 + $0x530] sm:$0xff]
      %v502 = vld [vmem:[%s275 + $0x538] sm:$0xff]
      %v503 = vld [vmem:[%s275 + $0x540] sm:$0xff]
      %v504 = vld [vmem:[%s275 + $0x548] sm:$0xff]
      %v505 = vld [vmem:[%s275 + $0x550] sm:$0xff]
      %v506 = vld [vmem:[%s275 + $0x558] sm:$0xff]
      %v507 = vld [vmem:[%s275 + $0x560] sm:$0xff]
      %v508 = vld [vmem:[%s275 + $0x568] sm:$0xff]
      %v509 = vld [vmem:[%s275 + $0x570] sm:$0xff]
      %v510 = vld [vmem:[%s275 + $0x578] sm:$0xff]
      %v511 = vld [vmem:[%s275 + $0x580] sm:$0xff]
      %v512 = vld [vmem:[%s275 + $0x588] sm:$0xff]
      %v513 = vld [vmem:[%s275 + $0x590] sm:$0xff]
      %v514 = vld [vmem:[%s275 + $0x598] sm:$0xff]
      %v515 = vld [vmem:[%s275 + $0x5a0] sm:$0xff]
      %v516 = vld [vmem:[%s275 + $0x5a8] sm:$0xff]
      %v517 = vld [vmem:[%s275 + $0x5b0] sm:$0xff]
      %v518 = vld [vmem:[%s275 + $0x5b8] sm:$0xff]
      %v519 = vld [vmem:[%s275 + $0x5c0] sm:$0xff]
      %v520 = vld [vmem:[%s275 + $0x5c8] sm:$0xff]
      %v521 = vld [vmem:[%s275 + $0x5d0] sm:$0xff]
      %v522 = vld [vmem:[%s275 + $0x5d8] sm:$0xff]
      %v523 = vld [vmem:[%s275 + $0x5e0] sm:$0xff]
      %v524 = vld [vmem:[%s275 + $0x5e8] sm:$0xff]
      %v525 = vld [vmem:[%s275 + $0x5f0] sm:$0xff]
      %v526 = vld [vmem:[%s275 + $0x5f8] sm:$0xff]
      %v527 = vld [vmem:[%s275 + $0x600] sm:$0xff]
      %v528 = vld [vmem:[%s275 + $0x608] sm:$0xff]
      %v529 = vld [vmem:[%s275 + $0x610] sm:$0xff]
      %v530 = vld [vmem:[%s275 + $0x618] sm:$0xff]
      %v531 = vld [vmem:[%s275 + $0x620] sm:$0xff]
      %v532 = vld [vmem:[%s275 + $0x628] sm:$0xff]
      %v533 = vld [vmem:[%s275 + $0x630] sm:$0xff]
      %v534 = vld [vmem:[%s275 + $0x638] sm:$0xff]
      %v535 = vld [vmem:[%s275 + $0x640] sm:$0xff]
      %v536 = vld [vmem:[%s275 + $0x648] sm:$0xff]
      %v537 = vld [vmem:[%s275 + $0x650] sm:$0xff]
      %v538 = vld [vmem:[%s275 + $0x658] sm:$0xff]
      %v539 = vld [vmem:[%s275 + $0x660] sm:$0xff]
      %v540 = vld [vmem:[%s275 + $0x668] sm:$0xff]
      %v541 = vld [vmem:[%s275 + $0x670] sm:$0xff]
      %v542 = vld [vmem:[%s275 + $0x678] sm:$0xff]
      %v543 = vld [vmem:[%s275 + $0x680] sm:$0xff]
      %v544 = vld [vmem:[%s275 + $0x688] sm:$0xff]
      %v545 = vld [vmem:[%s275 + $0x690] sm:$0xff]
      %v546 = vld [vmem:[%s275 + $0x698] sm:$0xff]
      %v547 = vld [vmem:[%s275 + $0x6a0] sm:$0xff]
      %v548 = vld [vmem:[%s275 + $0x6a8] sm:$0xff]
      %v549 = vld [vmem:[%s275 + $0x6b0] sm:$0xff]
      %v550 = vld [vmem:[%s275 + $0x6b8] sm:$0xff]
      %v551 = vld [vmem:[%s275 + $0x6c0] sm:$0xff]
      %v552 = vld [vmem:[%s275 + $0x6c8] sm:$0xff]
      %v553 = vld [vmem:[%s275 + $0x6d0] sm:$0xff]
      %v554 = vld [vmem:[%s275 + $0x6d8] sm:$0xff]
      %v555 = vld [vmem:[%s275 + $0x6e0] sm:$0xff]
      %v556 = vld [vmem:[%s275 + $0x6e8] sm:$0xff]
      %v557 = vld [vmem:[%s275 + $0x6f0] sm:$0xff]
      %v558 = vld [vmem:[%s275 + $0x6f8] sm:$0xff]
      %v559 = vld [vmem:[%s275 + $0x700] sm:$0xff]
      %v560 = vld [vmem:[%s275 + $0x708] sm:$0xff]
      %v561 = vld [vmem:[%s275 + $0x710] sm:$0xff]
      %v562 = vld [vmem:[%s275 + $0x718] sm:$0xff]
      %v563 = vld [vmem:[%s275 + $0x720] sm:$0xff]
      %v564 = vld [vmem:[%s275 + $0x728] sm:$0xff]
      %v565 = vld [vmem:[%s275 + $0x730] sm:$0xff]
      %v566 = vld [vmem:[%s275 + $0x738] sm:$0xff]
      %v567 = vld [vmem:[%s275 + $0x740] sm:$0xff]
      %v568 = vld [vmem:[%s275 + $0x748] sm:$0xff]
      %v569 = vld [vmem:[%s275 + $0x750] sm:$0xff]
      %v570 = vld [vmem:[%s275 + $0x758] sm:$0xff]
      %v571 = vld [vmem:[%s275 + $0x760] sm:$0xff]
      %v572 = vld [vmem:[%s275 + $0x768] sm:$0xff]
      %v573 = vld [vmem:[%s275 + $0x770] sm:$0xff]
      %v574 = vld [vmem:[%s275 + $0x778] sm:$0xff]
      %v575 = vld [vmem:[%s275 + $0x780] sm:$0xff]
      %v576 = vld [vmem:[%s275 + $0x788] sm:$0xff]
      %v577 = vld [vmem:[%s275 + $0x790] sm:$0xff]
      %v578 = vld [vmem:[%s275 + $0x798] sm:$0xff]
      %v579 = vld [vmem:[%s275 + $0x7a0] sm:$0xff]
      %v580 = vld [vmem:[%s275 + $0x7a8] sm:$0xff]
      %v581 = vld [vmem:[%s275 + $0x7b0] sm:$0xff]
      %v582 = vld [vmem:[%s275 + $0x7b8] sm:$0xff]
      %v583 = vld [vmem:[%s275 + $0x7c0] sm:$0xff]
      %v584 = vld [vmem:[%s275 + $0x7c8] sm:$0xff]
      %v585 = vld [vmem:[%s275 + $0x7d0] sm:$0xff]
      %v586 = vld [vmem:[%s275 + $0x7d8] sm:$0xff]
      %v587 = vld [vmem:[%s275 + $0x7e0] sm:$0xff]
      %v588 = vld [vmem:[%s275 + $0x7e8] sm:$0xff]
      %v589 = vld [vmem:[%s275 + $0x7f0] sm:$0xff]
      %v590 = vld [vmem:[%s275 + $0x7f8] sm:$0xff]
      %v623 = vunpack.c.l.b16 %v303
      %v624 = vunpack.c.h.b16 %v303
      %v625 = vunpack.c.l.b16 %v304
      %v626 = vunpack.c.h.b16 %v304
      %v627 = vunpack.c.l.b16 %v305
      %v628 = vunpack.c.h.b16 %v305
      %v629 = vunpack.c.l.b16 %v306
      %v630 = vunpack.c.h.b16 %v306
      %v631 = vunpack.c.l.b16 %v307
      %v632 = vunpack.c.h.b16 %v307
      %v633 = vunpack.c.l.b16 %v308
      %v634 = vunpack.c.h.b16 %v308
      %v635 = vunpack.c.l.b16 %v309
      %v636 = vunpack.c.h.b16 %v309
      %v637 = vunpack.c.l.b16 %v310
      %v638 = vunpack.c.h.b16 %v310
      %v639 = vunpack.c.l.b16 %v311
      %v640 = vunpack.c.h.b16 %v311
      %v641 = vunpack.c.l.b16 %v312
      %v642 = vunpack.c.h.b16 %v312
      %v643 = vunpack.c.l.b16 %v313
      %v644 = vunpack.c.h.b16 %v313
      %v645 = vunpack.c.l.b16 %v314
      %v646 = vunpack.c.h.b16 %v314
      %v647 = vunpack.c.l.b16 %v315
      %v648 = vunpack.c.h.b16 %v315
      %v649 = vunpack.c.l.b16 %v316
      %v650 = vunpack.c.h.b16 %v316
      %v651 = vunpack.c.l.b16 %v317
      %v652 = vunpack.c.h.b16 %v317
      %v653 = vunpack.c.l.b16 %v318
      %v654 = vunpack.c.h.b16 %v318
      %v655 = vunpack.c.l.b16 %v319
      %v656 = vunpack.c.h.b16 %v319
      %v657 = vunpack.c.l.b16 %v320
      %v658 = vunpack.c.h.b16 %v320
      %v659 = vunpack.c.l.b16 %v321
      %v660 = vunpack.c.h.b16 %v321
      %v661 = vunpack.c.l.b16 %v322
      %v662 = vunpack.c.h.b16 %v322
      %v663 = vunpack.c.l.b16 %v323
      %v664 = vunpack.c.h.b16 %v323
      %v665 = vunpack.c.l.b16 %v324
      %v666 = vunpack.c.h.b16 %v324
      %v667 = vunpack.c.l.b16 %v325
      %v668 = vunpack.c.h.b16 %v325
      %v669 = vunpack.c.l.b16 %v326
      %v670 = vunpack.c.h.b16 %v326
      %v671 = vunpack.c.l.b16 %v327
      %v672 = vunpack.c.h.b16 %v327
      %v673 = vunpack.c.l.b16 %v328
      %v674 = vunpack.c.h.b16 %v328
      %v675 = vunpack.c.l.b16 %v329
      %v676 = vunpack.c.h.b16 %v329
      %v677 = vunpack.c.l.b16 %v330
      %v678 = vunpack.c.h.b16 %v330
      %v679 = vunpack.c.l.b16 %v331
      %v680 = vunpack.c.h.b16 %v331
      %v681 = vunpack.c.l.b16 %v332
      %v682 = vunpack.c.h.b16 %v332
      %v683 = vunpack.c.l.b16 %v333
      %v684 = vunpack.c.h.b16 %v333
      %v685 = vunpack.c.l.b16 %v334
      %v686 = vunpack.c.h.b16 %v334
      %v687 = vpack.c.b16 %v639, %v623
      %v688 = vpack.c.b16 %v640, %v624
      %v689 = vpack.c.b16 %v641, %v625
      %v690 = vpack.c.b16 %v642, %v626
      %v691 = vpack.c.b16 %v643, %v627
      %v692 = vpack.c.b16 %v644, %v628
      %v693 = vpack.c.b16 %v645, %v629
      %v694 = vpack.c.b16 %v646, %v630
      %v695 = vpack.c.b16 %v647, %v631
      %v696 = vpack.c.b16 %v648, %v632
      %v697 = vpack.c.b16 %v649, %v633
      %v698 = vpack.c.b16 %v650, %v634
      %v699 = vpack.c.b16 %v651, %v635
      %v700 = vpack.c.b16 %v652, %v636
      %v701 = vpack.c.b16 %v653, %v637
      %v702 = vpack.c.b16 %v654, %v638
      %v703 = vpack.c.b16 %v671, %v655
      %v704 = vpack.c.b16 %v672, %v656
      %v705 = vpack.c.b16 %v673, %v657
      %v706 = vpack.c.b16 %v674, %v658
      %v707 = vpack.c.b16 %v675, %v659
      %v708 = vpack.c.b16 %v676, %v660
      %v709 = vpack.c.b16 %v677, %v661
      %v710 = vpack.c.b16 %v678, %v662
      %v711 = vpack.c.b16 %v679, %v663
      %v712 = vpack.c.b16 %v680, %v664
      %v713 = vpack.c.b16 %v681, %v665
      %v714 = vpack.c.b16 %v682, %v666
      %v715 = vpack.c.b16 %v683, %v667
      %v716 = vpack.c.b16 %v684, %v668
      %v717 = vpack.c.b16 %v685, %v669
      %v718 = vpack.c.b16 %v686, %v670
      %v1007 = vunpack.c.l.b16 %v335
      %v1008 = vunpack.c.h.b16 %v335
      %v1009 = vunpack.c.l.b16 %v336
      %v1010 = vunpack.c.h.b16 %v336
      %v1011 = vunpack.c.l.b16 %v337
      %v1012 = vunpack.c.h.b16 %v337
      %v1013 = vunpack.c.l.b16 %v338
      %v1014 = vunpack.c.h.b16 %v338
      %v1015 = vunpack.c.l.b16 %v339
      %v1016 = vunpack.c.h.b16 %v339
      %v1017 = vunpack.c.l.b16 %v340
      %v1018 = vunpack.c.h.b16 %v340
      %v1019 = vunpack.c.l.b16 %v341
      %v1020 = vunpack.c.h.b16 %v341
      %v1021 = vunpack.c.l.b16 %v342
      %v1022 = vunpack.c.h.b16 %v342
      %v1023 = vunpack.c.l.b16 %v343
      %v1024 = vunpack.c.h.b16 %v343
      %v1025 = vunpack.c.l.b16 %v344
      %v1026 = vunpack.c.h.b16 %v344
      %v1027 = vunpack.c.l.b16 %v345
      %v1028 = vunpack.c.h.b16 %v345
      %v1029 = vunpack.c.l.b16 %v346
      %v1030 = vunpack.c.h.b16 %v346
      %v1031 = vunpack.c.l.b16 %v347
      %v1032 = vunpack.c.h.b16 %v347
      %v1033 = vunpack.c.l.b16 %v348
      %v1034 = vunpack.c.h.b16 %v348
      %v1035 = vunpack.c.l.b16 %v349
      %v1036 = vunpack.c.h.b16 %v349
      %v1037 = vunpack.c.l.b16 %v350
      %v1038 = vunpack.c.h.b16 %v350
      %v1039 = vunpack.c.l.b16 %v351
      %v1040 = vunpack.c.h.b16 %v351
      %v1041 = vunpack.c.l.b16 %v352
      %v1042 = vunpack.c.h.b16 %v352
      %v1043 = vunpack.c.l.b16 %v353
      %v1044 = vunpack.c.h.b16 %v353
      %v1045 = vunpack.c.l.b16 %v354
      %v1046 = vunpack.c.h.b16 %v354
      %v1047 = vunpack.c.l.b16 %v355
      %v1048 = vunpack.c.h.b16 %v355
      %v1049 = vunpack.c.l.b16 %v356
      %v1050 = vunpack.c.h.b16 %v356
      %v1051 = vunpack.c.l.b16 %v357
      %v1052 = vunpack.c.h.b16 %v357
      %v1053 = vunpack.c.l.b16 %v358
      %v1054 = vunpack.c.h.b16 %v358
      %v1055 = vunpack.c.l.b16 %v359
      %v1056 = vunpack.c.h.b16 %v359
      %v1057 = vunpack.c.l.b16 %v360
      %v1058 = vunpack.c.h.b16 %v360
      %v1059 = vunpack.c.l.b16 %v361
      %v1060 = vunpack.c.h.b16 %v361
      %v1061 = vunpack.c.l.b16 %v362
      %v1062 = vunpack.c.h.b16 %v362
      %v1063 = vunpack.c.l.b16 %v363
      %v1064 = vunpack.c.h.b16 %v363
      %v1065 = vunpack.c.l.b16 %v364
      %v1066 = vunpack.c.h.b16 %v364
      %v1067 = vunpack.c.l.b16 %v365
      %v1068 = vunpack.c.h.b16 %v365
      %v1069 = vunpack.c.l.b16 %v366
      %v1070 = vunpack.c.h.b16 %v366
      %v1071 = vunpack.c.l.b16 %v367
      %v1072 = vunpack.c.h.b16 %v367
      %v1073 = vunpack.c.l.b16 %v368
      %v1074 = vunpack.c.h.b16 %v368
      %v1075 = vunpack.c.l.b16 %v369
      %v1076 = vunpack.c.h.b16 %v369
      %v1077 = vunpack.c.l.b16 %v370
      %v1078 = vunpack.c.h.b16 %v370
      %v1079 = vunpack.c.l.b16 %v371
      %v1080 = vunpack.c.h.b16 %v371
      %v1081 = vunpack.c.l.b16 %v372
      %v1082 = vunpack.c.h.b16 %v372
      %v1083 = vunpack.c.l.b16 %v373
      %v1084 = vunpack.c.h.b16 %v373
      %v1085 = vunpack.c.l.b16 %v374
      %v1086 = vunpack.c.h.b16 %v374
      %v1087 = vunpack.c.l.b16 %v375
      %v1088 = vunpack.c.h.b16 %v375
      %v1089 = vunpack.c.l.b16 %v376
      %v1090 = vunpack.c.h.b16 %v376
      %v1091 = vunpack.c.l.b16 %v377
      %v1092 = vunpack.c.h.b16 %v377
      %v1093 = vunpack.c.l.b16 %v378
      %v1094 = vunpack.c.h.b16 %v378
      %v1095 = vunpack.c.l.b16 %v379
      %v1096 = vunpack.c.h.b16 %v379
      %v1097 = vunpack.c.l.b16 %v380
      %v1098 = vunpack.c.h.b16 %v380
      %v1099 = vunpack.c.l.b16 %v381
      %v1100 = vunpack.c.h.b16 %v381
      %v1101 = vunpack.c.l.b16 %v382
      %v1102 = vunpack.c.h.b16 %v382
      %v1103 = vunpack.c.l.b16 %v383
      %v1104 = vunpack.c.h.b16 %v383
      %v1105 = vunpack.c.l.b16 %v384
      %v1106 = vunpack.c.h.b16 %v384
      %v1107 = vunpack.c.l.b16 %v385
      %v1108 = vunpack.c.h.b16 %v385
      %v1109 = vunpack.c.l.b16 %v386
      %v1110 = vunpack.c.h.b16 %v386
      %v1111 = vunpack.c.l.b16 %v387
      %v1112 = vunpack.c.h.b16 %v387
      %v1113 = vunpack.c.l.b16 %v388
      %v1114 = vunpack.c.h.b16 %v388
      %v1115 = vunpack.c.l.b16 %v389
      %v1116 = vunpack.c.h.b16 %v389
      %v1117 = vunpack.c.l.b16 %v390
      %v1118 = vunpack.c.h.b16 %v390
      %v1119 = vunpack.c.l.b16 %v391
      %v1120 = vunpack.c.h.b16 %v391
      %v1121 = vunpack.c.l.b16 %v392
      %v1122 = vunpack.c.h.b16 %v392
      %v1123 = vunpack.c.l.b16 %v393
      %v1124 = vunpack.c.h.b16 %v393
      %v1125 = vunpack.c.l.b16 %v394
      %v1126 = vunpack.c.h.b16 %v394
      %v1127 = vunpack.c.l.b16 %v395
      %v1128 = vunpack.c.h.b16 %v395
      %v1129 = vunpack.c.l.b16 %v396
      %v1130 = vunpack.c.h.b16 %v396
      %v1131 = vunpack.c.l.b16 %v397
      %v1132 = vunpack.c.h.b16 %v397
      %v1133 = vunpack.c.l.b16 %v398
      %v1134 = vunpack.c.h.b16 %v398
      %v1135 = vunpack.c.l.b16 %v399
      %v1136 = vunpack.c.h.b16 %v399
      %v1137 = vunpack.c.l.b16 %v400
      %v1138 = vunpack.c.h.b16 %v400
      %v1139 = vunpack.c.l.b16 %v401
      %v1140 = vunpack.c.h.b16 %v401
      %v1141 = vunpack.c.l.b16 %v402
      %v1142 = vunpack.c.h.b16 %v402
      %v1143 = vunpack.c.l.b16 %v403
      %v1144 = vunpack.c.h.b16 %v403
      %v1145 = vunpack.c.l.b16 %v404
      %v1146 = vunpack.c.h.b16 %v404
      %v1147 = vunpack.c.l.b16 %v405
      %v1148 = vunpack.c.h.b16 %v405
      %v1149 = vunpack.c.l.b16 %v406
      %v1150 = vunpack.c.h.b16 %v406
      %v1151 = vunpack.c.l.b16 %v407
      %v1152 = vunpack.c.h.b16 %v407
      %v1153 = vunpack.c.l.b16 %v408
      %v1154 = vunpack.c.h.b16 %v408
      %v1155 = vunpack.c.l.b16 %v409
      %v1156 = vunpack.c.h.b16 %v409
      %v1157 = vunpack.c.l.b16 %v410
      %v1158 = vunpack.c.h.b16 %v410
      %v1159 = vunpack.c.l.b16 %v411
      %v1160 = vunpack.c.h.b16 %v411
      %v1161 = vunpack.c.l.b16 %v412
      %v1162 = vunpack.c.h.b16 %v412
      %v1163 = vunpack.c.l.b16 %v413
      %v1164 = vunpack.c.h.b16 %v413
      %v1165 = vunpack.c.l.b16 %v414
      %v1166 = vunpack.c.h.b16 %v414
      %v1167 = vunpack.c.l.b16 %v415
      %v1168 = vunpack.c.h.b16 %v415
      %v1169 = vunpack.c.l.b16 %v416
      %v1170 = vunpack.c.h.b16 %v416
      %v1171 = vunpack.c.l.b16 %v417
      %v1172 = vunpack.c.h.b16 %v417
      %v1173 = vunpack.c.l.b16 %v418
      %v1174 = vunpack.c.h.b16 %v418
      %v1175 = vunpack.c.l.b16 %v419
      %v1176 = vunpack.c.h.b16 %v419
      %v1177 = vunpack.c.l.b16 %v420
      %v1178 = vunpack.c.h.b16 %v420
      %v1179 = vunpack.c.l.b16 %v421
      %v1180 = vunpack.c.h.b16 %v421
      %v1181 = vunpack.c.l.b16 %v422
      %v1182 = vunpack.c.h.b16 %v422
      %v1183 = vunpack.c.l.b16 %v423
      %v1184 = vunpack.c.h.b16 %v423
      %v1185 = vunpack.c.l.b16 %v424
      %v1186 = vunpack.c.h.b16 %v424
      %v1187 = vunpack.c.l.b16 %v425
      %v1188 = vunpack.c.h.b16 %v425
      %v1189 = vunpack.c.l.b16 %v426
      %v1190 = vunpack.c.h.b16 %v426
      %v1191 = vunpack.c.l.b16 %v427
      %v1192 = vunpack.c.h.b16 %v427
      %v1193 = vunpack.c.l.b16 %v428
      %v1194 = vunpack.c.h.b16 %v428
      %v1195 = vunpack.c.l.b16 %v429
      %v1196 = vunpack.c.h.b16 %v429
      %v1197 = vunpack.c.l.b16 %v430
      %v1198 = vunpack.c.h.b16 %v430
      %v1199 = vunpack.c.l.b16 %v431
      %v1200 = vunpack.c.h.b16 %v431
      %v1201 = vunpack.c.l.b16 %v432
      %v1202 = vunpack.c.h.b16 %v432
      %v1203 = vunpack.c.l.b16 %v433
      %v1204 = vunpack.c.h.b16 %v433
      %v1205 = vunpack.c.l.b16 %v434
      %v1206 = vunpack.c.h.b16 %v434
      %v1207 = vunpack.c.l.b16 %v435
      %v1208 = vunpack.c.h.b16 %v435
      %v1209 = vunpack.c.l.b16 %v436
      %v1210 = vunpack.c.h.b16 %v436
      %v1211 = vunpack.c.l.b16 %v437
      %v1212 = vunpack.c.h.b16 %v437
      %v1213 = vunpack.c.l.b16 %v438
      %v1214 = vunpack.c.h.b16 %v438
      %v1215 = vunpack.c.l.b16 %v439
      %v1216 = vunpack.c.h.b16 %v439
      %v1217 = vunpack.c.l.b16 %v440
      %v1218 = vunpack.c.h.b16 %v440
      %v1219 = vunpack.c.l.b16 %v441
      %v1220 = vunpack.c.h.b16 %v441
      %v1221 = vunpack.c.l.b16 %v442
      %v1222 = vunpack.c.h.b16 %v442
      %v1223 = vunpack.c.l.b16 %v443
      %v1224 = vunpack.c.h.b16 %v443
      %v1225 = vunpack.c.l.b16 %v444
      %v1226 = vunpack.c.h.b16 %v444
      %v1227 = vunpack.c.l.b16 %v445
      %v1228 = vunpack.c.h.b16 %v445
      %v1229 = vunpack.c.l.b16 %v446
      %v1230 = vunpack.c.h.b16 %v446
      %v1231 = vunpack.c.l.b16 %v447
      %v1232 = vunpack.c.h.b16 %v447
      %v1233 = vunpack.c.l.b16 %v448
      %v1234 = vunpack.c.h.b16 %v448
      %v1235 = vunpack.c.l.b16 %v449
      %v1236 = vunpack.c.h.b16 %v449
      %v1237 = vunpack.c.l.b16 %v450
      %v1238 = vunpack.c.h.b16 %v450
      %v1239 = vunpack.c.l.b16 %v451
      %v1240 = vunpack.c.h.b16 %v451
      %v1241 = vunpack.c.l.b16 %v452
      %v1242 = vunpack.c.h.b16 %v452
      %v1243 = vunpack.c.l.b16 %v453
      %v1244 = vunpack.c.h.b16 %v453
      %v1245 = vunpack.c.l.b16 %v454
      %v1246 = vunpack.c.h.b16 %v454
      %v1247 = vunpack.c.l.b16 %v455
      %v1248 = vunpack.c.h.b16 %v455
      %v1249 = vunpack.c.l.b16 %v456
      %v1250 = vunpack.c.h.b16 %v456
      %v1251 = vunpack.c.l.b16 %v457
      %v1252 = vunpack.c.h.b16 %v457
      %v1253 = vunpack.c.l.b16 %v458
      %v1254 = vunpack.c.h.b16 %v458
      %v1255 = vunpack.c.l.b16 %v459
      %v1256 = vunpack.c.h.b16 %v459
      %v1257 = vunpack.c.l.b16 %v460
      %v1258 = vunpack.c.h.b16 %v460
      %v1259 = vunpack.c.l.b16 %v461
      %v1260 = vunpack.c.h.b16 %v461
      %v1261 = vunpack.c.l.b16 %v462
      %v1262 = vunpack.c.h.b16 %v462
      %v1263 = vunpack.c.l.b16 %v463
      %v1264 = vunpack.c.h.b16 %v463
      %v1265 = vunpack.c.l.b16 %v464
      %v1266 = vunpack.c.h.b16 %v464
      %v1267 = vunpack.c.l.b16 %v465
      %v1268 = vunpack.c.h.b16 %v465
      %v1269 = vunpack.c.l.b16 %v466
      %v1270 = vunpack.c.h.b16 %v466
      %v1271 = vunpack.c.l.b16 %v467
      %v1272 = vunpack.c.h.b16 %v467
      %v1273 = vunpack.c.l.b16 %v468
      %v1274 = vunpack.c.h.b16 %v468
      %v1275 = vunpack.c.l.b16 %v469
      %v1276 = vunpack.c.h.b16 %v469
      %v1277 = vunpack.c.l.b16 %v470
      %v1278 = vunpack.c.h.b16 %v470
      %v1279 = vunpack.c.l.b16 %v471
      %v1280 = vunpack.c.h.b16 %v471
      %v1281 = vunpack.c.l.b16 %v472
      %v1282 = vunpack.c.h.b16 %v472
      %v1283 = vunpack.c.l.b16 %v473
      %v1284 = vunpack.c.h.b16 %v473
      %v1285 = vunpack.c.l.b16 %v474
      %v1286 = vunpack.c.h.b16 %v474
      %v1287 = vunpack.c.l.b16 %v475
      %v1288 = vunpack.c.h.b16 %v475
      %v1289 = vunpack.c.l.b16 %v476
      %v1290 = vunpack.c.h.b16 %v476
      %v1291 = vunpack.c.l.b16 %v477
      %v1292 = vunpack.c.h.b16 %v477
      %v1293 = vunpack.c.l.b16 %v478
      %v1294 = vunpack.c.h.b16 %v478
      %v1295 = vunpack.c.l.b16 %v479
      %v1296 = vunpack.c.h.b16 %v479
      %v1297 = vunpack.c.l.b16 %v480
      %v1298 = vunpack.c.h.b16 %v480
      %v1299 = vunpack.c.l.b16 %v481
      %v1300 = vunpack.c.h.b16 %v481
      %v1301 = vunpack.c.l.b16 %v482
      %v1302 = vunpack.c.h.b16 %v482
      %v1303 = vunpack.c.l.b16 %v483
      %v1304 = vunpack.c.h.b16 %v483
      %v1305 = vunpack.c.l.b16 %v484
      %v1306 = vunpack.c.h.b16 %v484
      %v1307 = vunpack.c.l.b16 %v485
      %v1308 = vunpack.c.h.b16 %v485
      %v1309 = vunpack.c.l.b16 %v486
      %v1310 = vunpack.c.h.b16 %v486
      %v1311 = vunpack.c.l.b16 %v487
      %v1312 = vunpack.c.h.b16 %v487
      %v1313 = vunpack.c.l.b16 %v488
      %v1314 = vunpack.c.h.b16 %v488
      %v1315 = vunpack.c.l.b16 %v489
      %v1316 = vunpack.c.h.b16 %v489
      %v1317 = vunpack.c.l.b16 %v490
      %v1318 = vunpack.c.h.b16 %v490
      %v1319 = vunpack.c.l.b16 %v491
      %v1320 = vunpack.c.h.b16 %v491
      %v1321 = vunpack.c.l.b16 %v492
      %v1322 = vunpack.c.h.b16 %v492
      %v1323 = vunpack.c.l.b16 %v493
      %v1324 = vunpack.c.h.b16 %v493
      %v1325 = vunpack.c.l.b16 %v494
      %v1326 = vunpack.c.h.b16 %v494
      %v1327 = vunpack.c.l.b16 %v495
      %v1328 = vunpack.c.h.b16 %v495
      %v1329 = vunpack.c.l.b16 %v496
      %v1330 = vunpack.c.h.b16 %v496
      %v1331 = vunpack.c.l.b16 %v497
      %v1332 = vunpack.c.h.b16 %v497
      %v1333 = vunpack.c.l.b16 %v498
      %v1334 = vunpack.c.h.b16 %v498
      %v1335 = vunpack.c.l.b16 %v499
      %v1336 = vunpack.c.h.b16 %v499
      %v1337 = vunpack.c.l.b16 %v500
      %v1338 = vunpack.c.h.b16 %v500
      %v1339 = vunpack.c.l.b16 %v501
      %v1340 = vunpack.c.h.b16 %v501
      %v1341 = vunpack.c.l.b16 %v502
      %v1342 = vunpack.c.h.b16 %v502
      %v1343 = vunpack.c.l.b16 %v503
      %v1344 = vunpack.c.h.b16 %v503
      %v1345 = vunpack.c.l.b16 %v504
      %v1346 = vunpack.c.h.b16 %v504
      %v1347 = vunpack.c.l.b16 %v505
      %v1348 = vunpack.c.h.b16 %v505
      %v1349 = vunpack.c.l.b16 %v506
      %v1350 = vunpack.c.h.b16 %v506
      %v1351 = vunpack.c.l.b16 %v507
      %v1352 = vunpack.c.h.b16 %v507
      %v1353 = vunpack.c.l.b16 %v508
      %v1354 = vunpack.c.h.b16 %v508
      %v1355 = vunpack.c.l.b16 %v509
      %v1356 = vunpack.c.h.b16 %v509
      %v1357 = vunpack.c.l.b16 %v510
      %v1358 = vunpack.c.h.b16 %v510
      %v1359 = vunpack.c.l.b16 %v511
      %v1360 = vunpack.c.h.b16 %v511
      %v1361 = vunpack.c.l.b16 %v512
      %v1362 = vunpack.c.h.b16 %v512
      %v1363 = vunpack.c.l.b16 %v513
      %v1364 = vunpack.c.h.b16 %v513
      %v1365 = vunpack.c.l.b16 %v514
      %v1366 = vunpack.c.h.b16 %v514
      %v1367 = vunpack.c.l.b16 %v515
      %v1368 = vunpack.c.h.b16 %v515
      %v1369 = vunpack.c.l.b16 %v516
      %v1370 = vunpack.c.h.b16 %v516
      %v1371 = vunpack.c.l.b16 %v517
      %v1372 = vunpack.c.h.b16 %v517
      %v1373 = vunpack.c.l.b16 %v518
      %v1374 = vunpack.c.h.b16 %v518
      %v1375 = vunpack.c.l.b16 %v519
      %v1376 = vunpack.c.h.b16 %v519
      %v1377 = vunpack.c.l.b16 %v520
      %v1378 = vunpack.c.h.b16 %v520
      %v1379 = vunpack.c.l.b16 %v521
      %v1380 = vunpack.c.h.b16 %v521
      %v1381 = vunpack.c.l.b16 %v522
      %v1382 = vunpack.c.h.b16 %v522
      %v1383 = vunpack.c.l.b16 %v523
      %v1384 = vunpack.c.h.b16 %v523
      %v1385 = vunpack.c.l.b16 %v524
      %v1386 = vunpack.c.h.b16 %v524
      %v1387 = vunpack.c.l.b16 %v525
      %v1388 = vunpack.c.h.b16 %v525
      %v1389 = vunpack.c.l.b16 %v526
      %v1390 = vunpack.c.h.b16 %v526
      %v1391 = vunpack.c.l.b16 %v527
      %v1392 = vunpack.c.h.b16 %v527
      %v1393 = vunpack.c.l.b16 %v528
      %v1394 = vunpack.c.h.b16 %v528
      %v1395 = vunpack.c.l.b16 %v529
      %v1396 = vunpack.c.h.b16 %v529
      %v1397 = vunpack.c.l.b16 %v530
      %v1398 = vunpack.c.h.b16 %v530
      %v1399 = vunpack.c.l.b16 %v531
      %v1400 = vunpack.c.h.b16 %v531
      %v1401 = vunpack.c.l.b16 %v532
      %v1402 = vunpack.c.h.b16 %v532
      %v1403 = vunpack.c.l.b16 %v533
      %v1404 = vunpack.c.h.b16 %v533
      %v1405 = vunpack.c.l.b16 %v534
      %v1406 = vunpack.c.h.b16 %v534
      %v1407 = vunpack.c.l.b16 %v535
      %v1408 = vunpack.c.h.b16 %v535
      %v1409 = vunpack.c.l.b16 %v536
      %v1410 = vunpack.c.h.b16 %v536
      %v1411 = vunpack.c.l.b16 %v537
      %v1412 = vunpack.c.h.b16 %v537
      %v1413 = vunpack.c.l.b16 %v538
      %v1414 = vunpack.c.h.b16 %v538
      %v1415 = vunpack.c.l.b16 %v539
      %v1416 = vunpack.c.h.b16 %v539
      %v1417 = vunpack.c.l.b16 %v540
      %v1418 = vunpack.c.h.b16 %v540
      %v1419 = vunpack.c.l.b16 %v541
      %v1420 = vunpack.c.h.b16 %v541
      %v1421 = vunpack.c.l.b16 %v542
      %v1422 = vunpack.c.h.b16 %v542
      %v1423 = vunpack.c.l.b16 %v543
      %v1424 = vunpack.c.h.b16 %v543
      %v1425 = vunpack.c.l.b16 %v544
      %v1426 = vunpack.c.h.b16 %v544
      %v1427 = vunpack.c.l.b16 %v545
      %v1428 = vunpack.c.h.b16 %v545
      %v1429 = vunpack.c.l.b16 %v546
      %v1430 = vunpack.c.h.b16 %v546
      %v1431 = vunpack.c.l.b16 %v547
      %v1432 = vunpack.c.h.b16 %v547
      %v1433 = vunpack.c.l.b16 %v548
      %v1434 = vunpack.c.h.b16 %v548
      %v1435 = vunpack.c.l.b16 %v549
      %v1436 = vunpack.c.h.b16 %v549
      %v1437 = vunpack.c.l.b16 %v550
      %v1438 = vunpack.c.h.b16 %v550
      %v1439 = vunpack.c.l.b16 %v551
      %v1440 = vunpack.c.h.b16 %v551
      %v1441 = vunpack.c.l.b16 %v552
      %v1442 = vunpack.c.h.b16 %v552
      %v1443 = vunpack.c.l.b16 %v553
      %v1444 = vunpack.c.h.b16 %v553
      %v1445 = vunpack.c.l.b16 %v554
      %v1446 = vunpack.c.h.b16 %v554
      %v1447 = vunpack.c.l.b16 %v555
      %v1448 = vunpack.c.h.b16 %v555
      %v1449 = vunpack.c.l.b16 %v556
      %v1450 = vunpack.c.h.b16 %v556
      %v1451 = vunpack.c.l.b16 %v557
      %v1452 = vunpack.c.h.b16 %v557
      %v1453 = vunpack.c.l.b16 %v558
      %v1454 = vunpack.c.h.b16 %v558
      %v1455 = vunpack.c.l.b16 %v559
      %v1456 = vunpack.c.h.b16 %v559
      %v1457 = vunpack.c.l.b16 %v560
      %v1458 = vunpack.c.h.b16 %v560
      %v1459 = vunpack.c.l.b16 %v561
      %v1460 = vunpack.c.h.b16 %v561
      %v1461 = vunpack.c.l.b16 %v562
      %v1462 = vunpack.c.h.b16 %v562
      %v1463 = vunpack.c.l.b16 %v563
      %v1464 = vunpack.c.h.b16 %v563
      %v1465 = vunpack.c.l.b16 %v564
      %v1466 = vunpack.c.h.b16 %v564
      %v1467 = vunpack.c.l.b16 %v565
      %v1468 = vunpack.c.h.b16 %v565
      %v1469 = vunpack.c.l.b16 %v566
      %v1470 = vunpack.c.h.b16 %v566
      %v1471 = vunpack.c.l.b16 %v567
      %v1472 = vunpack.c.h.b16 %v567
      %v1473 = vunpack.c.l.b16 %v568
      %v1474 = vunpack.c.h.b16 %v568
      %v1475 = vunpack.c.l.b16 %v569
      %v1476 = vunpack.c.h.b16 %v569
      %v1477 = vunpack.c.l.b16 %v570
      %v1478 = vunpack.c.h.b16 %v570
      %v1479 = vunpack.c.l.b16 %v571
      %v1480 = vunpack.c.h.b16 %v571
      %v1481 = vunpack.c.l.b16 %v572
      %v1482 = vunpack.c.h.b16 %v572
      %v1483 = vunpack.c.l.b16 %v573
      %v1484 = vunpack.c.h.b16 %v573
      %v1485 = vunpack.c.l.b16 %v574
      %v1486 = vunpack.c.h.b16 %v574
      %v1487 = vunpack.c.l.b16 %v575
      %v1488 = vunpack.c.h.b16 %v575
      %v1489 = vunpack.c.l.b16 %v576
      %v1490 = vunpack.c.h.b16 %v576
      %v1491 = vunpack.c.l.b16 %v577
      %v1492 = vunpack.c.h.b16 %v577
      %v1493 = vunpack.c.l.b16 %v578
      %v1494 = vunpack.c.h.b16 %v578
      %v1495 = vunpack.c.l.b16 %v579
      %v1496 = vunpack.c.h.b16 %v579
      %v1497 = vunpack.c.l.b16 %v580
      %v1498 = vunpack.c.h.b16 %v580
      %v1499 = vunpack.c.l.b16 %v581
      %v1500 = vunpack.c.h.b16 %v581
      %v1501 = vunpack.c.l.b16 %v582
      %v1502 = vunpack.c.h.b16 %v582
      %v1503 = vunpack.c.l.b16 %v583
      %v1504 = vunpack.c.h.b16 %v583
      %v1505 = vunpack.c.l.b16 %v584
      %v1506 = vunpack.c.h.b16 %v584
      %v1507 = vunpack.c.l.b16 %v585
      %v1508 = vunpack.c.h.b16 %v585
      %v1509 = vunpack.c.l.b16 %v586
      %v1510 = vunpack.c.h.b16 %v586
      %v1511 = vunpack.c.l.b16 %v587
      %v1512 = vunpack.c.h.b16 %v587
      %v1513 = vunpack.c.l.b16 %v588
      %v1514 = vunpack.c.h.b16 %v588
      %v1515 = vunpack.c.l.b16 %v589
      %v1516 = vunpack.c.h.b16 %v589
      %v1517 = vunpack.c.l.b16 %v590
      %v1518 = vunpack.c.h.b16 %v590
      %v1519 = vpack.c.b16 %v1009, %v1007
      %v1520 = vpack.c.b16 %v1010, %v1008
      %v1521 = vpack.c.b16 %v1013, %v1011
      %v1522 = vpack.c.b16 %v1014, %v1012
      %v1523 = vpack.c.b16 %v1017, %v1015
      %v1524 = vpack.c.b16 %v1018, %v1016
      %v1525 = vpack.c.b16 %v1021, %v1019
      %v1526 = vpack.c.b16 %v1022, %v1020
      %v1527 = vpack.c.b16 %v1025, %v1023
      %v1528 = vpack.c.b16 %v1026, %v1024
      %v1529 = vpack.c.b16 %v1029, %v1027
      %v1530 = vpack.c.b16 %v1030, %v1028
      %v1531 = vpack.c.b16 %v1033, %v1031
      %v1532 = vpack.c.b16 %v1034, %v1032
      %v1533 = vpack.c.b16 %v1037, %v1035
      %v1534 = vpack.c.b16 %v1038, %v1036
      %v1535 = vpack.c.b16 %v1041, %v1039
      %v1536 = vpack.c.b16 %v1042, %v1040
      %v1537 = vpack.c.b16 %v1045, %v1043
      %v1538 = vpack.c.b16 %v1046, %v1044
      %v1539 = vpack.c.b16 %v1049, %v1047
      %v1540 = vpack.c.b16 %v1050, %v1048
      %v1541 = vpack.c.b16 %v1053, %v1051
      %v1542 = vpack.c.b16 %v1054, %v1052
      %v1543 = vpack.c.b16 %v1057, %v1055
      %v1544 = vpack.c.b16 %v1058, %v1056
      %v1545 = vpack.c.b16 %v1061, %v1059
      %v1546 = vpack.c.b16 %v1062, %v1060
      %v1547 = vpack.c.b16 %v1065, %v1063
      %v1548 = vpack.c.b16 %v1066, %v1064
      %v1549 = vpack.c.b16 %v1069, %v1067
      %v1550 = vpack.c.b16 %v1070, %v1068
      %v1551 = vpack.c.b16 %v1073, %v1071
      %v1552 = vpack.c.b16 %v1074, %v1072
      %v1553 = vpack.c.b16 %v1077, %v1075
      %v1554 = vpack.c.b16 %v1078, %v1076
      %v1555 = vpack.c.b16 %v1081, %v1079
      %v1556 = vpack.c.b16 %v1082, %v1080
      %v1557 = vpack.c.b16 %v1085, %v1083
      %v1558 = vpack.c.b16 %v1086, %v1084
      %v1559 = vpack.c.b16 %v1089, %v1087
      %v1560 = vpack.c.b16 %v1090, %v1088
      %v1561 = vpack.c.b16 %v1093, %v1091
      %v1562 = vpack.c.b16 %v1094, %v1092
      %v1563 = vpack.c.b16 %v1097, %v1095
      %v1564 = vpack.c.b16 %v1098, %v1096
      %v1565 = vpack.c.b16 %v1101, %v1099
      %v1566 = vpack.c.b16 %v1102, %v1100
      %v1567 = vpack.c.b16 %v1105, %v1103
      %v1568 = vpack.c.b16 %v1106, %v1104
      %v1569 = vpack.c.b16 %v1109, %v1107
      %v1570 = vpack.c.b16 %v1110, %v1108
      %v1571 = vpack.c.b16 %v1113, %v1111
      %v1572 = vpack.c.b16 %v1114, %v1112
      %v1573 = vpack.c.b16 %v1117, %v1115
      %v1574 = vpack.c.b16 %v1118, %v1116
      %v1575 = vpack.c.b16 %v1121, %v1119
      %v1576 = vpack.c.b16 %v1122, %v1120
      %v1577 = vpack.c.b16 %v1125, %v1123
      %v1578 = vpack.c.b16 %v1126, %v1124
      %v1579 = vpack.c.b16 %v1129, %v1127
      %v1580 = vpack.c.b16 %v1130, %v1128
      %v1581 = vpack.c.b16 %v1133, %v1131
      %v1582 = vpack.c.b16 %v1134, %v1132
      %v1583 = vpack.c.b16 %v1137, %v1135
      %v1584 = vpack.c.b16 %v1138, %v1136
      %v1585 = vpack.c.b16 %v1141, %v1139
      %v1586 = vpack.c.b16 %v1142, %v1140
      %v1587 = vpack.c.b16 %v1145, %v1143
      %v1588 = vpack.c.b16 %v1146, %v1144
      %v1589 = vpack.c.b16 %v1149, %v1147
      %v1590 = vpack.c.b16 %v1150, %v1148
      %v1591 = vpack.c.b16 %v1153, %v1151
      %v1592 = vpack.c.b16 %v1154, %v1152
      %v1593 = vpack.c.b16 %v1157, %v1155
      %v1594 = vpack.c.b16 %v1158, %v1156
      %v1595 = vpack.c.b16 %v1161, %v1159
      %v1596 = vpack.c.b16 %v1162, %v1160
      %v1597 = vpack.c.b16 %v1165, %v1163
      %v1598 = vpack.c.b16 %v1166, %v1164
      %v1599 = vpack.c.b16 %v1169, %v1167
      %v1600 = vpack.c.b16 %v1170, %v1168
      %v1601 = vpack.c.b16 %v1173, %v1171
      %v1602 = vpack.c.b16 %v1174, %v1172
      %v1603 = vpack.c.b16 %v1177, %v1175
      %v1604 = vpack.c.b16 %v1178, %v1176
      %v1605 = vpack.c.b16 %v1181, %v1179
      %v1606 = vpack.c.b16 %v1182, %v1180
      %v1607 = vpack.c.b16 %v1185, %v1183
      %v1608 = vpack.c.b16 %v1186, %v1184
      %v1609 = vpack.c.b16 %v1189, %v1187
      %v1610 = vpack.c.b16 %v1190, %v1188
      %v1611 = vpack.c.b16 %v1193, %v1191
      %v1612 = vpack.c.b16 %v1194, %v1192
      %v1613 = vpack.c.b16 %v1197, %v1195
      %v1614 = vpack.c.b16 %v1198, %v1196
      %v1615 = vpack.c.b16 %v1201, %v1199
      %v1616 = vpack.c.b16 %v1202, %v1200
      %v1617 = vpack.c.b16 %v1205, %v1203
      %v1618 = vpack.c.b16 %v1206, %v1204
      %v1619 = vpack.c.b16 %v1209, %v1207
      %v1620 = vpack.c.b16 %v1210, %v1208
      %v1621 = vpack.c.b16 %v1213, %v1211
      %v1622 = vpack.c.b16 %v1214, %v1212
      %v1623 = vpack.c.b16 %v1217, %v1215
      %v1624 = vpack.c.b16 %v1218, %v1216
      %v1625 = vpack.c.b16 %v1221, %v1219
      %v1626 = vpack.c.b16 %v1222, %v1220
      %v1627 = vpack.c.b16 %v1225, %v1223
      %v1628 = vpack.c.b16 %v1226, %v1224
      %v1629 = vpack.c.b16 %v1229, %v1227
      %v1630 = vpack.c.b16 %v1230, %v1228
      %v1631 = vpack.c.b16 %v1233, %v1231
      %v1632 = vpack.c.b16 %v1234, %v1232
      %v1633 = vpack.c.b16 %v1237, %v1235
      %v1634 = vpack.c.b16 %v1238, %v1236
      %v1635 = vpack.c.b16 %v1241, %v1239
      %v1636 = vpack.c.b16 %v1242, %v1240
      %v1637 = vpack.c.b16 %v1245, %v1243
      %v1638 = vpack.c.b16 %v1246, %v1244
      %v1639 = vpack.c.b16 %v1249, %v1247
      %v1640 = vpack.c.b16 %v1250, %v1248
      %v1641 = vpack.c.b16 %v1253, %v1251
      %v1642 = vpack.c.b16 %v1254, %v1252
      %v1643 = vpack.c.b16 %v1257, %v1255
      %v1644 = vpack.c.b16 %v1258, %v1256
      %v1645 = vpack.c.b16 %v1261, %v1259
      %v1646 = vpack.c.b16 %v1262, %v1260
      %v1647 = vpack.c.b16 %v1265, %v1263
      %v1648 = vpack.c.b16 %v1266, %v1264
      %v1649 = vpack.c.b16 %v1269, %v1267
      %v1650 = vpack.c.b16 %v1270, %v1268
      %v1651 = vpack.c.b16 %v1273, %v1271
      %v1652 = vpack.c.b16 %v1274, %v1272
      %v1653 = vpack.c.b16 %v1277, %v1275
      %v1654 = vpack.c.b16 %v1278, %v1276
      %v1655 = vpack.c.b16 %v1281, %v1279
      %v1656 = vpack.c.b16 %v1282, %v1280
      %v1657 = vpack.c.b16 %v1285, %v1283
      %v1658 = vpack.c.b16 %v1286, %v1284
      %v1659 = vpack.c.b16 %v1289, %v1287
      %v1660 = vpack.c.b16 %v1290, %v1288
      %v1661 = vpack.c.b16 %v1293, %v1291
      %v1662 = vpack.c.b16 %v1294, %v1292
      %v1663 = vpack.c.b16 %v1297, %v1295
      %v1664 = vpack.c.b16 %v1298, %v1296
      %v1665 = vpack.c.b16 %v1301, %v1299
      %v1666 = vpack.c.b16 %v1302, %v1300
      %v1667 = vpack.c.b16 %v1305, %v1303
      %v1668 = vpack.c.b16 %v1306, %v1304
      %v1669 = vpack.c.b16 %v1309, %v1307
      %v1670 = vpack.c.b16 %v1310, %v1308
      %v1671 = vpack.c.b16 %v1313, %v1311
      %v1672 = vpack.c.b16 %v1314, %v1312
      %v1673 = vpack.c.b16 %v1317, %v1315
      %v1674 = vpack.c.b16 %v1318, %v1316
      %v1675 = vpack.c.b16 %v1321, %v1319
      %v1676 = vpack.c.b16 %v1322, %v1320
      %v1677 = vpack.c.b16 %v1325, %v1323
      %v1678 = vpack.c.b16 %v1326, %v1324
      %v1679 = vpack.c.b16 %v1329, %v1327
      %v1680 = vpack.c.b16 %v1330, %v1328
      %v1681 = vpack.c.b16 %v1333, %v1331
      %v1682 = vpack.c.b16 %v1334, %v1332
      %v1683 = vpack.c.b16 %v1337, %v1335
      %v1684 = vpack.c.b16 %v1338, %v1336
      %v1685 = vpack.c.b16 %v1341, %v1339
      %v1686 = vpack.c.b16 %v1342, %v1340
      %v1687 = vpack.c.b16 %v1345, %v1343
      %v1688 = vpack.c.b16 %v1346, %v1344
      %v1689 = vpack.c.b16 %v1349, %v1347
      %v1690 = vpack.c.b16 %v1350, %v1348
      %v1691 = vpack.c.b16 %v1353, %v1351
      %v1692 = vpack.c.b16 %v1354, %v1352
      %v1693 = vpack.c.b16 %v1357, %v1355
      %v1694 = vpack.c.b16 %v1358, %v1356
      %v1695 = vpack.c.b16 %v1361, %v1359
      %v1696 = vpack.c.b16 %v1362, %v1360
      %v1697 = vpack.c.b16 %v1365, %v1363
      %v1698 = vpack.c.b16 %v1366, %v1364
      %v1699 = vpack.c.b16 %v1369, %v1367
      %v1700 = vpack.c.b16 %v1370, %v1368
      %v1701 = vpack.c.b16 %v1373, %v1371
      %v1702 = vpack.c.b16 %v1374, %v1372
      %v1703 = vpack.c.b16 %v1377, %v1375
      %v1704 = vpack.c.b16 %v1378, %v1376
      %v1705 = vpack.c.b16 %v1381, %v1379
      %v1706 = vpack.c.b16 %v1382, %v1380
      %v1707 = vpack.c.b16 %v1385, %v1383
      %v1708 = vpack.c.b16 %v1386, %v1384
      %v1709 = vpack.c.b16 %v1389, %v1387
      %v1710 = vpack.c.b16 %v1390, %v1388
      %v1711 = vpack.c.b16 %v1393, %v1391
      %v1712 = vpack.c.b16 %v1394, %v1392
      %v1713 = vpack.c.b16 %v1397, %v1395
      %v1714 = vpack.c.b16 %v1398, %v1396
      %v1715 = vpack.c.b16 %v1401, %v1399
      %v1716 = vpack.c.b16 %v1402, %v1400
      %v1717 = vpack.c.b16 %v1405, %v1403
      %v1718 = vpack.c.b16 %v1406, %v1404
      %v1719 = vpack.c.b16 %v1409, %v1407
      %v1720 = vpack.c.b16 %v1410, %v1408
      %v1721 = vpack.c.b16 %v1413, %v1411
      %v1722 = vpack.c.b16 %v1414, %v1412
      %v1723 = vpack.c.b16 %v1417, %v1415
      %v1724 = vpack.c.b16 %v1418, %v1416
      %v1725 = vpack.c.b16 %v1421, %v1419
      %v1726 = vpack.c.b16 %v1422, %v1420
      %v1727 = vpack.c.b16 %v1425, %v1423
      %v1728 = vpack.c.b16 %v1426, %v1424
      %v1729 = vpack.c.b16 %v1429, %v1427
      %v1730 = vpack.c.b16 %v1430, %v1428
      %v1731 = vpack.c.b16 %v1433, %v1431
      %v1732 = vpack.c.b16 %v1434, %v1432
      %v1733 = vpack.c.b16 %v1437, %v1435
      %v1734 = vpack.c.b16 %v1438, %v1436
      %v1735 = vpack.c.b16 %v1441, %v1439
      %v1736 = vpack.c.b16 %v1442, %v1440
      %v1737 = vpack.c.b16 %v1445, %v1443
      %v1738 = vpack.c.b16 %v1446, %v1444
      %v1739 = vpack.c.b16 %v1449, %v1447
      %v1740 = vpack.c.b16 %v1450, %v1448
      %v1741 = vpack.c.b16 %v1453, %v1451
      %v1742 = vpack.c.b16 %v1454, %v1452
      %v1743 = vpack.c.b16 %v1457, %v1455
      %v1744 = vpack.c.b16 %v1458, %v1456
      %v1745 = vpack.c.b16 %v1461, %v1459
      %v1746 = vpack.c.b16 %v1462, %v1460
      %v1747 = vpack.c.b16 %v1465, %v1463
      %v1748 = vpack.c.b16 %v1466, %v1464
      %v1749 = vpack.c.b16 %v1469, %v1467
      %v1750 = vpack.c.b16 %v1470, %v1468
      %v1751 = vpack.c.b16 %v1473, %v1471
      %v1752 = vpack.c.b16 %v1474, %v1472
      %v1753 = vpack.c.b16 %v1477, %v1475
      %v1754 = vpack.c.b16 %v1478, %v1476
      %v1755 = vpack.c.b16 %v1481, %v1479
      %v1756 = vpack.c.b16 %v1482, %v1480
      %v1757 = vpack.c.b16 %v1485, %v1483
      %v1758 = vpack.c.b16 %v1486, %v1484
      %v1759 = vpack.c.b16 %v1489, %v1487
      %v1760 = vpack.c.b16 %v1490, %v1488
      %v1761 = vpack.c.b16 %v1493, %v1491
      %v1762 = vpack.c.b16 %v1494, %v1492
      %v1763 = vpack.c.b16 %v1497, %v1495
      %v1764 = vpack.c.b16 %v1498, %v1496
      %v1765 = vpack.c.b16 %v1501, %v1499
      %v1766 = vpack.c.b16 %v1502, %v1500
      %v1767 = vpack.c.b16 %v1505, %v1503
      %v1768 = vpack.c.b16 %v1506, %v1504
      %v1769 = vpack.c.b16 %v1509, %v1507
      %v1770 = vpack.c.b16 %v1510, %v1508
      %v1771 = vpack.c.b16 %v1513, %v1511
      %v1772 = vpack.c.b16 %v1514, %v1512
      %v1773 = vpack.c.b16 %v1517, %v1515
      %v1774 = vpack.c.b16 %v1518, %v1516
      %2031 = vmatprep.subr.bf16.mxu0 %v1534
      %2032 = vmatpush1.bf16.msra.mxu0 %v1533
      %2033 = vmatprep.subr.bf16.mxu0 %v1532
      %2034 = vmatpush1.bf16.msra.mxu0 %v1531
      %2035 = vmatprep.subr.bf16.mxu0 %v1530
      %2036 = vmatpush1.bf16.msra.mxu0 %v1529
      %2037 = vmatprep.subr.bf16.mxu0 %v1528
      %2038 = vmatpush1.bf16.msra.mxu0 %v1527
      %2039 = vmatprep.subr.bf16.mxu0 %v1526
      %2040 = vmatpush1.bf16.msra.mxu0 %v1525
      %2041 = vmatprep.subr.bf16.mxu0 %v1524
      %2042 = vmatpush1.bf16.msra.mxu0 %v1523
      %2043 = vmatprep.subr.bf16.mxu0 %v1522
      %2044 = vmatpush1.bf16.msra.mxu0 %v1521
      %2045 = vmatprep.subr.bf16.mxu0 %v1520
      %2046 = vmatpush1.bf16.msra.mxu0 %v1519
      %2047 = vmatprep.subr.bf16.mxu0 %v1550
      %2048 = vmatpush2.bf16.msra.mxu0 %v1549
      %2049 = vmatprep.subr.bf16.mxu0 %v1548
      %2050 = vmatpush2.bf16.msra.mxu0 %v1547
      %2051 = vmatprep.subr.bf16.mxu0 %v1546
      %2052 = vmatpush2.bf16.msra.mxu0 %v1545
      %2053 = vmatprep.subr.bf16.mxu0 %v1544
      %2054 = vmatpush2.bf16.msra.mxu0 %v1543
      %2055 = vmatprep.subr.bf16.mxu0 %v1542
      %2056 = vmatpush2.bf16.msra.mxu0 %v1541
      %2057 = vmatprep.subr.bf16.mxu0 %v1540
      %2058 = vmatpush2.bf16.msra.mxu0 %v1539
      %2059 = vmatprep.subr.bf16.mxu0 %v1538
      %2060 = vmatpush2.bf16.msra.mxu0 %v1537
      %2061 = vmatprep.subr.bf16.mxu0 %v1536
      %2062 = vmatpush2.bf16.msra.mxu0 %v1535
      %2063 = vmatprep.mubr.bf16.mxu0 %v688
      %2064 = vmatmul.mubr.bf16.gmra.mxu0 %v687
      %v2065 = vpop.f32.mrf.mxu0
      %v2066 = vadd.f32 0.0, %v2065
      %v2067 = vpop.f32.mrf.mxu0
      %v2068 = vadd.f32 0.0, %v2067
      %v2069 = vpop.f32.mrf.mxu0
      %v2070 = vadd.f32 0.0, %v2069
      %v2071 = vpop.f32.mrf.mxu0
      %v2072 = vadd.f32 0.0, %v2071
      %2073 = vmatprep.mubr.bf16.mxu0 %v704
      %2074 = vmatmul.mubr.bf16.gmra.mxu0 %v703
      %v2075 = vpop.f32.mrf.mxu0
      %v2076 = vadd.f32 0.0, %v2075
      %v2077 = vpop.f32.mrf.mxu0
      %v2078 = vadd.f32 0.0, %v2077
      %v2079 = vpop.f32.mrf.mxu0
      %v2080 = vadd.f32 0.0, %v2079
      %v2081 = vpop.f32.mrf.mxu0
      %v2082 = vadd.f32 0.0, %v2081
      %2083 = vdwg.mxu0
      %2084 = vmatprep.subr.bf16.mxu0 %v1566
      %2085 = vmatpush1.bf16.msra.mxu0 %v1565
      %2086 = vmatprep.subr.bf16.mxu0 %v1564
      %2087 = vmatpush1.bf16.msra.mxu0 %v1563
      %2088 = vmatprep.subr.bf16.mxu0 %v1562
      %2089 = vmatpush1.bf16.msra.mxu0 %v1561
      %2090 = vmatprep.subr.bf16.mxu0 %v1560
      %2091 = vmatpush1.bf16.msra.mxu0 %v1559
      %2092 = vmatprep.subr.bf16.mxu0 %v1558
      %2093 = vmatpush1.bf16.msra.mxu0 %v1557
      %2094 = vmatprep.subr.bf16.mxu0 %v1556
      %2095 = vmatpush1.bf16.msra.mxu0 %v1555
      %2096 = vmatprep.subr.bf16.mxu0 %v1554
      %2097 = vmatpush1.bf16.msra.mxu0 %v1553
      %2098 = vmatprep.subr.bf16.mxu0 %v1552
      %2099 = vmatpush1.bf16.msra.mxu0 %v1551
      %2100 = vmatprep.subr.bf16.mxu0 %v1582
      %2101 = vmatpush2.bf16.msra.mxu0 %v1581
      %2102 = vmatprep.subr.bf16.mxu0 %v1580
      %2103 = vmatpush2.bf16.msra.mxu0 %v1579
      %2104 = vmatprep.subr.bf16.mxu0 %v1578
      %2105 = vmatpush2.bf16.msra.mxu0 %v1577
      %2106 = vmatprep.subr.bf16.mxu0 %v1576
      %2107 = vmatpush2.bf16.msra.mxu0 %v1575
      %2108 = vmatprep.subr.bf16.mxu0 %v1574
      %2109 = vmatpush2.bf16.msra.mxu0 %v1573
      %2110 = vmatprep.subr.bf16.mxu0 %v1572
      %2111 = vmatpush2.bf16.msra.mxu0 %v1571
      %2112 = vmatprep.subr.bf16.mxu0 %v1570
      %2113 = vmatpush2.bf16.msra.mxu0 %v1569
      %2114 = vmatprep.subr.bf16.mxu0 %v1568
      %2115 = vmatpush2.bf16.msra.mxu0 %v1567
      %2116 = vmatprep.mubr.bf16.mxu0 %v690
      %2117 = vmatmul.mubr.bf16.gmra.mxu0 %v689
      %v2118 = vpop.f32.mrf.mxu0
      %v2119 = vadd.f32 %v2066, %v2118
      %v2120 = vpop.f32.mrf.mxu0
      %v2121 = vadd.f32 %v2068, %v2120
      %v2122 = vpop.f32.mrf.mxu0
      %v2123 = vadd.f32 %v2070, %v2122
      %v2124 = vpop.f32.mrf.mxu0
      %v2125 = vadd.f32 %v2072, %v2124
      %2126 = vmatprep.mubr.bf16.mxu0 %v706
      %2127 = vmatmul.mubr.bf16.gmra.mxu0 %v705
      %v2128 = vpop.f32.mrf.mxu0
      %v2129 = vadd.f32 %v2076, %v2128
      %v2130 = vpop.f32.mrf.mxu0
      %v2131 = vadd.f32 %v2078, %v2130
      %v2132 = vpop.f32.mrf.mxu0
      %v2133 = vadd.f32 %v2080, %v2132
      %v2134 = vpop.f32.mrf.mxu0
      %v2135 = vadd.f32 %v2082, %v2134
      %2136 = vdwg.mxu0
      %2137 = vmatprep.subr.bf16.mxu0 %v1598
      %2138 = vmatpush1.bf16.msra.mxu0 %v1597
      %2139 = vmatprep.subr.bf16.mxu0 %v1596
      %2140 = vmatpush1.bf16.msra.mxu0 %v1595
      %2141 = vmatprep.subr.bf16.mxu0 %v1594
      %2142 = vmatpush1.bf16.msra.mxu0 %v1593
      %2143 = vmatprep.subr.bf16.mxu0 %v1592
      %2144 = vmatpush1.bf16.msra.mxu0 %v1591
      %2145 = vmatprep.subr.bf16.mxu0 %v1590
      %2146 = vmatpush1.bf16.msra.mxu0 %v1589
      %2147 = vmatprep.subr.bf16.mxu0 %v1588
      %2148 = vmatpush1.bf16.msra.mxu0 %v1587
      %2149 = vmatprep.subr.bf16.mxu0 %v1586
      %2150 = vmatpush1.bf16.msra.mxu0 %v1585
      %2151 = vmatprep.subr.bf16.mxu0 %v1584
      %2152 = vmatpush1.bf16.msra.mxu0 %v1583
      %2153 = vmatprep.subr.bf16.mxu0 %v1614
      %2154 = vmatpush2.bf16.msra.mxu0 %v1613
      %2155 = vmatprep.subr.bf16.mxu0 %v1612
      %2156 = vmatpush2.bf16.msra.mxu0 %v1611
      %2157 = vmatprep.subr.bf16.mxu0 %v1610
      %2158 = vmatpush2.bf16.msra.mxu0 %v1609
      %2159 = vmatprep.subr.bf16.mxu0 %v1608
      %2160 = vmatpush2.bf16.msra.mxu0 %v1607
      %2161 = vmatprep.subr.bf16.mxu0 %v1606
      %2162 = vmatpush2.bf16.msra.mxu0 %v1605
      %2163 = vmatprep.subr.bf16.mxu0 %v1604
      %2164 = vmatpush2.bf16.msra.mxu0 %v1603
      %2165 = vmatprep.subr.bf16.mxu0 %v1602
      %2166 = vmatpush2.bf16.msra.mxu0 %v1601
      %2167 = vmatprep.subr.bf16.mxu0 %v1600
      %2168 = vmatpush2.bf16.msra.mxu0 %v1599
      %2169 = vmatprep.mubr.bf16.mxu0 %v692
      %2170 = vmatmul.mubr.bf16.gmra.mxu0 %v691
      %v2171 = vpop.f32.mrf.mxu0
      %v2172 = vadd.f32 %v2119, %v2171
      %v2173 = vpop.f32.mrf.mxu0
      %v2174 = vadd.f32 %v2121, %v2173
      %v2175 = vpop.f32.mrf.mxu0
      %v2176 = vadd.f32 %v2123, %v2175
      %v2177 = vpop.f32.mrf.mxu0
      %v2178 = vadd.f32 %v2125, %v2177
      %2179 = vmatprep.mubr.bf16.mxu0 %v708
      %2180 = vmatmul.mubr.bf16.gmra.mxu0 %v707
      %v2181 = vpop.f32.mrf.mxu0
      %v2182 = vadd.f32 %v2129, %v2181
      %v2183 = vpop.f32.mrf.mxu0
      %v2184 = vadd.f32 %v2131, %v2183
      %v2185 = vpop.f32.mrf.mxu0
      %v2186 = vadd.f32 %v2133, %v2185
      %v2187 = vpop.f32.mrf.mxu0
      %v2188 = vadd.f32 %v2135, %v2187
      %2189 = vdwg.mxu0
      %2190 = vmatprep.subr.bf16.mxu0 %v1630
      %2191 = vmatpush1.bf16.msra.mxu0 %v1629
      %2192 = vmatprep.subr.bf16.mxu0 %v1628
      %2193 = vmatpush1.bf16.msra.mxu0 %v1627
      %2194 = vmatprep.subr.bf16.mxu0 %v1626
      %2195 = vmatpush1.bf16.msra.mxu0 %v1625
      %2196 = vmatprep.subr.bf16.mxu0 %v1624
      %2197 = vmatpush1.bf16.msra.mxu0 %v1623
      %2198 = vmatprep.subr.bf16.mxu0 %v1622
      %2199 = vmatpush1.bf16.msra.mxu0 %v1621
      %2200 = vmatprep.subr.bf16.mxu0 %v1620
      %2201 = vmatpush1.bf16.msra.mxu0 %v1619
      %2202 = vmatprep.subr.bf16.mxu0 %v1618
      %2203 = vmatpush1.bf16.msra.mxu0 %v1617
      %2204 = vmatprep.subr.bf16.mxu0 %v1616
      %2205 = vmatpush1.bf16.msra.mxu0 %v1615
      %2206 = vmatprep.subr.bf16.mxu0 %v1646
      %2207 = vmatpush2.bf16.msra.mxu0 %v1645
      %2208 = vmatprep.subr.bf16.mxu0 %v1644
      %2209 = vmatpush2.bf16.msra.mxu0 %v1643
      %2210 = vmatprep.subr.bf16.mxu0 %v1642
      %2211 = vmatpush2.bf16.msra.mxu0 %v1641
      %2212 = vmatprep.subr.bf16.mxu0 %v1640
      %2213 = vmatpush2.bf16.msra.mxu0 %v1639
      %2214 = vmatprep.subr.bf16.mxu0 %v1638
      %2215 = vmatpush2.bf16.msra.mxu0 %v1637
      %2216 = vmatprep.subr.bf16.mxu0 %v1636
      %2217 = vmatpush2.bf16.msra.mxu0 %v1635
      %2218 = vmatprep.subr.bf16.mxu0 %v1634
      %2219 = vmatpush2.bf16.msra.mxu0 %v1633
      %2220 = vmatprep.subr.bf16.mxu0 %v1632
      %2221 = vmatpush2.bf16.msra.mxu0 %v1631
      %2222 = vmatprep.mubr.bf16.mxu0 %v694
      %2223 = vmatmul.mubr.bf16.gmra.mxu0 %v693
      %v2224 = vpop.f32.mrf.mxu0
      %v2225 = vadd.f32 %v2172, %v2224
      %v2226 = vpop.f32.mrf.mxu0
      %v2227 = vadd.f32 %v2174, %v2226
      %v2228 = vpop.f32.mrf.mxu0
      %v2229 = vadd.f32 %v2176, %v2228
      %v2230 = vpop.f32.mrf.mxu0
      %v2231 = vadd.f32 %v2178, %v2230
      %2232 = vmatprep.mubr.bf16.mxu0 %v710
      %2233 = vmatmul.mubr.bf16.gmra.mxu0 %v709
      %v2234 = vpop.f32.mrf.mxu0
      %v2235 = vadd.f32 %v2182, %v2234
      %v2236 = vpop.f32.mrf.mxu0
      %v2237 = vadd.f32 %v2184, %v2236
      %v2238 = vpop.f32.mrf.mxu0
      %v2239 = vadd.f32 %v2186, %v2238
      %v2240 = vpop.f32.mrf.mxu0
      %v2241 = vadd.f32 %v2188, %v2240
      %2242 = vdwg.mxu0
      %2243 = vmatprep.subr.bf16.mxu0 %v1662
      %2244 = vmatpush1.bf16.msra.mxu0 %v1661
      %2245 = vmatprep.subr.bf16.mxu0 %v1660
      %2246 = vmatpush1.bf16.msra.mxu0 %v1659
      %2247 = vmatprep.subr.bf16.mxu0 %v1658
      %2248 = vmatpush1.bf16.msra.mxu0 %v1657
      %2249 = vmatprep.subr.bf16.mxu0 %v1656
      %2250 = vmatpush1.bf16.msra.mxu0 %v1655
      %2251 = vmatprep.subr.bf16.mxu0 %v1654
      %2252 = vmatpush1.bf16.msra.mxu0 %v1653
      %2253 = vmatprep.subr.bf16.mxu0 %v1652
      %2254 = vmatpush1.bf16.msra.mxu0 %v1651
      %2255 = vmatprep.subr.bf16.mxu0 %v1650
      %2256 = vmatpush1.bf16.msra.mxu0 %v1649
      %2257 = vmatprep.subr.bf16.mxu0 %v1648
      %2258 = vmatpush1.bf16.msra.mxu0 %v1647
      %2259 = vmatprep.subr.bf16.mxu0 %v1678
      %2260 = vmatpush2.bf16.msra.mxu0 %v1677
      %2261 = vmatprep.subr.bf16.mxu0 %v1676
      %2262 = vmatpush2.bf16.msra.mxu0 %v1675
      %2263 = vmatprep.subr.bf16.mxu0 %v1674
      %2264 = vmatpush2.bf16.msra.mxu0 %v1673
      %2265 = vmatprep.subr.bf16.mxu0 %v1672
      %2266 = vmatpush2.bf16.msra.mxu0 %v1671
      %2267 = vmatprep.subr.bf16.mxu0 %v1670
      %2268 = vmatpush2.bf16.msra.mxu0 %v1669
      %2269 = vmatprep.subr.bf16.mxu0 %v1668
      %2270 = vmatpush2.bf16.msra.mxu0 %v1667
      %2271 = vmatprep.subr.bf16.mxu0 %v1666
      %2272 = vmatpush2.bf16.msra.mxu0 %v1665
      %2273 = vmatprep.subr.bf16.mxu0 %v1664
      %2274 = vmatpush2.bf16.msra.mxu0 %v1663
      %2275 = vmatprep.mubr.bf16.mxu0 %v696
      %2276 = vmatmul.mubr.bf16.gmra.mxu0 %v695
      %v2277 = vpop.f32.mrf.mxu0
      %v2278 = vadd.f32 %v2225, %v2277
      %v2279 = vpop.f32.mrf.mxu0
      %v2280 = vadd.f32 %v2227, %v2279
      %v2281 = vpop.f32.mrf.mxu0
      %v2282 = vadd.f32 %v2229, %v2281
      %v2283 = vpop.f32.mrf.mxu0
      %v2284 = vadd.f32 %v2231, %v2283
      %2285 = vmatprep.mubr.bf16.mxu0 %v712
      %2286 = vmatmul.mubr.bf16.gmra.mxu0 %v711
      %v2287 = vpop.f32.mrf.mxu0
      %v2288 = vadd.f32 %v2235, %v2287
      %v2289 = vpop.f32.mrf.mxu0
      %v2290 = vadd.f32 %v2237, %v2289
      %v2291 = vpop.f32.mrf.mxu0
      %v2292 = vadd.f32 %v2239, %v2291
      %v2293 = vpop.f32.mrf.mxu0
      %v2294 = vadd.f32 %v2241, %v2293
      %2295 = vdwg.mxu0
      %2296 = vmatprep.subr.bf16.mxu0 %v1694
      %2297 = vmatpush1.bf16.msra.mxu0 %v1693
      %2298 = vmatprep.subr.bf16.mxu0 %v1692
      %2299 = vmatpush1.bf16.msra.mxu0 %v1691
      %2300 = vmatprep.subr.bf16.mxu0 %v1690
      %2301 = vmatpush1.bf16.msra.mxu0 %v1689
      %2302 = vmatprep.subr.bf16.mxu0 %v1688
      %2303 = vmatpush1.bf16.msra.mxu0 %v1687
      %2304 = vmatprep.subr.bf16.mxu0 %v1686
      %2305 = vmatpush1.bf16.msra.mxu0 %v1685
      %2306 = vmatprep.subr.bf16.mxu0 %v1684
      %2307 = vmatpush1.bf16.msra.mxu0 %v1683
      %2308 = vmatprep.subr.bf16.mxu0 %v1682
      %2309 = vmatpush1.bf16.msra.mxu0 %v1681
      %2310 = vmatprep.subr.bf16.mxu0 %v1680
      %2311 = vmatpush1.bf16.msra.mxu0 %v1679
      %2312 = vmatprep.subr.bf16.mxu0 %v1710
      %2313 = vmatpush2.bf16.msra.mxu0 %v1709
      %2314 = vmatprep.subr.bf16.mxu0 %v1708
      %2315 = vmatpush2.bf16.msra.mxu0 %v1707
      %2316 = vmatprep.subr.bf16.mxu0 %v1706
      %2317 = vmatpush2.bf16.msra.mxu0 %v1705
      %2318 = vmatprep.subr.bf16.mxu0 %v1704
      %2319 = vmatpush2.bf16.msra.mxu0 %v1703
      %2320 = vmatprep.subr.bf16.mxu0 %v1702
      %2321 = vmatpush2.bf16.msra.mxu0 %v1701
      %2322 = vmatprep.subr.bf16.mxu0 %v1700
      %2323 = vmatpush2.bf16.msra.mxu0 %v1699
      %2324 = vmatprep.subr.bf16.mxu0 %v1698
      %2325 = vmatpush2.bf16.msra.mxu0 %v1697
      %2326 = vmatprep.subr.bf16.mxu0 %v1696
      %2327 = vmatpush2.bf16.msra.mxu0 %v1695
      %2328 = vmatprep.mubr.bf16.mxu0 %v698
      %2329 = vmatmul.mubr.bf16.gmra.mxu0 %v697
      %v2330 = vpop.f32.mrf.mxu0
      %v2331 = vadd.f32 %v2278, %v2330
      %v2332 = vpop.f32.mrf.mxu0
      %v2333 = vadd.f32 %v2280, %v2332
      %v2334 = vpop.f32.mrf.mxu0
      %v2335 = vadd.f32 %v2282, %v2334
      %v2336 = vpop.f32.mrf.mxu0
      %v2337 = vadd.f32 %v2284, %v2336
      %2338 = vmatprep.mubr.bf16.mxu0 %v714
      %2339 = vmatmul.mubr.bf16.gmra.mxu0 %v713
      %v2340 = vpop.f32.mrf.mxu0
      %v2341 = vadd.f32 %v2288, %v2340
      %v2342 = vpop.f32.mrf.mxu0
      %v2343 = vadd.f32 %v2290, %v2342
      %v2344 = vpop.f32.mrf.mxu0
      %v2345 = vadd.f32 %v2292, %v2344
      %v2346 = vpop.f32.mrf.mxu0
      %v2347 = vadd.f32 %v2294, %v2346
      %2348 = vdwg.mxu0
      %2349 = vmatprep.subr.bf16.mxu0 %v1726
      %2350 = vmatpush1.bf16.msra.mxu0 %v1725
      %2351 = vmatprep.subr.bf16.mxu0 %v1724
      %2352 = vmatpush1.bf16.msra.mxu0 %v1723
      %2353 = vmatprep.subr.bf16.mxu0 %v1722
      %2354 = vmatpush1.bf16.msra.mxu0 %v1721
      %2355 = vmatprep.subr.bf16.mxu0 %v1720
      %2356 = vmatpush1.bf16.msra.mxu0 %v1719
      %2357 = vmatprep.subr.bf16.mxu0 %v1718
      %2358 = vmatpush1.bf16.msra.mxu0 %v1717
      %2359 = vmatprep.subr.bf16.mxu0 %v1716
      %2360 = vmatpush1.bf16.msra.mxu0 %v1715
      %2361 = vmatprep.subr.bf16.mxu0 %v1714
      %2362 = vmatpush1.bf16.msra.mxu0 %v1713
      %2363 = vmatprep.subr.bf16.mxu0 %v1712
      %2364 = vmatpush1.bf16.msra.mxu0 %v1711
      %2365 = vmatprep.subr.bf16.mxu0 %v1742
      %2366 = vmatpush2.bf16.msra.mxu0 %v1741
      %2367 = vmatprep.subr.bf16.mxu0 %v1740
      %2368 = vmatpush2.bf16.msra.mxu0 %v1739
      %2369 = vmatprep.subr.bf16.mxu0 %v1738
      %2370 = vmatpush2.bf16.msra.mxu0 %v1737
      %2371 = vmatprep.subr.bf16.mxu0 %v1736
      %2372 = vmatpush2.bf16.msra.mxu0 %v1735
      %2373 = vmatprep.subr.bf16.mxu0 %v1734
      %2374 = vmatpush2.bf16.msra.mxu0 %v1733
      %2375 = vmatprep.subr.bf16.mxu0 %v1732
      %2376 = vmatpush2.bf16.msra.mxu0 %v1731
      %2377 = vmatprep.subr.bf16.mxu0 %v1730
      %2378 = vmatpush2.bf16.msra.mxu0 %v1729
      %2379 = vmatprep.subr.bf16.mxu0 %v1728
      %2380 = vmatpush2.bf16.msra.mxu0 %v1727
      %2381 = vmatprep.mubr.bf16.mxu0 %v700
      %2382 = vmatmul.mubr.bf16.gmra.mxu0 %v699
      %v2383 = vpop.f32.mrf.mxu0
      %v2384 = vadd.f32 %v2331, %v2383
      %v2385 = vpop.f32.mrf.mxu0
      %v2386 = vadd.f32 %v2333, %v2385
      %v2387 = vpop.f32.mrf.mxu0
      %v2388 = vadd.f32 %v2335, %v2387
      %v2389 = vpop.f32.mrf.mxu0
      %v2390 = vadd.f32 %v2337, %v2389
      %2391 = vmatprep.mubr.bf16.mxu0 %v716
      %2392 = vmatmul.mubr.bf16.gmra.mxu0 %v715
      %v2393 = vpop.f32.mrf.mxu0
      %v2394 = vadd.f32 %v2341, %v2393
      %v2395 = vpop.f32.mrf.mxu0
      %v2396 = vadd.f32 %v2343, %v2395
      %v2397 = vpop.f32.mrf.mxu0
      %v2398 = vadd.f32 %v2345, %v2397
      %v2399 = vpop.f32.mrf.mxu0
      %v2400 = vadd.f32 %v2347, %v2399
      %2401 = vdwg.mxu0
      %2402 = vmatprep.subr.bf16.mxu0 %v1758
      %2403 = vmatpush1.bf16.msra.mxu0 %v1757
      %2404 = vmatprep.subr.bf16.mxu0 %v1756
      %2405 = vmatpush1.bf16.msra.mxu0 %v1755
      %2406 = vmatprep.subr.bf16.mxu0 %v1754
      %2407 = vmatpush1.bf16.msra.mxu0 %v1753
      %2408 = vmatprep.subr.bf16.mxu0 %v1752
      %2409 = vmatpush1.bf16.msra.mxu0 %v1751
      %2410 = vmatprep.subr.bf16.mxu0 %v1750
      %2411 = vmatpush1.bf16.msra.mxu0 %v1749
      %2412 = vmatprep.subr.bf16.mxu0 %v1748
      %2413 = vmatpush1.bf16.msra.mxu0 %v1747
      %2414 = vmatprep.subr.bf16.mxu0 %v1746
      %2415 = vmatpush1.bf16.msra.mxu0 %v1745
      %2416 = vmatprep.subr.bf16.mxu0 %v1744
      %2417 = vmatpush1.bf16.msra.mxu0 %v1743
      %2418 = vmatprep.subr.bf16.mxu0 %v1774
      %2419 = vmatpush2.bf16.msra.mxu0 %v1773
      %2420 = vmatprep.subr.bf16.mxu0 %v1772
      %2421 = vmatpush2.bf16.msra.mxu0 %v1771
      %2422 = vmatprep.subr.bf16.mxu0 %v1770
      %2423 = vmatpush2.bf16.msra.mxu0 %v1769
      %2424 = vmatprep.subr.bf16.mxu0 %v1768
      %2425 = vmatpush2.bf16.msra.mxu0 %v1767
      %2426 = vmatprep.subr.bf16.mxu0 %v1766
      %2427 = vmatpush2.bf16.msra.mxu0 %v1765
      %2428 = vmatprep.subr.bf16.mxu0 %v1764
      %2429 = vmatpush2.bf16.msra.mxu0 %v1763
      %2430 = vmatprep.subr.bf16.mxu0 %v1762
      %2431 = vmatpush2.bf16.msra.mxu0 %v1761
      %2432 = vmatprep.subr.bf16.mxu0 %v1760
      %2433 = vmatpush2.bf16.msra.mxu0 %v1759
      %2434 = vmatprep.mubr.bf16.mxu0 %v702
      %2435 = vmatmul.mubr.bf16.gmra.mxu0 %v701
      %v2436 = vpop.f32.mrf.mxu0
      %v2437 = vadd.f32 %v2384, %v2436
      %v2438 = vpop.f32.mrf.mxu0
      %v2439 = vadd.f32 %v2386, %v2438
      %v2440 = vpop.f32.mrf.mxu0
      %v2441 = vadd.f32 %v2388, %v2440
      %v2442 = vpop.f32.mrf.mxu0
      %v2443 = vadd.f32 %v2390, %v2442
      %2444 = vmatprep.mubr.bf16.mxu0 %v718
      %2445 = vmatmul.mubr.bf16.gmra.mxu0 %v717
      %v2446 = vpop.f32.mrf.mxu0
      %v2447 = vadd.f32 %v2394, %v2446
      %v2448 = vpop.f32.mrf.mxu0
      %v2449 = vadd.f32 %v2396, %v2448
      %v2450 = vpop.f32.mrf.mxu0
      %v2451 = vadd.f32 %v2398, %v2450
      %v2452 = vpop.f32.mrf.mxu0
      %v2453 = vadd.f32 %v2400, %v2452
      %2454 = vdwg.mxu0
      %2455 = vst [vmem:[%s285] sm:$0xff] %v2437
      %2456 = vst [vmem:[%s285 + $0x8] sm:$0xff] %v2439
      %2457 = vst [vmem:[%s285 + $0x10] sm:$0xff] %v2441
      %2458 = vst [vmem:[%s285 + $0x18] sm:$0xff] %v2443
      %2459 = vst [vmem:[%s285 + $0x20] sm:$0xff] %v2447
      %2460 = vst [vmem:[%s285 + $0x28] sm:$0xff] %v2449
      %2461 = vst [vmem:[%s285 + $0x30] sm:$0xff] %v2451
      %2462 = vst [vmem:[%s285 + $0x38] sm:$0xff] %v2453
      %v2463 = vadd.f32 %v2437, %v2441
      %v2464 = vadd.f32 %v2463, %v2447
      %v2465 = vadd.f32 %v2464, %v2451
      %v2466 = vrot.slane %v2465, 4
      %v2467 = vadd.f32 %v2465, %v2466
      %v2468 = vrot.slane %v2467, 2
      %v2469 = vadd.f32 %v2467, %v2468
      %v2470 = vrot.slane %v2469, 1
      %v2471 = vadd.f32 %v2469, %v2470
      %v2472 = vadd.f32 %v2439, %v2443
      %v2473 = vadd.f32 %v2472, %v2449
      %v2474 = vadd.f32 %v2473, %v2453
      %v2475 = vrot.slane %v2474, 4
      %v2476 = vadd.f32 %v2474, %v2475
      %v2477 = vrot.slane %v2476, 2
      %v2478 = vadd.f32 %v2476, %v2477
      %v2479 = vrot.slane %v2478, 1
      %v2480 = vadd.f32 %v2478, %v2479
      %v2481 = vmul.f32 %v2437, %v2437
      %v2482 = vmul.f32 %v2439, %v2439
      %v2483 = vmul.f32 %v2441, %v2441
      %v2484 = vmul.f32 %v2443, %v2443
      %v2485 = vmul.f32 %v2447, %v2447
      %v2486 = vmul.f32 %v2449, %v2449
      %v2487 = vmul.f32 %v2451, %v2451
      %v2488 = vmul.f32 %v2453, %v2453
      %v2489 = vadd.f32 %v2481, %v2483
      %v2490 = vadd.f32 %v2489, %v2485
      %v2491 = vadd.f32 %v2490, %v2487
      %v2492 = vrot.slane %v2491, 4
      %v2493 = vadd.f32 %v2491, %v2492
      %v2494 = vrot.slane %v2493, 2
      %v2495 = vadd.f32 %v2493, %v2494
      %v2496 = vrot.slane %v2495, 1
      %v2497 = vadd.f32 %v2495, %v2496
      %v2498 = vadd.f32 %v2482, %v2484
      %v2499 = vadd.f32 %v2498, %v2486
      %v2500 = vadd.f32 %v2499, %v2488
      %v2501 = vrot.slane %v2500, 4
      %v2502 = vadd.f32 %v2500, %v2501
      %v2503 = vrot.slane %v2502, 2
      %v2504 = vadd.f32 %v2502, %v2503
      %v2505 = vrot.slane %v2504, 1
      %v2506 = vadd.f32 %v2504, %v2505
      %v2509 = vcombine.low %v2471, %v2480
      %v2511 = vunpack.c.l.s4 1966171168
      %v2512 = vunpack.c.0.s8 %v2511
      %v2513 = vlaneseq
      %v2514 = vshrl.u32 %v2513, 7
      %v2515 = vsub.s32 %v2512, %v2514
      %v2516 = vrot.slane %v2509, %v2515
      %v2518 = vunpack.c.l.s4 1966171168
      %v2519 = vunpack.c.0.s8 %v2518
      %v2520 = vlaneseq
      %v2521 = vshrl.u32 %v2520, 7
      %v2522 = vsub.s32 %v2519, %v2521
      %v2523 = vrot.slane %v2516, %v2522
      %v2525 = vlaneseq
      %vm2526 = vcmp.ge.s32.totalorder %v2525, 0
      %vm2527 = vcmp.lt.s32.totalorder %v2525, 256
      %vm2528 = vmand %vm2526, %vm2527
      %2529 = vst.msk [vmem:[%s294] sm:$0x3] %vm2528, %v2523
      %v2532 = vcombine.low %v2497, %v2506
      %v2534 = vunpack.c.l.s4 1966171168
      %v2535 = vunpack.c.0.s8 %v2534
      %v2536 = vlaneseq
      %v2537 = vshrl.u32 %v2536, 7
      %v2538 = vsub.s32 %v2535, %v2537
      %v2539 = vrot.slane %v2532, %v2538
      %v2541 = vunpack.c.l.s4 1966171168
      %v2542 = vunpack.c.0.s8 %v2541
      %v2543 = vlaneseq
      %v2544 = vshrl.u32 %v2543, 7
      %v2545 = vsub.s32 %v2542, %v2544
      %v2546 = vrot.slane %v2539, %v2545
      %2548 = vst.msk [vmem:[%s302] sm:$0x3] %vm2528, %v2546
      %s2549 = smul.u32 4, %s21
      %p2550 = scmp.lt.s32.totalorder %s20, 3
      %s2551 = scalar_select %p2550, %s20, 3
      %p2552 = scmp.lt.s32.totalorder %s2549, 3
      %s2553 = scalar_select %p2552, %s2549, 3
      %s2554 = smul.addr %s2553, 2
      %s2555 = smul.addr %s2551, 8
      %s2556 = sadd.s32 %s2554, %s2555
      %s2557 = smul.addr %s2556, 8
      %s2558 = scalar_lea.vmem %s2, %s2557
      %p2559 = scmp.lt.s32.totalorder %s20, 3
      %s2560 = scalar_select %p2559, %s20, 3
      %p2561 = scmp.lt.s32.totalorder %s21, 0
      %s2562 = scalar_select %p2561, %s21, 0
      %s2563 = smul.addr %s2562, 2
      %s2564 = smul.addr %s2560, 2
      %s2565 = sadd.s32 %s2563, %s2564
      %s2566 = scalar_lea.vmem %s3, %s2565
      %p2567 = scmp.lt.s32.totalorder %s20, 3
      %s2568 = scalar_select %p2567, %s20, 3
      %p2569 = scmp.lt.s32.totalorder %s21, 0
      %s2570 = scalar_select %p2569, %s21, 0
      %s2571 = smul.addr %s2570, 2
      %s2572 = smul.addr %s2568, 2
      %s2573 = sadd.s32 %s2571, %s2572
      %s2574 = scalar_lea.vmem %s4, %s2573
      // Predicated region
      $region29: #{generator_forward.9} parent=27 // pred_check
        %p2575 = pneg %p102
      $region30: #{generator_forward.9} parent=27 // pred_check_branch
        %2577 = sbr.rel (%p2575) target = $region32
      $region31: #{generator_forward.9} parent=27 // pred_region
        %s2578 = smul.u32 4, %s21
      $region32: #{generator_forward.9} parent=27 // pred_fallthru
        _
      // Predicated region
      $region33: #{generator_forward.9} parent=27 // pred_check
        %p2579 = pneg %p130
      $region34: #{generator_forward.9} parent=27 // pred_check_branch
        %2581 = sbr.rel (%p2579) target = $region36
      $region35: #{generator_forward.9} parent=27 // pred_region
        _
      $region36: #{generator_forward.9} parent=27 // pred_fallthru
        _
      // Predicated region
      $region37: #{generator_forward.9} parent=27 // pred_check
        %p2582 = pneg %p158
      $region38: #{generator_forward.9} parent=27 // pred_check_branch
        %2584 = sbr.rel (%p2582) target = $region40
      $region39: #{generator_forward.9} parent=27 // pred_region
        _
      $region40: #{generator_forward.9} parent=27 // pred_fallthru
        _
    $region28: #{generator_forward.9} parent=5 // pred_fallthru
      _
    %p2585 = scmp.le.s32.totalorder 2, %s11
    // Predicated region
    $region41: #{generator_forward.9} parent=5 // pred_check
      %p2586 = pneg %p2585
    $region42: #{generator_forward.9} parent=5 // pred_check_branch
      %2588 = sbr.rel (%p2586) target = $region44
    $region43: #{generator_forward.9} parent=5 // pred_region
      %s2589 = ssub.s32 %s11, 2
      // Predicated region
      $region45: #{generator_forward.9} parent=43 // pred_check
        %p2590 = pneg %p108
      $region46: #{generator_forward.9} parent=43 // pred_check_branch
        %2592 = sbr.rel (%p2590) target = $region48
      $region47: #{generator_forward.9} parent=43 // pred_region
        %s2593 = smul.u32 4, %s23
        %p2594 = scmp.lt.s32.totalorder %s22, 3
        %s2595 = scalar_select %p2594, %s22, 3
        %p2596 = scmp.lt.s32.totalorder %s2593, 3
        %s2597 = scalar_select %p2596, %s2593, 3
        %s2598 = smul.addr %s2597, 2
        %s2599 = smul.addr %s2595, 8
        %s2600 = sadd.s32 %s2598, %s2599
        %s2601 = smul.addr %s2600, 8
        %s2602 = scalar_lea.vmem %s2, %s2601
      $region48: #{generator_forward.9} parent=43 // pred_fallthru
        _
      // Predicated region
      $region49: #{generator_forward.9} parent=43 // pred_check
        %p2603 = pneg %p136
      $region50: #{generator_forward.9} parent=43 // pred_check_branch
        %2605 = sbr.rel (%p2603) target = $region52
      $region51: #{generator_forward.9} parent=43 // pred_region
        %p2606 = scmp.lt.s32.totalorder %s22, 3
        %s2607 = scalar_select %p2606, %s22, 3
        %p2608 = scmp.lt.s32.totalorder %s23, 0
        %s2609 = scalar_select %p2608, %s23, 0
        %s2610 = smul.addr %s2609, 2
        %s2611 = smul.addr %s2607, 2
        %s2612 = sadd.s32 %s2610, %s2611
        %s2613 = scalar_lea.vmem %s3, %s2612
      $region52: #{generator_forward.9} parent=43 // pred_fallthru
        _
      // Predicated region
      $region53: #{generator_forward.9} parent=43 // pred_check
        %p2614 = pneg %p164
      $region54: #{generator_forward.9} parent=43 // pred_check_branch
        %2616 = sbr.rel (%p2614) target = $region56
      $region55: #{generator_forward.9} parent=43 // pred_region
        %p2617 = scmp.lt.s32.totalorder %s22, 3
        %s2618 = scalar_select %p2617, %s22, 3
        %p2619 = scmp.lt.s32.totalorder %s23, 0
        %s2620 = scalar_select %p2619, %s23, 0
        %s2621 = smul.addr %s2620, 2
        %s2622 = smul.addr %s2618, 2
        %s2623 = sadd.s32 %s2621, %s2622
        %s2624 = scalar_lea.vmem %s4, %s2623
      $region56: #{generator_forward.9} parent=43 // pred_fallthru
        _
    $region44: #{generator_forward.9} parent=5 // pred_fallthru
      _
  $region6: #{generator_forward.9} parent=0 // loop_footer
    %s15 = sadd.s32 1, %s11
  $region7: #{generator_forward.9} parent=0 // loop_footer_branch
    %10 = sbr.rel target = $region3
  $region8: #{generator_forward.9} parent=0 // loop_exit
    _

// kernel: generator_forward.10
$region0: #{generator_forward.10}
  #allocation0 [shape = 'u32[]', space=smem, size = 0x4, offset = 0x4, fixed_abs, tag = 'smem constant byte address 0x4 - core index']
  #allocation1 [shape = 'u32[144,128]{1,0:T(1,128)}', space=vmem, size = 0x12000, scoped, tag = 'internal scratch']
  %s0 = inlined_call_operand.vmem [shape: f32[4,32,256], index: 0, kind: input, shape index: {}]
  %s1 = inlined_call_operand.vmem [shape: f32[1,1,256], index: 1, kind: input, shape index: {}]
  %s2 = inlined_call_operand.vmem [shape: f32[1,1,256], index: 2, kind: input, shape index: {}]
  %s3 = inlined_call_operand.vmem [shape: bf16[4,32,256], index: 3, kind: output, shape index: {}]
  %s4 = sld [smem:[#allocation0]]
  $region45: #{generator_forward.10} parent=0
    _
  %s6 = ssub.s32 1, %s4
  %s7 = scalar_select 0, %s6, %s4
  loop: start=0, step=1, limit=6
  $region2: #{generator_forward.10} parent=0 // loop_pre_header
    _
  $region3: #{generator_forward.10} parent=0 // loop_header
    %s9 = sphi 0, %s13
    %p10 = scmp.ge.s32.totalorder %s9, 6
    %s16 = sphi 0, %s28
    %s17 = sphi 0, %s24
    %s18 = sphi 0, %s16
    %s19 = sphi 0, %s17
    %s20 = sphi 0, %s18
    %s21 = sphi 0, %s19
    %s33 = sphi 0, %s35
    %s36 = sphi 0, %s33
    %s37 = sphi 0, %s36
    %s53 = sphi 0, %s37
    %s57 = sphi 0, %s57
    %s59 = sphi 0, %s57
    %s60 = sphi 0, %s59
    %s74 = sphi 0, %s60
    %s78 = sphi 0, %s78
    %s80 = sphi 0, %s78
    %s81 = sphi 0, %s80
    %s95 = sphi 0, %s81
    %s103 = sphi 0, %s105
    %s106 = sphi 0, %s103
    %s107 = sphi 0, %s106
    %s123 = sphi 0, %s107
  $region4: #{generator_forward.10} parent=0 // loop_header_branch
    %12 = sbr.rel (%p10) target = $region8
  $region5: #{generator_forward.10} parent=0 // loop_body
    %s14 = ssub.s32 %s9, 1
    %s15 = ssub.s32 %s9, 2
    %s22 = sadd.s32 1, %s17
    %p23 = scmp.ge.s32.totalorder %s22, 1
    %s24 = scalar_select %p23, 0, %s22
    %s25 = sadd.s32 1, %s16
    %s26 = scalar_select %p23, %s25, %s16
    %p27 = scmp.ge.s32.totalorder %s26, 4
    %s28 = scalar_select %p27, 0, %s26
    %s29 = ssub.s32 %s16, %s28
    %s30 = ssub.s32 %s17, %s24
    %s31 = sor.u32 %s29, %s30
    %p32 = scmp.eq.s32.totalorder %s31, 0
    %s34 = sadd.s32 %s33, 1
    %s35 = scalar_select %p32, %s33, %s34
    %p38 = pneg %p32
    %p39 = scmp.eq.s32.totalorder %s9, 3
    %p40 = por %p38, %p39
    %p41 = scmp.ne.s32.totalorder %s33, %s36
    %p42 = scmp.eq.s32.totalorder %s9, 0
    %p43 = por %p41, %p42
    %p44 = scmp.ne.s32.totalorder %s33, %s36
    %p45 = scmp.eq.s32.totalorder %s14, 3
    %p46 = por %p44, %p45
    %p47 = scmp.ne.s32.totalorder %s36, %s37
    %p48 = scmp.eq.s32.totalorder %s14, 0
    %p49 = por %p47, %p48
    %p50 = scmp.ne.s32.totalorder %s36, %s37
    %p51 = scmp.eq.s32.totalorder %s15, 3
    %p52 = por %p50, %p51
    %p54 = scmp.ne.s32.totalorder %s37, %s53
    %p55 = scmp.eq.s32.totalorder %s15, 0
    %p56 = por %p54, %p55
    %s58 = sadd.s32 %s57, 1
    %p61 = scmp.eq.s32.totalorder %s9, 3
    %p62 = scmp.ne.s32.totalorder %s57, %s59
    %p63 = scmp.eq.s32.totalorder %s9, 0
    %p64 = por %p62, %p63
    %p65 = scmp.ne.s32.totalorder %s57, %s59
    %p66 = scmp.eq.s32.totalorder %s14, 3
    %p67 = por %p65, %p66
    %p68 = scmp.ne.s32.totalorder %s59, %s60
    %p69 = scmp.eq.s32.totalorder %s14, 0
    %p70 = por %p68, %p69
    %p71 = scmp.ne.s32.totalorder %s59, %s60
    %p72 = scmp.eq.s32.totalorder %s15, 3
    %p73 = por %p71, %p72
    %p75 = scmp.ne.s32.totalorder %s60, %s74
    %p76 = scmp.eq.s32.totalorder %s15, 0
    %p77 = por %p75, %p76
    %s79 = sadd.s32 %s78, 1
    %p82 = scmp.eq.s32.totalorder %s9, 3
    %p83 = scmp.ne.s32.totalorder %s78, %s80
    %p84 = scmp.eq.s32.totalorder %s9, 0
    %p85 = por %p83, %p84
    %p86 = scmp.ne.s32.totalorder %s78, %s80
    %p87 = scmp.eq.s32.totalorder %s14, 3
    %p88 = por %p86, %p87
    %p89 = scmp.ne.s32.totalorder %s80, %s81
    %p90 = scmp.eq.s32.totalorder %s14, 0
    %p91 = por %p89, %p90
    %p92 = scmp.ne.s32.totalorder %s80, %s81
    %p93 = scmp.eq.s32.totalorder %s15, 3
    %p94 = por %p92, %p93
    %p96 = scmp.ne.s32.totalorder %s81, %s95
    %p97 = scmp.eq.s32.totalorder %s15, 0
    %p98 = por %p96, %p97
    %s99 = ssub.s32 %s16, %s28
    %s100 = ssub.s32 %s17, %s24
    %s101 = sor.u32 %s99, %s100
    %p102 = scmp.eq.s32.totalorder %s101, 0
    %s104 = sadd.s32 %s103, 1
    %s105 = scalar_select %p102, %s103, %s104
    %p108 = pneg %p102
    %p109 = scmp.eq.s32.totalorder %s9, 3
    %p110 = por %p108, %p109
    %p111 = scmp.ne.s32.totalorder %s103, %s106
    %p112 = scmp.eq.s32.totalorder %s9, 0
    %p113 = por %p111, %p112
    %p114 = scmp.ne.s32.totalorder %s103, %s106
    %p115 = scmp.eq.s32.totalorder %s14, 3
    %p116 = por %p114, %p115
    %p117 = scmp.ne.s32.totalorder %s106, %s107
    %p118 = scmp.eq.s32.totalorder %s14, 0
    %p119 = por %p117, %p118
    %p120 = scmp.ne.s32.totalorder %s106, %s107
    %p121 = scmp.eq.s32.totalorder %s15, 3
    %p122 = por %p120, %p121
    %p124 = scmp.ne.s32.totalorder %s107, %s123
    %p125 = scmp.eq.s32.totalorder %s15, 0
    %p126 = por %p124, %p125
    %p127 = scmp.le.s32.totalorder 1, %s9
    %p128 = scmp.lt.s32.totalorder %s9, 5
    %p129 = pnand %p127, %p128
    %p130 = pneg %p129
    // Predicated region
    $region9: #{generator_forward.10} parent=5 // pred_check
      _
    $region10: #{generator_forward.10} parent=5 // pred_check_branch
      %132 = sbr.rel (%p129) target = $region12
    $region11: #{generator_forward.10} parent=5 // pred_region
      %s133 = ssub.s32 %s9, 1
      // Predicated region
      $region13: #{generator_forward.10} parent=11 // pred_check
        %p134 = pneg %p70
      $region14: #{generator_forward.10} parent=11 // pred_check_branch
        %136 = sbr.rel (%p134) target = $region16
      $region15: #{generator_forward.10} parent=11 // pred_region
        _
      $region16: #{generator_forward.10} parent=11 // pred_fallthru
        _
      // Predicated region
      $region17: #{generator_forward.10} parent=11 // pred_check
        %p137 = pneg %p91
      $region18: #{generator_forward.10} parent=11 // pred_check_branch
        %139 = sbr.rel (%p137) target = $region20
      $region19: #{generator_forward.10} parent=11 // pred_region
        _
      $region20: #{generator_forward.10} parent=11 // pred_fallthru
        _
    $region12: #{generator_forward.10} parent=5 // pred_fallthru
      _
    %p140 = scmp.lt.s32.totalorder %s9, 4
    // Predicated region
    $region21: #{generator_forward.10} parent=5 // pred_check
      %p141 = pneg %p140
    $region22: #{generator_forward.10} parent=5 // pred_check_branch
      %143 = sbr.rel (%p141) target = $region24
    $region23: #{generator_forward.10} parent=5 // pred_region
      // Predicated region
      $region25: #{generator_forward.10} parent=23 // pred_check
        %p144 = pneg %p43
      $region26: #{generator_forward.10} parent=23 // pred_check_branch
        %146 = sbr.rel (%p144) target = $region28
      $region27: #{generator_forward.10} parent=23 // pred_region
        %s147 = smul.u32 4, %s17
        %p148 = scmp.lt.s32.totalorder %s16, 3
        %s149 = scalar_select %p148, %s16, 3
        %p150 = scmp.lt.s32.totalorder %s147, 3
        %s151 = scalar_select %p150, %s147, 3
        %s152 = smul.addr %s151, 2
        %s153 = smul.addr %s149, 8
        %s154 = sadd.s32 %s152, %s153
        %s155 = smul.addr %s154, 8
        %s156 = scalar_lea.vmem %s0, %s155
        %s157 = smul.u32 4, %s17
      $region28: #{generator_forward.10} parent=23 // pred_fallthru
        _
    $region24: #{generator_forward.10} parent=5 // pred_fallthru
      _
    %p158 = scmp.le.s32.totalorder 1, %s9
    %p159 = scmp.lt.s32.totalorder %s9, 5
    %p160 = pnand %p158, %p159
    %p161 = pneg %p160
    // Predicated region
    $region29: #{generator_forward.10} parent=5 // pred_check
      _
    $region30: #{generator_forward.10} parent=5 // pred_check_branch
      %163 = sbr.rel (%p160) target = $region32
    $region31: #{generator_forward.10} parent=5 // pred_region
      %s164 = ssub.s32 %s9, 1
      %s165 = smul.u32 4, %s19
      %p166 = scmp.lt.s32.totalorder %s18, 3
      %s167 = scalar_select %p166, %s18, 3
      %p168 = scmp.lt.s32.totalorder %s165, 3
      %s169 = scalar_select %p168, %s165, 3
      %s170 = smul.addr %s169, 2
      %s171 = smul.addr %s167, 8
      %s172 = sadd.s32 %s170, %s171
      %s173 = smul.addr %s172, 8
      %s174 = scalar_lea.vmem %s0, %s173
      %p175 = pneg %p49
      %p176 = pneg %p46
      %p177 = pneg %p70
      %p178 = pneg %p67
      %p179 = pneg %p91
      %p180 = pneg %p88
      %p181 = pneg %p119
      %p182 = pneg %p116
      %s183 = smul.u32 4, %s19
      %p184 = scmp.lt.s32.totalorder %s18, 3
      %s185 = scalar_select %p184, %s18, 3
      %p186 = scmp.lt.s32.totalorder %s183, 3
      %s187 = scalar_select %p186, %s183, 3
      %s188 = smul.addr %s187, 2
      %s189 = smul.addr %s185, 8
      %s190 = sadd.s32 %s188, %s189
      %s191 = smul.addr %s190, 4
      %s192 = scalar_lea.vmem %s3, %s191
      %s193 = smul.u32 4, %s19
      %p194 = scmp.lt.s32.totalorder %s18, 3
      %s195 = scalar_select %p194, %s18, 3
      %p196 = scmp.lt.s32.totalorder %s193, 3
      %s197 = scalar_select %p196, %s193, 3
      %s198 = smul.addr %s197, 2
      %s199 = smul.addr %s195, 8
      %s200 = sadd.s32 %s198, %s199
      %s201 = smul.addr %s200, 8
      %s202 = scalar_lea.vmem %s0, %s201
      %s203 = smul.u32 4, %s19
      %s204 = smul.u32 4, %s19
      %p205 = scmp.lt.s32.totalorder %s18, 3
      %s206 = scalar_select %p205, %s18, 3
      %p207 = scmp.lt.s32.totalorder %s204, 3
      %s208 = scalar_select %p207, %s204, 3
      %s209 = smul.addr %s208, 2
      %s210 = smul.addr %s206, 8
      %s211 = sadd.s32 %s209, %s210
      %s212 = smul.addr %s211, 4
      %s213 = scalar_lea.vmem %s3, %s212
      %s214 = smul.u32 4, %s19
      %v215 = vld [vmem:[%s202] sm:$0xff]
      %v216 = vld [vmem:[%s202 + $0x8] sm:$0xff]
      %v217 = vld [vmem:[%s202 + $0x10] sm:$0xff]
      %v218 = vld [vmem:[%s202 + $0x18] sm:$0xff]
      %v219 = vld [vmem:[%s202 + $0x20] sm:$0xff]
      %v220 = vld [vmem:[%s202 + $0x28] sm:$0xff]
      %v221 = vld [vmem:[%s202 + $0x30] sm:$0xff]
      %v222 = vld [vmem:[%s202 + $0x38] sm:$0xff]
      %v223 = vld [vmem:[%s1] sm:$0x3]
      %v225 = vlaneseq
      %v226 = vshrl.u32 %v225, 7
      %v227 = vsub.s32 0, %v226
      %v228 = vrot.slane %v223, %v227
      %v229 = vlaneseq
      %v230 = vshrl.u32 %v229, 7
      %v231 = vsub.s32 1, %v230
      %v232 = vrot.slane %v223, %v231
      %v235 = vmul.f32 %v215, %v228
      %v236 = vmul.f32 %v216, %v232
      %v237 = vmul.f32 %v217, %v228
      %v238 = vmul.f32 %v218, %v232
      %v239 = vmul.f32 %v219, %v228
      %v240 = vmul.f32 %v220, %v232
      %v241 = vmul.f32 %v221, %v228
      %v242 = vmul.f32 %v222, %v232
      %v243 = vld [vmem:[%s2] sm:$0x3]
      %v245 = vlaneseq
      %v246 = vshrl.u32 %v245, 7
      %v247 = vsub.s32 0, %v246
      %v248 = vrot.slane %v243, %v247
      %v249 = vlaneseq
      %v250 = vshrl.u32 %v249, 7
      %v251 = vsub.s32 1, %v250
      %v252 = vrot.slane %v243, %v251
      %v255 = vadd.f32 %v235, %v248
      %v256 = vadd.f32 %v236, %v252
      %v257 = vadd.f32 %v237, %v248
      %v258 = vadd.f32 %v238, %v252
      %v259 = vadd.f32 %v239, %v248
      %v260 = vadd.f32 %v240, %v252
      %v261 = vadd.f32 %v241, %v248
      %v262 = vadd.f32 %v242, %v252
      %v263 = vmax.f32 %v255, 0.0
      %v264 = vmax.f32 %v256, 0.0
      %v265 = vmax.f32 %v257, 0.0
      %v266 = vmax.f32 %v258, 0.0
      %v267 = vmax.f32 %v259, 0.0
      %v268 = vmax.f32 %v260, 0.0
      %v269 = vmax.f32 %v261, 0.0
      %v270 = vmax.f32 %v262, 0.0
      %v271 = vpack.c.bf16 %v265, %v263
      %v272 = vpack.c.bf16 %v266, %v264
      %v273 = vpack.c.bf16 %v269, %v267
      %v274 = vpack.c.bf16 %v270, %v268
      %v279 = vunpack.c.l.b16 %v271
      %v280 = vunpack.c.l.b16 %v272
      %v281 = vunpack.c.h.b16 %v271
      %v282 = vunpack.c.h.b16 %v272
      %v283 = vunpack.c.l.b16 %v273
      %v284 = vunpack.c.l.b16 %v274
      %v285 = vunpack.c.h.b16 %v273
      %v286 = vunpack.c.h.b16 %v274
      %v287 = vpack.c.b16 %v280, %v279
      %v288 = vpack.c.b16 %v282, %v281
      %v289 = vpack.c.b16 %v284, %v283
      %v290 = vpack.c.b16 %v286, %v285
      %295 = vst [vmem:[%s213] sm:$0xff] %v287
      %296 = vst [vmem:[%s213 + $0x8] sm:$0xff] %v288
      %297 = vst [vmem:[%s213 + $0x10] sm:$0xff] %v289
      %298 = vst [vmem:[%s213 + $0x18] sm:$0xff] %v290
      %s299 = smul.u32 4, %s19
      %p300 = scmp.lt.s32.totalorder %s18, 3
      %s301 = scalar_select %p300, %s18, 3
      %p302 = scmp.lt.s32.totalorder %s299, 3
      %s303 = scalar_select %p302, %s299, 3
      %s304 = smul.addr %s303, 2
      %s305 = smul.addr %s301, 8
      %s306 = sadd.s32 %s304, %s305
      %s307 = smul.addr %s306, 4
      %s308 = scalar_lea.vmem %s3, %s307
      // Predicated region
      $region33: #{generator_forward.10} parent=31 // pred_check
        %p309 = pneg %p116
      $region34: #{generator_forward.10} parent=31 // pred_check_branch
        %311 = sbr.rel (%p309) target = $region36
      $region35: #{generator_forward.10} parent=31 // pred_region
        %s312 = smul.u32 4, %s19
      $region36: #{generator_forward.10} parent=31 // pred_fallthru
        _
    $region32: #{generator_forward.10} parent=5 // pred_fallthru
      _
    %p313 = scmp.le.s32.totalorder 2, %s9
    // Predicated region
    $region37: #{generator_forward.10} parent=5 // pred_check
      %p314 = pneg %p313
    $region38: #{generator_forward.10} parent=5 // pred_check_branch
      %316 = sbr.rel (%p314) target = $region40
    $region39: #{generator_forward.10} parent=5 // pred_region
      %s317 = ssub.s32 %s9, 2
      // Predicated region
      $region41: #{generator_forward.10} parent=39 // pred_check
        %p318 = pneg %p122
      $region42: #{generator_forward.10} parent=39 // pred_check_branch
        %320 = sbr.rel (%p318) target = $region44
      $region43: #{generator_forward.10} parent=39 // pred_region
        %s321 = smul.u32 4, %s21
        %p322 = scmp.lt.s32.totalorder %s20, 3
        %s323 = scalar_select %p322, %s20, 3
        %p324 = scmp.lt.s32.totalorder %s321, 3
        %s325 = scalar_select %p324, %s321, 3
        %s326 = smul.addr %s325, 2
        %s327 = smul.addr %s323, 8
        %s328 = sadd.s32 %s326, %s327
        %s329 = smul.addr %s328, 4
        %s330 = scalar_lea.vmem %s3, %s329
      $region44: #{generator_forward.10} parent=39 // pred_fallthru
        _
    $region40: #{generator_forward.10} parent=5 // pred_fallthru
      _
  $region6: #{generator_forward.10} parent=0 // loop_footer
    %s13 = sadd.s32 1, %s9
  $region7: #{generator_forward.10} parent=0 // loop_footer_branch
    %8 = sbr.rel target = $region3
  $region8: #{generator_forward.10} parent=0 // loop_exit
    _

// kernel: generator_forward.11
$region0: #{generator_forward.11}
  #allocation0 [shape = 'u32[]', space=smem, size = 0x4, offset = 0x4, fixed_abs, tag = 'smem constant byte address 0x4 - core index']
  #allocation1 [shape = 'u32[144,128]{1,0:T(1,128)}', space=vmem, size = 0x12000, scoped, tag = 'internal scratch']
  %s0 = inlined_call_operand.vmem [shape: bf16[4,128,1024], index: 0, kind: input, shape index: {}]
  %s1 = inlined_call_operand.vmem [shape: bf16[4,1024,128], index: 1, kind: input, shape index: {}]
  %s2 = inlined_call_operand.vmem [shape: f32[4,128,128], index: 2, kind: output, shape index: {0}]
  %s3 = inlined_call_operand.vmem [shape: f32[4,1,1,128], index: 3, kind: output, shape index: {1}]
  %s4 = inlined_call_operand.vmem [shape: f32[4,1,1,128], index: 4, kind: output, shape index: {2}]
  %5 = xla_tuple %s2, %s3, %s4
  %s6 = sld [smem:[#allocation0]]
  $region57: #{generator_forward.11} parent=0
    _
  %s8 = ssub.s32 1, %s6
  %s9 = scalar_select 0, %s8, %s6
  loop: start=0, step=1, limit=6
  $region2: #{generator_forward.11} parent=0 // loop_pre_header
    _
  $region3: #{generator_forward.11} parent=0 // loop_header
    %s11 = sphi 0, %s15
    %p12 = scmp.ge.s32.totalorder %s11, 6
    %s18 = sphi 0, %s30
    %s19 = sphi 0, %s26
    %s20 = sphi 0, %s18
    %s21 = sphi 0, %s19
    %s22 = sphi 0, %s20
    %s23 = sphi 0, %s21
    %s35 = sphi 0, %s37
    %s38 = sphi 0, %s35
    %s39 = sphi 0, %s38
    %s55 = sphi 0, %s39
    %s61 = sphi 0, %s63
    %s64 = sphi 0, %s61
    %s65 = sphi 0, %s64
    %s81 = sphi 0, %s65
    %s89 = sphi 0, %s91
    %s92 = sphi 0, %s89
    %s93 = sphi 0, %s92
    %s109 = sphi 0, %s93
    %s117 = sphi 0, %s119
    %s120 = sphi 0, %s117
    %s121 = sphi 0, %s120
    %s137 = sphi 0, %s121
    %s145 = sphi 0, %s147
    %s148 = sphi 0, %s145
    %s149 = sphi 0, %s148
    %s165 = sphi 0, %s149
  $region4: #{generator_forward.11} parent=0 // loop_header_branch
    %14 = sbr.rel (%p12) target = $region8
  $region5: #{generator_forward.11} parent=0 // loop_body
    %s16 = ssub.s32 %s11, 1
    %s17 = ssub.s32 %s11, 2
    %s24 = sadd.s32 1, %s19
    %p25 = scmp.ge.s32.totalorder %s24, 1
    %s26 = scalar_select %p25, 0, %s24
    %s27 = sadd.s32 1, %s18
    %s28 = scalar_select %p25, %s27, %s18
    %p29 = scmp.ge.s32.totalorder %s28, 4
    %s30 = scalar_select %p29, 0, %s28
    %s31 = ssub.s32 %s18, %s30
    %s32 = ssub.s32 %s19, %s26
    %s33 = sor.u32 %s31, %s32
    %p34 = scmp.eq.s32.totalorder %s33, 0
    %s36 = sadd.s32 %s35, 1
    %s37 = scalar_select %p34, %s35, %s36
    %p40 = pneg %p34
    %p41 = scmp.eq.s32.totalorder %s11, 3
    %p42 = por %p40, %p41
    %p43 = scmp.ne.s32.totalorder %s35, %s38
    %p44 = scmp.eq.s32.totalorder %s11, 0
    %p45 = por %p43, %p44
    %p46 = scmp.ne.s32.totalorder %s35, %s38
    %p47 = scmp.eq.s32.totalorder %s16, 3
    %p48 = por %p46, %p47
    %p49 = scmp.ne.s32.totalorder %s38, %s39
    %p50 = scmp.eq.s32.totalorder %s16, 0
    %p51 = por %p49, %p50
    %p52 = scmp.ne.s32.totalorder %s38, %s39
    %p53 = scmp.eq.s32.totalorder %s17, 3
    %p54 = por %p52, %p53
    %p56 = scmp.ne.s32.totalorder %s39, %s55
    %p57 = scmp.eq.s32.totalorder %s17, 0
    %p58 = por %p56, %p57
    %s59 = ssub.s32 %s18, %s30
    %p60 = scmp.eq.s32.totalorder %s59, 0
    %s62 = sadd.s32 %s61, 1
    %s63 = scalar_select %p60, %s61, %s62
    %p66 = pneg %p60
    %p67 = scmp.eq.s32.totalorder %s11, 3
    %p68 = por %p66, %p67
    %p69 = scmp.ne.s32.totalorder %s61, %s64
    %p70 = scmp.eq.s32.totalorder %s11, 0
    %p71 = por %p69, %p70
    %p72 = scmp.ne.s32.totalorder %s61, %s64
    %p73 = scmp.eq.s32.totalorder %s16, 3
    %p74 = por %p72, %p73
    %p75 = scmp.ne.s32.totalorder %s64, %s65
    %p76 = scmp.eq.s32.totalorder %s16, 0
    %p77 = por %p75, %p76
    %p78 = scmp.ne.s32.totalorder %s64, %s65
    %p79 = scmp.eq.s32.totalorder %s17, 3
    %p80 = por %p78, %p79
    %p82 = scmp.ne.s32.totalorder %s65, %s81
    %p83 = scmp.eq.s32.totalorder %s17, 0
    %p84 = por %p82, %p83
    %s85 = ssub.s32 %s18, %s30
    %s86 = ssub.s32 %s19, %s26
    %s87 = sor.u32 %s85, %s86
    %p88 = scmp.eq.s32.totalorder %s87, 0
    %s90 = sadd.s32 %s89, 1
    %s91 = scalar_select %p88, %s89, %s90
    %p94 = pneg %p88
    %p95 = scmp.eq.s32.totalorder %s11, 3
    %p96 = por %p94, %p95
    %p97 = scmp.ne.s32.totalorder %s89, %s92
    %p98 = scmp.eq.s32.totalorder %s11, 0
    %p99 = por %p97, %p98
    %p100 = scmp.ne.s32.totalorder %s89, %s92
    %p101 = scmp.eq.s32.totalorder %s16, 3
    %p102 = por %p100, %p101
    %p103 = scmp.ne.s32.totalorder %s92, %s93
    %p104 = scmp.eq.s32.totalorder %s16, 0
    %p105 = por %p103, %p104
    %p106 = scmp.ne.s32.totalorder %s92, %s93
    %p107 = scmp.eq.s32.totalorder %s17, 3
    %p108 = por %p106, %p107
    %p110 = scmp.ne.s32.totalorder %s93, %s109
    %p111 = scmp.eq.s32.totalorder %s17, 0
    %p112 = por %p110, %p111
    %s113 = ssub.s32 %s18, %s30
    %s114 = ssub.s32 %s19, %s26
    %s115 = sor.u32 %s113, %s114
    %p116 = scmp.eq.s32.totalorder %s115, 0
    %s118 = sadd.s32 %s117, 1
    %s119 = scalar_select %p116, %s117, %s118
    %p122 = pneg %p116
    %p123 = scmp.eq.s32.totalorder %s11, 3
    %p124 = por %p122, %p123
    %p125 = scmp.ne.s32.totalorder %s117, %s120
    %p126 = scmp.eq.s32.totalorder %s11, 0
    %p127 = por %p125, %p126
    %p128 = scmp.ne.s32.totalorder %s117, %s120
    %p129 = scmp.eq.s32.totalorder %s16, 3
    %p130 = por %p128, %p129
    %p131 = scmp.ne.s32.totalorder %s120, %s121
    %p132 = scmp.eq.s32.totalorder %s16, 0
    %p133 = por %p131, %p132
    %p134 = scmp.ne.s32.totalorder %s120, %s121
    %p135 = scmp.eq.s32.totalorder %s17, 3
    %p136 = por %p134, %p135
    %p138 = scmp.ne.s32.totalorder %s121, %s137
    %p139 = scmp.eq.s32.totalorder %s17, 0
    %p140 = por %p138, %p139
    %s141 = ssub.s32 %s18, %s30
    %s142 = ssub.s32 %s19, %s26
    %s143 = sor.u32 %s141, %s142
    %p144 = scmp.eq.s32.totalorder %s143, 0
    %s146 = sadd.s32 %s145, 1
    %s147 = scalar_select %p144, %s145, %s146
    %p150 = pneg %p144
    %p151 = scmp.eq.s32.totalorder %s11, 3
    %p152 = por %p150, %p151
    %p153 = scmp.ne.s32.totalorder %s145, %s148
    %p154 = scmp.eq.s32.totalorder %s11, 0
    %p155 = por %p153, %p154
    %p156 = scmp.ne.s32.totalorder %s145, %s148
    %p157 = scmp.eq.s32.totalorder %s16, 3
    %p158 = por %p156, %p157
    %p159 = scmp.ne.s32.totalorder %s148, %s149
    %p160 = scmp.eq.s32.totalorder %s16, 0
    %p161 = por %p159, %p160
    %p162 = scmp.ne.s32.totalorder %s148, %s149
    %p163 = scmp.eq.s32.totalorder %s17, 3
    %p164 = por %p162, %p163
    %p166 = scmp.ne.s32.totalorder %s149, %s165
    %p167 = scmp.eq.s32.totalorder %s17, 0
    %p168 = por %p166, %p167
    %p169 = scmp.le.s32.totalorder 1, %s11
    %p170 = scmp.lt.s32.totalorder %s11, 5
    %p171 = pnand %p169, %p170
    %p172 = pneg %p171
    // Predicated region
    $region9: #{generator_forward.11} parent=5 // pred_check
      _
    $region10: #{generator_forward.11} parent=5 // pred_check_branch
      %174 = sbr.rel (%p171) target = $region12
    $region11: #{generator_forward.11} parent=5 // pred_region
      %s175 = ssub.s32 %s11, 1
    $region12: #{generator_forward.11} parent=5 // pred_fallthru
      _
    %p176 = scmp.lt.s32.totalorder %s11, 4
    // Predicated region
    $region13: #{generator_forward.11} parent=5 // pred_check
      %p177 = pneg %p176
    $region14: #{generator_forward.11} parent=5 // pred_check_branch
      %179 = sbr.rel (%p177) target = $region16
    $region15: #{generator_forward.11} parent=5 // pred_region
      // Predicated region
      $region17: #{generator_forward.11} parent=15 // pred_check
        %p180 = pneg %p45
      $region18: #{generator_forward.11} parent=15 // pred_check_branch
        %182 = sbr.rel (%p180) target = $region20
      $region19: #{generator_forward.11} parent=15 // pred_region
        %s183 = smul.u32 16, %s19
        %p184 = scmp.lt.s32.totalorder %s18, 3
        %s185 = scalar_select %p184, %s18, 3
        %p186 = scmp.lt.s32.totalorder %s183, 15
        %s187 = scalar_select %p186, %s183, 15
        %s188 = smul.addr %s187, 8
        %s189 = smul.addr %s185, 128
        %s190 = sadd.s32 %s188, %s189
        %s191 = smul.addr %s190, 4
        %s192 = scalar_lea.vmem %s0, %s191
        %s193 = smul.u32 16, %s19
      $region20: #{generator_forward.11} parent=15 // pred_fallthru
        _
      // Predicated region
      $region21: #{generator_forward.11} parent=15 // pred_check
        %p194 = pneg %p71
      $region22: #{generator_forward.11} parent=15 // pred_check_branch
        %196 = sbr.rel (%p194) target = $region24
      $region23: #{generator_forward.11} parent=15 // pred_region
        %p197 = scmp.lt.s32.totalorder %s18, 3
        %s198 = scalar_select %p197, %s18, 3
        %s199 = smul.addr %s198, 128
        %s200 = smul.addr %s199, 4
        %s201 = scalar_lea.vmem %s1, %s200
      $region24: #{generator_forward.11} parent=15 // pred_fallthru
        _
    $region16: #{generator_forward.11} parent=5 // pred_fallthru
      _
    %p202 = scmp.le.s32.totalorder 1, %s11
    %p203 = scmp.lt.s32.totalorder %s11, 5
    %p204 = pnand %p202, %p203
    %p205 = pneg %p204
    // Predicated region
    $region25: #{generator_forward.11} parent=5 // pred_check
      _
    $region26: #{generator_forward.11} parent=5 // pred_check_branch
      %207 = sbr.rel (%p204) target = $region28
    $region27: #{generator_forward.11} parent=5 // pred_region
      %s208 = ssub.s32 %s11, 1
      %s209 = smul.u32 16, %s21
      %p210 = scmp.lt.s32.totalorder %s20, 3
      %s211 = scalar_select %p210, %s20, 3
      %p212 = scmp.lt.s32.totalorder %s209, 15
      %s213 = scalar_select %p212, %s209, 15
      %s214 = smul.addr %s213, 8
      %s215 = smul.addr %s211, 128
      %s216 = sadd.s32 %s214, %s215
      %s217 = smul.addr %s216, 4
      %s218 = scalar_lea.vmem %s0, %s217
      %p219 = pneg %p51
      %p220 = pneg %p48
      %p221 = scmp.lt.s32.totalorder %s20, 3
      %s222 = scalar_select %p221, %s20, 3
      %s223 = smul.addr %s222, 128
      %s224 = smul.addr %s223, 4
      %s225 = scalar_lea.vmem %s1, %s224
      %p226 = pneg %p77
      %p227 = pneg %p74
      %p228 = pneg %p105
      %p229 = pneg %p102
      %s230 = smul.u32 16, %s21
      %p231 = scmp.lt.s32.totalorder %s20, 3
      %s232 = scalar_select %p231, %s20, 3
      %p233 = scmp.lt.s32.totalorder %s230, 15
      %s234 = scalar_select %p233, %s230, 15
      %s235 = smul.addr %s232, 16
      %s236 = sadd.s32 %s234, %s235
      %s237 = smul.addr %s236, 8
      %s238 = scalar_lea.vmem %s2, %s237
      %p239 = pneg %p133
      %p240 = pneg %p130
      %p241 = scmp.lt.s32.totalorder %s20, 3
      %s242 = scalar_select %p241, %s20, 3
      %p243 = scmp.lt.s32.totalorder %s21, 0
      %s244 = scalar_select %p243, %s21, 0
      %s245 = sadd.s32 %s244, %s242
      %s246 = scalar_lea.vmem %s3, %s245
      %p247 = pneg %p161
      %p248 = pneg %p158
      %p249 = scmp.lt.s32.totalorder %s20, 3
      %s250 = scalar_select %p249, %s20, 3
      %p251 = scmp.lt.s32.totalorder %s21, 0
      %s252 = scalar_select %p251, %s21, 0
      %s253 = sadd.s32 %s252, %s250
      %s254 = scalar_lea.vmem %s4, %s253
      %s255 = smul.u32 16, %s21
      %p256 = scmp.lt.s32.totalorder %s20, 3
      %s257 = scalar_select %p256, %s20, 3
      %p258 = scmp.lt.s32.totalorder %s255, 15
      %s259 = scalar_select %p258, %s255, 15
      %s260 = smul.addr %s259, 8
      %s261 = smul.addr %s257, 128
      %s262 = sadd.s32 %s260, %s261
      %s263 = smul.addr %s262, 4
      %s264 = scalar_lea.vmem %s0, %s263
      %s265 = smul.u32 16, %s21
      %p266 = scmp.lt.s32.totalorder %s20, 3
      %s267 = scalar_select %p266, %s20, 3
      %s268 = smul.addr %s267, 128
      %s269 = smul.addr %s268, 4
      %s270 = scalar_lea.vmem %s1, %s269
      %s271 = smul.u32 16, %s21
      %p272 = scmp.lt.s32.totalorder %s20, 3
      %s273 = scalar_select %p272, %s20, 3
      %p274 = scmp.lt.s32.totalorder %s271, 15
      %s275 = scalar_select %p274, %s271, 15
      %s276 = smul.addr %s273, 16
      %s277 = sadd.s32 %s275, %s276
      %s278 = smul.addr %s277, 8
      %s279 = scalar_lea.vmem %s2, %s278
      %s280 = smul.u32 16, %s21
      %p281 = scmp.lt.s32.totalorder %s20, 3
      %s282 = scalar_select %p281, %s20, 3
      %p283 = scmp.lt.s32.totalorder %s21, 0
      %s284 = scalar_select %p283, %s21, 0
      %s285 = sadd.s32 %s284, %s282
      %s286 = scalar_lea.vmem %s3, %s285
      %p287 = scmp.lt.s32.totalorder %s20, 3
      %s288 = scalar_select %p287, %s20, 3
      %p289 = scmp.lt.s32.totalorder %s21, 0
      %s290 = scalar_select %p289, %s21, 0
      %s291 = sadd.s32 %s290, %s288
      %s292 = scalar_lea.vmem %s4, %s291
      %v294 = vld [vmem:[%s264] sm:$0xff]
      %v295 = vld [vmem:[%s264 + $0x8] sm:$0xff]
      %v296 = vld [vmem:[%s264 + $0x10] sm:$0xff]
      %v297 = vld [vmem:[%s264 + $0x18] sm:$0xff]
      %v298 = vld [vmem:[%s264 + $0x20] sm:$0xff]
      %v299 = vld [vmem:[%s264 + $0x28] sm:$0xff]
      %v300 = vld [vmem:[%s264 + $0x30] sm:$0xff]
      %v301 = vld [vmem:[%s264 + $0x38] sm:$0xff]
      %v302 = vld [vmem:[%s264 + $0x40] sm:$0xff]
      %v303 = vld [vmem:[%s264 + $0x48] sm:$0xff]
      %v304 = vld [vmem:[%s264 + $0x50] sm:$0xff]
      %v305 = vld [vmem:[%s264 + $0x58] sm:$0xff]
      %v306 = vld [vmem:[%s264 + $0x60] sm:$0xff]
      %v307 = vld [vmem:[%s264 + $0x68] sm:$0xff]
      %v308 = vld [vmem:[%s264 + $0x70] sm:$0xff]
      %v309 = vld [vmem:[%s264 + $0x78] sm:$0xff]
      %v310 = vld [vmem:[%s264 + $0x80] sm:$0xff]
      %v311 = vld [vmem:[%s264 + $0x88] sm:$0xff]
      %v312 = vld [vmem:[%s264 + $0x90] sm:$0xff]
      %v313 = vld [vmem:[%s264 + $0x98] sm:$0xff]
      %v314 = vld [vmem:[%s264 + $0xa0] sm:$0xff]
      %v315 = vld [vmem:[%s264 + $0xa8] sm:$0xff]
      %v316 = vld [vmem:[%s264 + $0xb0] sm:$0xff]
      %v317 = vld [vmem:[%s264 + $0xb8] sm:$0xff]
      %v318 = vld [vmem:[%s264 + $0xc0] sm:$0xff]
      %v319 = vld [vmem:[%s264 + $0xc8] sm:$0xff]
      %v320 = vld [vmem:[%s264 + $0xd0] sm:$0xff]
      %v321 = vld [vmem:[%s264 + $0xd8] sm:$0xff]
      %v322 = vld [vmem:[%s264 + $0xe0] sm:$0xff]
      %v323 = vld [vmem:[%s264 + $0xe8] sm:$0xff]
      %v324 = vld [vmem:[%s264 + $0xf0] sm:$0xff]
      %v325 = vld [vmem:[%s264 + $0xf8] sm:$0xff]
      %v326 = vld [vmem:[%s264 + $0x100] sm:$0xff]
      %v327 = vld [vmem:[%s264 + $0x108] sm:$0xff]
      %v328 = vld [vmem:[%s264 + $0x110] sm:$0xff]
      %v329 = vld [vmem:[%s264 + $0x118] sm:$0xff]
      %v330 = vld [vmem:[%s264 + $0x120] sm:$0xff]
      %v331 = vld [vmem:[%s264 + $0x128] sm:$0xff]
      %v332 = vld [vmem:[%s264 + $0x130] sm:$0xff]
      %v333 = vld [vmem:[%s264 + $0x138] sm:$0xff]
      %v334 = vld [vmem:[%s264 + $0x140] sm:$0xff]
      %v335 = vld [vmem:[%s264 + $0x148] sm:$0xff]
      %v336 = vld [vmem:[%s264 + $0x150] sm:$0xff]
      %v337 = vld [vmem:[%s264 + $0x158] sm:$0xff]
      %v338 = vld [vmem:[%s264 + $0x160] sm:$0xff]
      %v339 = vld [vmem:[%s264 + $0x168] sm:$0xff]
      %v340 = vld [vmem:[%s264 + $0x170] sm:$0xff]
      %v341 = vld [vmem:[%s264 + $0x178] sm:$0xff]
      %v342 = vld [vmem:[%s264 + $0x180] sm:$0xff]
      %v343 = vld [vmem:[%s264 + $0x188] sm:$0xff]
      %v344 = vld [vmem:[%s264 + $0x190] sm:$0xff]
      %v345 = vld [vmem:[%s264 + $0x198] sm:$0xff]
      %v346 = vld [vmem:[%s264 + $0x1a0] sm:$0xff]
      %v347 = vld [vmem:[%s264 + $0x1a8] sm:$0xff]
      %v348 = vld [vmem:[%s264 + $0x1b0] sm:$0xff]
      %v349 = vld [vmem:[%s264 + $0x1b8] sm:$0xff]
      %v350 = vld [vmem:[%s264 + $0x1c0] sm:$0xff]
      %v351 = vld [vmem:[%s264 + $0x1c8] sm:$0xff]
      %v352 = vld [vmem:[%s264 + $0x1d0] sm:$0xff]
      %v353 = vld [vmem:[%s264 + $0x1d8] sm:$0xff]
      %v354 = vld [vmem:[%s264 + $0x1e0] sm:$0xff]
      %v355 = vld [vmem:[%s264 + $0x1e8] sm:$0xff]
      %v356 = vld [vmem:[%s264 + $0x1f0] sm:$0xff]
      %v357 = vld [vmem:[%s264 + $0x1f8] sm:$0xff]
      %v358 = vld [vmem:[%s270] sm:$0xf]
      %v359 = vld [vmem:[%s270 + $0x4] sm:$0xf]
      %v360 = vld [vmem:[%s270 + $0x8] sm:$0xf]
      %v361 = vld [vmem:[%s270 + $0xc] sm:$0xf]
      %v362 = vld [vmem:[%s270 + $0x10] sm:$0xf]
      %v363 = vld [vmem:[%s270 + $0x14] sm:$0xf]
      %v364 = vld [vmem:[%s270 + $0x18] sm:$0xf]
      %v365 = vld [vmem:[%s270 + $0x1c] sm:$0xf]
      %v366 = vld [vmem:[%s270 + $0x20] sm:$0xf]
      %v367 = vld [vmem:[%s270 + $0x24] sm:$0xf]
      %v368 = vld [vmem:[%s270 + $0x28] sm:$0xf]
      %v369 = vld [vmem:[%s270 + $0x2c] sm:$0xf]
      %v370 = vld [vmem:[%s270 + $0x30] sm:$0xf]
      %v371 = vld [vmem:[%s270 + $0x34] sm:$0xf]
      %v372 = vld [vmem:[%s270 + $0x38] sm:$0xf]
      %v373 = vld [vmem:[%s270 + $0x3c] sm:$0xf]
      %v374 = vld [vmem:[%s270 + $0x40] sm:$0xf]
      %v375 = vld [vmem:[%s270 + $0x44] sm:$0xf]
      %v376 = vld [vmem:[%s270 + $0x48] sm:$0xf]
      %v377 = vld [vmem:[%s270 + $0x4c] sm:$0xf]
      %v378 = vld [vmem:[%s270 + $0x50] sm:$0xf]
      %v379 = vld [vmem:[%s270 + $0x54] sm:$0xf]
      %v380 = vld [vmem:[%s270 + $0x58] sm:$0xf]
      %v381 = vld [vmem:[%s270 + $0x5c] sm:$0xf]
      %v382 = vld [vmem:[%s270 + $0x60] sm:$0xf]
      %v383 = vld [vmem:[%s270 + $0x64] sm:$0xf]
      %v384 = vld [vmem:[%s270 + $0x68] sm:$0xf]
      %v385 = vld [vmem:[%s270 + $0x6c] sm:$0xf]
      %v386 = vld [vmem:[%s270 + $0x70] sm:$0xf]
      %v387 = vld [vmem:[%s270 + $0x74] sm:$0xf]
      %v388 = vld [vmem:[%s270 + $0x78] sm:$0xf]
      %v389 = vld [vmem:[%s270 + $0x7c] sm:$0xf]
      %v390 = vld [vmem:[%s270 + $0x80] sm:$0xf]
      %v391 = vld [vmem:[%s270 + $0x84] sm:$0xf]
      %v392 = vld [vmem:[%s270 + $0x88] sm:$0xf]
      %v393 = vld [vmem:[%s270 + $0x8c] sm:$0xf]
      %v394 = vld [vmem:[%s270 + $0x90] sm:$0xf]
      %v395 = vld [vmem:[%s270 + $0x94] sm:$0xf]
      %v396 = vld [vmem:[%s270 + $0x98] sm:$0xf]
      %v397 = vld [vmem:[%s270 + $0x9c] sm:$0xf]
      %v398 = vld [vmem:[%s270 + $0xa0] sm:$0xf]
      %v399 = vld [vmem:[%s270 + $0xa4] sm:$0xf]
      %v400 = vld [vmem:[%s270 + $0xa8] sm:$0xf]
      %v401 = vld [vmem:[%s270 + $0xac] sm:$0xf]
      %v402 = vld [vmem:[%s270 + $0xb0] sm:$0xf]
      %v403 = vld [vmem:[%s270 + $0xb4] sm:$0xf]
      %v404 = vld [vmem:[%s270 + $0xb8] sm:$0xf]
      %v405 = vld [vmem:[%s270 + $0xbc] sm:$0xf]
      %v406 = vld [vmem:[%s270 + $0xc0] sm:$0xf]
      %v407 = vld [vmem:[%s270 + $0xc4] sm:$0xf]
      %v408 = vld [vmem:[%s270 + $0xc8] sm:$0xf]
      %v409 = vld [vmem:[%s270 + $0xcc] sm:$0xf]
      %v410 = vld [vmem:[%s270 + $0xd0] sm:$0xf]
      %v411 = vld [vmem:[%s270 + $0xd4] sm:$0xf]
      %v412 = vld [vmem:[%s270 + $0xd8] sm:$0xf]
      %v413 = vld [vmem:[%s270 + $0xdc] sm:$0xf]
      %v414 = vld [vmem:[%s270 + $0xe0] sm:$0xf]
      %v415 = vld [vmem:[%s270 + $0xe4] sm:$0xf]
      %v416 = vld [vmem:[%s270 + $0xe8] sm:$0xf]
      %v417 = vld [vmem:[%s270 + $0xec] sm:$0xf]
      %v418 = vld [vmem:[%s270 + $0xf0] sm:$0xf]
      %v419 = vld [vmem:[%s270 + $0xf4] sm:$0xf]
      %v420 = vld [vmem:[%s270 + $0xf8] sm:$0xf]
      %v421 = vld [vmem:[%s270 + $0xfc] sm:$0xf]
      %v422 = vld [vmem:[%s270 + $0x100] sm:$0xf]
      %v423 = vld [vmem:[%s270 + $0x104] sm:$0xf]
      %v424 = vld [vmem:[%s270 + $0x108] sm:$0xf]
      %v425 = vld [vmem:[%s270 + $0x10c] sm:$0xf]
      %v426 = vld [vmem:[%s270 + $0x110] sm:$0xf]
      %v427 = vld [vmem:[%s270 + $0x114] sm:$0xf]
      %v428 = vld [vmem:[%s270 + $0x118] sm:$0xf]
      %v429 = vld [vmem:[%s270 + $0x11c] sm:$0xf]
      %v430 = vld [vmem:[%s270 + $0x120] sm:$0xf]
      %v431 = vld [vmem:[%s270 + $0x124] sm:$0xf]
      %v432 = vld [vmem:[%s270 + $0x128] sm:$0xf]
      %v433 = vld [vmem:[%s270 + $0x12c] sm:$0xf]
      %v434 = vld [vmem:[%s270 + $0x130] sm:$0xf]
      %v435 = vld [vmem:[%s270 + $0x134] sm:$0xf]
      %v436 = vld [vmem:[%s270 + $0x138] sm:$0xf]
      %v437 = vld [vmem:[%s270 + $0x13c] sm:$0xf]
      %v438 = vld [vmem:[%s270 + $0x140] sm:$0xf]
      %v439 = vld [vmem:[%s270 + $0x144] sm:$0xf]
      %v440 = vld [vmem:[%s270 + $0x148] sm:$0xf]
      %v441 = vld [vmem:[%s270 + $0x14c] sm:$0xf]
      %v442 = vld [vmem:[%s270 + $0x150] sm:$0xf]
      %v443 = vld [vmem:[%s270 + $0x154] sm:$0xf]
      %v444 = vld [vmem:[%s270 + $0x158] sm:$0xf]
      %v445 = vld [vmem:[%s270 + $0x15c] sm:$0xf]
      %v446 = vld [vmem:[%s270 + $0x160] sm:$0xf]
      %v447 = vld [vmem:[%s270 + $0x164] sm:$0xf]
      %v448 = vld [vmem:[%s270 + $0x168] sm:$0xf]
      %v449 = vld [vmem:[%s270 + $0x16c] sm:$0xf]
      %v450 = vld [vmem:[%s270 + $0x170] sm:$0xf]
      %v451 = vld [vmem:[%s270 + $0x174] sm:$0xf]
      %v452 = vld [vmem:[%s270 + $0x178] sm:$0xf]
      %v453 = vld [vmem:[%s270 + $0x17c] sm:$0xf]
      %v454 = vld [vmem:[%s270 + $0x180] sm:$0xf]
      %v455 = vld [vmem:[%s270 + $0x184] sm:$0xf]
      %v456 = vld [vmem:[%s270 + $0x188] sm:$0xf]
      %v457 = vld [vmem:[%s270 + $0x18c] sm:$0xf]
      %v458 = vld [vmem:[%s270 + $0x190] sm:$0xf]
      %v459 = vld [vmem:[%s270 + $0x194] sm:$0xf]
      %v460 = vld [vmem:[%s270 + $0x198] sm:$0xf]
      %v461 = vld [vmem:[%s270 + $0x19c] sm:$0xf]
      %v462 = vld [vmem:[%s270 + $0x1a0] sm:$0xf]
      %v463 = vld [vmem:[%s270 + $0x1a4] sm:$0xf]
      %v464 = vld [vmem:[%s270 + $0x1a8] sm:$0xf]
      %v465 = vld [vmem:[%s270 + $0x1ac] sm:$0xf]
      %v466 = vld [vmem:[%s270 + $0x1b0] sm:$0xf]
      %v467 = vld [vmem:[%s270 + $0x1b4] sm:$0xf]
      %v468 = vld [vmem:[%s270 + $0x1b8] sm:$0xf]
      %v469 = vld [vmem:[%s270 + $0x1bc] sm:$0xf]
      %v470 = vld [vmem:[%s270 + $0x1c0] sm:$0xf]
      %v471 = vld [vmem:[%s270 + $0x1c4] sm:$0xf]
      %v472 = vld [vmem:[%s270 + $0x1c8] sm:$0xf]
      %v473 = vld [vmem:[%s270 + $0x1cc] sm:$0xf]
      %v474 = vld [vmem:[%s270 + $0x1d0] sm:$0xf]
      %v475 = vld [vmem:[%s270 + $0x1d4] sm:$0xf]
      %v476 = vld [vmem:[%s270 + $0x1d8] sm:$0xf]
      %v477 = vld [vmem:[%s270 + $0x1dc] sm:$0xf]
      %v478 = vld [vmem:[%s270 + $0x1e0] sm:$0xf]
      %v479 = vld [vmem:[%s270 + $0x1e4] sm:$0xf]
      %v480 = vld [vmem:[%s270 + $0x1e8] sm:$0xf]
      %v481 = vld [vmem:[%s270 + $0x1ec] sm:$0xf]
      %v482 = vld [vmem:[%s270 + $0x1f0] sm:$0xf]
      %v483 = vld [vmem:[%s270 + $0x1f4] sm:$0xf]
      %v484 = vld [vmem:[%s270 + $0x1f8] sm:$0xf]
      %v485 = vld [vmem:[%s270 + $0x1fc] sm:$0xf]
      %v550 = vunpack.c.l.b16 %v294
      %v551 = vunpack.c.h.b16 %v294
      %v552 = vunpack.c.l.b16 %v295
      %v553 = vunpack.c.h.b16 %v295
      %v554 = vunpack.c.l.b16 %v296
      %v555 = vunpack.c.h.b16 %v296
      %v556 = vunpack.c.l.b16 %v297
      %v557 = vunpack.c.h.b16 %v297
      %v558 = vunpack.c.l.b16 %v298
      %v559 = vunpack.c.h.b16 %v298
      %v560 = vunpack.c.l.b16 %v299
      %v561 = vunpack.c.h.b16 %v299
      %v562 = vunpack.c.l.b16 %v300
      %v563 = vunpack.c.h.b16 %v300
      %v564 = vunpack.c.l.b16 %v301
      %v565 = vunpack.c.h.b16 %v301
      %v566 = vunpack.c.l.b16 %v302
      %v567 = vunpack.c.h.b16 %v302
      %v568 = vunpack.c.l.b16 %v303
      %v569 = vunpack.c.h.b16 %v303
      %v570 = vunpack.c.l.b16 %v304
      %v571 = vunpack.c.h.b16 %v304
      %v572 = vunpack.c.l.b16 %v305
      %v573 = vunpack.c.h.b16 %v305
      %v574 = vunpack.c.l.b16 %v306
      %v575 = vunpack.c.h.b16 %v306
      %v576 = vunpack.c.l.b16 %v307
      %v577 = vunpack.c.h.b16 %v307
      %v578 = vunpack.c.l.b16 %v308
      %v579 = vunpack.c.h.b16 %v308
      %v580 = vunpack.c.l.b16 %v309
      %v581 = vunpack.c.h.b16 %v309
      %v582 = vunpack.c.l.b16 %v310
      %v583 = vunpack.c.h.b16 %v310
      %v584 = vunpack.c.l.b16 %v311
      %v585 = vunpack.c.h.b16 %v311
      %v586 = vunpack.c.l.b16 %v312
      %v587 = vunpack.c.h.b16 %v312
      %v588 = vunpack.c.l.b16 %v313
      %v589 = vunpack.c.h.b16 %v313
      %v590 = vunpack.c.l.b16 %v314
      %v591 = vunpack.c.h.b16 %v314
      %v592 = vunpack.c.l.b16 %v315
      %v593 = vunpack.c.h.b16 %v315
      %v594 = vunpack.c.l.b16 %v316
      %v595 = vunpack.c.h.b16 %v316
      %v596 = vunpack.c.l.b16 %v317
      %v597 = vunpack.c.h.b16 %v317
      %v598 = vunpack.c.l.b16 %v318
      %v599 = vunpack.c.h.b16 %v318
      %v600 = vunpack.c.l.b16 %v319
      %v601 = vunpack.c.h.b16 %v319
      %v602 = vunpack.c.l.b16 %v320
      %v603 = vunpack.c.h.b16 %v320
      %v604 = vunpack.c.l.b16 %v321
      %v605 = vunpack.c.h.b16 %v321
      %v606 = vunpack.c.l.b16 %v322
      %v607 = vunpack.c.h.b16 %v322
      %v608 = vunpack.c.l.b16 %v323
      %v609 = vunpack.c.h.b16 %v323
      %v610 = vunpack.c.l.b16 %v324
      %v611 = vunpack.c.h.b16 %v324
      %v612 = vunpack.c.l.b16 %v325
      %v613 = vunpack.c.h.b16 %v325
      %v614 = vunpack.c.l.b16 %v326
      %v615 = vunpack.c.h.b16 %v326
      %v616 = vunpack.c.l.b16 %v327
      %v617 = vunpack.c.h.b16 %v327
      %v618 = vunpack.c.l.b16 %v328
      %v619 = vunpack.c.h.b16 %v328
      %v620 = vunpack.c.l.b16 %v329
      %v621 = vunpack.c.h.b16 %v329
      %v622 = vunpack.c.l.b16 %v330
      %v623 = vunpack.c.h.b16 %v330
      %v624 = vunpack.c.l.b16 %v331
      %v625 = vunpack.c.h.b16 %v331
      %v626 = vunpack.c.l.b16 %v332
      %v627 = vunpack.c.h.b16 %v332
      %v628 = vunpack.c.l.b16 %v333
      %v629 = vunpack.c.h.b16 %v333
      %v630 = vunpack.c.l.b16 %v334
      %v631 = vunpack.c.h.b16 %v334
      %v632 = vunpack.c.l.b16 %v335
      %v633 = vunpack.c.h.b16 %v335
      %v634 = vunpack.c.l.b16 %v336
      %v635 = vunpack.c.h.b16 %v336
      %v636 = vunpack.c.l.b16 %v337
      %v637 = vunpack.c.h.b16 %v337
      %v638 = vunpack.c.l.b16 %v338
      %v639 = vunpack.c.h.b16 %v338
      %v640 = vunpack.c.l.b16 %v339
      %v641 = vunpack.c.h.b16 %v339
      %v642 = vunpack.c.l.b16 %v340
      %v643 = vunpack.c.h.b16 %v340
      %v644 = vunpack.c.l.b16 %v341
      %v645 = vunpack.c.h.b16 %v341
      %v646 = vunpack.c.l.b16 %v342
      %v647 = vunpack.c.h.b16 %v342
      %v648 = vunpack.c.l.b16 %v343
      %v649 = vunpack.c.h.b16 %v343
      %v650 = vunpack.c.l.b16 %v344
      %v651 = vunpack.c.h.b16 %v344
      %v652 = vunpack.c.l.b16 %v345
      %v653 = vunpack.c.h.b16 %v345
      %v654 = vunpack.c.l.b16 %v346
      %v655 = vunpack.c.h.b16 %v346
      %v656 = vunpack.c.l.b16 %v347
      %v657 = vunpack.c.h.b16 %v347
      %v658 = vunpack.c.l.b16 %v348
      %v659 = vunpack.c.h.b16 %v348
      %v660 = vunpack.c.l.b16 %v349
      %v661 = vunpack.c.h.b16 %v349
      %v662 = vunpack.c.l.b16 %v350
      %v663 = vunpack.c.h.b16 %v350
      %v664 = vunpack.c.l.b16 %v351
      %v665 = vunpack.c.h.b16 %v351
      %v666 = vunpack.c.l.b16 %v352
      %v667 = vunpack.c.h.b16 %v352
      %v668 = vunpack.c.l.b16 %v353
      %v669 = vunpack.c.h.b16 %v353
      %v670 = vunpack.c.l.b16 %v354
      %v671 = vunpack.c.h.b16 %v354
      %v672 = vunpack.c.l.b16 %v355
      %v673 = vunpack.c.h.b16 %v355
      %v674 = vunpack.c.l.b16 %v356
      %v675 = vunpack.c.h.b16 %v356
      %v676 = vunpack.c.l.b16 %v357
      %v677 = vunpack.c.h.b16 %v357
      %v678 = vpack.c.b16 %v558, %v550
      %v679 = vpack.c.b16 %v559, %v551
      %v680 = vpack.c.b16 %v560, %v552
      %v681 = vpack.c.b16 %v561, %v553
      %v682 = vpack.c.b16 %v562, %v554
      %v683 = vpack.c.b16 %v563, %v555
      %v684 = vpack.c.b16 %v564, %v556
      %v685 = vpack.c.b16 %v565, %v557
      %v686 = vpack.c.b16 %v574, %v566
      %v687 = vpack.c.b16 %v575, %v567
      %v688 = vpack.c.b16 %v576, %v568
      %v689 = vpack.c.b16 %v577, %v569
      %v690 = vpack.c.b16 %v578, %v570
      %v691 = vpack.c.b16 %v579, %v571
      %v692 = vpack.c.b16 %v580, %v572
      %v693 = vpack.c.b16 %v581, %v573
      %v694 = vpack.c.b16 %v590, %v582
      %v695 = vpack.c.b16 %v591, %v583
      %v696 = vpack.c.b16 %v592, %v584
      %v697 = vpack.c.b16 %v593, %v585
      %v698 = vpack.c.b16 %v594, %v586
      %v699 = vpack.c.b16 %v595, %v587
      %v700 = vpack.c.b16 %v596, %v588
      %v701 = vpack.c.b16 %v597, %v589
      %v702 = vpack.c.b16 %v606, %v598
      %v703 = vpack.c.b16 %v607, %v599
      %v704 = vpack.c.b16 %v608, %v600
      %v705 = vpack.c.b16 %v609, %v601
      %v706 = vpack.c.b16 %v610, %v602
      %v707 = vpack.c.b16 %v611, %v603
      %v708 = vpack.c.b16 %v612, %v604
      %v709 = vpack.c.b16 %v613, %v605
      %v710 = vpack.c.b16 %v622, %v614
      %v711 = vpack.c.b16 %v623, %v615
      %v712 = vpack.c.b16 %v624, %v616
      %v713 = vpack.c.b16 %v625, %v617
      %v714 = vpack.c.b16 %v626, %v618
      %v715 = vpack.c.b16 %v627, %v619
      %v716 = vpack.c.b16 %v628, %v620
      %v717 = vpack.c.b16 %v629, %v621
      %v718 = vpack.c.b16 %v638, %v630
      %v719 = vpack.c.b16 %v639, %v631
      %v720 = vpack.c.b16 %v640, %v632
      %v721 = vpack.c.b16 %v641, %v633
      %v722 = vpack.c.b16 %v642, %v634
      %v723 = vpack.c.b16 %v643, %v635
      %v724 = vpack.c.b16 %v644, %v636
      %v725 = vpack.c.b16 %v645, %v637
      %v726 = vpack.c.b16 %v654, %v646
      %v727 = vpack.c.b16 %v655, %v647
      %v728 = vpack.c.b16 %v656, %v648
      %v729 = vpack.c.b16 %v657, %v649
      %v730 = vpack.c.b16 %v658, %v650
      %v731 = vpack.c.b16 %v659, %v651
      %v732 = vpack.c.b16 %v660, %v652
      %v733 = vpack.c.b16 %v661, %v653
      %v734 = vpack.c.b16 %v670, %v662
      %v735 = vpack.c.b16 %v671, %v663
      %v736 = vpack.c.b16 %v672, %v664
      %v737 = vpack.c.b16 %v673, %v665
      %v738 = vpack.c.b16 %v674, %v666
      %v739 = vpack.c.b16 %v675, %v667
      %v740 = vpack.c.b16 %v676, %v668
      %v741 = vpack.c.b16 %v677, %v669
      %v934 = vunpack.c.l.b16 %v358
      %v935 = vunpack.c.l.b16 %v359
      %v936 = vunpack.c.l.b16 %v360
      %v937 = vunpack.c.l.b16 %v361
      %v938 = vunpack.c.l.b16 %v362
      %v939 = vunpack.c.l.b16 %v363
      %v940 = vunpack.c.l.b16 %v364
      %v941 = vunpack.c.l.b16 %v365
      %v942 = vunpack.c.l.b16 %v366
      %v943 = vunpack.c.l.b16 %v367
      %v944 = vunpack.c.l.b16 %v368
      %v945 = vunpack.c.l.b16 %v369
      %v946 = vunpack.c.l.b16 %v370
      %v947 = vunpack.c.l.b16 %v371
      %v948 = vunpack.c.l.b16 %v372
      %v949 = vunpack.c.l.b16 %v373
      %v950 = vunpack.c.l.b16 %v374
      %v951 = vunpack.c.l.b16 %v375
      %v952 = vunpack.c.l.b16 %v376
      %v953 = vunpack.c.l.b16 %v377
      %v954 = vunpack.c.l.b16 %v378
      %v955 = vunpack.c.l.b16 %v379
      %v956 = vunpack.c.l.b16 %v380
      %v957 = vunpack.c.l.b16 %v381
      %v958 = vunpack.c.l.b16 %v382
      %v959 = vunpack.c.l.b16 %v383
      %v960 = vunpack.c.l.b16 %v384
      %v961 = vunpack.c.l.b16 %v385
      %v962 = vunpack.c.l.b16 %v386
      %v963 = vunpack.c.l.b16 %v387
      %v964 = vunpack.c.l.b16 %v388
      %v965 = vunpack.c.l.b16 %v389
      %v966 = vunpack.c.l.b16 %v390
      %v967 = vunpack.c.l.b16 %v391
      %v968 = vunpack.c.l.b16 %v392
      %v969 = vunpack.c.l.b16 %v393
      %v970 = vunpack.c.l.b16 %v394
      %v971 = vunpack.c.l.b16 %v395
      %v972 = vunpack.c.l.b16 %v396
      %v973 = vunpack.c.l.b16 %v397
      %v974 = vunpack.c.l.b16 %v398
      %v975 = vunpack.c.l.b16 %v399
      %v976 = vunpack.c.l.b16 %v400
      %v977 = vunpack.c.l.b16 %v401
      %v978 = vunpack.c.l.b16 %v402
      %v979 = vunpack.c.l.b16 %v403
      %v980 = vunpack.c.l.b16 %v404
      %v981 = vunpack.c.l.b16 %v405
      %v982 = vunpack.c.l.b16 %v406
      %v983 = vunpack.c.l.b16 %v407
      %v984 = vunpack.c.l.b16 %v408
      %v985 = vunpack.c.l.b16 %v409
      %v986 = vunpack.c.l.b16 %v410
      %v987 = vunpack.c.l.b16 %v411
      %v988 = vunpack.c.l.b16 %v412
      %v989 = vunpack.c.l.b16 %v413
      %v990 = vunpack.c.l.b16 %v414
      %v991 = vunpack.c.l.b16 %v415
      %v992 = vunpack.c.l.b16 %v416
      %v993 = vunpack.c.l.b16 %v417
      %v994 = vunpack.c.l.b16 %v418
      %v995 = vunpack.c.l.b16 %v419
      %v996 = vunpack.c.l.b16 %v420
      %v997 = vunpack.c.l.b16 %v421
      %v998 = vunpack.c.l.b16 %v422
      %v999 = vunpack.c.l.b16 %v423
      %v1000 = vunpack.c.l.b16 %v424
      %v1001 = vunpack.c.l.b16 %v425
      %v1002 = vunpack.c.l.b16 %v426
      %v1003 = vunpack.c.l.b16 %v427
      %v1004 = vunpack.c.l.b16 %v428
      %v1005 = vunpack.c.l.b16 %v429
      %v1006 = vunpack.c.l.b16 %v430
      %v1007 = vunpack.c.l.b16 %v431
      %v1008 = vunpack.c.l.b16 %v432
      %v1009 = vunpack.c.l.b16 %v433
      %v1010 = vunpack.c.l.b16 %v434
      %v1011 = vunpack.c.l.b16 %v435
      %v1012 = vunpack.c.l.b16 %v436
      %v1013 = vunpack.c.l.b16 %v437
      %v1014 = vunpack.c.l.b16 %v438
      %v1015 = vunpack.c.l.b16 %v439
      %v1016 = vunpack.c.l.b16 %v440
      %v1017 = vunpack.c.l.b16 %v441
      %v1018 = vunpack.c.l.b16 %v442
      %v1019 = vunpack.c.l.b16 %v443
      %v1020 = vunpack.c.l.b16 %v444
      %v1021 = vunpack.c.l.b16 %v445
      %v1022 = vunpack.c.l.b16 %v446
      %v1023 = vunpack.c.l.b16 %v447
      %v1024 = vunpack.c.l.b16 %v448
      %v1025 = vunpack.c.l.b16 %v449
      %v1026 = vunpack.c.l.b16 %v450
      %v1027 = vunpack.c.l.b16 %v451
      %v1028 = vunpack.c.l.b16 %v452
      %v1029 = vunpack.c.l.b16 %v453
      %v1030 = vunpack.c.l.b16 %v454
      %v1031 = vunpack.c.l.b16 %v455
      %v1032 = vunpack.c.l.b16 %v456
      %v1033 = vunpack.c.l.b16 %v457
      %v1034 = vunpack.c.l.b16 %v458
      %v1035 = vunpack.c.l.b16 %v459
      %v1036 = vunpack.c.l.b16 %v460
      %v1037 = vunpack.c.l.b16 %v461
      %v1038 = vunpack.c.l.b16 %v462
      %v1039 = vunpack.c.l.b16 %v463
      %v1040 = vunpack.c.l.b16 %v464
      %v1041 = vunpack.c.l.b16 %v465
      %v1042 = vunpack.c.l.b16 %v466
      %v1043 = vunpack.c.l.b16 %v467
      %v1044 = vunpack.c.l.b16 %v468
      %v1045 = vunpack.c.l.b16 %v469
      %v1046 = vunpack.c.l.b16 %v470
      %v1047 = vunpack.c.l.b16 %v471
      %v1048 = vunpack.c.l.b16 %v472
      %v1049 = vunpack.c.l.b16 %v473
      %v1050 = vunpack.c.l.b16 %v474
      %v1051 = vunpack.c.l.b16 %v475
      %v1052 = vunpack.c.l.b16 %v476
      %v1053 = vunpack.c.l.b16 %v477
      %v1054 = vunpack.c.l.b16 %v478
      %v1055 = vunpack.c.l.b16 %v479
      %v1056 = vunpack.c.l.b16 %v480
      %v1057 = vunpack.c.l.b16 %v481
      %v1058 = vunpack.c.l.b16 %v482
      %v1059 = vunpack.c.l.b16 %v483
      %v1060 = vunpack.c.l.b16 %v484
      %v1061 = vunpack.c.l.b16 %v485
      %v1062 = vpack.c.b16 %v935, %v934
      %v1063 = vpack.c.b16 %v937, %v936
      %v1064 = vpack.c.b16 %v939, %v938
      %v1065 = vpack.c.b16 %v941, %v940
      %v1066 = vpack.c.b16 %v943, %v942
      %v1067 = vpack.c.b16 %v945, %v944
      %v1068 = vpack.c.b16 %v947, %v946
      %v1069 = vpack.c.b16 %v949, %v948
      %v1070 = vpack.c.b16 %v951, %v950
      %v1071 = vpack.c.b16 %v953, %v952
      %v1072 = vpack.c.b16 %v955, %v954
      %v1073 = vpack.c.b16 %v957, %v956
      %v1074 = vpack.c.b16 %v959, %v958
      %v1075 = vpack.c.b16 %v961, %v960
      %v1076 = vpack.c.b16 %v963, %v962
      %v1077 = vpack.c.b16 %v965, %v964
      %v1078 = vpack.c.b16 %v967, %v966
      %v1079 = vpack.c.b16 %v969, %v968
      %v1080 = vpack.c.b16 %v971, %v970
      %v1081 = vpack.c.b16 %v973, %v972
      %v1082 = vpack.c.b16 %v975, %v974
      %v1083 = vpack.c.b16 %v977, %v976
      %v1084 = vpack.c.b16 %v979, %v978
      %v1085 = vpack.c.b16 %v981, %v980
      %v1086 = vpack.c.b16 %v983, %v982
      %v1087 = vpack.c.b16 %v985, %v984
      %v1088 = vpack.c.b16 %v987, %v986
      %v1089 = vpack.c.b16 %v989, %v988
      %v1090 = vpack.c.b16 %v991, %v990
      %v1091 = vpack.c.b16 %v993, %v992
      %v1092 = vpack.c.b16 %v995, %v994
      %v1093 = vpack.c.b16 %v997, %v996
      %v1094 = vpack.c.b16 %v999, %v998
      %v1095 = vpack.c.b16 %v1001, %v1000
      %v1096 = vpack.c.b16 %v1003, %v1002
      %v1097 = vpack.c.b16 %v1005, %v1004
      %v1098 = vpack.c.b16 %v1007, %v1006
      %v1099 = vpack.c.b16 %v1009, %v1008
      %v1100 = vpack.c.b16 %v1011, %v1010
      %v1101 = vpack.c.b16 %v1013, %v1012
      %v1102 = vpack.c.b16 %v1015, %v1014
      %v1103 = vpack.c.b16 %v1017, %v1016
      %v1104 = vpack.c.b16 %v1019, %v1018
      %v1105 = vpack.c.b16 %v1021, %v1020
      %v1106 = vpack.c.b16 %v1023, %v1022
      %v1107 = vpack.c.b16 %v1025, %v1024
      %v1108 = vpack.c.b16 %v1027, %v1026
      %v1109 = vpack.c.b16 %v1029, %v1028
      %v1110 = vpack.c.b16 %v1031, %v1030
      %v1111 = vpack.c.b16 %v1033, %v1032
      %v1112 = vpack.c.b16 %v1035, %v1034
      %v1113 = vpack.c.b16 %v1037, %v1036
      %v1114 = vpack.c.b16 %v1039, %v1038
      %v1115 = vpack.c.b16 %v1041, %v1040
      %v1116 = vpack.c.b16 %v1043, %v1042
      %v1117 = vpack.c.b16 %v1045, %v1044
      %v1118 = vpack.c.b16 %v1047, %v1046
      %v1119 = vpack.c.b16 %v1049, %v1048
      %v1120 = vpack.c.b16 %v1051, %v1050
      %v1121 = vpack.c.b16 %v1053, %v1052
      %v1122 = vpack.c.b16 %v1055, %v1054
      %v1123 = vpack.c.b16 %v1057, %v1056
      %v1124 = vpack.c.b16 %v1059, %v1058
      %v1125 = vpack.c.b16 %v1061, %v1060
      %1190 = vmatprep.subr.bf16.mxu0 0
      %1191 = vmatpush1.bf16.msra.mxu0 %v1069
      %1192 = vmatprep.subr.bf16.mxu0 0
      %1193 = vmatpush1.bf16.msra.mxu0 %v1068
      %1194 = vmatprep.subr.bf16.mxu0 0
      %1195 = vmatpush1.bf16.msra.mxu0 %v1067
      %1196 = vmatprep.subr.bf16.mxu0 0
      %1197 = vmatpush1.bf16.msra.mxu0 %v1066
      %1198 = vmatprep.subr.bf16.mxu0 0
      %1199 = vmatpush1.bf16.msra.mxu0 %v1065
      %1200 = vmatprep.subr.bf16.mxu0 0
      %1201 = vmatpush1.bf16.msra.mxu0 %v1064
      %1202 = vmatprep.subr.bf16.mxu0 0
      %1203 = vmatpush1.bf16.msra.mxu0 %v1063
      %1204 = vmatprep.subr.bf16.mxu0 0
      %1205 = vmatpush1.bf16.msra.mxu0 %v1062
      %1206 = vmatprep.subr.bf16.mxu0 0
      %1207 = vmatpush2.bf16.msra.mxu0 %v1077
      %1208 = vmatprep.subr.bf16.mxu0 0
      %1209 = vmatpush2.bf16.msra.mxu0 %v1076
      %1210 = vmatprep.subr.bf16.mxu0 0
      %1211 = vmatpush2.bf16.msra.mxu0 %v1075
      %1212 = vmatprep.subr.bf16.mxu0 0
      %1213 = vmatpush2.bf16.msra.mxu0 %v1074
      %1214 = vmatprep.subr.bf16.mxu0 0
      %1215 = vmatpush2.bf16.msra.mxu0 %v1073
      %1216 = vmatprep.subr.bf16.mxu0 0
      %1217 = vmatpush2.bf16.msra.mxu0 %v1072
      %1218 = vmatprep.subr.bf16.mxu0 0
      %1219 = vmatpush2.bf16.msra.mxu0 %v1071
      %1220 = vmatprep.subr.bf16.mxu0 0
      %1221 = vmatpush2.bf16.msra.mxu0 %v1070
      %1222 = vmatprep.mubr.bf16.mxu0 %v679
      %1223 = vmatmul.mubr.bf16.gmra.mxu0 %v678
      %v1224 = vpop.f32.mrf.mxu0
      %v1225 = vadd.f32 0.0, %v1224
      %v1226 = vpop.f32.mrf.mxu0
      %v1227 = vpop.f32.mrf.mxu0
      %v1228 = vadd.f32 0.0, %v1227
      %v1229 = vpop.f32.mrf.mxu0
      %1230 = vmatprep.mubr.bf16.mxu0 %v687
      %1231 = vmatmul.mubr.bf16.gmra.mxu0 %v686
      %v1232 = vpop.f32.mrf.mxu0
      %v1233 = vadd.f32 0.0, %v1232
      %v1234 = vpop.f32.mrf.mxu0
      %v1235 = vpop.f32.mrf.mxu0
      %v1236 = vadd.f32 0.0, %v1235
      %v1237 = vpop.f32.mrf.mxu0
      %1238 = vmatprep.mubr.bf16.mxu0 %v695
      %1239 = vmatmul.mubr.bf16.gmra.mxu0 %v694
      %v1240 = vpop.f32.mrf.mxu0
      %v1241 = vadd.f32 0.0, %v1240
      %v1242 = vpop.f32.mrf.mxu0
      %v1243 = vpop.f32.mrf.mxu0
      %v1244 = vadd.f32 0.0, %v1243
      %v1245 = vpop.f32.mrf.mxu0
      %1246 = vmatprep.mubr.bf16.mxu0 %v703
      %1247 = vmatmul.mubr.bf16.gmra.mxu0 %v702
      %v1248 = vpop.f32.mrf.mxu0
      %v1249 = vadd.f32 0.0, %v1248
      %v1250 = vpop.f32.mrf.mxu0
      %v1251 = vpop.f32.mrf.mxu0
      %v1252 = vadd.f32 0.0, %v1251
      %v1253 = vpop.f32.mrf.mxu0
      %1254 = vmatprep.mubr.bf16.mxu0 %v711
      %1255 = vmatmul.mubr.bf16.gmra.mxu0 %v710
      %v1256 = vpop.f32.mrf.mxu0
      %v1257 = vadd.f32 0.0, %v1256
      %v1258 = vpop.f32.mrf.mxu0
      %v1259 = vpop.f32.mrf.mxu0
      %v1260 = vadd.f32 0.0, %v1259
      %v1261 = vpop.f32.mrf.mxu0
      %1262 = vmatprep.mubr.bf16.mxu0 %v719
      %1263 = vmatmul.mubr.bf16.gmra.mxu0 %v718
      %v1264 = vpop.f32.mrf.mxu0
      %v1265 = vadd.f32 0.0, %v1264
      %v1266 = vpop.f32.mrf.mxu0
      %v1267 = vpop.f32.mrf.mxu0
      %v1268 = vadd.f32 0.0, %v1267
      %v1269 = vpop.f32.mrf.mxu0
      %1270 = vmatprep.mubr.bf16.mxu0 %v727
      %1271 = vmatmul.mubr.bf16.gmra.mxu0 %v726
      %v1272 = vpop.f32.mrf.mxu0
      %v1273 = vadd.f32 0.0, %v1272
      %v1274 = vpop.f32.mrf.mxu0
      %v1275 = vpop.f32.mrf.mxu0
      %v1276 = vadd.f32 0.0, %v1275
      %v1277 = vpop.f32.mrf.mxu0
      %1278 = vmatprep.mubr.bf16.mxu0 %v735
      %1279 = vmatmul.mubr.bf16.gmra.mxu0 %v734
      %v1280 = vpop.f32.mrf.mxu0
      %v1281 = vadd.f32 0.0, %v1280
      %v1282 = vpop.f32.mrf.mxu0
      %v1283 = vpop.f32.mrf.mxu0
      %v1284 = vadd.f32 0.0, %v1283
      %v1285 = vpop.f32.mrf.mxu0
      %1286 = vdwg.mxu0
      %1287 = vmatprep.subr.bf16.mxu0 0
      %1288 = vmatpush1.bf16.msra.mxu0 %v1085
      %1289 = vmatprep.subr.bf16.mxu0 0
      %1290 = vmatpush1.bf16.msra.mxu0 %v1084
      %1291 = vmatprep.subr.bf16.mxu0 0
      %1292 = vmatpush1.bf16.msra.mxu0 %v1083
      %1293 = vmatprep.subr.bf16.mxu0 0
      %1294 = vmatpush1.bf16.msra.mxu0 %v1082
      %1295 = vmatprep.subr.bf16.mxu0 0
      %1296 = vmatpush1.bf16.msra.mxu0 %v1081
      %1297 = vmatprep.subr.bf16.mxu0 0
      %1298 = vmatpush1.bf16.msra.mxu0 %v1080
      %1299 = vmatprep.subr.bf16.mxu0 0
      %1300 = vmatpush1.bf16.msra.mxu0 %v1079
      %1301 = vmatprep.subr.bf16.mxu0 0
      %1302 = vmatpush1.bf16.msra.mxu0 %v1078
      %1303 = vmatprep.subr.bf16.mxu0 0
      %1304 = vmatpush2.bf16.msra.mxu0 %v1093
      %1305 = vmatprep.subr.bf16.mxu0 0
      %1306 = vmatpush2.bf16.msra.mxu0 %v1092
      %1307 = vmatprep.subr.bf16.mxu0 0
      %1308 = vmatpush2.bf16.msra.mxu0 %v1091
      %1309 = vmatprep.subr.bf16.mxu0 0
      %1310 = vmatpush2.bf16.msra.mxu0 %v1090
      %1311 = vmatprep.subr.bf16.mxu0 0
      %1312 = vmatpush2.bf16.msra.mxu0 %v1089
      %1313 = vmatprep.subr.bf16.mxu0 0
      %1314 = vmatpush2.bf16.msra.mxu0 %v1088
      %1315 = vmatprep.subr.bf16.mxu0 0
      %1316 = vmatpush2.bf16.msra.mxu0 %v1087
      %1317 = vmatprep.subr.bf16.mxu0 0
      %1318 = vmatpush2.bf16.msra.mxu0 %v1086
      %1319 = vmatprep.mubr.bf16.mxu0 %v681
      %1320 = vmatmul.mubr.bf16.gmra.mxu0 %v680
      %v1321 = vpop.f32.mrf.mxu0
      %v1322 = vadd.f32 %v1225, %v1321
      %v1323 = vpop.f32.mrf.mxu0
      %v1324 = vpop.f32.mrf.mxu0
      %v1325 = vadd.f32 %v1228, %v1324
      %v1326 = vpop.f32.mrf.mxu0
      %1327 = vmatprep.mubr.bf16.mxu0 %v689
      %1328 = vmatmul.mubr.bf16.gmra.mxu0 %v688
      %v1329 = vpop.f32.mrf.mxu0
      %v1330 = vadd.f32 %v1233, %v1329
      %v1331 = vpop.f32.mrf.mxu0
      %v1332 = vpop.f32.mrf.mxu0
      %v1333 = vadd.f32 %v1236, %v1332
      %v1334 = vpop.f32.mrf.mxu0
      %1335 = vmatprep.mubr.bf16.mxu0 %v697
      %1336 = vmatmul.mubr.bf16.gmra.mxu0 %v696
      %v1337 = vpop.f32.mrf.mxu0
      %v1338 = vadd.f32 %v1241, %v1337
      %v1339 = vpop.f32.mrf.mxu0
      %v1340 = vpop.f32.mrf.mxu0
      %v1341 = vadd.f32 %v1244, %v1340
      %v1342 = vpop.f32.mrf.mxu0
      %1343 = vmatprep.mubr.bf16.mxu0 %v705
      %1344 = vmatmul.mubr.bf16.gmra.mxu0 %v704
      %v1345 = vpop.f32.mrf.mxu0
      %v1346 = vadd.f32 %v1249, %v1345
      %v1347 = vpop.f32.mrf.mxu0
      %v1348 = vpop.f32.mrf.mxu0
      %v1349 = vadd.f32 %v1252, %v1348
      %v1350 = vpop.f32.mrf.mxu0
      %1351 = vmatprep.mubr.bf16.mxu0 %v713
      %1352 = vmatmul.mubr.bf16.gmra.mxu0 %v712
      %v1353 = vpop.f32.mrf.mxu0
      %v1354 = vadd.f32 %v1257, %v1353
      %v1355 = vpop.f32.mrf.mxu0
      %v1356 = vpop.f32.mrf.mxu0
      %v1357 = vadd.f32 %v1260, %v1356
      %v1358 = vpop.f32.mrf.mxu0
      %1359 = vmatprep.mubr.bf16.mxu0 %v721
      %1360 = vmatmul.mubr.bf16.gmra.mxu0 %v720
      %v1361 = vpop.f32.mrf.mxu0
      %v1362 = vadd.f32 %v1265, %v1361
      %v1363 = vpop.f32.mrf.mxu0
      %v1364 = vpop.f32.mrf.mxu0
      %v1365 = vadd.f32 %v1268, %v1364
      %v1366 = vpop.f32.mrf.mxu0
      %1367 = vmatprep.mubr.bf16.mxu0 %v729
      %1368 = vmatmul.mubr.bf16.gmra.mxu0 %v728
      %v1369 = vpop.f32.mrf.mxu0
      %v1370 = vadd.f32 %v1273, %v1369
      %v1371 = vpop.f32.mrf.mxu0
      %v1372 = vpop.f32.mrf.mxu0
      %v1373 = vadd.f32 %v1276, %v1372
      %v1374 = vpop.f32.mrf.mxu0
      %1375 = vmatprep.mubr.bf16.mxu0 %v737
      %1376 = vmatmul.mubr.bf16.gmra.mxu0 %v736
      %v1377 = vpop.f32.mrf.mxu0
      %v1378 = vadd.f32 %v1281, %v1377
      %v1379 = vpop.f32.mrf.mxu0
      %v1380 = vpop.f32.mrf.mxu0
      %v1381 = vadd.f32 %v1284, %v1380
      %v1382 = vpop.f32.mrf.mxu0
      %1383 = vdwg.mxu0
      %1384 = vmatprep.subr.bf16.mxu0 0
      %1385 = vmatpush1.bf16.msra.mxu0 %v1101
      %1386 = vmatprep.subr.bf16.mxu0 0
      %1387 = vmatpush1.bf16.msra.mxu0 %v1100
      %1388 = vmatprep.subr.bf16.mxu0 0
      %1389 = vmatpush1.bf16.msra.mxu0 %v1099
      %1390 = vmatprep.subr.bf16.mxu0 0
      %1391 = vmatpush1.bf16.msra.mxu0 %v1098
      %1392 = vmatprep.subr.bf16.mxu0 0
      %1393 = vmatpush1.bf16.msra.mxu0 %v1097
      %1394 = vmatprep.subr.bf16.mxu0 0
      %1395 = vmatpush1.bf16.msra.mxu0 %v1096
      %1396 = vmatprep.subr.bf16.mxu0 0
      %1397 = vmatpush1.bf16.msra.mxu0 %v1095
      %1398 = vmatprep.subr.bf16.mxu0 0
      %1399 = vmatpush1.bf16.msra.mxu0 %v1094
      %1400 = vmatprep.subr.bf16.mxu0 0
      %1401 = vmatpush2.bf16.msra.mxu0 %v1109
      %1402 = vmatprep.subr.bf16.mxu0 0
      %1403 = vmatpush2.bf16.msra.mxu0 %v1108
      %1404 = vmatprep.subr.bf16.mxu0 0
      %1405 = vmatpush2.bf16.msra.mxu0 %v1107
      %1406 = vmatprep.subr.bf16.mxu0 0
      %1407 = vmatpush2.bf16.msra.mxu0 %v1106
      %1408 = vmatprep.subr.bf16.mxu0 0
      %1409 = vmatpush2.bf16.msra.mxu0 %v1105
      %1410 = vmatprep.subr.bf16.mxu0 0
      %1411 = vmatpush2.bf16.msra.mxu0 %v1104
      %1412 = vmatprep.subr.bf16.mxu0 0
      %1413 = vmatpush2.bf16.msra.mxu0 %v1103
      %1414 = vmatprep.subr.bf16.mxu0 0
      %1415 = vmatpush2.bf16.msra.mxu0 %v1102
      %1416 = vmatprep.mubr.bf16.mxu0 %v683
      %1417 = vmatmul.mubr.bf16.gmra.mxu0 %v682
      %v1418 = vpop.f32.mrf.mxu0
      %v1419 = vadd.f32 %v1322, %v1418
      %v1420 = vpop.f32.mrf.mxu0
      %v1421 = vpop.f32.mrf.mxu0
      %v1422 = vadd.f32 %v1325, %v1421
      %v1423 = vpop.f32.mrf.mxu0
      %1424 = vmatprep.mubr.bf16.mxu0 %v691
      %1425 = vmatmul.mubr.bf16.gmra.mxu0 %v690
      %v1426 = vpop.f32.mrf.mxu0
      %v1427 = vadd.f32 %v1330, %v1426
      %v1428 = vpop.f32.mrf.mxu0
      %v1429 = vpop.f32.mrf.mxu0
      %v1430 = vadd.f32 %v1333, %v1429
      %v1431 = vpop.f32.mrf.mxu0
      %1432 = vmatprep.mubr.bf16.mxu0 %v699
      %1433 = vmatmul.mubr.bf16.gmra.mxu0 %v698
      %v1434 = vpop.f32.mrf.mxu0
      %v1435 = vadd.f32 %v1338, %v1434
      %v1436 = vpop.f32.mrf.mxu0
      %v1437 = vpop.f32.mrf.mxu0
      %v1438 = vadd.f32 %v1341, %v1437
      %v1439 = vpop.f32.mrf.mxu0
      %1440 = vmatprep.mubr.bf16.mxu0 %v707
      %1441 = vmatmul.mubr.bf16.gmra.mxu0 %v706
      %v1442 = vpop.f32.mrf.mxu0
      %v1443 = vadd.f32 %v1346, %v1442
      %v1444 = vpop.f32.mrf.mxu0
      %v1445 = vpop.f32.mrf.mxu0
      %v1446 = vadd.f32 %v1349, %v1445
      %v1447 = vpop.f32.mrf.mxu0
      %1448 = vmatprep.mubr.bf16.mxu0 %v715
      %1449 = vmatmul.mubr.bf16.gmra.mxu0 %v714
      %v1450 = vpop.f32.mrf.mxu0
      %v1451 = vadd.f32 %v1354, %v1450
      %v1452 = vpop.f32.mrf.mxu0
      %v1453 = vpop.f32.mrf.mxu0
      %v1454 = vadd.f32 %v1357, %v1453
      %v1455 = vpop.f32.mrf.mxu0
      %1456 = vmatprep.mubr.bf16.mxu0 %v723
      %1457 = vmatmul.mubr.bf16.gmra.mxu0 %v722
      %v1458 = vpop.f32.mrf.mxu0
      %v1459 = vadd.f32 %v1362, %v1458
      %v1460 = vpop.f32.mrf.mxu0
      %v1461 = vpop.f32.mrf.mxu0
      %v1462 = vadd.f32 %v1365, %v1461
      %v1463 = vpop.f32.mrf.mxu0
      %1464 = vmatprep.mubr.bf16.mxu0 %v731
      %1465 = vmatmul.mubr.bf16.gmra.mxu0 %v730
      %v1466 = vpop.f32.mrf.mxu0
      %v1467 = vadd.f32 %v1370, %v1466
      %v1468 = vpop.f32.mrf.mxu0
      %v1469 = vpop.f32.mrf.mxu0
      %v1470 = vadd.f32 %v1373, %v1469
      %v1471 = vpop.f32.mrf.mxu0
      %1472 = vmatprep.mubr.bf16.mxu0 %v739
      %1473 = vmatmul.mubr.bf16.gmra.mxu0 %v738
      %v1474 = vpop.f32.mrf.mxu0
      %v1475 = vadd.f32 %v1378, %v1474
      %v1476 = vpop.f32.mrf.mxu0
      %v1477 = vpop.f32.mrf.mxu0
      %v1478 = vadd.f32 %v1381, %v1477
      %v1479 = vpop.f32.mrf.mxu0
      %1480 = vdwg.mxu0
      %1481 = vmatprep.subr.bf16.mxu0 0
      %1482 = vmatpush1.bf16.msra.mxu0 %v1117
      %1483 = vmatprep.subr.bf16.mxu0 0
      %1484 = vmatpush1.bf16.msra.mxu0 %v1116
      %1485 = vmatprep.subr.bf16.mxu0 0
      %1486 = vmatpush1.bf16.msra.mxu0 %v1115
      %1487 = vmatprep.subr.bf16.mxu0 0
      %1488 = vmatpush1.bf16.msra.mxu0 %v1114
      %1489 = vmatprep.subr.bf16.mxu0 0
      %1490 = vmatpush1.bf16.msra.mxu0 %v1113
      %1491 = vmatprep.subr.bf16.mxu0 0
      %1492 = vmatpush1.bf16.msra.mxu0 %v1112
      %1493 = vmatprep.subr.bf16.mxu0 0
      %1494 = vmatpush1.bf16.msra.mxu0 %v1111
      %1495 = vmatprep.subr.bf16.mxu0 0
      %1496 = vmatpush1.bf16.msra.mxu0 %v1110
      %1497 = vmatprep.subr.bf16.mxu0 0
      %1498 = vmatpush2.bf16.msra.mxu0 %v1125
      %1499 = vmatprep.subr.bf16.mxu0 0
      %1500 = vmatpush2.bf16.msra.mxu0 %v1124
      %1501 = vmatprep.subr.bf16.mxu0 0
      %1502 = vmatpush2.bf16.msra.mxu0 %v1123
      %1503 = vmatprep.subr.bf16.mxu0 0
      %1504 = vmatpush2.bf16.msra.mxu0 %v1122
      %1505 = vmatprep.subr.bf16.mxu0 0
      %1506 = vmatpush2.bf16.msra.mxu0 %v1121
      %1507 = vmatprep.subr.bf16.mxu0 0
      %1508 = vmatpush2.bf16.msra.mxu0 %v1120
      %1509 = vmatprep.subr.bf16.mxu0 0
      %1510 = vmatpush2.bf16.msra.mxu0 %v1119
      %1511 = vmatprep.subr.bf16.mxu0 0
      %1512 = vmatpush2.bf16.msra.mxu0 %v1118
      %1513 = vmatprep.mubr.bf16.mxu0 %v685
      %1514 = vmatmul.mubr.bf16.gmra.mxu0 %v684
      %v1515 = vpop.f32.mrf.mxu0
      %v1516 = vadd.f32 %v1419, %v1515
      %v1517 = vpop.f32.mrf.mxu0
      %v1518 = vpop.f32.mrf.mxu0
      %v1519 = vadd.f32 %v1422, %v1518
      %v1520 = vpop.f32.mrf.mxu0
      %1521 = vmatprep.mubr.bf16.mxu0 %v693
      %1522 = vmatmul.mubr.bf16.gmra.mxu0 %v692
      %v1523 = vpop.f32.mrf.mxu0
      %v1524 = vadd.f32 %v1427, %v1523
      %v1525 = vpop.f32.mrf.mxu0
      %v1526 = vpop.f32.mrf.mxu0
      %v1527 = vadd.f32 %v1430, %v1526
      %v1528 = vpop.f32.mrf.mxu0
      %1529 = vmatprep.mubr.bf16.mxu0 %v701
      %1530 = vmatmul.mubr.bf16.gmra.mxu0 %v700
      %v1531 = vpop.f32.mrf.mxu0
      %v1532 = vadd.f32 %v1435, %v1531
      %v1533 = vpop.f32.mrf.mxu0
      %v1534 = vpop.f32.mrf.mxu0
      %v1535 = vadd.f32 %v1438, %v1534
      %v1536 = vpop.f32.mrf.mxu0
      %1537 = vmatprep.mubr.bf16.mxu0 %v709
      %1538 = vmatmul.mubr.bf16.gmra.mxu0 %v708
      %v1539 = vpop.f32.mrf.mxu0
      %v1540 = vadd.f32 %v1443, %v1539
      %v1541 = vpop.f32.mrf.mxu0
      %v1542 = vpop.f32.mrf.mxu0
      %v1543 = vadd.f32 %v1446, %v1542
      %v1544 = vpop.f32.mrf.mxu0
      %1545 = vmatprep.mubr.bf16.mxu0 %v717
      %1546 = vmatmul.mubr.bf16.gmra.mxu0 %v716
      %v1547 = vpop.f32.mrf.mxu0
      %v1548 = vadd.f32 %v1451, %v1547
      %v1549 = vpop.f32.mrf.mxu0
      %v1550 = vpop.f32.mrf.mxu0
      %v1551 = vadd.f32 %v1454, %v1550
      %v1552 = vpop.f32.mrf.mxu0
      %1553 = vmatprep.mubr.bf16.mxu0 %v725
      %1554 = vmatmul.mubr.bf16.gmra.mxu0 %v724
      %v1555 = vpop.f32.mrf.mxu0
      %v1556 = vadd.f32 %v1459, %v1555
      %v1557 = vpop.f32.mrf.mxu0
      %v1558 = vpop.f32.mrf.mxu0
      %v1559 = vadd.f32 %v1462, %v1558
      %v1560 = vpop.f32.mrf.mxu0
      %1561 = vmatprep.mubr.bf16.mxu0 %v733
      %1562 = vmatmul.mubr.bf16.gmra.mxu0 %v732
      %v1563 = vpop.f32.mrf.mxu0
      %v1564 = vadd.f32 %v1467, %v1563
      %v1565 = vpop.f32.mrf.mxu0
      %v1566 = vpop.f32.mrf.mxu0
      %v1567 = vadd.f32 %v1470, %v1566
      %v1568 = vpop.f32.mrf.mxu0
      %1569 = vmatprep.mubr.bf16.mxu0 %v741
      %1570 = vmatmul.mubr.bf16.gmra.mxu0 %v740
      %v1571 = vpop.f32.mrf.mxu0
      %v1572 = vadd.f32 %v1475, %v1571
      %v1573 = vpop.f32.mrf.mxu0
      %v1574 = vpop.f32.mrf.mxu0
      %v1575 = vadd.f32 %v1478, %v1574
      %v1576 = vpop.f32.mrf.mxu0
      %1577 = vdwg.mxu0
      %1578 = vst [vmem:[%s279] sm:$0xff] %v1516
      %1579 = vst [vmem:[%s279 + $0x8] sm:$0xff] %v1519
      %1580 = vst [vmem:[%s279 + $0x10] sm:$0xff] %v1524
      %1581 = vst [vmem:[%s279 + $0x18] sm:$0xff] %v1527
      %1582 = vst [vmem:[%s279 + $0x20] sm:$0xff] %v1532
      %1583 = vst [vmem:[%s279 + $0x28] sm:$0xff] %v1535
      %1584 = vst [vmem:[%s279 + $0x30] sm:$0xff] %v1540
      %1585 = vst [vmem:[%s279 + $0x38] sm:$0xff] %v1543
      %1586 = vst [vmem:[%s279 + $0x40] sm:$0xff] %v1548
      %1587 = vst [vmem:[%s279 + $0x48] sm:$0xff] %v1551
      %1588 = vst [vmem:[%s279 + $0x50] sm:$0xff] %v1556
      %1589 = vst [vmem:[%s279 + $0x58] sm:$0xff] %v1559
      %1590 = vst [vmem:[%s279 + $0x60] sm:$0xff] %v1564
      %1591 = vst [vmem:[%s279 + $0x68] sm:$0xff] %v1567
      %1592 = vst [vmem:[%s279 + $0x70] sm:$0xff] %v1572
      %1593 = vst [vmem:[%s279 + $0x78] sm:$0xff] %v1575
      %v1594 = vadd.f32 %v1516, %v1519
      %v1595 = vadd.f32 %v1594, %v1524
      %v1596 = vadd.f32 %v1595, %v1527
      %v1597 = vadd.f32 %v1596, %v1532
      %v1598 = vadd.f32 %v1597, %v1535
      %v1599 = vadd.f32 %v1598, %v1540
      %v1600 = vadd.f32 %v1599, %v1543
      %v1601 = vadd.f32 %v1600, %v1548
      %v1602 = vadd.f32 %v1601, %v1551
      %v1603 = vadd.f32 %v1602, %v1556
      %v1604 = vadd.f32 %v1603, %v1559
      %v1605 = vadd.f32 %v1604, %v1564
      %v1606 = vadd.f32 %v1605, %v1567
      %v1607 = vadd.f32 %v1606, %v1572
      %v1608 = vadd.f32 %v1607, %v1575
      %v1609 = vrot.slane %v1608, 4
      %v1610 = vadd.f32 %v1608, %v1609
      %v1611 = vrot.slane %v1610, 2
      %v1612 = vadd.f32 %v1610, %v1611
      %v1613 = vrot.slane %v1612, 1
      %v1614 = vadd.f32 %v1612, %v1613
      %v1615 = vmul.f32 %v1516, %v1516
      %v1616 = vmul.f32 %v1519, %v1519
      %v1617 = vmul.f32 %v1524, %v1524
      %v1618 = vmul.f32 %v1527, %v1527
      %v1619 = vmul.f32 %v1532, %v1532
      %v1620 = vmul.f32 %v1535, %v1535
      %v1621 = vmul.f32 %v1540, %v1540
      %v1622 = vmul.f32 %v1543, %v1543
      %v1623 = vmul.f32 %v1548, %v1548
      %v1624 = vmul.f32 %v1551, %v1551
      %v1625 = vmul.f32 %v1556, %v1556
      %v1626 = vmul.f32 %v1559, %v1559
      %v1627 = vmul.f32 %v1564, %v1564
      %v1628 = vmul.f32 %v1567, %v1567
      %v1629 = vmul.f32 %v1572, %v1572
      %v1630 = vmul.f32 %v1575, %v1575
      %v1631 = vadd.f32 %v1615, %v1616
      %v1632 = vadd.f32 %v1631, %v1617
      %v1633 = vadd.f32 %v1632, %v1618
      %v1634 = vadd.f32 %v1633, %v1619
      %v1635 = vadd.f32 %v1634, %v1620
      %v1636 = vadd.f32 %v1635, %v1621
      %v1637 = vadd.f32 %v1636, %v1622
      %v1638 = vadd.f32 %v1637, %v1623
      %v1639 = vadd.f32 %v1638, %v1624
      %v1640 = vadd.f32 %v1639, %v1625
      %v1641 = vadd.f32 %v1640, %v1626
      %v1642 = vadd.f32 %v1641, %v1627
      %v1643 = vadd.f32 %v1642, %v1628
      %v1644 = vadd.f32 %v1643, %v1629
      %v1645 = vadd.f32 %v1644, %v1630
      %v1646 = vrot.slane %v1645, 4
      %v1647 = vadd.f32 %v1645, %v1646
      %v1648 = vrot.slane %v1647, 2
      %v1649 = vadd.f32 %v1647, %v1648
      %v1650 = vrot.slane %v1649, 1
      %v1651 = vadd.f32 %v1649, %v1650
      %1652 = vst [vmem:[%s286] sm:$0x1] %v1614
      %1653 = vst [vmem:[%s292] sm:$0x1] %v1651
      %s1654 = smul.u32 16, %s21
      %p1655 = scmp.lt.s32.totalorder %s20, 3
      %s1656 = scalar_select %p1655, %s20, 3
      %p1657 = scmp.lt.s32.totalorder %s1654, 15
      %s1658 = scalar_select %p1657, %s1654, 15
      %s1659 = smul.addr %s1656, 16
      %s1660 = sadd.s32 %s1658, %s1659
      %s1661 = smul.addr %s1660, 8
      %s1662 = scalar_lea.vmem %s2, %s1661
      %p1663 = scmp.lt.s32.totalorder %s20, 3
      %s1664 = scalar_select %p1663, %s20, 3
      %p1665 = scmp.lt.s32.totalorder %s21, 0
      %s1666 = scalar_select %p1665, %s21, 0
      %s1667 = sadd.s32 %s1666, %s1664
      %s1668 = scalar_lea.vmem %s3, %s1667
      %p1669 = scmp.lt.s32.totalorder %s20, 3
      %s1670 = scalar_select %p1669, %s20, 3
      %p1671 = scmp.lt.s32.totalorder %s21, 0
      %s1672 = scalar_select %p1671, %s21, 0
      %s1673 = sadd.s32 %s1672, %s1670
      %s1674 = scalar_lea.vmem %s4, %s1673
      // Predicated region
      $region29: #{generator_forward.11} parent=27 // pred_check
        %p1675 = pneg %p102
      $region30: #{generator_forward.11} parent=27 // pred_check_branch
        %1677 = sbr.rel (%p1675) target = $region32
      $region31: #{generator_forward.11} parent=27 // pred_region
        %s1678 = smul.u32 16, %s21
      $region32: #{generator_forward.11} parent=27 // pred_fallthru
        _
      // Predicated region
      $region33: #{generator_forward.11} parent=27 // pred_check
        %p1679 = pneg %p130
      $region34: #{generator_forward.11} parent=27 // pred_check_branch
        %1681 = sbr.rel (%p1679) target = $region36
      $region35: #{generator_forward.11} parent=27 // pred_region
        _
      $region36: #{generator_forward.11} parent=27 // pred_fallthru
        _
      // Predicated region
      $region37: #{generator_forward.11} parent=27 // pred_check
        %p1682 = pneg %p158
      $region38: #{generator_forward.11} parent=27 // pred_check_branch
        %1684 = sbr.rel (%p1682) target = $region40
      $region39: #{generator_forward.11} parent=27 // pred_region
        _
      $region40: #{generator_forward.11} parent=27 // pred_fallthru
        _
    $region28: #{generator_forward.11} parent=5 // pred_fallthru
      _
    %p1685 = scmp.le.s32.totalorder 2, %s11
    // Predicated region
    $region41: #{generator_forward.11} parent=5 // pred_check
      %p1686 = pneg %p1685
    $region42: #{generator_forward.11} parent=5 // pred_check_branch
      %1688 = sbr.rel (%p1686) target = $region44
    $region43: #{generator_forward.11} parent=5 // pred_region
      %s1689 = ssub.s32 %s11, 2
      // Predicated region
      $region45: #{generator_forward.11} parent=43 // pred_check
        %p1690 = pneg %p108
      $region46: #{generator_forward.11} parent=43 // pred_check_branch
        %1692 = sbr.rel (%p1690) target = $region48
      $region47: #{generator_forward.11} parent=43 // pred_region
        %s1693 = smul.u32 16, %s23
        %p1694 = scmp.lt.s32.totalorder %s22, 3
        %s1695 = scalar_select %p1694, %s22, 3
        %p1696 = scmp.lt.s32.totalorder %s1693, 15
        %s1697 = scalar_select %p1696, %s1693, 15
        %s1698 = smul.addr %s1695, 16
        %s1699 = sadd.s32 %s1697, %s1698
        %s1700 = smul.addr %s1699, 8
        %s1701 = scalar_lea.vmem %s2, %s1700
      $region48: #{generator_forward.11} parent=43 // pred_fallthru
        _
      // Predicated region
      $region49: #{generator_forward.11} parent=43 // pred_check
        %p1702 = pneg %p136
      $region50: #{generator_forward.11} parent=43 // pred_check_branch
        %1704 = sbr.rel (%p1702) target = $region52
      $region51: #{generator_forward.11} parent=43 // pred_region
        %p1705 = scmp.lt.s32.totalorder %s22, 3
        %s1706 = scalar_select %p1705, %s22, 3
        %p1707 = scmp.lt.s32.totalorder %s23, 0
        %s1708 = scalar_select %p1707, %s23, 0
        %s1709 = sadd.s32 %s1708, %s1706
        %s1710 = scalar_lea.vmem %s3, %s1709
      $region52: #{generator_forward.11} parent=43 // pred_fallthru
        _
      // Predicated region
      $region53: #{generator_forward.11} parent=43 // pred_check
        %p1711 = pneg %p164
      $region54: #{generator_forward.11} parent=43 // pred_check_branch
        %1713 = sbr.rel (%p1711) target = $region56
      $region55: #{generator_forward.11} parent=43 // pred_region
        %p1714 = scmp.lt.s32.totalorder %s22, 3
        %s1715 = scalar_select %p1714, %s22, 3
        %p1716 = scmp.lt.s32.totalorder %s23, 0
        %s1717 = scalar_select %p1716, %s23, 0
        %s1718 = sadd.s32 %s1717, %s1715
        %s1719 = scalar_lea.vmem %s4, %s1718
      $region56: #{generator_forward.11} parent=43 // pred_fallthru
        _
    $region44: #{generator_forward.11} parent=5 // pred_fallthru
      _
  $region6: #{generator_forward.11} parent=0 // loop_footer
    %s15 = sadd.s32 1, %s11
  $region7: #{generator_forward.11} parent=0 // loop_footer_branch
    %10 = sbr.rel target = $region3
  $region8: #{generator_forward.11} parent=0 // loop_exit
    _

// kernel: generator_forward.12
$region0: #{generator_forward.12}
  #allocation0 [shape = 'u32[]', space=smem, size = 0x4, offset = 0x4, fixed_abs, tag = 'smem constant byte address 0x4 - core index']
  #allocation1 [shape = 'u32[144,128]{1,0:T(1,128)}', space=vmem, size = 0x12000, scoped, tag = 'internal scratch']
  %s0 = inlined_call_operand.vmem [shape: f32[4,128,128], index: 0, kind: input, shape index: {}]
  %s1 = inlined_call_operand.vmem [shape: f32[1,1,128], index: 1, kind: input, shape index: {}]
  %s2 = inlined_call_operand.vmem [shape: f32[1,1,128], index: 2, kind: input, shape index: {}]
  %s3 = inlined_call_operand.vmem [shape: bf16[4,128,128], index: 3, kind: output, shape index: {}]
  %s4 = sld [smem:[#allocation0]]
  $region45: #{generator_forward.12} parent=0
    _
  %s6 = ssub.s32 1, %s4
  %s7 = scalar_select 0, %s6, %s4
  loop: start=0, step=1, limit=6
  $region2: #{generator_forward.12} parent=0 // loop_pre_header
    _
  $region3: #{generator_forward.12} parent=0 // loop_header
    %s9 = sphi 0, %s13
    %p10 = scmp.ge.s32.totalorder %s9, 6
    %s16 = sphi 0, %s28
    %s17 = sphi 0, %s24
    %s18 = sphi 0, %s16
    %s19 = sphi 0, %s17
    %s20 = sphi 0, %s18
    %s21 = sphi 0, %s19
    %s33 = sphi 0, %s35
    %s36 = sphi 0, %s33
    %s37 = sphi 0, %s36
    %s53 = sphi 0, %s37
    %s57 = sphi 0, %s57
    %s59 = sphi 0, %s57
    %s60 = sphi 0, %s59
    %s74 = sphi 0, %s60
    %s78 = sphi 0, %s78
    %s80 = sphi 0, %s78
    %s81 = sphi 0, %s80
    %s95 = sphi 0, %s81
    %s103 = sphi 0, %s105
    %s106 = sphi 0, %s103
    %s107 = sphi 0, %s106
    %s123 = sphi 0, %s107
  $region4: #{generator_forward.12} parent=0 // loop_header_branch
    %12 = sbr.rel (%p10) target = $region8
  $region5: #{generator_forward.12} parent=0 // loop_body
    %s14 = ssub.s32 %s9, 1
    %s15 = ssub.s32 %s9, 2
    %s22 = sadd.s32 1, %s17
    %p23 = scmp.ge.s32.totalorder %s22, 1
    %s24 = scalar_select %p23, 0, %s22
    %s25 = sadd.s32 1, %s16
    %s26 = scalar_select %p23, %s25, %s16
    %p27 = scmp.ge.s32.totalorder %s26, 4
    %s28 = scalar_select %p27, 0, %s26
    %s29 = ssub.s32 %s16, %s28
    %s30 = ssub.s32 %s17, %s24
    %s31 = sor.u32 %s29, %s30
    %p32 = scmp.eq.s32.totalorder %s31, 0
    %s34 = sadd.s32 %s33, 1
    %s35 = scalar_select %p32, %s33, %s34
    %p38 = pneg %p32
    %p39 = scmp.eq.s32.totalorder %s9, 3
    %p40 = por %p38, %p39
    %p41 = scmp.ne.s32.totalorder %s33, %s36
    %p42 = scmp.eq.s32.totalorder %s9, 0
    %p43 = por %p41, %p42
    %p44 = scmp.ne.s32.totalorder %s33, %s36
    %p45 = scmp.eq.s32.totalorder %s14, 3
    %p46 = por %p44, %p45
    %p47 = scmp.ne.s32.totalorder %s36, %s37
    %p48 = scmp.eq.s32.totalorder %s14, 0
    %p49 = por %p47, %p48
    %p50 = scmp.ne.s32.totalorder %s36, %s37
    %p51 = scmp.eq.s32.totalorder %s15, 3
    %p52 = por %p50, %p51
    %p54 = scmp.ne.s32.totalorder %s37, %s53
    %p55 = scmp.eq.s32.totalorder %s15, 0
    %p56 = por %p54, %p55
    %s58 = sadd.s32 %s57, 1
    %p61 = scmp.eq.s32.totalorder %s9, 3
    %p62 = scmp.ne.s32.totalorder %s57, %s59
    %p63 = scmp.eq.s32.totalorder %s9, 0
    %p64 = por %p62, %p63
    %p65 = scmp.ne.s32.totalorder %s57, %s59
    %p66 = scmp.eq.s32.totalorder %s14, 3
    %p67 = por %p65, %p66
    %p68 = scmp.ne.s32.totalorder %s59, %s60
    %p69 = scmp.eq.s32.totalorder %s14, 0
    %p70 = por %p68, %p69
    %p71 = scmp.ne.s32.totalorder %s59, %s60
    %p72 = scmp.eq.s32.totalorder %s15, 3
    %p73 = por %p71, %p72
    %p75 = scmp.ne.s32.totalorder %s60, %s74
    %p76 = scmp.eq.s32.totalorder %s15, 0
    %p77 = por %p75, %p76
    %s79 = sadd.s32 %s78, 1
    %p82 = scmp.eq.s32.totalorder %s9, 3
    %p83 = scmp.ne.s32.totalorder %s78, %s80
    %p84 = scmp.eq.s32.totalorder %s9, 0
    %p85 = por %p83, %p84
    %p86 = scmp.ne.s32.totalorder %s78, %s80
    %p87 = scmp.eq.s32.totalorder %s14, 3
    %p88 = por %p86, %p87
    %p89 = scmp.ne.s32.totalorder %s80, %s81
    %p90 = scmp.eq.s32.totalorder %s14, 0
    %p91 = por %p89, %p90
    %p92 = scmp.ne.s32.totalorder %s80, %s81
    %p93 = scmp.eq.s32.totalorder %s15, 3
    %p94 = por %p92, %p93
    %p96 = scmp.ne.s32.totalorder %s81, %s95
    %p97 = scmp.eq.s32.totalorder %s15, 0
    %p98 = por %p96, %p97
    %s99 = ssub.s32 %s16, %s28
    %s100 = ssub.s32 %s17, %s24
    %s101 = sor.u32 %s99, %s100
    %p102 = scmp.eq.s32.totalorder %s101, 0
    %s104 = sadd.s32 %s103, 1
    %s105 = scalar_select %p102, %s103, %s104
    %p108 = pneg %p102
    %p109 = scmp.eq.s32.totalorder %s9, 3
    %p110 = por %p108, %p109
    %p111 = scmp.ne.s32.totalorder %s103, %s106
    %p112 = scmp.eq.s32.totalorder %s9, 0
    %p113 = por %p111, %p112
    %p114 = scmp.ne.s32.totalorder %s103, %s106
    %p115 = scmp.eq.s32.totalorder %s14, 3
    %p116 = por %p114, %p115
    %p117 = scmp.ne.s32.totalorder %s106, %s107
    %p118 = scmp.eq.s32.totalorder %s14, 0
    %p119 = por %p117, %p118
    %p120 = scmp.ne.s32.totalorder %s106, %s107
    %p121 = scmp.eq.s32.totalorder %s15, 3
    %p122 = por %p120, %p121
    %p124 = scmp.ne.s32.totalorder %s107, %s123
    %p125 = scmp.eq.s32.totalorder %s15, 0
    %p126 = por %p124, %p125
    %p127 = scmp.le.s32.totalorder 1, %s9
    %p128 = scmp.lt.s32.totalorder %s9, 5
    %p129 = pnand %p127, %p128
    %p130 = pneg %p129
    // Predicated region
    $region9: #{generator_forward.12} parent=5 // pred_check
      _
    $region10: #{generator_forward.12} parent=5 // pred_check_branch
      %132 = sbr.rel (%p129) target = $region12
    $region11: #{generator_forward.12} parent=5 // pred_region
      %s133 = ssub.s32 %s9, 1
      // Predicated region
      $region13: #{generator_forward.12} parent=11 // pred_check
        %p134 = pneg %p70
      $region14: #{generator_forward.12} parent=11 // pred_check_branch
        %136 = sbr.rel (%p134) target = $region16
      $region15: #{generator_forward.12} parent=11 // pred_region
        _
      $region16: #{generator_forward.12} parent=11 // pred_fallthru
        _
      // Predicated region
      $region17: #{generator_forward.12} parent=11 // pred_check
        %p137 = pneg %p91
      $region18: #{generator_forward.12} parent=11 // pred_check_branch
        %139 = sbr.rel (%p137) target = $region20
      $region19: #{generator_forward.12} parent=11 // pred_region
        _
      $region20: #{generator_forward.12} parent=11 // pred_fallthru
        _
    $region12: #{generator_forward.12} parent=5 // pred_fallthru
      _
    %p140 = scmp.lt.s32.totalorder %s9, 4
    // Predicated region
    $region21: #{generator_forward.12} parent=5 // pred_check
      %p141 = pneg %p140
    $region22: #{generator_forward.12} parent=5 // pred_check_branch
      %143 = sbr.rel (%p141) target = $region24
    $region23: #{generator_forward.12} parent=5 // pred_region
      // Predicated region
      $region25: #{generator_forward.12} parent=23 // pred_check
        %p144 = pneg %p43
      $region26: #{generator_forward.12} parent=23 // pred_check_branch
        %146 = sbr.rel (%p144) target = $region28
      $region27: #{generator_forward.12} parent=23 // pred_region
        %s147 = smul.u32 16, %s17
        %p148 = scmp.lt.s32.totalorder %s16, 3
        %s149 = scalar_select %p148, %s16, 3
        %p150 = scmp.lt.s32.totalorder %s147, 15
        %s151 = scalar_select %p150, %s147, 15
        %s152 = smul.addr %s149, 16
        %s153 = sadd.s32 %s151, %s152
        %s154 = smul.addr %s153, 8
        %s155 = scalar_lea.vmem %s0, %s154
        %s156 = smul.u32 16, %s17
      $region28: #{generator_forward.12} parent=23 // pred_fallthru
        _
    $region24: #{generator_forward.12} parent=5 // pred_fallthru
      _
    %p157 = scmp.le.s32.totalorder 1, %s9
    %p158 = scmp.lt.s32.totalorder %s9, 5
    %p159 = pnand %p157, %p158
    %p160 = pneg %p159
    // Predicated region
    $region29: #{generator_forward.12} parent=5 // pred_check
      _
    $region30: #{generator_forward.12} parent=5 // pred_check_branch
      %162 = sbr.rel (%p159) target = $region32
    $region31: #{generator_forward.12} parent=5 // pred_region
      %s163 = ssub.s32 %s9, 1
      %s164 = smul.u32 16, %s19
      %p165 = scmp.lt.s32.totalorder %s18, 3
      %s166 = scalar_select %p165, %s18, 3
      %p167 = scmp.lt.s32.totalorder %s164, 15
      %s168 = scalar_select %p167, %s164, 15
      %s169 = smul.addr %s166, 16
      %s170 = sadd.s32 %s168, %s169
      %s171 = smul.addr %s170, 8
      %s172 = scalar_lea.vmem %s0, %s171
      %p173 = pneg %p49
      %p174 = pneg %p46
      %p175 = pneg %p70
      %p176 = pneg %p67
      %p177 = pneg %p91
      %p178 = pneg %p88
      %p179 = pneg %p119
      %p180 = pneg %p116
      %s181 = smul.u32 16, %s19
      %p182 = scmp.lt.s32.totalorder %s18, 3
      %s183 = scalar_select %p182, %s18, 3
      %p184 = scmp.lt.s32.totalorder %s181, 15
      %s185 = scalar_select %p184, %s181, 15
      %s186 = smul.addr %s183, 16
      %s187 = sadd.s32 %s185, %s186
      %s188 = smul.addr %s187, 4
      %s189 = scalar_lea.vmem %s3, %s188
      %s190 = smul.u32 16, %s19
      %p191 = scmp.lt.s32.totalorder %s18, 3
      %s192 = scalar_select %p191, %s18, 3
      %p193 = scmp.lt.s32.totalorder %s190, 15
      %s194 = scalar_select %p193, %s190, 15
      %s195 = smul.addr %s192, 16
      %s196 = sadd.s32 %s194, %s195
      %s197 = smul.addr %s196, 8
      %s198 = scalar_lea.vmem %s0, %s197
      %s199 = smul.u32 16, %s19
      %s200 = smul.u32 16, %s19
      %p201 = scmp.lt.s32.totalorder %s18, 3
      %s202 = scalar_select %p201, %s18, 3
      %p203 = scmp.lt.s32.totalorder %s200, 15
      %s204 = scalar_select %p203, %s200, 15
      %s205 = smul.addr %s202, 16
      %s206 = sadd.s32 %s204, %s205
      %s207 = smul.addr %s206, 4
      %s208 = scalar_lea.vmem %s3, %s207
      %s209 = smul.u32 16, %s19
      %v210 = vld [vmem:[%s198] sm:$0xff]
      %v211 = vld [vmem:[%s198 + $0x8] sm:$0xff]
      %v212 = vld [vmem:[%s198 + $0x10] sm:$0xff]
      %v213 = vld [vmem:[%s198 + $0x18] sm:$0xff]
      %v214 = vld [vmem:[%s198 + $0x20] sm:$0xff]
      %v215 = vld [vmem:[%s198 + $0x28] sm:$0xff]
      %v216 = vld [vmem:[%s198 + $0x30] sm:$0xff]
      %v217 = vld [vmem:[%s198 + $0x38] sm:$0xff]
      %v218 = vld [vmem:[%s198 + $0x40] sm:$0xff]
      %v219 = vld [vmem:[%s198 + $0x48] sm:$0xff]
      %v220 = vld [vmem:[%s198 + $0x50] sm:$0xff]
      %v221 = vld [vmem:[%s198 + $0x58] sm:$0xff]
      %v222 = vld [vmem:[%s198 + $0x60] sm:$0xff]
      %v223 = vld [vmem:[%s198 + $0x68] sm:$0xff]
      %v224 = vld [vmem:[%s198 + $0x70] sm:$0xff]
      %v225 = vld [vmem:[%s198 + $0x78] sm:$0xff]
      %v226 = vld [vmem:[%s1] sm:$0x1]
      %v228 = vlaneseq
      %v229 = vshrl.u32 %v228, 7
      %v230 = vsub.s32 0, %v229
      %v231 = vrot.slane %v226, %v230
      %v233 = vmul.f32 %v210, %v231
      %v234 = vmul.f32 %v211, %v231
      %v235 = vmul.f32 %v212, %v231
      %v236 = vmul.f32 %v213, %v231
      %v237 = vmul.f32 %v214, %v231
      %v238 = vmul.f32 %v215, %v231
      %v239 = vmul.f32 %v216, %v231
      %v240 = vmul.f32 %v217, %v231
      %v241 = vmul.f32 %v218, %v231
      %v242 = vmul.f32 %v219, %v231
      %v243 = vmul.f32 %v220, %v231
      %v244 = vmul.f32 %v221, %v231
      %v245 = vmul.f32 %v222, %v231
      %v246 = vmul.f32 %v223, %v231
      %v247 = vmul.f32 %v224, %v231
      %v248 = vmul.f32 %v225, %v231
      %v249 = vld [vmem:[%s2] sm:$0x1]
      %v251 = vlaneseq
      %v252 = vshrl.u32 %v251, 7
      %v253 = vsub.s32 0, %v252
      %v254 = vrot.slane %v249, %v253
      %v256 = vadd.f32 %v233, %v254
      %v257 = vadd.f32 %v234, %v254
      %v258 = vadd.f32 %v235, %v254
      %v259 = vadd.f32 %v236, %v254
      %v260 = vadd.f32 %v237, %v254
      %v261 = vadd.f32 %v238, %v254
      %v262 = vadd.f32 %v239, %v254
      %v263 = vadd.f32 %v240, %v254
      %v264 = vadd.f32 %v241, %v254
      %v265 = vadd.f32 %v242, %v254
      %v266 = vadd.f32 %v243, %v254
      %v267 = vadd.f32 %v244, %v254
      %v268 = vadd.f32 %v245, %v254
      %v269 = vadd.f32 %v246, %v254
      %v270 = vadd.f32 %v247, %v254
      %v271 = vadd.f32 %v248, %v254
      %v272 = vmax.f32 %v256, 0.0
      %v273 = vmax.f32 %v257, 0.0
      %v274 = vmax.f32 %v258, 0.0
      %v275 = vmax.f32 %v259, 0.0
      %v276 = vmax.f32 %v260, 0.0
      %v277 = vmax.f32 %v261, 0.0
      %v278 = vmax.f32 %v262, 0.0
      %v279 = vmax.f32 %v263, 0.0
      %v280 = vmax.f32 %v264, 0.0
      %v281 = vmax.f32 %v265, 0.0
      %v282 = vmax.f32 %v266, 0.0
      %v283 = vmax.f32 %v267, 0.0
      %v284 = vmax.f32 %v268, 0.0
      %v285 = vmax.f32 %v269, 0.0
      %v286 = vmax.f32 %v270, 0.0
      %v287 = vmax.f32 %v271, 0.0
      %v288 = vpack.c.bf16 %v273, %v272
      %v289 = vpack.c.bf16 %v275, %v274
      %v290 = vpack.c.bf16 %v277, %v276
      %v291 = vpack.c.bf16 %v279, %v278
      %v292 = vpack.c.bf16 %v281, %v280
      %v293 = vpack.c.bf16 %v283, %v282
      %v294 = vpack.c.bf16 %v285, %v284
      %v295 = vpack.c.bf16 %v287, %v286
      %v304 = vunpack.c.l.b16 %v288
      %v305 = vunpack.c.h.b16 %v288
      %v306 = vunpack.c.l.b16 %v289
      %v307 = vunpack.c.h.b16 %v289
      %v308 = vunpack.c.l.b16 %v290
      %v309 = vunpack.c.h.b16 %v290
      %v310 = vunpack.c.l.b16 %v291
      %v311 = vunpack.c.h.b16 %v291
      %v312 = vunpack.c.l.b16 %v292
      %v313 = vunpack.c.h.b16 %v292
      %v314 = vunpack.c.l.b16 %v293
      %v315 = vunpack.c.h.b16 %v293
      %v316 = vunpack.c.l.b16 %v294
      %v317 = vunpack.c.h.b16 %v294
      %v318 = vunpack.c.l.b16 %v295
      %v319 = vunpack.c.h.b16 %v295
      %v320 = vpack.c.b16 %v304, %v304
      %v321 = vpack.c.b16 %v305, %v305
      %v322 = vpack.c.b16 %v306, %v306
      %v323 = vpack.c.b16 %v307, %v307
      %v324 = vpack.c.b16 %v308, %v308
      %v325 = vpack.c.b16 %v309, %v309
      %v326 = vpack.c.b16 %v310, %v310
      %v327 = vpack.c.b16 %v311, %v311
      %v328 = vpack.c.b16 %v312, %v312
      %v329 = vpack.c.b16 %v313, %v313
      %v330 = vpack.c.b16 %v314, %v314
      %v331 = vpack.c.b16 %v315, %v315
      %v332 = vpack.c.b16 %v316, %v316
      %v333 = vpack.c.b16 %v317, %v317
      %v334 = vpack.c.b16 %v318, %v318
      %v335 = vpack.c.b16 %v319, %v319
      %352 = vst [vmem:[%s208] sm:$0xf] %v320
      %353 = vst [vmem:[%s208 + $0x4] sm:$0xf] %v321
      %354 = vst [vmem:[%s208 + $0x8] sm:$0xf] %v322
      %355 = vst [vmem:[%s208 + $0xc] sm:$0xf] %v323
      %356 = vst [vmem:[%s208 + $0x10] sm:$0xf] %v324
      %357 = vst [vmem:[%s208 + $0x14] sm:$0xf] %v325
      %358 = vst [vmem:[%s208 + $0x18] sm:$0xf] %v326
      %359 = vst [vmem:[%s208 + $0x1c] sm:$0xf] %v327
      %360 = vst [vmem:[%s208 + $0x20] sm:$0xf] %v328
      %361 = vst [vmem:[%s208 + $0x24] sm:$0xf] %v329
      %362 = vst [vmem:[%s208 + $0x28] sm:$0xf] %v330
      %363 = vst [vmem:[%s208 + $0x2c] sm:$0xf] %v331
      %364 = vst [vmem:[%s208 + $0x30] sm:$0xf] %v332
      %365 = vst [vmem:[%s208 + $0x34] sm:$0xf] %v333
      %366 = vst [vmem:[%s208 + $0x38] sm:$0xf] %v334
      %367 = vst [vmem:[%s208 + $0x3c] sm:$0xf] %v335
      %s368 = smul.u32 16, %s19
      %p369 = scmp.lt.s32.totalorder %s18, 3
      %s370 = scalar_select %p369, %s18, 3
      %p371 = scmp.lt.s32.totalorder %s368, 15
      %s372 = scalar_select %p371, %s368, 15
      %s373 = smul.addr %s370, 16
      %s374 = sadd.s32 %s372, %s373
      %s375 = smul.addr %s374, 4
      %s376 = scalar_lea.vmem %s3, %s375
      // Predicated region
      $region33: #{generator_forward.12} parent=31 // pred_check
        %p377 = pneg %p116
      $region34: #{generator_forward.12} parent=31 // pred_check_branch
        %379 = sbr.rel (%p377) target = $region36
      $region35: #{generator_forward.12} parent=31 // pred_region
        %s380 = smul.u32 16, %s19
      $region36: #{generator_forward.12} parent=31 // pred_fallthru
        _
    $region32: #{generator_forward.12} parent=5 // pred_fallthru
      _
    %p381 = scmp.le.s32.totalorder 2, %s9
    // Predicated region
    $region37: #{generator_forward.12} parent=5 // pred_check
      %p382 = pneg %p381
    $region38: #{generator_forward.12} parent=5 // pred_check_branch
      %384 = sbr.rel (%p382) target = $region40
    $region39: #{generator_forward.12} parent=5 // pred_region
      %s385 = ssub.s32 %s9, 2
      // Predicated region
      $region41: #{generator_forward.12} parent=39 // pred_check
        %p386 = pneg %p122
      $region42: #{generator_forward.12} parent=39 // pred_check_branch
        %388 = sbr.rel (%p386) target = $region44
      $region43: #{generator_forward.12} parent=39 // pred_region
        %s389 = smul.u32 16, %s21
        %p390 = scmp.lt.s32.totalorder %s20, 3
        %s391 = scalar_select %p390, %s20, 3
        %p392 = scmp.lt.s32.totalorder %s389, 15
        %s393 = scalar_select %p392, %s389, 15
        %s394 = smul.addr %s391, 16
        %s395 = sadd.s32 %s393, %s394
        %s396 = smul.addr %s395, 4
        %s397 = scalar_lea.vmem %s3, %s396
      $region44: #{generator_forward.12} parent=39 // pred_fallthru
        _
    $region40: #{generator_forward.12} parent=5 // pred_fallthru
      _
  $region6: #{generator_forward.12} parent=0 // loop_footer
    %s13 = sadd.s32 1, %s9
  $region7: #{generator_forward.12} parent=0 // loop_footer_branch
    %8 = sbr.rel target = $region3
  $region8: #{generator_forward.12} parent=0 // loop_exit
    _

// kernel: generator_forward.13
$region0: #{generator_forward.13}
  #allocation0 [shape = 'u32[]', space=smem, size = 0x4, offset = 0x4, fixed_abs, tag = 'smem constant byte address 0x4 - core index']
  #allocation1 [shape = 'u32[144,128]{1,0:T(1,128)}', space=vmem, size = 0x12000, scoped, tag = 'internal scratch']
  %s0 = inlined_call_operand.vmem [shape: bf16[4,512,512], index: 0, kind: input, shape index: {}]
  %s1 = inlined_call_operand.vmem [shape: bf16[4,512,128], index: 1, kind: input, shape index: {}]
  %s2 = inlined_call_operand.vmem [shape: f32[4,512,128], index: 2, kind: output, shape index: {}]
  %s3 = sld [smem:[#allocation0]]
  $region41: #{generator_forward.13} parent=0
    _
  %s5 = ssub.s32 1, %s3
  %s6 = scalar_select 0, %s5, %s3
  loop: start=0, step=1, limit=6
  $region2: #{generator_forward.13} parent=0 // loop_pre_header
    _
  $region3: #{generator_forward.13} parent=0 // loop_header
    %s8 = sphi 0, %s12
    %p9 = scmp.ge.s32.totalorder %s8, 6
    %s15 = sphi 0, %s27
    %s16 = sphi 0, %s23
    %s17 = sphi 0, %s15
    %s18 = sphi 0, %s16
    %s19 = sphi 0, %s17
    %s20 = sphi 0, %s18
    %s32 = sphi 0, %s34
    %s35 = sphi 0, %s32
    %s36 = sphi 0, %s35
    %s52 = sphi 0, %s36
    %s58 = sphi 0, %s60
    %s61 = sphi 0, %s58
    %s62 = sphi 0, %s61
    %s78 = sphi 0, %s62
    %s86 = sphi 0, %s88
    %s89 = sphi 0, %s86
    %s90 = sphi 0, %s89
    %s106 = sphi 0, %s90
  $region4: #{generator_forward.13} parent=0 // loop_header_branch
    %11 = sbr.rel (%p9) target = $region8
  $region5: #{generator_forward.13} parent=0 // loop_body
    %s13 = ssub.s32 %s8, 1
    %s14 = ssub.s32 %s8, 2
    %s21 = sadd.s32 1, %s16
    %p22 = scmp.ge.s32.totalorder %s21, 1
    %s23 = scalar_select %p22, 0, %s21
    %s24 = sadd.s32 1, %s15
    %s25 = scalar_select %p22, %s24, %s15
    %p26 = scmp.ge.s32.totalorder %s25, 4
    %s27 = scalar_select %p26, 0, %s25
    %s28 = ssub.s32 %s15, %s27
    %s29 = ssub.s32 %s16, %s23
    %s30 = sor.u32 %s28, %s29
    %p31 = scmp.eq.s32.totalorder %s30, 0
    %s33 = sadd.s32 %s32, 1
    %s34 = scalar_select %p31, %s32, %s33
    %p37 = pneg %p31
    %p38 = scmp.eq.s32.totalorder %s8, 3
    %p39 = por %p37, %p38
    %p40 = scmp.ne.s32.totalorder %s32, %s35
    %p41 = scmp.eq.s32.totalorder %s8, 0
    %p42 = por %p40, %p41
    %p43 = scmp.ne.s32.totalorder %s32, %s35
    %p44 = scmp.eq.s32.totalorder %s13, 3
    %p45 = por %p43, %p44
    %p46 = scmp.ne.s32.totalorder %s35, %s36
    %p47 = scmp.eq.s32.totalorder %s13, 0
    %p48 = por %p46, %p47
    %p49 = scmp.ne.s32.totalorder %s35, %s36
    %p50 = scmp.eq.s32.totalorder %s14, 3
    %p51 = por %p49, %p50
    %p53 = scmp.ne.s32.totalorder %s36, %s52
    %p54 = scmp.eq.s32.totalorder %s14, 0
    %p55 = por %p53, %p54
    %s56 = ssub.s32 %s15, %s27
    %p57 = scmp.eq.s32.totalorder %s56, 0
    %s59 = sadd.s32 %s58, 1
    %s60 = scalar_select %p57, %s58, %s59
    %p63 = pneg %p57
    %p64 = scmp.eq.s32.totalorder %s8, 3
    %p65 = por %p63, %p64
    %p66 = scmp.ne.s32.totalorder %s58, %s61
    %p67 = scmp.eq.s32.totalorder %s8, 0
    %p68 = por %p66, %p67
    %p69 = scmp.ne.s32.totalorder %s58, %s61
    %p70 = scmp.eq.s32.totalorder %s13, 3
    %p71 = por %p69, %p70
    %p72 = scmp.ne.s32.totalorder %s61, %s62
    %p73 = scmp.eq.s32.totalorder %s13, 0
    %p74 = por %p72, %p73
    %p75 = scmp.ne.s32.totalorder %s61, %s62
    %p76 = scmp.eq.s32.totalorder %s14, 3
    %p77 = por %p75, %p76
    %p79 = scmp.ne.s32.totalorder %s62, %s78
    %p80 = scmp.eq.s32.totalorder %s14, 0
    %p81 = por %p79, %p80
    %s82 = ssub.s32 %s15, %s27
    %s83 = ssub.s32 %s16, %s23
    %s84 = sor.u32 %s82, %s83
    %p85 = scmp.eq.s32.totalorder %s84, 0
    %s87 = sadd.s32 %s86, 1
    %s88 = scalar_select %p85, %s86, %s87
    %p91 = pneg %p85
    %p92 = scmp.eq.s32.totalorder %s8, 3
    %p93 = por %p91, %p92
    %p94 = scmp.ne.s32.totalorder %s86, %s89
    %p95 = scmp.eq.s32.totalorder %s8, 0
    %p96 = por %p94, %p95
    %p97 = scmp.ne.s32.totalorder %s86, %s89
    %p98 = scmp.eq.s32.totalorder %s13, 3
    %p99 = por %p97, %p98
    %p100 = scmp.ne.s32.totalorder %s89, %s90
    %p101 = scmp.eq.s32.totalorder %s13, 0
    %p102 = por %p100, %p101
    %p103 = scmp.ne.s32.totalorder %s89, %s90
    %p104 = scmp.eq.s32.totalorder %s14, 3
    %p105 = por %p103, %p104
    %p107 = scmp.ne.s32.totalorder %s90, %s106
    %p108 = scmp.eq.s32.totalorder %s14, 0
    %p109 = por %p107, %p108
    %p110 = scmp.le.s32.totalorder 1, %s8
    %p111 = scmp.lt.s32.totalorder %s8, 5
    %p112 = pnand %p110, %p111
    %p113 = pneg %p112
    // Predicated region
    $region9: #{generator_forward.13} parent=5 // pred_check
      _
    $region10: #{generator_forward.13} parent=5 // pred_check_branch
      %115 = sbr.rel (%p112) target = $region12
    $region11: #{generator_forward.13} parent=5 // pred_region
      %s116 = ssub.s32 %s8, 1
    $region12: #{generator_forward.13} parent=5 // pred_fallthru
      _
    %p117 = scmp.lt.s32.totalorder %s8, 4
    // Predicated region
    $region13: #{generator_forward.13} parent=5 // pred_check
      %p118 = pneg %p117
    $region14: #{generator_forward.13} parent=5 // pred_check_branch
      %120 = sbr.rel (%p118) target = $region16
    $region15: #{generator_forward.13} parent=5 // pred_region
      // Predicated region
      $region17: #{generator_forward.13} parent=15 // pred_check
        %p121 = pneg %p42
      $region18: #{generator_forward.13} parent=15 // pred_check_branch
        %123 = sbr.rel (%p121) target = $region20
      $region19: #{generator_forward.13} parent=15 // pred_region
        %s124 = smul.u32 64, %s16
        %p125 = scmp.lt.s32.totalorder %s15, 3
        %s126 = scalar_select %p125, %s15, 3
        %p127 = scmp.lt.s32.totalorder %s124, 63
        %s128 = scalar_select %p127, %s124, 63
        %s129 = smul.addr %s128, 4
        %s130 = smul.addr %s126, 256
        %s131 = sadd.s32 %s129, %s130
        %s132 = smul.addr %s131, 4
        %s133 = scalar_lea.vmem %s0, %s132
        %s134 = smul.u32 64, %s16
      $region20: #{generator_forward.13} parent=15 // pred_fallthru
        _
      // Predicated region
      $region21: #{generator_forward.13} parent=15 // pred_check
        %p135 = pneg %p68
      $region22: #{generator_forward.13} parent=15 // pred_check_branch
        %137 = sbr.rel (%p135) target = $region24
      $region23: #{generator_forward.13} parent=15 // pred_region
        %p138 = scmp.lt.s32.totalorder %s15, 3
        %s139 = scalar_select %p138, %s15, 3
        %s140 = smul.addr %s139, 64
        %s141 = smul.addr %s140, 4
        %s142 = scalar_lea.vmem %s1, %s141
      $region24: #{generator_forward.13} parent=15 // pred_fallthru
        _
    $region16: #{generator_forward.13} parent=5 // pred_fallthru
      _
    %p143 = scmp.le.s32.totalorder 1, %s8
    %p144 = scmp.lt.s32.totalorder %s8, 5
    %p145 = pnand %p143, %p144
    %p146 = pneg %p145
    // Predicated region
    $region25: #{generator_forward.13} parent=5 // pred_check
      _
    $region26: #{generator_forward.13} parent=5 // pred_check_branch
      %148 = sbr.rel (%p145) target = $region28
    $region27: #{generator_forward.13} parent=5 // pred_region
      %s149 = ssub.s32 %s8, 1
      %s150 = smul.u32 64, %s18
      %p151 = scmp.lt.s32.totalorder %s17, 3
      %s152 = scalar_select %p151, %s17, 3
      %p153 = scmp.lt.s32.totalorder %s150, 63
      %s154 = scalar_select %p153, %s150, 63
      %s155 = smul.addr %s154, 4
      %s156 = smul.addr %s152, 256
      %s157 = sadd.s32 %s155, %s156
      %s158 = smul.addr %s157, 4
      %s159 = scalar_lea.vmem %s0, %s158
      %p160 = pneg %p48
      %p161 = pneg %p45
      %p162 = scmp.lt.s32.totalorder %s17, 3
      %s163 = scalar_select %p162, %s17, 3
      %s164 = smul.addr %s163, 64
      %s165 = smul.addr %s164, 4
      %s166 = scalar_lea.vmem %s1, %s165
      %p167 = pneg %p74
      %p168 = pneg %p71
      %p169 = pneg %p102
      %p170 = pneg %p99
      %s171 = smul.u32 64, %s18
      %p172 = scmp.lt.s32.totalorder %s17, 3
      %s173 = scalar_select %p172, %s17, 3
      %p174 = scmp.lt.s32.totalorder %s171, 63
      %s175 = scalar_select %p174, %s171, 63
      %s176 = smul.addr %s173, 64
      %s177 = sadd.s32 %s175, %s176
      %s178 = smul.addr %s177, 8
      %s179 = scalar_lea.vmem %s2, %s178
      %s180 = smul.u32 64, %s18
      %p181 = scmp.lt.s32.totalorder %s17, 3
      %s182 = scalar_select %p181, %s17, 3
      %p183 = scmp.lt.s32.totalorder %s180, 63
      %s184 = scalar_select %p183, %s180, 63
      %s185 = smul.addr %s184, 4
      %s186 = smul.addr %s182, 256
      %s187 = sadd.s32 %s185, %s186
      %s188 = smul.addr %s187, 4
      %s189 = scalar_lea.vmem %s0, %s188
      %s190 = smul.u32 64, %s18
      %p191 = scmp.lt.s32.totalorder %s17, 3
      %s192 = scalar_select %p191, %s17, 3
      %s193 = smul.addr %s192, 64
      %s194 = smul.addr %s193, 4
      %s195 = scalar_lea.vmem %s1, %s194
      %s196 = smul.u32 64, %s18
      %p197 = scmp.lt.s32.totalorder %s17, 3
      %s198 = scalar_select %p197, %s17, 3
      %p199 = scmp.lt.s32.totalorder %s196, 63
      %s200 = scalar_select %p199, %s196, 63
      %s201 = smul.addr %s198, 64
      %s202 = sadd.s32 %s200, %s201
      %s203 = smul.addr %s202, 8
      %s204 = scalar_lea.vmem %s2, %s203
      %s205 = smul.u32 64, %s18
      %v207 = vld [vmem:[%s189] sm:$0xff]
      %v208 = vld [vmem:[%s189 + $0x8] sm:$0xff]
      %v209 = vld [vmem:[%s189 + $0x10] sm:$0xff]
      %v210 = vld [vmem:[%s189 + $0x18] sm:$0xff]
      %v211 = vld [vmem:[%s189 + $0x20] sm:$0xff]
      %v212 = vld [vmem:[%s189 + $0x28] sm:$0xff]
      %v213 = vld [vmem:[%s189 + $0x30] sm:$0xff]
      %v214 = vld [vmem:[%s189 + $0x38] sm:$0xff]
      %v215 = vld [vmem:[%s189 + $0x40] sm:$0xff]
      %v216 = vld [vmem:[%s189 + $0x48] sm:$0xff]
      %v217 = vld [vmem:[%s189 + $0x50] sm:$0xff]
      %v218 = vld [vmem:[%s189 + $0x58] sm:$0xff]
      %v219 = vld [vmem:[%s189 + $0x60] sm:$0xff]
      %v220 = vld [vmem:[%s189 + $0x68] sm:$0xff]
      %v221 = vld [vmem:[%s189 + $0x70] sm:$0xff]
      %v222 = vld [vmem:[%s189 + $0x78] sm:$0xff]
      %v223 = vld [vmem:[%s189 + $0x80] sm:$0xff]
      %v224 = vld [vmem:[%s189 + $0x88] sm:$0xff]
      %v225 = vld [vmem:[%s189 + $0x90] sm:$0xff]
      %v226 = vld [vmem:[%s189 + $0x98] sm:$0xff]
      %v227 = vld [vmem:[%s189 + $0xa0] sm:$0xff]
      %v228 = vld [vmem:[%s189 + $0xa8] sm:$0xff]
      %v229 = vld [vmem:[%s189 + $0xb0] sm:$0xff]
      %v230 = vld [vmem:[%s189 + $0xb8] sm:$0xff]
      %v231 = vld [vmem:[%s189 + $0xc0] sm:$0xff]
      %v232 = vld [vmem:[%s189 + $0xc8] sm:$0xff]
      %v233 = vld [vmem:[%s189 + $0xd0] sm:$0xff]
      %v234 = vld [vmem:[%s189 + $0xd8] sm:$0xff]
      %v235 = vld [vmem:[%s189 + $0xe0] sm:$0xff]
      %v236 = vld [vmem:[%s189 + $0xe8] sm:$0xff]
      %v237 = vld [vmem:[%s189 + $0xf0] sm:$0xff]
      %v238 = vld [vmem:[%s189 + $0xf8] sm:$0xff]
      %v239 = vld [vmem:[%s189 + $0x100] sm:$0xff]
      %v240 = vld [vmem:[%s189 + $0x108] sm:$0xff]
      %v241 = vld [vmem:[%s189 + $0x110] sm:$0xff]
      %v242 = vld [vmem:[%s189 + $0x118] sm:$0xff]
      %v243 = vld [vmem:[%s189 + $0x120] sm:$0xff]
      %v244 = vld [vmem:[%s189 + $0x128] sm:$0xff]
      %v245 = vld [vmem:[%s189 + $0x130] sm:$0xff]
      %v246 = vld [vmem:[%s189 + $0x138] sm:$0xff]
      %v247 = vld [vmem:[%s189 + $0x140] sm:$0xff]
      %v248 = vld [vmem:[%s189 + $0x148] sm:$0xff]
      %v249 = vld [vmem:[%s189 + $0x150] sm:$0xff]
      %v250 = vld [vmem:[%s189 + $0x158] sm:$0xff]
      %v251 = vld [vmem:[%s189 + $0x160] sm:$0xff]
      %v252 = vld [vmem:[%s189 + $0x168] sm:$0xff]
      %v253 = vld [vmem:[%s189 + $0x170] sm:$0xff]
      %v254 = vld [vmem:[%s189 + $0x178] sm:$0xff]
      %v255 = vld [vmem:[%s189 + $0x180] sm:$0xff]
      %v256 = vld [vmem:[%s189 + $0x188] sm:$0xff]
      %v257 = vld [vmem:[%s189 + $0x190] sm:$0xff]
      %v258 = vld [vmem:[%s189 + $0x198] sm:$0xff]
      %v259 = vld [vmem:[%s189 + $0x1a0] sm:$0xff]
      %v260 = vld [vmem:[%s189 + $0x1a8] sm:$0xff]
      %v261 = vld [vmem:[%s189 + $0x1b0] sm:$0xff]
      %v262 = vld [vmem:[%s189 + $0x1b8] sm:$0xff]
      %v263 = vld [vmem:[%s189 + $0x1c0] sm:$0xff]
      %v264 = vld [vmem:[%s189 + $0x1c8] sm:$0xff]
      %v265 = vld [vmem:[%s189 + $0x1d0] sm:$0xff]
      %v266 = vld [vmem:[%s189 + $0x1d8] sm:$0xff]
      %v267 = vld [vmem:[%s189 + $0x1e0] sm:$0xff]
      %v268 = vld [vmem:[%s189 + $0x1e8] sm:$0xff]
      %v269 = vld [vmem:[%s189 + $0x1f0] sm:$0xff]
      %v270 = vld [vmem:[%s189 + $0x1f8] sm:$0xff]
      %v271 = vld [vmem:[%s189 + $0x200] sm:$0xff]
      %v272 = vld [vmem:[%s189 + $0x208] sm:$0xff]
      %v273 = vld [vmem:[%s189 + $0x210] sm:$0xff]
      %v274 = vld [vmem:[%s189 + $0x218] sm:$0xff]
      %v275 = vld [vmem:[%s189 + $0x220] sm:$0xff]
      %v276 = vld [vmem:[%s189 + $0x228] sm:$0xff]
      %v277 = vld [vmem:[%s189 + $0x230] sm:$0xff]
      %v278 = vld [vmem:[%s189 + $0x238] sm:$0xff]
      %v279 = vld [vmem:[%s189 + $0x240] sm:$0xff]
      %v280 = vld [vmem:[%s189 + $0x248] sm:$0xff]
      %v281 = vld [vmem:[%s189 + $0x250] sm:$0xff]
      %v282 = vld [vmem:[%s189 + $0x258] sm:$0xff]
      %v283 = vld [vmem:[%s189 + $0x260] sm:$0xff]
      %v284 = vld [vmem:[%s189 + $0x268] sm:$0xff]
      %v285 = vld [vmem:[%s189 + $0x270] sm:$0xff]
      %v286 = vld [vmem:[%s189 + $0x278] sm:$0xff]
      %v287 = vld [vmem:[%s189 + $0x280] sm:$0xff]
      %v288 = vld [vmem:[%s189 + $0x288] sm:$0xff]
      %v289 = vld [vmem:[%s189 + $0x290] sm:$0xff]
      %v290 = vld [vmem:[%s189 + $0x298] sm:$0xff]
      %v291 = vld [vmem:[%s189 + $0x2a0] sm:$0xff]
      %v292 = vld [vmem:[%s189 + $0x2a8] sm:$0xff]
      %v293 = vld [vmem:[%s189 + $0x2b0] sm:$0xff]
      %v294 = vld [vmem:[%s189 + $0x2b8] sm:$0xff]
      %v295 = vld [vmem:[%s189 + $0x2c0] sm:$0xff]
      %v296 = vld [vmem:[%s189 + $0x2c8] sm:$0xff]
      %v297 = vld [vmem:[%s189 + $0x2d0] sm:$0xff]
      %v298 = vld [vmem:[%s189 + $0x2d8] sm:$0xff]
      %v299 = vld [vmem:[%s189 + $0x2e0] sm:$0xff]
      %v300 = vld [vmem:[%s189 + $0x2e8] sm:$0xff]
      %v301 = vld [vmem:[%s189 + $0x2f0] sm:$0xff]
      %v302 = vld [vmem:[%s189 + $0x2f8] sm:$0xff]
      %v303 = vld [vmem:[%s189 + $0x300] sm:$0xff]
      %v304 = vld [vmem:[%s189 + $0x308] sm:$0xff]
      %v305 = vld [vmem:[%s189 + $0x310] sm:$0xff]
      %v306 = vld [vmem:[%s189 + $0x318] sm:$0xff]
      %v307 = vld [vmem:[%s189 + $0x320] sm:$0xff]
      %v308 = vld [vmem:[%s189 + $0x328] sm:$0xff]
      %v309 = vld [vmem:[%s189 + $0x330] sm:$0xff]
      %v310 = vld [vmem:[%s189 + $0x338] sm:$0xff]
      %v311 = vld [vmem:[%s189 + $0x340] sm:$0xff]
      %v312 = vld [vmem:[%s189 + $0x348] sm:$0xff]
      %v313 = vld [vmem:[%s189 + $0x350] sm:$0xff]
      %v314 = vld [vmem:[%s189 + $0x358] sm:$0xff]
      %v315 = vld [vmem:[%s189 + $0x360] sm:$0xff]
      %v316 = vld [vmem:[%s189 + $0x368] sm:$0xff]
      %v317 = vld [vmem:[%s189 + $0x370] sm:$0xff]
      %v318 = vld [vmem:[%s189 + $0x378] sm:$0xff]
      %v319 = vld [vmem:[%s189 + $0x380] sm:$0xff]
      %v320 = vld [vmem:[%s189 + $0x388] sm:$0xff]
      %v321 = vld [vmem:[%s189 + $0x390] sm:$0xff]
      %v322 = vld [vmem:[%s189 + $0x398] sm:$0xff]
      %v323 = vld [vmem:[%s189 + $0x3a0] sm:$0xff]
      %v324 = vld [vmem:[%s189 + $0x3a8] sm:$0xff]
      %v325 = vld [vmem:[%s189 + $0x3b0] sm:$0xff]
      %v326 = vld [vmem:[%s189 + $0x3b8] sm:$0xff]
      %v327 = vld [vmem:[%s189 + $0x3c0] sm:$0xff]
      %v328 = vld [vmem:[%s189 + $0x3c8] sm:$0xff]
      %v329 = vld [vmem:[%s189 + $0x3d0] sm:$0xff]
      %v330 = vld [vmem:[%s189 + $0x3d8] sm:$0xff]
      %v331 = vld [vmem:[%s189 + $0x3e0] sm:$0xff]
      %v332 = vld [vmem:[%s189 + $0x3e8] sm:$0xff]
      %v333 = vld [vmem:[%s189 + $0x3f0] sm:$0xff]
      %v334 = vld [vmem:[%s189 + $0x3f8] sm:$0xff]
      %v335 = vld [vmem:[%s195] sm:$0xf]
      %v336 = vld [vmem:[%s195 + $0x4] sm:$0xf]
      %v337 = vld [vmem:[%s195 + $0x8] sm:$0xf]
      %v338 = vld [vmem:[%s195 + $0xc] sm:$0xf]
      %v339 = vld [vmem:[%s195 + $0x10] sm:$0xf]
      %v340 = vld [vmem:[%s195 + $0x14] sm:$0xf]
      %v341 = vld [vmem:[%s195 + $0x18] sm:$0xf]
      %v342 = vld [vmem:[%s195 + $0x1c] sm:$0xf]
      %v343 = vld [vmem:[%s195 + $0x20] sm:$0xf]
      %v344 = vld [vmem:[%s195 + $0x24] sm:$0xf]
      %v345 = vld [vmem:[%s195 + $0x28] sm:$0xf]
      %v346 = vld [vmem:[%s195 + $0x2c] sm:$0xf]
      %v347 = vld [vmem:[%s195 + $0x30] sm:$0xf]
      %v348 = vld [vmem:[%s195 + $0x34] sm:$0xf]
      %v349 = vld [vmem:[%s195 + $0x38] sm:$0xf]
      %v350 = vld [vmem:[%s195 + $0x3c] sm:$0xf]
      %v351 = vld [vmem:[%s195 + $0x40] sm:$0xf]
      %v352 = vld [vmem:[%s195 + $0x44] sm:$0xf]
      %v353 = vld [vmem:[%s195 + $0x48] sm:$0xf]
      %v354 = vld [vmem:[%s195 + $0x4c] sm:$0xf]
      %v355 = vld [vmem:[%s195 + $0x50] sm:$0xf]
      %v356 = vld [vmem:[%s195 + $0x54] sm:$0xf]
      %v357 = vld [vmem:[%s195 + $0x58] sm:$0xf]
      %v358 = vld [vmem:[%s195 + $0x5c] sm:$0xf]
      %v359 = vld [vmem:[%s195 + $0x60] sm:$0xf]
      %v360 = vld [vmem:[%s195 + $0x64] sm:$0xf]
      %v361 = vld [vmem:[%s195 + $0x68] sm:$0xf]
      %v362 = vld [vmem:[%s195 + $0x6c] sm:$0xf]
      %v363 = vld [vmem:[%s195 + $0x70] sm:$0xf]
      %v364 = vld [vmem:[%s195 + $0x74] sm:$0xf]
      %v365 = vld [vmem:[%s195 + $0x78] sm:$0xf]
      %v366 = vld [vmem:[%s195 + $0x7c] sm:$0xf]
      %v367 = vld [vmem:[%s195 + $0x80] sm:$0xf]
      %v368 = vld [vmem:[%s195 + $0x84] sm:$0xf]
      %v369 = vld [vmem:[%s195 + $0x88] sm:$0xf]
      %v370 = vld [vmem:[%s195 + $0x8c] sm:$0xf]
      %v371 = vld [vmem:[%s195 + $0x90] sm:$0xf]
      %v372 = vld [vmem:[%s195 + $0x94] sm:$0xf]
      %v373 = vld [vmem:[%s195 + $0x98] sm:$0xf]
      %v374 = vld [vmem:[%s195 + $0x9c] sm:$0xf]
      %v375 = vld [vmem:[%s195 + $0xa0] sm:$0xf]
      %v376 = vld [vmem:[%s195 + $0xa4] sm:$0xf]
      %v377 = vld [vmem:[%s195 + $0xa8] sm:$0xf]
      %v378 = vld [vmem:[%s195 + $0xac] sm:$0xf]
      %v379 = vld [vmem:[%s195 + $0xb0] sm:$0xf]
      %v380 = vld [vmem:[%s195 + $0xb4] sm:$0xf]
      %v381 = vld [vmem:[%s195 + $0xb8] sm:$0xf]
      %v382 = vld [vmem:[%s195 + $0xbc] sm:$0xf]
      %v383 = vld [vmem:[%s195 + $0xc0] sm:$0xf]
      %v384 = vld [vmem:[%s195 + $0xc4] sm:$0xf]
      %v385 = vld [vmem:[%s195 + $0xc8] sm:$0xf]
      %v386 = vld [vmem:[%s195 + $0xcc] sm:$0xf]
      %v387 = vld [vmem:[%s195 + $0xd0] sm:$0xf]
      %v388 = vld [vmem:[%s195 + $0xd4] sm:$0xf]
      %v389 = vld [vmem:[%s195 + $0xd8] sm:$0xf]
      %v390 = vld [vmem:[%s195 + $0xdc] sm:$0xf]
      %v391 = vld [vmem:[%s195 + $0xe0] sm:$0xf]
      %v392 = vld [vmem:[%s195 + $0xe4] sm:$0xf]
      %v393 = vld [vmem:[%s195 + $0xe8] sm:$0xf]
      %v394 = vld [vmem:[%s195 + $0xec] sm:$0xf]
      %v395 = vld [vmem:[%s195 + $0xf0] sm:$0xf]
      %v396 = vld [vmem:[%s195 + $0xf4] sm:$0xf]
      %v397 = vld [vmem:[%s195 + $0xf8] sm:$0xf]
      %v398 = vld [vmem:[%s195 + $0xfc] sm:$0xf]
      %v527 = vunpack.c.l.b16 %v207
      %v528 = vunpack.c.h.b16 %v207
      %v529 = vunpack.c.l.b16 %v208
      %v530 = vunpack.c.h.b16 %v208
      %v531 = vunpack.c.l.b16 %v209
      %v532 = vunpack.c.h.b16 %v209
      %v533 = vunpack.c.l.b16 %v210
      %v534 = vunpack.c.h.b16 %v210
      %v535 = vunpack.c.l.b16 %v211
      %v536 = vunpack.c.h.b16 %v211
      %v537 = vunpack.c.l.b16 %v212
      %v538 = vunpack.c.h.b16 %v212
      %v539 = vunpack.c.l.b16 %v213
      %v540 = vunpack.c.h.b16 %v213
      %v541 = vunpack.c.l.b16 %v214
      %v542 = vunpack.c.h.b16 %v214
      %v543 = vunpack.c.l.b16 %v215
      %v544 = vunpack.c.h.b16 %v215
      %v545 = vunpack.c.l.b16 %v216
      %v546 = vunpack.c.h.b16 %v216
      %v547 = vunpack.c.l.b16 %v217
      %v548 = vunpack.c.h.b16 %v217
      %v549 = vunpack.c.l.b16 %v218
      %v550 = vunpack.c.h.b16 %v218
      %v551 = vunpack.c.l.b16 %v219
      %v552 = vunpack.c.h.b16 %v219
      %v553 = vunpack.c.l.b16 %v220
      %v554 = vunpack.c.h.b16 %v220
      %v555 = vunpack.c.l.b16 %v221
      %v556 = vunpack.c.h.b16 %v221
      %v557 = vunpack.c.l.b16 %v222
      %v558 = vunpack.c.h.b16 %v222
      %v559 = vunpack.c.l.b16 %v223
      %v560 = vunpack.c.h.b16 %v223
      %v561 = vunpack.c.l.b16 %v224
      %v562 = vunpack.c.h.b16 %v224
      %v563 = vunpack.c.l.b16 %v225
      %v564 = vunpack.c.h.b16 %v225
      %v565 = vunpack.c.l.b16 %v226
      %v566 = vunpack.c.h.b16 %v226
      %v567 = vunpack.c.l.b16 %v227
      %v568 = vunpack.c.h.b16 %v227
      %v569 = vunpack.c.l.b16 %v228
      %v570 = vunpack.c.h.b16 %v228
      %v571 = vunpack.c.l.b16 %v229
      %v572 = vunpack.c.h.b16 %v229
      %v573 = vunpack.c.l.b16 %v230
      %v574 = vunpack.c.h.b16 %v230
      %v575 = vunpack.c.l.b16 %v231
      %v576 = vunpack.c.h.b16 %v231
      %v577 = vunpack.c.l.b16 %v232
      %v578 = vunpack.c.h.b16 %v232
      %v579 = vunpack.c.l.b16 %v233
      %v580 = vunpack.c.h.b16 %v233
      %v581 = vunpack.c.l.b16 %v234
      %v582 = vunpack.c.h.b16 %v234
      %v583 = vunpack.c.l.b16 %v235
      %v584 = vunpack.c.h.b16 %v235
      %v585 = vunpack.c.l.b16 %v236
      %v586 = vunpack.c.h.b16 %v236
      %v587 = vunpack.c.l.b16 %v237
      %v588 = vunpack.c.h.b16 %v237
      %v589 = vunpack.c.l.b16 %v238
      %v590 = vunpack.c.h.b16 %v238
      %v591 = vunpack.c.l.b16 %v239
      %v592 = vunpack.c.h.b16 %v239
      %v593 = vunpack.c.l.b16 %v240
      %v594 = vunpack.c.h.b16 %v240
      %v595 = vunpack.c.l.b16 %v241
      %v596 = vunpack.c.h.b16 %v241
      %v597 = vunpack.c.l.b16 %v242
      %v598 = vunpack.c.h.b16 %v242
      %v599 = vunpack.c.l.b16 %v243
      %v600 = vunpack.c.h.b16 %v243
      %v601 = vunpack.c.l.b16 %v244
      %v602 = vunpack.c.h.b16 %v244
      %v603 = vunpack.c.l.b16 %v245
      %v604 = vunpack.c.h.b16 %v245
      %v605 = vunpack.c.l.b16 %v246
      %v606 = vunpack.c.h.b16 %v246
      %v607 = vunpack.c.l.b16 %v247
      %v608 = vunpack.c.h.b16 %v247
      %v609 = vunpack.c.l.b16 %v248
      %v610 = vunpack.c.h.b16 %v248
      %v611 = vunpack.c.l.b16 %v249
      %v612 = vunpack.c.h.b16 %v249
      %v613 = vunpack.c.l.b16 %v250
      %v614 = vunpack.c.h.b16 %v250
      %v615 = vunpack.c.l.b16 %v251
      %v616 = vunpack.c.h.b16 %v251
      %v617 = vunpack.c.l.b16 %v252
      %v618 = vunpack.c.h.b16 %v252
      %v619 = vunpack.c.l.b16 %v253
      %v620 = vunpack.c.h.b16 %v253
      %v621 = vunpack.c.l.b16 %v254
      %v622 = vunpack.c.h.b16 %v254
      %v623 = vunpack.c.l.b16 %v255
      %v624 = vunpack.c.h.b16 %v255
      %v625 = vunpack.c.l.b16 %v256
      %v626 = vunpack.c.h.b16 %v256
      %v627 = vunpack.c.l.b16 %v257
      %v628 = vunpack.c.h.b16 %v257
      %v629 = vunpack.c.l.b16 %v258
      %v630 = vunpack.c.h.b16 %v258
      %v631 = vunpack.c.l.b16 %v259
      %v632 = vunpack.c.h.b16 %v259
      %v633 = vunpack.c.l.b16 %v260
      %v634 = vunpack.c.h.b16 %v260
      %v635 = vunpack.c.l.b16 %v261
      %v636 = vunpack.c.h.b16 %v261
      %v637 = vunpack.c.l.b16 %v262
      %v638 = vunpack.c.h.b16 %v262
      %v639 = vunpack.c.l.b16 %v263
      %v640 = vunpack.c.h.b16 %v263
      %v641 = vunpack.c.l.b16 %v264
      %v642 = vunpack.c.h.b16 %v264
      %v643 = vunpack.c.l.b16 %v265
      %v644 = vunpack.c.h.b16 %v265
      %v645 = vunpack.c.l.b16 %v266
      %v646 = vunpack.c.h.b16 %v266
      %v647 = vunpack.c.l.b16 %v267
      %v648 = vunpack.c.h.b16 %v267
      %v649 = vunpack.c.l.b16 %v268
      %v650 = vunpack.c.h.b16 %v268
      %v651 = vunpack.c.l.b16 %v269
      %v652 = vunpack.c.h.b16 %v269
      %v653 = vunpack.c.l.b16 %v270
      %v654 = vunpack.c.h.b16 %v270
      %v655 = vunpack.c.l.b16 %v271
      %v656 = vunpack.c.h.b16 %v271
      %v657 = vunpack.c.l.b16 %v272
      %v658 = vunpack.c.h.b16 %v272
      %v659 = vunpack.c.l.b16 %v273
      %v660 = vunpack.c.h.b16 %v273
      %v661 = vunpack.c.l.b16 %v274
      %v662 = vunpack.c.h.b16 %v274
      %v663 = vunpack.c.l.b16 %v275
      %v664 = vunpack.c.h.b16 %v275
      %v665 = vunpack.c.l.b16 %v276
      %v666 = vunpack.c.h.b16 %v276
      %v667 = vunpack.c.l.b16 %v277
      %v668 = vunpack.c.h.b16 %v277
      %v669 = vunpack.c.l.b16 %v278
      %v670 = vunpack.c.h.b16 %v278
      %v671 = vunpack.c.l.b16 %v279
      %v672 = vunpack.c.h.b16 %v279
      %v673 = vunpack.c.l.b16 %v280
      %v674 = vunpack.c.h.b16 %v280
      %v675 = vunpack.c.l.b16 %v281
      %v676 = vunpack.c.h.b16 %v281
      %v677 = vunpack.c.l.b16 %v282
      %v678 = vunpack.c.h.b16 %v282
      %v679 = vunpack.c.l.b16 %v283
      %v680 = vunpack.c.h.b16 %v283
      %v681 = vunpack.c.l.b16 %v284
      %v682 = vunpack.c.h.b16 %v284
      %v683 = vunpack.c.l.b16 %v285
      %v684 = vunpack.c.h.b16 %v285
      %v685 = vunpack.c.l.b16 %v286
      %v686 = vunpack.c.h.b16 %v286
      %v687 = vunpack.c.l.b16 %v287
      %v688 = vunpack.c.h.b16 %v287
      %v689 = vunpack.c.l.b16 %v288
      %v690 = vunpack.c.h.b16 %v288
      %v691 = vunpack.c.l.b16 %v289
      %v692 = vunpack.c.h.b16 %v289
      %v693 = vunpack.c.l.b16 %v290
      %v694 = vunpack.c.h.b16 %v290
      %v695 = vunpack.c.l.b16 %v291
      %v696 = vunpack.c.h.b16 %v291
      %v697 = vunpack.c.l.b16 %v292
      %v698 = vunpack.c.h.b16 %v292
      %v699 = vunpack.c.l.b16 %v293
      %v700 = vunpack.c.h.b16 %v293
      %v701 = vunpack.c.l.b16 %v294
      %v702 = vunpack.c.h.b16 %v294
      %v703 = vunpack.c.l.b16 %v295
      %v704 = vunpack.c.h.b16 %v295
      %v705 = vunpack.c.l.b16 %v296
      %v706 = vunpack.c.h.b16 %v296
      %v707 = vunpack.c.l.b16 %v297
      %v708 = vunpack.c.h.b16 %v297
      %v709 = vunpack.c.l.b16 %v298
      %v710 = vunpack.c.h.b16 %v298
      %v711 = vunpack.c.l.b16 %v299
      %v712 = vunpack.c.h.b16 %v299
      %v713 = vunpack.c.l.b16 %v300
      %v714 = vunpack.c.h.b16 %v300
      %v715 = vunpack.c.l.b16 %v301
      %v716 = vunpack.c.h.b16 %v301
      %v717 = vunpack.c.l.b16 %v302
      %v718 = vunpack.c.h.b16 %v302
      %v719 = vunpack.c.l.b16 %v303
      %v720 = vunpack.c.h.b16 %v303
      %v721 = vunpack.c.l.b16 %v304
      %v722 = vunpack.c.h.b16 %v304
      %v723 = vunpack.c.l.b16 %v305
      %v724 = vunpack.c.h.b16 %v305
      %v725 = vunpack.c.l.b16 %v306
      %v726 = vunpack.c.h.b16 %v306
      %v727 = vunpack.c.l.b16 %v307
      %v728 = vunpack.c.h.b16 %v307
      %v729 = vunpack.c.l.b16 %v308
      %v730 = vunpack.c.h.b16 %v308
      %v731 = vunpack.c.l.b16 %v309
      %v732 = vunpack.c.h.b16 %v309
      %v733 = vunpack.c.l.b16 %v310
      %v734 = vunpack.c.h.b16 %v310
      %v735 = vunpack.c.l.b16 %v311
      %v736 = vunpack.c.h.b16 %v311
      %v737 = vunpack.c.l.b16 %v312
      %v738 = vunpack.c.h.b16 %v312
      %v739 = vunpack.c.l.b16 %v313
      %v740 = vunpack.c.h.b16 %v313
      %v741 = vunpack.c.l.b16 %v314
      %v742 = vunpack.c.h.b16 %v314
      %v743 = vunpack.c.l.b16 %v315
      %v744 = vunpack.c.h.b16 %v315
      %v745 = vunpack.c.l.b16 %v316
      %v746 = vunpack.c.h.b16 %v316
      %v747 = vunpack.c.l.b16 %v317
      %v748 = vunpack.c.h.b16 %v317
      %v749 = vunpack.c.l.b16 %v318
      %v750 = vunpack.c.h.b16 %v318
      %v751 = vunpack.c.l.b16 %v319
      %v752 = vunpack.c.h.b16 %v319
      %v753 = vunpack.c.l.b16 %v320
      %v754 = vunpack.c.h.b16 %v320
      %v755 = vunpack.c.l.b16 %v321
      %v756 = vunpack.c.h.b16 %v321
      %v757 = vunpack.c.l.b16 %v322
      %v758 = vunpack.c.h.b16 %v322
      %v759 = vunpack.c.l.b16 %v323
      %v760 = vunpack.c.h.b16 %v323
      %v761 = vunpack.c.l.b16 %v324
      %v762 = vunpack.c.h.b16 %v324
      %v763 = vunpack.c.l.b16 %v325
      %v764 = vunpack.c.h.b16 %v325
      %v765 = vunpack.c.l.b16 %v326
      %v766 = vunpack.c.h.b16 %v326
      %v767 = vunpack.c.l.b16 %v327
      %v768 = vunpack.c.h.b16 %v327
      %v769 = vunpack.c.l.b16 %v328
      %v770 = vunpack.c.h.b16 %v328
      %v771 = vunpack.c.l.b16 %v329
      %v772 = vunpack.c.h.b16 %v329
      %v773 = vunpack.c.l.b16 %v330
      %v774 = vunpack.c.h.b16 %v330
      %v775 = vunpack.c.l.b16 %v331
      %v776 = vunpack.c.h.b16 %v331
      %v777 = vunpack.c.l.b16 %v332
      %v778 = vunpack.c.h.b16 %v332
      %v779 = vunpack.c.l.b16 %v333
      %v780 = vunpack.c.h.b16 %v333
      %v781 = vunpack.c.l.b16 %v334
      %v782 = vunpack.c.h.b16 %v334
      %v783 = vpack.c.b16 %v531, %v527
      %v784 = vpack.c.b16 %v532, %v528
      %v785 = vpack.c.b16 %v533, %v529
      %v786 = vpack.c.b16 %v534, %v530
      %v787 = vpack.c.b16 %v539, %v535
      %v788 = vpack.c.b16 %v540, %v536
      %v789 = vpack.c.b16 %v541, %v537
      %v790 = vpack.c.b16 %v542, %v538
      %v791 = vpack.c.b16 %v547, %v543
      %v792 = vpack.c.b16 %v548, %v544
      %v793 = vpack.c.b16 %v549, %v545
      %v794 = vpack.c.b16 %v550, %v546
      %v795 = vpack.c.b16 %v555, %v551
      %v796 = vpack.c.b16 %v556, %v552
      %v797 = vpack.c.b16 %v557, %v553
      %v798 = vpack.c.b16 %v558, %v554
      %v799 = vpack.c.b16 %v563, %v559
      %v800 = vpack.c.b16 %v564, %v560
      %v801 = vpack.c.b16 %v565, %v561
      %v802 = vpack.c.b16 %v566, %v562
      %v803 = vpack.c.b16 %v571, %v567
      %v804 = vpack.c.b16 %v572, %v568
      %v805 = vpack.c.b16 %v573, %v569
      %v806 = vpack.c.b16 %v574, %v570
      %v807 = vpack.c.b16 %v579, %v575
      %v808 = vpack.c.b16 %v580, %v576
      %v809 = vpack.c.b16 %v581, %v577
      %v810 = vpack.c.b16 %v582, %v578
      %v811 = vpack.c.b16 %v587, %v583
      %v812 = vpack.c.b16 %v588, %v584
      %v813 = vpack.c.b16 %v589, %v585
      %v814 = vpack.c.b16 %v590, %v586
      %v815 = vpack.c.b16 %v595, %v591
      %v816 = vpack.c.b16 %v596, %v592
      %v817 = vpack.c.b16 %v597, %v593
      %v818 = vpack.c.b16 %v598, %v594
      %v819 = vpack.c.b16 %v603, %v599
      %v820 = vpack.c.b16 %v604, %v600
      %v821 = vpack.c.b16 %v605, %v601
      %v822 = vpack.c.b16 %v606, %v602
      %v823 = vpack.c.b16 %v611, %v607
      %v824 = vpack.c.b16 %v612, %v608
      %v825 = vpack.c.b16 %v613, %v609
      %v826 = vpack.c.b16 %v614, %v610
      %v827 = vpack.c.b16 %v619, %v615
      %v828 = vpack.c.b16 %v620, %v616
      %v829 = vpack.c.b16 %v621, %v617
      %v830 = vpack.c.b16 %v622, %v618
      %v831 = vpack.c.b16 %v627, %v623
      %v832 = vpack.c.b16 %v628, %v624
      %v833 = vpack.c.b16 %v629, %v625
      %v834 = vpack.c.b16 %v630, %v626
      %v835 = vpack.c.b16 %v635, %v631
      %v836 = vpack.c.b16 %v636, %v632
      %v837 = vpack.c.b16 %v637, %v633
      %v838 = vpack.c.b16 %v638, %v634
      %v839 = vpack.c.b16 %v643, %v639
      %v840 = vpack.c.b16 %v644, %v640
      %v841 = vpack.c.b16 %v645, %v641
      %v842 = vpack.c.b16 %v646, %v642
      %v843 = vpack.c.b16 %v651, %v647
      %v844 = vpack.c.b16 %v652, %v648
      %v845 = vpack.c.b16 %v653, %v649
      %v846 = vpack.c.b16 %v654, %v650
      %v847 = vpack.c.b16 %v659, %v655
      %v848 = vpack.c.b16 %v660, %v656
      %v849 = vpack.c.b16 %v661, %v657
      %v850 = vpack.c.b16 %v662, %v658
      %v851 = vpack.c.b16 %v667, %v663
      %v852 = vpack.c.b16 %v668, %v664
      %v853 = vpack.c.b16 %v669, %v665
      %v854 = vpack.c.b16 %v670, %v666
      %v855 = vpack.c.b16 %v675, %v671
      %v856 = vpack.c.b16 %v676, %v672
      %v857 = vpack.c.b16 %v677, %v673
      %v858 = vpack.c.b16 %v678, %v674
      %v859 = vpack.c.b16 %v683, %v679
      %v860 = vpack.c.b16 %v684, %v680
      %v861 = vpack.c.b16 %v685, %v681
      %v862 = vpack.c.b16 %v686, %v682
      %v863 = vpack.c.b16 %v691, %v687
      %v864 = vpack.c.b16 %v692, %v688
      %v865 = vpack.c.b16 %v693, %v689
      %v866 = vpack.c.b16 %v694, %v690
      %v867 = vpack.c.b16 %v699, %v695
      %v868 = vpack.c.b16 %v700, %v696
      %v869 = vpack.c.b16 %v701, %v697
      %v870 = vpack.c.b16 %v702, %v698
      %v871 = vpack.c.b16 %v707, %v703
      %v872 = vpack.c.b16 %v708, %v704
      %v873 = vpack.c.b16 %v709, %v705
      %v874 = vpack.c.b16 %v710, %v706
      %v875 = vpack.c.b16 %v715, %v711
      %v876 = vpack.c.b16 %v716, %v712
      %v877 = vpack.c.b16 %v717, %v713
      %v878 = vpack.c.b16 %v718, %v714
      %v879 = vpack.c.b16 %v723, %v719
      %v880 = vpack.c.b16 %v724, %v720
      %v881 = vpack.c.b16 %v725, %v721
      %v882 = vpack.c.b16 %v726, %v722
      %v883 = vpack.c.b16 %v731, %v727
      %v884 = vpack.c.b16 %v732, %v728
      %v885 = vpack.c.b16 %v733, %v729
      %v886 = vpack.c.b16 %v734, %v730
      %v887 = vpack.c.b16 %v739, %v735
      %v888 = vpack.c.b16 %v740, %v736
      %v889 = vpack.c.b16 %v741, %v737
      %v890 = vpack.c.b16 %v742, %v738
      %v891 = vpack.c.b16 %v747, %v743
      %v892 = vpack.c.b16 %v748, %v744
      %v893 = vpack.c.b16 %v749, %v745
      %v894 = vpack.c.b16 %v750, %v746
      %v895 = vpack.c.b16 %v755, %v751
      %v896 = vpack.c.b16 %v756, %v752
      %v897 = vpack.c.b16 %v757, %v753
      %v898 = vpack.c.b16 %v758, %v754
      %v899 = vpack.c.b16 %v763, %v759
      %v900 = vpack.c.b16 %v764, %v760
      %v901 = vpack.c.b16 %v765, %v761
      %v902 = vpack.c.b16 %v766, %v762
      %v903 = vpack.c.b16 %v771, %v767
      %v904 = vpack.c.b16 %v772, %v768
      %v905 = vpack.c.b16 %v773, %v769
      %v906 = vpack.c.b16 %v774, %v770
      %v907 = vpack.c.b16 %v779, %v775
      %v908 = vpack.c.b16 %v780, %v776
      %v909 = vpack.c.b16 %v781, %v777
      %v910 = vpack.c.b16 %v782, %v778
      %v1103 = vunpack.c.l.b16 %v335
      %v1104 = vunpack.c.l.b16 %v336
      %v1105 = vunpack.c.l.b16 %v337
      %v1106 = vunpack.c.l.b16 %v338
      %v1107 = vunpack.c.l.b16 %v339
      %v1108 = vunpack.c.l.b16 %v340
      %v1109 = vunpack.c.l.b16 %v341
      %v1110 = vunpack.c.l.b16 %v342
      %v1111 = vunpack.c.l.b16 %v343
      %v1112 = vunpack.c.l.b16 %v344
      %v1113 = vunpack.c.l.b16 %v345
      %v1114 = vunpack.c.l.b16 %v346
      %v1115 = vunpack.c.l.b16 %v347
      %v1116 = vunpack.c.l.b16 %v348
      %v1117 = vunpack.c.l.b16 %v349
      %v1118 = vunpack.c.l.b16 %v350
      %v1119 = vunpack.c.l.b16 %v351
      %v1120 = vunpack.c.l.b16 %v352
      %v1121 = vunpack.c.l.b16 %v353
      %v1122 = vunpack.c.l.b16 %v354
      %v1123 = vunpack.c.l.b16 %v355
      %v1124 = vunpack.c.l.b16 %v356
      %v1125 = vunpack.c.l.b16 %v357
      %v1126 = vunpack.c.l.b16 %v358
      %v1127 = vunpack.c.l.b16 %v359
      %v1128 = vunpack.c.l.b16 %v360
      %v1129 = vunpack.c.l.b16 %v361
      %v1130 = vunpack.c.l.b16 %v362
      %v1131 = vunpack.c.l.b16 %v363
      %v1132 = vunpack.c.l.b16 %v364
      %v1133 = vunpack.c.l.b16 %v365
      %v1134 = vunpack.c.l.b16 %v366
      %v1135 = vunpack.c.l.b16 %v367
      %v1136 = vunpack.c.l.b16 %v368
      %v1137 = vunpack.c.l.b16 %v369
      %v1138 = vunpack.c.l.b16 %v370
      %v1139 = vunpack.c.l.b16 %v371
      %v1140 = vunpack.c.l.b16 %v372
      %v1141 = vunpack.c.l.b16 %v373
      %v1142 = vunpack.c.l.b16 %v374
      %v1143 = vunpack.c.l.b16 %v375
      %v1144 = vunpack.c.l.b16 %v376
      %v1145 = vunpack.c.l.b16 %v377
      %v1146 = vunpack.c.l.b16 %v378
      %v1147 = vunpack.c.l.b16 %v379
      %v1148 = vunpack.c.l.b16 %v380
      %v1149 = vunpack.c.l.b16 %v381
      %v1150 = vunpack.c.l.b16 %v382
      %v1151 = vunpack.c.l.b16 %v383
      %v1152 = vunpack.c.l.b16 %v384
      %v1153 = vunpack.c.l.b16 %v385
      %v1154 = vunpack.c.l.b16 %v386
      %v1155 = vunpack.c.l.b16 %v387
      %v1156 = vunpack.c.l.b16 %v388
      %v1157 = vunpack.c.l.b16 %v389
      %v1158 = vunpack.c.l.b16 %v390
      %v1159 = vunpack.c.l.b16 %v391
      %v1160 = vunpack.c.l.b16 %v392
      %v1161 = vunpack.c.l.b16 %v393
      %v1162 = vunpack.c.l.b16 %v394
      %v1163 = vunpack.c.l.b16 %v395
      %v1164 = vunpack.c.l.b16 %v396
      %v1165 = vunpack.c.l.b16 %v397
      %v1166 = vunpack.c.l.b16 %v398
      %v1167 = vpack.c.b16 %v1104, %v1103
      %v1168 = vpack.c.b16 %v1106, %v1105
      %v1169 = vpack.c.b16 %v1108, %v1107
      %v1170 = vpack.c.b16 %v1110, %v1109
      %v1171 = vpack.c.b16 %v1112, %v1111
      %v1172 = vpack.c.b16 %v1114, %v1113
      %v1173 = vpack.c.b16 %v1116, %v1115
      %v1174 = vpack.c.b16 %v1118, %v1117
      %v1175 = vpack.c.b16 %v1120, %v1119
      %v1176 = vpack.c.b16 %v1122, %v1121
      %v1177 = vpack.c.b16 %v1124, %v1123
      %v1178 = vpack.c.b16 %v1126, %v1125
      %v1179 = vpack.c.b16 %v1128, %v1127
      %v1180 = vpack.c.b16 %v1130, %v1129
      %v1181 = vpack.c.b16 %v1132, %v1131
      %v1182 = vpack.c.b16 %v1134, %v1133
      %v1183 = vpack.c.b16 %v1136, %v1135
      %v1184 = vpack.c.b16 %v1138, %v1137
      %v1185 = vpack.c.b16 %v1140, %v1139
      %v1186 = vpack.c.b16 %v1142, %v1141
      %v1187 = vpack.c.b16 %v1144, %v1143
      %v1188 = vpack.c.b16 %v1146, %v1145
      %v1189 = vpack.c.b16 %v1148, %v1147
      %v1190 = vpack.c.b16 %v1150, %v1149
      %v1191 = vpack.c.b16 %v1152, %v1151
      %v1192 = vpack.c.b16 %v1154, %v1153
      %v1193 = vpack.c.b16 %v1156, %v1155
      %v1194 = vpack.c.b16 %v1158, %v1157
      %v1195 = vpack.c.b16 %v1160, %v1159
      %v1196 = vpack.c.b16 %v1162, %v1161
      %v1197 = vpack.c.b16 %v1164, %v1163
      %v1198 = vpack.c.b16 %v1166, %v1165
      %1231 = vmatprep.subr.bf16.mxu0 0
      %1232 = vmatpush1.bf16.msra.mxu0 %v1174
      %1233 = vmatprep.subr.bf16.mxu0 0
      %1234 = vmatpush1.bf16.msra.mxu0 %v1173
      %1235 = vmatprep.subr.bf16.mxu0 0
      %1236 = vmatpush1.bf16.msra.mxu0 %v1172
      %1237 = vmatprep.subr.bf16.mxu0 0
      %1238 = vmatpush1.bf16.msra.mxu0 %v1171
      %1239 = vmatprep.subr.bf16.mxu0 0
      %1240 = vmatpush1.bf16.msra.mxu0 %v1170
      %1241 = vmatprep.subr.bf16.mxu0 0
      %1242 = vmatpush1.bf16.msra.mxu0 %v1169
      %1243 = vmatprep.subr.bf16.mxu0 0
      %1244 = vmatpush1.bf16.msra.mxu0 %v1168
      %1245 = vmatprep.subr.bf16.mxu0 0
      %1246 = vmatpush1.bf16.msra.mxu0 %v1167
      %1247 = vmatprep.subr.bf16.mxu0 0
      %1248 = vmatpush2.bf16.msra.mxu0 %v1182
      %1249 = vmatprep.subr.bf16.mxu0 0
      %1250 = vmatpush2.bf16.msra.mxu0 %v1181
      %1251 = vmatprep.subr.bf16.mxu0 0
      %1252 = vmatpush2.bf16.msra.mxu0 %v1180
      %1253 = vmatprep.subr.bf16.mxu0 0
      %1254 = vmatpush2.bf16.msra.mxu0 %v1179
      %1255 = vmatprep.subr.bf16.mxu0 0
      %1256 = vmatpush2.bf16.msra.mxu0 %v1178
      %1257 = vmatprep.subr.bf16.mxu0 0
      %1258 = vmatpush2.bf16.msra.mxu0 %v1177
      %1259 = vmatprep.subr.bf16.mxu0 0
      %1260 = vmatpush2.bf16.msra.mxu0 %v1176
      %1261 = vmatprep.subr.bf16.mxu0 0
      %1262 = vmatpush2.bf16.msra.mxu0 %v1175
      %1263 = vmatprep.mubr.bf16.mxu0 %v784
      %1264 = vmatmul.mubr.bf16.gmra.mxu0 %v783
      %v1265 = vpop.f32.mrf.mxu0
      %v1266 = vadd.f32 0.0, %v1265
      %v1267 = vpop.f32.mrf.mxu0
      %v1268 = vpop.f32.mrf.mxu0
      %v1269 = vadd.f32 0.0, %v1268
      %v1270 = vpop.f32.mrf.mxu0
      %1271 = vmatprep.mubr.bf16.mxu0 %v788
      %1272 = vmatmul.mubr.bf16.gmra.mxu0 %v787
      %v1273 = vpop.f32.mrf.mxu0
      %v1274 = vadd.f32 0.0, %v1273
      %v1275 = vpop.f32.mrf.mxu0
      %v1276 = vpop.f32.mrf.mxu0
      %v1277 = vadd.f32 0.0, %v1276
      %v1278 = vpop.f32.mrf.mxu0
      %1279 = vmatprep.mubr.bf16.mxu0 %v792
      %1280 = vmatmul.mubr.bf16.gmra.mxu0 %v791
      %v1281 = vpop.f32.mrf.mxu0
      %v1282 = vadd.f32 0.0, %v1281
      %v1283 = vpop.f32.mrf.mxu0
      %v1284 = vpop.f32.mrf.mxu0
      %v1285 = vadd.f32 0.0, %v1284
      %v1286 = vpop.f32.mrf.mxu0
      %1287 = vmatprep.mubr.bf16.mxu0 %v796
      %1288 = vmatmul.mubr.bf16.gmra.mxu0 %v795
      %v1289 = vpop.f32.mrf.mxu0
      %v1290 = vadd.f32 0.0, %v1289
      %v1291 = vpop.f32.mrf.mxu0
      %v1292 = vpop.f32.mrf.mxu0
      %v1293 = vadd.f32 0.0, %v1292
      %v1294 = vpop.f32.mrf.mxu0
      %1295 = vmatprep.mubr.bf16.mxu0 %v800
      %1296 = vmatmul.mubr.bf16.gmra.mxu0 %v799
      %v1297 = vpop.f32.mrf.mxu0
      %v1298 = vadd.f32 0.0, %v1297
      %v1299 = vpop.f32.mrf.mxu0
      %v1300 = vpop.f32.mrf.mxu0
      %v1301 = vadd.f32 0.0, %v1300
      %v1302 = vpop.f32.mrf.mxu0
      %1303 = vmatprep.mubr.bf16.mxu0 %v804
      %1304 = vmatmul.mubr.bf16.gmra.mxu0 %v803
      %v1305 = vpop.f32.mrf.mxu0
      %v1306 = vadd.f32 0.0, %v1305
      %v1307 = vpop.f32.mrf.mxu0
      %v1308 = vpop.f32.mrf.mxu0
      %v1309 = vadd.f32 0.0, %v1308
      %v1310 = vpop.f32.mrf.mxu0
      %1311 = vmatprep.mubr.bf16.mxu0 %v808
      %1312 = vmatmul.mubr.bf16.gmra.mxu0 %v807
      %v1313 = vpop.f32.mrf.mxu0
      %v1314 = vadd.f32 0.0, %v1313
      %v1315 = vpop.f32.mrf.mxu0
      %v1316 = vpop.f32.mrf.mxu0
      %v1317 = vadd.f32 0.0, %v1316
      %v1318 = vpop.f32.mrf.mxu0
      %1319 = vmatprep.mubr.bf16.mxu0 %v812
      %1320 = vmatmul.mubr.bf16.gmra.mxu0 %v811
      %v1321 = vpop.f32.mrf.mxu0
      %v1322 = vadd.f32 0.0, %v1321
      %v1323 = vpop.f32.mrf.mxu0
      %v1324 = vpop.f32.mrf.mxu0
      %v1325 = vadd.f32 0.0, %v1324
      %v1326 = vpop.f32.mrf.mxu0
      %1327 = vmatprep.mubr.bf16.mxu0 %v816
      %1328 = vmatmul.mubr.bf16.gmra.mxu0 %v815
      %v1329 = vpop.f32.mrf.mxu0
      %v1330 = vadd.f32 0.0, %v1329
      %v1331 = vpop.f32.mrf.mxu0
      %v1332 = vpop.f32.mrf.mxu0
      %v1333 = vadd.f32 0.0, %v1332
      %v1334 = vpop.f32.mrf.mxu0
      %1335 = vmatprep.mubr.bf16.mxu0 %v820
      %1336 = vmatmul.mubr.bf16.gmra.mxu0 %v819
      %v1337 = vpop.f32.mrf.mxu0
      %v1338 = vadd.f32 0.0, %v1337
      %v1339 = vpop.f32.mrf.mxu0
      %v1340 = vpop.f32.mrf.mxu0
      %v1341 = vadd.f32 0.0, %v1340
      %v1342 = vpop.f32.mrf.mxu0
      %1343 = vmatprep.mubr.bf16.mxu0 %v824
      %1344 = vmatmul.mubr.bf16.gmra.mxu0 %v823
      %v1345 = vpop.f32.mrf.mxu0
      %v1346 = vadd.f32 0.0, %v1345
      %v1347 = vpop.f32.mrf.mxu0
      %v1348 = vpop.f32.mrf.mxu0
      %v1349 = vadd.f32 0.0, %v1348
      %v1350 = vpop.f32.mrf.mxu0
      %1351 = vmatprep.mubr.bf16.mxu0 %v828
      %1352 = vmatmul.mubr.bf16.gmra.mxu0 %v827
      %v1353 = vpop.f32.mrf.mxu0
      %v1354 = vadd.f32 0.0, %v1353
      %v1355 = vpop.f32.mrf.mxu0
      %v1356 = vpop.f32.mrf.mxu0
      %v1357 = vadd.f32 0.0, %v1356
      %v1358 = vpop.f32.mrf.mxu0
      %1359 = vmatprep.mubr.bf16.mxu0 %v832
      %1360 = vmatmul.mubr.bf16.gmra.mxu0 %v831
      %v1361 = vpop.f32.mrf.mxu0
      %v1362 = vadd.f32 0.0, %v1361
      %v1363 = vpop.f32.mrf.mxu0
      %v1364 = vpop.f32.mrf.mxu0
      %v1365 = vadd.f32 0.0, %v1364
      %v1366 = vpop.f32.mrf.mxu0
      %1367 = vmatprep.mubr.bf16.mxu0 %v836
      %1368 = vmatmul.mubr.bf16.gmra.mxu0 %v835
      %v1369 = vpop.f32.mrf.mxu0
      %v1370 = vadd.f32 0.0, %v1369
      %v1371 = vpop.f32.mrf.mxu0
      %v1372 = vpop.f32.mrf.mxu0
      %v1373 = vadd.f32 0.0, %v1372
      %v1374 = vpop.f32.mrf.mxu0
      %1375 = vmatprep.mubr.bf16.mxu0 %v840
      %1376 = vmatmul.mubr.bf16.gmra.mxu0 %v839
      %v1377 = vpop.f32.mrf.mxu0
      %v1378 = vadd.f32 0.0, %v1377
      %v1379 = vpop.f32.mrf.mxu0
      %v1380 = vpop.f32.mrf.mxu0
      %v1381 = vadd.f32 0.0, %v1380
      %v1382 = vpop.f32.mrf.mxu0
      %1383 = vmatprep.mubr.bf16.mxu0 %v844
      %1384 = vmatmul.mubr.bf16.gmra.mxu0 %v843
      %v1385 = vpop.f32.mrf.mxu0
      %v1386 = vadd.f32 0.0, %v1385
      %v1387 = vpop.f32.mrf.mxu0
      %v1388 = vpop.f32.mrf.mxu0
      %v1389 = vadd.f32 0.0, %v1388
      %v1390 = vpop.f32.mrf.mxu0
      %1391 = vmatprep.mubr.bf16.mxu0 %v848
      %1392 = vmatmul.mubr.bf16.gmra.mxu0 %v847
      %v1393 = vpop.f32.mrf.mxu0
      %v1394 = vadd.f32 0.0, %v1393
      %v1395 = vpop.f32.mrf.mxu0
      %v1396 = vpop.f32.mrf.mxu0
      %v1397 = vadd.f32 0.0, %v1396
      %v1398 = vpop.f32.mrf.mxu0
      %1399 = vmatprep.mubr.bf16.mxu0 %v852
      %1400 = vmatmul.mubr.bf16.gmra.mxu0 %v851
      %v1401 = vpop.f32.mrf.mxu0
      %v1402 = vadd.f32 0.0, %v1401
      %v1403 = vpop.f32.mrf.mxu0
      %v1404 = vpop.f32.mrf.mxu0
      %v1405 = vadd.f32 0.0, %v1404
      %v1406 = vpop.f32.mrf.mxu0
      %1407 = vmatprep.mubr.bf16.mxu0 %v856
      %1408 = vmatmul.mubr.bf16.gmra.mxu0 %v855
      %v1409 = vpop.f32.mrf.mxu0
      %v1410 = vadd.f32 0.0, %v1409
      %v1411 = vpop.f32.mrf.mxu0
      %v1412 = vpop.f32.mrf.mxu0
      %v1413 = vadd.f32 0.0, %v1412
      %v1414 = vpop.f32.mrf.mxu0
      %1415 = vmatprep.mubr.bf16.mxu0 %v860
      %1416 = vmatmul.mubr.bf16.gmra.mxu0 %v859
      %v1417 = vpop.f32.mrf.mxu0
      %v1418 = vadd.f32 0.0, %v1417
      %v1419 = vpop.f32.mrf.mxu0
      %v1420 = vpop.f32.mrf.mxu0
      %v1421 = vadd.f32 0.0, %v1420
      %v1422 = vpop.f32.mrf.mxu0
      %1423 = vmatprep.mubr.bf16.mxu0 %v864
      %1424 = vmatmul.mubr.bf16.gmra.mxu0 %v863
      %v1425 = vpop.f32.mrf.mxu0
      %v1426 = vadd.f32 0.0, %v1425
      %v1427 = vpop.f32.mrf.mxu0
      %v1428 = vpop.f32.mrf.mxu0
      %v1429 = vadd.f32 0.0, %v1428
      %v1430 = vpop.f32.mrf.mxu0
      %1431 = vmatprep.mubr.bf16.mxu0 %v868
      %1432 = vmatmul.mubr.bf16.gmra.mxu0 %v867
      %v1433 = vpop.f32.mrf.mxu0
      %v1434 = vadd.f32 0.0, %v1433
      %v1435 = vpop.f32.mrf.mxu0
      %v1436 = vpop.f32.mrf.mxu0
      %v1437 = vadd.f32 0.0, %v1436
      %v1438 = vpop.f32.mrf.mxu0
      %1439 = vmatprep.mubr.bf16.mxu0 %v872
      %1440 = vmatmul.mubr.bf16.gmra.mxu0 %v871
      %v1441 = vpop.f32.mrf.mxu0
      %v1442 = vadd.f32 0.0, %v1441
      %v1443 = vpop.f32.mrf.mxu0
      %v1444 = vpop.f32.mrf.mxu0
      %v1445 = vadd.f32 0.0, %v1444
      %v1446 = vpop.f32.mrf.mxu0
      %1447 = vmatprep.mubr.bf16.mxu0 %v876
      %1448 = vmatmul.mubr.bf16.gmra.mxu0 %v875
      %v1449 = vpop.f32.mrf.mxu0
      %v1450 = vadd.f32 0.0, %v1449
      %v1451 = vpop.f32.mrf.mxu0
      %v1452 = vpop.f32.mrf.mxu0
      %v1453 = vadd.f32 0.0, %v1452
      %v1454 = vpop.f32.mrf.mxu0
      %1455 = vmatprep.mubr.bf16.mxu0 %v880
      %1456 = vmatmul.mubr.bf16.gmra.mxu0 %v879
      %v1457 = vpop.f32.mrf.mxu0
      %v1458 = vadd.f32 0.0, %v1457
      %v1459 = vpop.f32.mrf.mxu0
      %v1460 = vpop.f32.mrf.mxu0
      %v1461 = vadd.f32 0.0, %v1460
      %v1462 = vpop.f32.mrf.mxu0
      %1463 = vmatprep.mubr.bf16.mxu0 %v884
      %1464 = vmatmul.mubr.bf16.gmra.mxu0 %v883
      %v1465 = vpop.f32.mrf.mxu0
      %v1466 = vadd.f32 0.0, %v1465
      %v1467 = vpop.f32.mrf.mxu0
      %v1468 = vpop.f32.mrf.mxu0
      %v1469 = vadd.f32 0.0, %v1468
      %v1470 = vpop.f32.mrf.mxu0
      %1471 = vmatprep.mubr.bf16.mxu0 %v888
      %1472 = vmatmul.mubr.bf16.gmra.mxu0 %v887
      %v1473 = vpop.f32.mrf.mxu0
      %v1474 = vadd.f32 0.0, %v1473
      %v1475 = vpop.f32.mrf.mxu0
      %v1476 = vpop.f32.mrf.mxu0
      %v1477 = vadd.f32 0.0, %v1476
      %v1478 = vpop.f32.mrf.mxu0
      %1479 = vmatprep.mubr.bf16.mxu0 %v892
      %1480 = vmatmul.mubr.bf16.gmra.mxu0 %v891
      %v1481 = vpop.f32.mrf.mxu0
      %v1482 = vadd.f32 0.0, %v1481
      %v1483 = vpop.f32.mrf.mxu0
      %v1484 = vpop.f32.mrf.mxu0
      %v1485 = vadd.f32 0.0, %v1484
      %v1486 = vpop.f32.mrf.mxu0
      %1487 = vmatprep.mubr.bf16.mxu0 %v896
      %1488 = vmatmul.mubr.bf16.gmra.mxu0 %v895
      %v1489 = vpop.f32.mrf.mxu0
      %v1490 = vadd.f32 0.0, %v1489
      %v1491 = vpop.f32.mrf.mxu0
      %v1492 = vpop.f32.mrf.mxu0
      %v1493 = vadd.f32 0.0, %v1492
      %v1494 = vpop.f32.mrf.mxu0
      %1495 = vmatprep.mubr.bf16.mxu0 %v900
      %1496 = vmatmul.mubr.bf16.gmra.mxu0 %v899
      %v1497 = vpop.f32.mrf.mxu0
      %v1498 = vadd.f32 0.0, %v1497
      %v1499 = vpop.f32.mrf.mxu0
      %v1500 = vpop.f32.mrf.mxu0
      %v1501 = vadd.f32 0.0, %v1500
      %v1502 = vpop.f32.mrf.mxu0
      %1503 = vmatprep.mubr.bf16.mxu0 %v904
      %1504 = vmatmul.mubr.bf16.gmra.mxu0 %v903
      %v1505 = vpop.f32.mrf.mxu0
      %v1506 = vadd.f32 0.0, %v1505
      %v1507 = vpop.f32.mrf.mxu0
      %v1508 = vpop.f32.mrf.mxu0
      %v1509 = vadd.f32 0.0, %v1508
      %v1510 = vpop.f32.mrf.mxu0
      %1511 = vmatprep.mubr.bf16.mxu0 %v908
      %1512 = vmatmul.mubr.bf16.gmra.mxu0 %v907
      %v1513 = vpop.f32.mrf.mxu0
      %v1514 = vadd.f32 0.0, %v1513
      %v1515 = vpop.f32.mrf.mxu0
      %v1516 = vpop.f32.mrf.mxu0
      %v1517 = vadd.f32 0.0, %v1516
      %v1518 = vpop.f32.mrf.mxu0
      %1519 = vdwg.mxu0
      %1520 = vmatprep.subr.bf16.mxu0 0
      %1521 = vmatpush1.bf16.msra.mxu0 %v1190
      %1522 = vmatprep.subr.bf16.mxu0 0
      %1523 = vmatpush1.bf16.msra.mxu0 %v1189
      %1524 = vmatprep.subr.bf16.mxu0 0
      %1525 = vmatpush1.bf16.msra.mxu0 %v1188
      %1526 = vmatprep.subr.bf16.mxu0 0
      %1527 = vmatpush1.bf16.msra.mxu0 %v1187
      %1528 = vmatprep.subr.bf16.mxu0 0
      %1529 = vmatpush1.bf16.msra.mxu0 %v1186
      %1530 = vmatprep.subr.bf16.mxu0 0
      %1531 = vmatpush1.bf16.msra.mxu0 %v1185
      %1532 = vmatprep.subr.bf16.mxu0 0
      %1533 = vmatpush1.bf16.msra.mxu0 %v1184
      %1534 = vmatprep.subr.bf16.mxu0 0
      %1535 = vmatpush1.bf16.msra.mxu0 %v1183
      %1536 = vmatprep.subr.bf16.mxu0 0
      %1537 = vmatpush2.bf16.msra.mxu0 %v1198
      %1538 = vmatprep.subr.bf16.mxu0 0
      %1539 = vmatpush2.bf16.msra.mxu0 %v1197
      %1540 = vmatprep.subr.bf16.mxu0 0
      %1541 = vmatpush2.bf16.msra.mxu0 %v1196
      %1542 = vmatprep.subr.bf16.mxu0 0
      %1543 = vmatpush2.bf16.msra.mxu0 %v1195
      %1544 = vmatprep.subr.bf16.mxu0 0
      %1545 = vmatpush2.bf16.msra.mxu0 %v1194
      %1546 = vmatprep.subr.bf16.mxu0 0
      %1547 = vmatpush2.bf16.msra.mxu0 %v1193
      %1548 = vmatprep.subr.bf16.mxu0 0
      %1549 = vmatpush2.bf16.msra.mxu0 %v1192
      %1550 = vmatprep.subr.bf16.mxu0 0
      %1551 = vmatpush2.bf16.msra.mxu0 %v1191
      %1552 = vmatprep.mubr.bf16.mxu0 %v786
      %1553 = vmatmul.mubr.bf16.gmra.mxu0 %v785
      %v1554 = vpop.f32.mrf.mxu0
      %v1555 = vadd.f32 %v1266, %v1554
      %v1556 = vpop.f32.mrf.mxu0
      %v1557 = vpop.f32.mrf.mxu0
      %v1558 = vadd.f32 %v1269, %v1557
      %v1559 = vpop.f32.mrf.mxu0
      %1560 = vmatprep.mubr.bf16.mxu0 %v790
      %1561 = vmatmul.mubr.bf16.gmra.mxu0 %v789
      %v1562 = vpop.f32.mrf.mxu0
      %v1563 = vadd.f32 %v1274, %v1562
      %v1564 = vpop.f32.mrf.mxu0
      %v1565 = vpop.f32.mrf.mxu0
      %v1566 = vadd.f32 %v1277, %v1565
      %v1567 = vpop.f32.mrf.mxu0
      %1568 = vmatprep.mubr.bf16.mxu0 %v794
      %1569 = vmatmul.mubr.bf16.gmra.mxu0 %v793
      %v1570 = vpop.f32.mrf.mxu0
      %v1571 = vadd.f32 %v1282, %v1570
      %v1572 = vpop.f32.mrf.mxu0
      %v1573 = vpop.f32.mrf.mxu0
      %v1574 = vadd.f32 %v1285, %v1573
      %v1575 = vpop.f32.mrf.mxu0
      %1576 = vmatprep.mubr.bf16.mxu0 %v798
      %1577 = vmatmul.mubr.bf16.gmra.mxu0 %v797
      %v1578 = vpop.f32.mrf.mxu0
      %v1579 = vadd.f32 %v1290, %v1578
      %v1580 = vpop.f32.mrf.mxu0
      %v1581 = vpop.f32.mrf.mxu0
      %v1582 = vadd.f32 %v1293, %v1581
      %v1583 = vpop.f32.mrf.mxu0
      %1584 = vmatprep.mubr.bf16.mxu0 %v802
      %1585 = vmatmul.mubr.bf16.gmra.mxu0 %v801
      %v1586 = vpop.f32.mrf.mxu0
      %v1587 = vadd.f32 %v1298, %v1586
      %v1588 = vpop.f32.mrf.mxu0
      %v1589 = vpop.f32.mrf.mxu0
      %v1590 = vadd.f32 %v1301, %v1589
      %v1591 = vpop.f32.mrf.mxu0
      %1592 = vmatprep.mubr.bf16.mxu0 %v806
      %1593 = vmatmul.mubr.bf16.gmra.mxu0 %v805
      %v1594 = vpop.f32.mrf.mxu0
      %v1595 = vadd.f32 %v1306, %v1594
      %v1596 = vpop.f32.mrf.mxu0
      %v1597 = vpop.f32.mrf.mxu0
      %v1598 = vadd.f32 %v1309, %v1597
      %v1599 = vpop.f32.mrf.mxu0
      %1600 = vmatprep.mubr.bf16.mxu0 %v810
      %1601 = vmatmul.mubr.bf16.gmra.mxu0 %v809
      %v1602 = vpop.f32.mrf.mxu0
      %v1603 = vadd.f32 %v1314, %v1602
      %v1604 = vpop.f32.mrf.mxu0
      %v1605 = vpop.f32.mrf.mxu0
      %v1606 = vadd.f32 %v1317, %v1605
      %v1607 = vpop.f32.mrf.mxu0
      %1608 = vmatprep.mubr.bf16.mxu0 %v814
      %1609 = vmatmul.mubr.bf16.gmra.mxu0 %v813
      %v1610 = vpop.f32.mrf.mxu0
      %v1611 = vadd.f32 %v1322, %v1610
      %v1612 = vpop.f32.mrf.mxu0
      %v1613 = vpop.f32.mrf.mxu0
      %v1614 = vadd.f32 %v1325, %v1613
      %v1615 = vpop.f32.mrf.mxu0
      %1616 = vmatprep.mubr.bf16.mxu0 %v818
      %1617 = vmatmul.mubr.bf16.gmra.mxu0 %v817
      %v1618 = vpop.f32.mrf.mxu0
      %v1619 = vadd.f32 %v1330, %v1618
      %v1620 = vpop.f32.mrf.mxu0
      %v1621 = vpop.f32.mrf.mxu0
      %v1622 = vadd.f32 %v1333, %v1621
      %v1623 = vpop.f32.mrf.mxu0
      %1624 = vmatprep.mubr.bf16.mxu0 %v822
      %1625 = vmatmul.mubr.bf16.gmra.mxu0 %v821
      %v1626 = vpop.f32.mrf.mxu0
      %v1627 = vadd.f32 %v1338, %v1626
      %v1628 = vpop.f32.mrf.mxu0
      %v1629 = vpop.f32.mrf.mxu0
      %v1630 = vadd.f32 %v1341, %v1629
      %v1631 = vpop.f32.mrf.mxu0
      %1632 = vmatprep.mubr.bf16.mxu0 %v826
      %1633 = vmatmul.mubr.bf16.gmra.mxu0 %v825
      %v1634 = vpop.f32.mrf.mxu0
      %v1635 = vadd.f32 %v1346, %v1634
      %v1636 = vpop.f32.mrf.mxu0
      %v1637 = vpop.f32.mrf.mxu0
      %v1638 = vadd.f32 %v1349, %v1637
      %v1639 = vpop.f32.mrf.mxu0
      %1640 = vmatprep.mubr.bf16.mxu0 %v830
      %1641 = vmatmul.mubr.bf16.gmra.mxu0 %v829
      %v1642 = vpop.f32.mrf.mxu0
      %v1643 = vadd.f32 %v1354, %v1642
      %v1644 = vpop.f32.mrf.mxu0
      %v1645 = vpop.f32.mrf.mxu0
      %v1646 = vadd.f32 %v1357, %v1645
      %v1647 = vpop.f32.mrf.mxu0
      %1648 = vmatprep.mubr.bf16.mxu0 %v834
      %1649 = vmatmul.mubr.bf16.gmra.mxu0 %v833
      %v1650 = vpop.f32.mrf.mxu0
      %v1651 = vadd.f32 %v1362, %v1650
      %v1652 = vpop.f32.mrf.mxu0
      %v1653 = vpop.f32.mrf.mxu0
      %v1654 = vadd.f32 %v1365, %v1653
      %v1655 = vpop.f32.mrf.mxu0
      %1656 = vmatprep.mubr.bf16.mxu0 %v838
      %1657 = vmatmul.mubr.bf16.gmra.mxu0 %v837
      %v1658 = vpop.f32.mrf.mxu0
      %v1659 = vadd.f32 %v1370, %v1658
      %v1660 = vpop.f32.mrf.mxu0
      %v1661 = vpop.f32.mrf.mxu0
      %v1662 = vadd.f32 %v1373, %v1661
      %v1663 = vpop.f32.mrf.mxu0
      %1664 = vmatprep.mubr.bf16.mxu0 %v842
      %1665 = vmatmul.mubr.bf16.gmra.mxu0 %v841
      %v1666 = vpop.f32.mrf.mxu0
      %v1667 = vadd.f32 %v1378, %v1666
      %v1668 = vpop.f32.mrf.mxu0
      %v1669 = vpop.f32.mrf.mxu0
      %v1670 = vadd.f32 %v1381, %v1669
      %v1671 = vpop.f32.mrf.mxu0
      %1672 = vmatprep.mubr.bf16.mxu0 %v846
      %1673 = vmatmul.mubr.bf16.gmra.mxu0 %v845
      %v1674 = vpop.f32.mrf.mxu0
      %v1675 = vadd.f32 %v1386, %v1674
      %v1676 = vpop.f32.mrf.mxu0
      %v1677 = vpop.f32.mrf.mxu0
      %v1678 = vadd.f32 %v1389, %v1677
      %v1679 = vpop.f32.mrf.mxu0
      %1680 = vmatprep.mubr.bf16.mxu0 %v850
      %1681 = vmatmul.mubr.bf16.gmra.mxu0 %v849
      %v1682 = vpop.f32.mrf.mxu0
      %v1683 = vadd.f32 %v1394, %v1682
      %v1684 = vpop.f32.mrf.mxu0
      %v1685 = vpop.f32.mrf.mxu0
      %v1686 = vadd.f32 %v1397, %v1685
      %v1687 = vpop.f32.mrf.mxu0
      %1688 = vmatprep.mubr.bf16.mxu0 %v854
      %1689 = vmatmul.mubr.bf16.gmra.mxu0 %v853
      %v1690 = vpop.f32.mrf.mxu0
      %v1691 = vadd.f32 %v1402, %v1690
      %v1692 = vpop.f32.mrf.mxu0
      %v1693 = vpop.f32.mrf.mxu0
      %v1694 = vadd.f32 %v1405, %v1693
      %v1695 = vpop.f32.mrf.mxu0
      %1696 = vmatprep.mubr.bf16.mxu0 %v858
      %1697 = vmatmul.mubr.bf16.gmra.mxu0 %v857
      %v1698 = vpop.f32.mrf.mxu0
      %v1699 = vadd.f32 %v1410, %v1698
      %v1700 = vpop.f32.mrf.mxu0
      %v1701 = vpop.f32.mrf.mxu0
      %v1702 = vadd.f32 %v1413, %v1701
      %v1703 = vpop.f32.mrf.mxu0
      %1704 = vmatprep.mubr.bf16.mxu0 %v862
      %1705 = vmatmul.mubr.bf16.gmra.mxu0 %v861
      %v1706 = vpop.f32.mrf.mxu0
      %v1707 = vadd.f32 %v1418, %v1706
      %v1708 = vpop.f32.mrf.mxu0
      %v1709 = vpop.f32.mrf.mxu0
      %v1710 = vadd.f32 %v1421, %v1709
      %v1711 = vpop.f32.mrf.mxu0
      %1712 = vmatprep.mubr.bf16.mxu0 %v866
      %1713 = vmatmul.mubr.bf16.gmra.mxu0 %v865
      %v1714 = vpop.f32.mrf.mxu0
      %v1715 = vadd.f32 %v1426, %v1714
      %v1716 = vpop.f32.mrf.mxu0
      %v1717 = vpop.f32.mrf.mxu0
      %v1718 = vadd.f32 %v1429, %v1717
      %v1719 = vpop.f32.mrf.mxu0
      %1720 = vmatprep.mubr.bf16.mxu0 %v870
      %1721 = vmatmul.mubr.bf16.gmra.mxu0 %v869
      %v1722 = vpop.f32.mrf.mxu0
      %v1723 = vadd.f32 %v1434, %v1722
      %v1724 = vpop.f32.mrf.mxu0
      %v1725 = vpop.f32.mrf.mxu0
      %v1726 = vadd.f32 %v1437, %v1725
      %v1727 = vpop.f32.mrf.mxu0
      %1728 = vmatprep.mubr.bf16.mxu0 %v874
      %1729 = vmatmul.mubr.bf16.gmra.mxu0 %v873
      %v1730 = vpop.f32.mrf.mxu0
      %v1731 = vadd.f32 %v1442, %v1730
      %v1732 = vpop.f32.mrf.mxu0
      %v1733 = vpop.f32.mrf.mxu0
      %v1734 = vadd.f32 %v1445, %v1733
      %v1735 = vpop.f32.mrf.mxu0
      %1736 = vmatprep.mubr.bf16.mxu0 %v878
      %1737 = vmatmul.mubr.bf16.gmra.mxu0 %v877
      %v1738 = vpop.f32.mrf.mxu0
      %v1739 = vadd.f32 %v1450, %v1738
      %v1740 = vpop.f32.mrf.mxu0
      %v1741 = vpop.f32.mrf.mxu0
      %v1742 = vadd.f32 %v1453, %v1741
      %v1743 = vpop.f32.mrf.mxu0
      %1744 = vmatprep.mubr.bf16.mxu0 %v882
      %1745 = vmatmul.mubr.bf16.gmra.mxu0 %v881
      %v1746 = vpop.f32.mrf.mxu0
      %v1747 = vadd.f32 %v1458, %v1746
      %v1748 = vpop.f32.mrf.mxu0
      %v1749 = vpop.f32.mrf.mxu0
      %v1750 = vadd.f32 %v1461, %v1749
      %v1751 = vpop.f32.mrf.mxu0
      %1752 = vmatprep.mubr.bf16.mxu0 %v886
      %1753 = vmatmul.mubr.bf16.gmra.mxu0 %v885
      %v1754 = vpop.f32.mrf.mxu0
      %v1755 = vadd.f32 %v1466, %v1754
      %v1756 = vpop.f32.mrf.mxu0
      %v1757 = vpop.f32.mrf.mxu0
      %v1758 = vadd.f32 %v1469, %v1757
      %v1759 = vpop.f32.mrf.mxu0
      %1760 = vmatprep.mubr.bf16.mxu0 %v890
      %1761 = vmatmul.mubr.bf16.gmra.mxu0 %v889
      %v1762 = vpop.f32.mrf.mxu0
      %v1763 = vadd.f32 %v1474, %v1762
      %v1764 = vpop.f32.mrf.mxu0
      %v1765 = vpop.f32.mrf.mxu0
      %v1766 = vadd.f32 %v1477, %v1765
      %v1767 = vpop.f32.mrf.mxu0
      %1768 = vmatprep.mubr.bf16.mxu0 %v894
      %1769 = vmatmul.mubr.bf16.gmra.mxu0 %v893
      %v1770 = vpop.f32.mrf.mxu0
      %v1771 = vadd.f32 %v1482, %v1770
      %v1772 = vpop.f32.mrf.mxu0
      %v1773 = vpop.f32.mrf.mxu0
      %v1774 = vadd.f32 %v1485, %v1773
      %v1775 = vpop.f32.mrf.mxu0
      %1776 = vmatprep.mubr.bf16.mxu0 %v898
      %1777 = vmatmul.mubr.bf16.gmra.mxu0 %v897
      %v1778 = vpop.f32.mrf.mxu0
      %v1779 = vadd.f32 %v1490, %v1778
      %v1780 = vpop.f32.mrf.mxu0
      %v1781 = vpop.f32.mrf.mxu0
      %v1782 = vadd.f32 %v1493, %v1781
      %v1783 = vpop.f32.mrf.mxu0
      %1784 = vmatprep.mubr.bf16.mxu0 %v902
      %1785 = vmatmul.mubr.bf16.gmra.mxu0 %v901
      %v1786 = vpop.f32.mrf.mxu0
      %v1787 = vadd.f32 %v1498, %v1786
      %v1788 = vpop.f32.mrf.mxu0
      %v1789 = vpop.f32.mrf.mxu0
      %v1790 = vadd.f32 %v1501, %v1789
      %v1791 = vpop.f32.mrf.mxu0
      %1792 = vmatprep.mubr.bf16.mxu0 %v906
      %1793 = vmatmul.mubr.bf16.gmra.mxu0 %v905
      %v1794 = vpop.f32.mrf.mxu0
      %v1795 = vadd.f32 %v1506, %v1794
      %v1796 = vpop.f32.mrf.mxu0
      %v1797 = vpop.f32.mrf.mxu0
      %v1798 = vadd.f32 %v1509, %v1797
      %v1799 = vpop.f32.mrf.mxu0
      %1800 = vmatprep.mubr.bf16.mxu0 %v910
      %1801 = vmatmul.mubr.bf16.gmra.mxu0 %v909
      %v1802 = vpop.f32.mrf.mxu0
      %v1803 = vadd.f32 %v1514, %v1802
      %v1804 = vpop.f32.mrf.mxu0
      %v1805 = vpop.f32.mrf.mxu0
      %v1806 = vadd.f32 %v1517, %v1805
      %v1807 = vpop.f32.mrf.mxu0
      %1808 = vdwg.mxu0
      %v1809 = vtanh.pop %v1555
      %v1810 = vtanh.pop %v1558
      %v1811 = vtanh.pop %v1563
      %v1812 = vtanh.pop %v1566
      %v1813 = vtanh.pop %v1571
      %v1814 = vtanh.pop %v1574
      %v1815 = vtanh.pop %v1579
      %v1816 = vtanh.pop %v1582
      %v1817 = vtanh.pop %v1587
      %v1818 = vtanh.pop %v1590
      %v1819 = vtanh.pop %v1595
      %v1820 = vtanh.pop %v1598
      %v1821 = vtanh.pop %v1603
      %v1822 = vtanh.pop %v1606
      %v1823 = vtanh.pop %v1611
      %v1824 = vtanh.pop %v1614
      %v1825 = vtanh.pop %v1619
      %v1826 = vtanh.pop %v1622
      %v1827 = vtanh.pop %v1627
      %v1828 = vtanh.pop %v1630
      %v1829 = vtanh.pop %v1635
      %v1830 = vtanh.pop %v1638
      %v1831 = vtanh.pop %v1643
      %v1832 = vtanh.pop %v1646
      %v1833 = vtanh.pop %v1651
      %v1834 = vtanh.pop %v1654
      %v1835 = vtanh.pop %v1659
      %v1836 = vtanh.pop %v1662
      %v1837 = vtanh.pop %v1667
      %v1838 = vtanh.pop %v1670
      %v1839 = vtanh.pop %v1675
      %v1840 = vtanh.pop %v1678
      %v1841 = vtanh.pop %v1683
      %v1842 = vtanh.pop %v1686
      %v1843 = vtanh.pop %v1691
      %v1844 = vtanh.pop %v1694
      %v1845 = vtanh.pop %v1699
      %v1846 = vtanh.pop %v1702
      %v1847 = vtanh.pop %v1707
      %v1848 = vtanh.pop %v1710
      %v1849 = vtanh.pop %v1715
      %v1850 = vtanh.pop %v1718
      %v1851 = vtanh.pop %v1723
      %v1852 = vtanh.pop %v1726
      %v1853 = vtanh.pop %v1731
      %v1854 = vtanh.pop %v1734
      %v1855 = vtanh.pop %v1739
      %v1856 = vtanh.pop %v1742
      %v1857 = vtanh.pop %v1747
      %v1858 = vtanh.pop %v1750
      %v1859 = vtanh.pop %v1755
      %v1860 = vtanh.pop %v1758
      %v1861 = vtanh.pop %v1763
      %v1862 = vtanh.pop %v1766
      %v1863 = vtanh.pop %v1771
      %v1864 = vtanh.pop %v1774
      %v1865 = vtanh.pop %v1779
      %v1866 = vtanh.pop %v1782
      %v1867 = vtanh.pop %v1787
      %v1868 = vtanh.pop %v1790
      %v1869 = vtanh.pop %v1795
      %v1870 = vtanh.pop %v1798
      %v1871 = vtanh.pop %v1803
      %v1872 = vtanh.pop %v1806
      %1873 = vst [vmem:[%s204] sm:$0xff] %v1809
      %1874 = vst [vmem:[%s204 + $0x8] sm:$0xff] %v1810
      %1875 = vst [vmem:[%s204 + $0x10] sm:$0xff] %v1811
      %1876 = vst [vmem:[%s204 + $0x18] sm:$0xff] %v1812
      %1877 = vst [vmem:[%s204 + $0x20] sm:$0xff] %v1813
      %1878 = vst [vmem:[%s204 + $0x28] sm:$0xff] %v1814
      %1879 = vst [vmem:[%s204 + $0x30] sm:$0xff] %v1815
      %1880 = vst [vmem:[%s204 + $0x38] sm:$0xff] %v1816
      %1881 = vst [vmem:[%s204 + $0x40] sm:$0xff] %v1817
      %1882 = vst [vmem:[%s204 + $0x48] sm:$0xff] %v1818
      %1883 = vst [vmem:[%s204 + $0x50] sm:$0xff] %v1819
      %1884 = vst [vmem:[%s204 + $0x58] sm:$0xff] %v1820
      %1885 = vst [vmem:[%s204 + $0x60] sm:$0xff] %v1821
      %1886 = vst [vmem:[%s204 + $0x68] sm:$0xff] %v1822
      %1887 = vst [vmem:[%s204 + $0x70] sm:$0xff] %v1823
      %1888 = vst [vmem:[%s204 + $0x78] sm:$0xff] %v1824
      %1889 = vst [vmem:[%s204 + $0x80] sm:$0xff] %v1825
      %1890 = vst [vmem:[%s204 + $0x88] sm:$0xff] %v1826
      %1891 = vst [vmem:[%s204 + $0x90] sm:$0xff] %v1827
      %1892 = vst [vmem:[%s204 + $0x98] sm:$0xff] %v1828
      %1893 = vst [vmem:[%s204 + $0xa0] sm:$0xff] %v1829
      %1894 = vst [vmem:[%s204 + $0xa8] sm:$0xff] %v1830
      %1895 = vst [vmem:[%s204 + $0xb0] sm:$0xff] %v1831
      %1896 = vst [vmem:[%s204 + $0xb8] sm:$0xff] %v1832
      %1897 = vst [vmem:[%s204 + $0xc0] sm:$0xff] %v1833
      %1898 = vst [vmem:[%s204 + $0xc8] sm:$0xff] %v1834
      %1899 = vst [vmem:[%s204 + $0xd0] sm:$0xff] %v1835
      %1900 = vst [vmem:[%s204 + $0xd8] sm:$0xff] %v1836
      %1901 = vst [vmem:[%s204 + $0xe0] sm:$0xff] %v1837
      %1902 = vst [vmem:[%s204 + $0xe8] sm:$0xff] %v1838
      %1903 = vst [vmem:[%s204 + $0xf0] sm:$0xff] %v1839
      %1904 = vst [vmem:[%s204 + $0xf8] sm:$0xff] %v1840
      %1905 = vst [vmem:[%s204 + $0x100] sm:$0xff] %v1841
      %1906 = vst [vmem:[%s204 + $0x108] sm:$0xff] %v1842
      %1907 = vst [vmem:[%s204 + $0x110] sm:$0xff] %v1843
      %1908 = vst [vmem:[%s204 + $0x118] sm:$0xff] %v1844
      %1909 = vst [vmem:[%s204 + $0x120] sm:$0xff] %v1845
      %1910 = vst [vmem:[%s204 + $0x128] sm:$0xff] %v1846
      %1911 = vst [vmem:[%s204 + $0x130] sm:$0xff] %v1847
      %1912 = vst [vmem:[%s204 + $0x138] sm:$0xff] %v1848
      %1913 = vst [vmem:[%s204 + $0x140] sm:$0xff] %v1849
      %1914 = vst [vmem:[%s204 + $0x148] sm:$0xff] %v1850
      %1915 = vst [vmem:[%s204 + $0x150] sm:$0xff] %v1851
      %1916 = vst [vmem:[%s204 + $0x158] sm:$0xff] %v1852
      %1917 = vst [vmem:[%s204 + $0x160] sm:$0xff] %v1853
      %1918 = vst [vmem:[%s204 + $0x168] sm:$0xff] %v1854
      %1919 = vst [vmem:[%s204 + $0x170] sm:$0xff] %v1855
      %1920 = vst [vmem:[%s204 + $0x178] sm:$0xff] %v1856
      %1921 = vst [vmem:[%s204 + $0x180] sm:$0xff] %v1857
      %1922 = vst [vmem:[%s204 + $0x188] sm:$0xff] %v1858
      %1923 = vst [vmem:[%s204 + $0x190] sm:$0xff] %v1859
      %1924 = vst [vmem:[%s204 + $0x198] sm:$0xff] %v1860
      %1925 = vst [vmem:[%s204 + $0x1a0] sm:$0xff] %v1861
      %1926 = vst [vmem:[%s204 + $0x1a8] sm:$0xff] %v1862
      %1927 = vst [vmem:[%s204 + $0x1b0] sm:$0xff] %v1863
      %1928 = vst [vmem:[%s204 + $0x1b8] sm:$0xff] %v1864
      %1929 = vst [vmem:[%s204 + $0x1c0] sm:$0xff] %v1865
      %1930 = vst [vmem:[%s204 + $0x1c8] sm:$0xff] %v1866
      %1931 = vst [vmem:[%s204 + $0x1d0] sm:$0xff] %v1867
      %1932 = vst [vmem:[%s204 + $0x1d8] sm:$0xff] %v1868
      %1933 = vst [vmem:[%s204 + $0x1e0] sm:$0xff] %v1869
      %1934 = vst [vmem:[%s204 + $0x1e8] sm:$0xff] %v1870
      %1935 = vst [vmem:[%s204 + $0x1f0] sm:$0xff] %v1871
      %1936 = vst [vmem:[%s204 + $0x1f8] sm:$0xff] %v1872
      %s1937 = smul.u32 64, %s18
      %p1938 = scmp.lt.s32.totalorder %s17, 3
      %s1939 = scalar_select %p1938, %s17, 3
      %p1940 = scmp.lt.s32.totalorder %s1937, 63
      %s1941 = scalar_select %p1940, %s1937, 63
      %s1942 = smul.addr %s1939, 64
      %s1943 = sadd.s32 %s1941, %s1942
      %s1944 = smul.addr %s1943, 8
      %s1945 = scalar_lea.vmem %s2, %s1944
      // Predicated region
      $region29: #{generator_forward.13} parent=27 // pred_check
        %p1946 = pneg %p99
      $region30: #{generator_forward.13} parent=27 // pred_check_branch
        %1948 = sbr.rel (%p1946) target = $region32
      $region31: #{generator_forward.13} parent=27 // pred_region
        %s1949 = smul.u32 64, %s18
      $region32: #{generator_forward.13} parent=27 // pred_fallthru
        _
    $region28: #{generator_forward.13} parent=5 // pred_fallthru
      _
    %p1950 = scmp.le.s32.totalorder 2, %s8
    // Predicated region
    $region33: #{generator_forward.13} parent=5 // pred_check
      %p1951 = pneg %p1950
    $region34: #{generator_forward.13} parent=5 // pred_check_branch
      %1953 = sbr.rel (%p1951) target = $region36
    $region35: #{generator_forward.13} parent=5 // pred_region
      %s1954 = ssub.s32 %s8, 2
      // Predicated region
      $region37: #{generator_forward.13} parent=35 // pred_check
        %p1955 = pneg %p105
      $region38: #{generator_forward.13} parent=35 // pred_check_branch
        %1957 = sbr.rel (%p1955) target = $region40
      $region39: #{generator_forward.13} parent=35 // pred_region
        %s1958 = smul.u32 64, %s20
        %p1959 = scmp.lt.s32.totalorder %s19, 3
        %s1960 = scalar_select %p1959, %s19, 3
        %p1961 = scmp.lt.s32.totalorder %s1958, 63
        %s1962 = scalar_select %p1961, %s1958, 63
        %s1963 = smul.addr %s1960, 64
        %s1964 = sadd.s32 %s1962, %s1963
        %s1965 = smul.addr %s1964, 8
        %s1966 = scalar_lea.vmem %s2, %s1965
      $region40: #{generator_forward.13} parent=35 // pred_fallthru
        _
    $region36: #{generator_forward.13} parent=5 // pred_fallthru
      _
  $region6: #{generator_forward.13} parent=0 // loop_footer
    %s12 = sadd.s32 1, %s8
  $region7: #{generator_forward.13} parent=0 // loop_footer_branch
    %7 = sbr.rel target = $region3
  $region8: #{generator_forward.13} parent=0 // loop_exit
    _

</llo_original>
